<compile_context>
chip_gen: v5e
topology: v5e:2x2
jax: 0.10.0
libtpu: 0.0.40
codegen_flags: <defaults>
</compile_context>

<pallas_src>
import functools

import jax
import jax.numpy as jnp
from jax.experimental import pallas as pl
from jax.experimental.pallas import tpu as pltpu

# Original PyTorch layer sizes and their lane-aligned (128-multiple) padding.
LAYER_SIZES = [3072, 120, 800, 1250, 500, 120, 10]
PAD_SIZES = [3072, 128, 896, 1280, 512, 128, 128]
N_LAYERS = len(LAYER_SIZES) - 1

NEG_BIG = -1e30  # masks padded logits out of log_softmax


def _round_up(x, m):
    return (x + m - 1) // m * m


def mlp_kernel(x_ref, *refs):
    """refs = (w1, b1, ..., w6, b6, out_ref).

    x_ref:  (TILE_B, 3072) bf16
    w_i:    (in_pad, out_pad) bf16   (zero-padded)
    b_i:    (1, out_pad)   f32       (zero-padded; last layer padded with -1e30)
    out:    (TILE_B, 128)  f32       (padded logits' log-probs; garbage past col 10)
    """
    out_ref = refs[-1]
    params = refs[:-1]

    h = x_ref[...]  # bf16 activations feed the MXU directly
    for i in range(N_LAYERS):
        w = params[2 * i][...]
        b = params[2 * i + 1][...]
        acc = jnp.dot(h, w, preferred_element_type=jnp.float32) + b
        if i < N_LAYERS - 1:
            acc = jnp.maximum(acc, 0.0)          # ReLU (keeps padded cols == 0)
            h = acc.astype(jnp.bfloat16)         # bf16 into the next matmul
        else:
            h = acc                              # f32 logits; padded cols ~ -1e30

    # Numerically stable log_softmax over the lane dim; padded lanes have
    # logit ~ -1e30 so exp() contributes 0 to the normalizer.
    m = jnp.max(h, axis=-1, keepdims=True)
    shifted = h - m
    lse = jnp.log(jnp.sum(jnp.exp(shifted), axis=-1, keepdims=True))
    out_ref[...] = (shifted - lse).astype(out_ref.dtype)


def init_params(key):
    """Match nn.Linear default init: U(-1/sqrt(fan_in), 1/sqrt(fan_in))."""
    params = []
    for i in range(N_LAYERS):
        fan_in, fan_out = LAYER_SIZES[i], LAYER_SIZES[i + 1]
        key, kw, kb = jax.random.split(key, 3)
        bound = 1.0 / jnp.sqrt(float(fan_in))
        w = jax.random.uniform(kw, (fan_in, fan_out), jnp.float32, -bound, bound)
        b = jax.random.uniform(kb, (fan_out,), jnp.float32, -bound, bound)
        params.append((w, b))
    return params


def _pack_params(params):
    """Pad weights/biases to lane-aligned shapes; weights -> bf16, biases f32."""
    flat = []
    for i, (w, b) in enumerate(params):
        in_p, out_p = PAD_SIZES[i], PAD_SIZES[i + 1]
        wp = jnp.zeros((in_p, out_p), jnp.bfloat16)
        wp = wp.at[: w.shape[0], : w.shape[1]].set(w.astype(jnp.bfloat16))
        if i == N_LAYERS - 1:
            bp = jnp.full((1, out_p), NEG_BIG, jnp.float32)
        else:
            bp = jnp.zeros((1, out_p), jnp.float32)
        bp = bp.at[0, : b.shape[0]].set(b)
        flat.append(wp)
        flat.append(bp)
    return flat


@functools.partial(jax.jit, static_argnames=())
def mlp_forward(x, flat_params):
    B = x.shape[0]
    x2d = x.reshape(B, -1).astype(jnp.bfloat16)  # same row-major flatten as torch .view

    # Batch tiling: 128-row MXU-friendly tiles for real batches, a single
    # sublane-aligned tile for tiny batches.
    TILE_B = 128 if B >= 128 else _round_up(B, 8)
    B_pad = _round_up(B, TILE_B)
    if B_pad != B:
        x2d = jnp.pad(x2d, ((0, B_pad - B), (0, 0)))
    grid = (B_pad // TILE_B,)

    in_specs = [pl.BlockSpec((TILE_B, PAD_SIZES[0]), lambda i: (i, 0))]
    for li in range(N_LAYERS):
        in_p, out_p = PAD_SIZES[li], PAD_SIZES[li + 1]
        # Constant block index -> weights/biases stay VMEM-resident across tiles.
        in_specs.append(pl.BlockSpec((in_p, out_p), lambda i: (0, 0)))
        in_specs.append(pl.BlockSpec((1, out_p), lambda i: (0, 0)))
    out_specs = pl.BlockSpec((TILE_B, PAD_SIZES[-1]), lambda i: (i, 0))

    # Advisory cost estimate so XLA can overlap this call with neighbors.
    flops = 2 * B_pad * sum(PAD_SIZES[i] * PAD_SIZES[i + 1] for i in range(N_LAYERS))
    weight_bytes = sum(
        PAD_SIZES[i] * PAD_SIZES[i + 1] * 2 + PAD_SIZES[i + 1] * 4
        for i in range(N_LAYERS)
    )
    bytes_accessed = weight_bytes + B_pad * PAD_SIZES[0] * 2 + B_pad * PAD_SIZES[-1] * 4
    cost = pl.CostEstimate(
        flops=flops,
        transcendentals=B_pad * (PAD_SIZES[-1] + 1),
        bytes_accessed=bytes_accessed,
    )

    out_pad = pl.pallas_call(
        mlp_kernel,
        out_shape=jax.ShapeDtypeStruct((B_pad, PAD_SIZES[-1]), jnp.float32),
        grid=grid,
        in_specs=in_specs,
        out_specs=out_specs,
        compiler_params=pltpu.CompilerParams(dimension_semantics=("parallel",)),
        cost_estimate=cost,
    )(x2d, *flat_params)

    # Slice away batch padding and the padded logit lanes.
    return out_pad[:B, : LAYER_SIZES[-1]]


if __name__ == "__main__":
    key = jax.random.PRNGKey(0)
    key, kx = jax.random.split(key)

    # Small SVHN-like batch: (B, C, H, W) = (2, 3, 32, 32) -> 3072 features
    x = jax.random.normal(kx, (2, 3, 32, 32), dtype=jnp.float32)

    params = init_params(key)
    flat_params = _pack_params(params)

    out = mlp_forward(x, flat_params)
    out = jax.block_until_ready(out)

    assert out.shape == (2, 10), out.shape
    # log_softmax rows should exponentiate-sum to ~1
    row_sums = jnp.sum(jnp.exp(out), axis=1)
    assert jnp.allclose(row_sums, jnp.ones_like(row_sums), atol=1e-3), row_sums

    print("KERNEL_OK")
</pallas_src>

<mosaic_0001>
module attributes {stable_mosaic.version = 11 : i64} {
  func.func @mlp_kernel(%arg0: i32, %arg1: memref<8x3072xbf16, #tpu.memory_space<vmem>>, %arg2: memref<3072x128xbf16, #tpu.memory_space<vmem>>, %arg3: memref<1x128xf32, #tpu.memory_space<vmem>>, %arg4: memref<128x896xbf16, #tpu.memory_space<vmem>>, %arg5: memref<1x896xf32, #tpu.memory_space<vmem>>, %arg6: memref<896x1280xbf16, #tpu.memory_space<vmem>>, %arg7: memref<1x1280xf32, #tpu.memory_space<vmem>>, %arg8: memref<1280x512xbf16, #tpu.memory_space<vmem>>, %arg9: memref<1x512xf32, #tpu.memory_space<vmem>>, %arg10: memref<512x128xbf16, #tpu.memory_space<vmem>>, %arg11: memref<1x128xf32, #tpu.memory_space<vmem>>, %arg12: memref<128x128xbf16, #tpu.memory_space<vmem>>, %arg13: memref<1x128xf32, #tpu.memory_space<vmem>>, %arg14: memref<8x128xf32, #tpu.memory_space<vmem>>) attributes {dimension_semantics = [#tpu.dimension_semantics<parallel>], iteration_bounds = array<i64: 1>, scalar_prefetch = 0 : i64, scratch_operands = 0 : i64, tpu.core_type = #tpu.core_type<tc>, window_params = [{transform_indices = @transform_0, window_bounds = array<i64: 8, 3072>}, {pipeline_mode = #tpu.pipeline_mode<synchronous>, transform_indices = @transform_1, window_bounds = array<i64: 3072, 128>}, {pipeline_mode = #tpu.pipeline_mode<synchronous>, transform_indices = @transform_2, window_bounds = array<i64: 1, 128>}, {pipeline_mode = #tpu.pipeline_mode<synchronous>, transform_indices = @transform_3, window_bounds = array<i64: 128, 896>}, {pipeline_mode = #tpu.pipeline_mode<synchronous>, transform_indices = @transform_4, window_bounds = array<i64: 1, 896>}, {pipeline_mode = #tpu.pipeline_mode<synchronous>, transform_indices = @transform_5, window_bounds = array<i64: 896, 1280>}, {pipeline_mode = #tpu.pipeline_mode<synchronous>, transform_indices = @transform_6, window_bounds = array<i64: 1, 1280>}, {pipeline_mode = #tpu.pipeline_mode<synchronous>, transform_indices = @transform_7, window_bounds = array<i64: 1280, 512>}, {pipeline_mode = #tpu.pipeline_mode<synchronous>, transform_indices = @transform_8, window_bounds = array<i64: 1, 512>}, {pipeline_mode = #tpu.pipeline_mode<synchronous>, transform_indices = @transform_9, window_bounds = array<i64: 512, 128>}, {pipeline_mode = #tpu.pipeline_mode<synchronous>, transform_indices = @transform_10, window_bounds = array<i64: 1, 128>}, {pipeline_mode = #tpu.pipeline_mode<synchronous>, transform_indices = @transform_11, window_bounds = array<i64: 128, 128>}, {pipeline_mode = #tpu.pipeline_mode<synchronous>, transform_indices = @transform_12, window_bounds = array<i64: 1, 128>}, {transform_indices = @transform_13, window_bounds = array<i64: 8, 128>}]} {
    %c0 = arith.constant 0 : index
    %c0_0 = arith.constant 0 : index
    %0 = vector.load %arg1[%c0, %c0_0] : memref<8x3072xbf16, #tpu.memory_space<vmem>>, vector<8x3072xbf16>
    %c0_1 = arith.constant 0 : index
    %c0_2 = arith.constant 0 : index
    %1 = vector.load %arg2[%c0_1, %c0_2] : memref<3072x128xbf16, #tpu.memory_space<vmem>>, vector<3072x128xbf16>
    %c0_3 = arith.constant 0 : index
    %c0_4 = arith.constant 0 : index
    %2 = vector.load %arg3[%c0_3, %c0_4] : memref<1x128xf32, #tpu.memory_space<vmem>>, vector<1x128xf32>
    %cst = arith.constant dense<0.000000e+00> : vector<8x128xf32>
    %3 = tpu.matmul %0, %1, %cst {dimension_numbers = #tpu.dot_dimension_numbers<[1], [0], [0], [1], [0, 0, 1, 1], [], []>} : vector<8x3072xbf16>, vector<3072x128xbf16>, vector<8x128xf32> -> vector<8x128xf32>
    %4 = vector.broadcast %2 : vector<1x128xf32> to vector<8x128xf32>
    %5 = arith.addf %3, %4 : vector<8x128xf32>
    %cst_5 = arith.constant 0.000000e+00 : f32
    %6 = vector.broadcast %cst_5 : f32 to vector<8x128xf32>
    %7 = arith.maximumf %5, %6 : vector<8x128xf32>
    %8 = arith.truncf %7 : vector<8x128xf32> to vector<8x128xbf16>
    %c0_6 = arith.constant 0 : index
    %c0_7 = arith.constant 0 : index
    %9 = vector.load %arg4[%c0_6, %c0_7] : memref<128x896xbf16, #tpu.memory_space<vmem>>, vector<128x896xbf16>
    %c0_8 = arith.constant 0 : index
    %c0_9 = arith.constant 0 : index
    %10 = vector.load %arg5[%c0_8, %c0_9] : memref<1x896xf32, #tpu.memory_space<vmem>>, vector<1x896xf32>
    %cst_10 = arith.constant dense<0.000000e+00> : vector<8x896xf32>
    %11 = tpu.matmul %8, %9, %cst_10 {dimension_numbers = #tpu.dot_dimension_numbers<[1], [0], [0], [1], [0, 0, 1, 1], [], []>} : vector<8x128xbf16>, vector<128x896xbf16>, vector<8x896xf32> -> vector<8x896xf32>
    %12 = vector.broadcast %10 : vector<1x896xf32> to vector<8x896xf32>
    %13 = arith.addf %11, %12 : vector<8x896xf32>
    %cst_11 = arith.constant 0.000000e+00 : f32
    %14 = vector.broadcast %cst_11 : f32 to vector<8x896xf32>
    %15 = arith.maximumf %13, %14 : vector<8x896xf32>
    %16 = arith.truncf %15 : vector<8x896xf32> to vector<8x896xbf16>
    %c0_12 = arith.constant 0 : index
    %c0_13 = arith.constant 0 : index
    %17 = vector.load %arg6[%c0_12, %c0_13] : memref<896x1280xbf16, #tpu.memory_space<vmem>>, vector<896x1280xbf16>
    %c0_14 = arith.constant 0 : index
    %c0_15 = arith.constant 0 : index
    %18 = vector.load %arg7[%c0_14, %c0_15] : memref<1x1280xf32, #tpu.memory_space<vmem>>, vector<1x1280xf32>
    %cst_16 = arith.constant dense<0.000000e+00> : vector<8x1280xf32>
    %19 = tpu.matmul %16, %17, %cst_16 {dimension_numbers = #tpu.dot_dimension_numbers<[1], [0], [0], [1], [0, 0, 1, 1], [], []>} : vector<8x896xbf16>, vector<896x1280xbf16>, vector<8x1280xf32> -> vector<8x1280xf32>
    %20 = vector.broadcast %18 : vector<1x1280xf32> to vector<8x1280xf32>
    %21 = arith.addf %19, %20 : vector<8x1280xf32>
    %cst_17 = arith.constant 0.000000e+00 : f32
    %22 = vector.broadcast %cst_17 : f32 to vector<8x1280xf32>
    %23 = arith.maximumf %21, %22 : vector<8x1280xf32>
    %24 = arith.truncf %23 : vector<8x1280xf32> to vector<8x1280xbf16>
    %c0_18 = arith.constant 0 : index
    %c0_19 = arith.constant 0 : index
    %25 = vector.load %arg8[%c0_18, %c0_19] : memref<1280x512xbf16, #tpu.memory_space<vmem>>, vector<1280x512xbf16>
    %c0_20 = arith.constant 0 : index
    %c0_21 = arith.constant 0 : index
    %26 = vector.load %arg9[%c0_20, %c0_21] : memref<1x512xf32, #tpu.memory_space<vmem>>, vector<1x512xf32>
    %cst_22 = arith.constant dense<0.000000e+00> : vector<8x512xf32>
    %27 = tpu.matmul %24, %25, %cst_22 {dimension_numbers = #tpu.dot_dimension_numbers<[1], [0], [0], [1], [0, 0, 1, 1], [], []>} : vector<8x1280xbf16>, vector<1280x512xbf16>, vector<8x512xf32> -> vector<8x512xf32>
    %28 = vector.broadcast %26 : vector<1x512xf32> to vector<8x512xf32>
    %29 = arith.addf %27, %28 : vector<8x512xf32>
    %cst_23 = arith.constant 0.000000e+00 : f32
    %30 = vector.broadcast %cst_23 : f32 to vector<8x512xf32>
    %31 = arith.maximumf %29, %30 : vector<8x512xf32>
    %32 = arith.truncf %31 : vector<8x512xf32> to vector<8x512xbf16>
    %c0_24 = arith.constant 0 : index
    %c0_25 = arith.constant 0 : index
    %33 = vector.load %arg10[%c0_24, %c0_25] : memref<512x128xbf16, #tpu.memory_space<vmem>>, vector<512x128xbf16>
    %c0_26 = arith.constant 0 : index
    %c0_27 = arith.constant 0 : index
    %34 = vector.load %arg11[%c0_26, %c0_27] : memref<1x128xf32, #tpu.memory_space<vmem>>, vector<1x128xf32>
    %cst_28 = arith.constant dense<0.000000e+00> : vector<8x128xf32>
    %35 = tpu.matmul %32, %33, %cst_28 {dimension_numbers = #tpu.dot_dimension_numbers<[1], [0], [0], [1], [0, 0, 1, 1], [], []>} : vector<8x512xbf16>, vector<512x128xbf16>, vector<8x128xf32> -> vector<8x128xf32>
    %36 = vector.broadcast %34 : vector<1x128xf32> to vector<8x128xf32>
    %37 = arith.addf %35, %36 : vector<8x128xf32>
    %cst_29 = arith.constant 0.000000e+00 : f32
    %38 = vector.broadcast %cst_29 : f32 to vector<8x128xf32>
    %39 = arith.maximumf %37, %38 : vector<8x128xf32>
    %40 = arith.truncf %39 : vector<8x128xf32> to vector<8x128xbf16>
    %c0_30 = arith.constant 0 : index
    %c0_31 = arith.constant 0 : index
    %41 = vector.load %arg12[%c0_30, %c0_31] : memref<128x128xbf16, #tpu.memory_space<vmem>>, vector<128x128xbf16>
    %c0_32 = arith.constant 0 : index
    %c0_33 = arith.constant 0 : index
    %42 = vector.load %arg13[%c0_32, %c0_33] : memref<1x128xf32, #tpu.memory_space<vmem>>, vector<1x128xf32>
    %cst_34 = arith.constant dense<0.000000e+00> : vector<8x128xf32>
    %43 = tpu.matmul %40, %41, %cst_34 {dimension_numbers = #tpu.dot_dimension_numbers<[1], [0], [0], [1], [0, 0, 1, 1], [], []>} : vector<8x128xbf16>, vector<128x128xbf16>, vector<8x128xf32> -> vector<8x128xf32>
    %44 = vector.broadcast %42 : vector<1x128xf32> to vector<8x128xf32>
    %45 = arith.addf %43, %44 : vector<8x128xf32>
    %cst_35 = arith.constant dense<0xFF800000> : vector<8xf32>
    %46 = vector.multi_reduction <maximumf>, %45, %cst_35 [1] : vector<8x128xf32> to vector<8xf32>
    %47 = vector.shape_cast %46 : vector<8xf32> to vector<8x1xf32>
    %48 = vector.broadcast %47 : vector<8x1xf32> to vector<8x128xf32>
    %49 = arith.subf %45, %48 : vector<8x128xf32>
    %50 = math.exp %49 : vector<8x128xf32>
    %cst_36 = arith.constant dense<0.000000e+00> : vector<8xf32>
    %51 = vector.multi_reduction <add>, %50, %cst_36 [1] : vector<8x128xf32> to vector<8xf32>
    %52 = vector.shape_cast %51 : vector<8xf32> to vector<8x1xf32>
    %53 = math.log %52 : vector<8x1xf32>
    %54 = vector.broadcast %53 : vector<8x1xf32> to vector<8x128xf32>
    %55 = arith.subf %49, %54 : vector<8x128xf32>
    %c0_37 = arith.constant 0 : index
    %c0_38 = arith.constant 0 : index
    %56 = vector.load %arg14[%c0_37, %c0_38] : memref<8x128xf32, #tpu.memory_space<vmem>>, vector<8x128xf32>
    tpu.vector_store %arg14[%c0_37, %c0_38], %55 {strides = array<i32>} : memref<8x128xf32, #tpu.memory_space<vmem>>, vector<8x128xf32>,
    return
  }
  func.func @transform_0(%arg0: i32) -> (i32, i32) {
    %c0_i32 = arith.constant 0 : i32
    %c0_i32_0 = arith.constant 0 : i32
    return %arg0, %c0_i32 : i32, i32
  }
  func.func @transform_1(%arg0: i32) -> (i32, i32) {
    %c0_i32 = arith.constant 0 : i32
    %c0_i32_0 = arith.constant 0 : i32
    %c0_i32_1 = arith.constant 0 : i32
    return %c0_i32, %c0_i32_0 : i32, i32
  }
  func.func @transform_2(%arg0: i32) -> (i32, i32) {
    %c0_i32 = arith.constant 0 : i32
    %c0_i32_0 = arith.constant 0 : i32
    %c0_i32_1 = arith.constant 0 : i32
    return %c0_i32, %c0_i32_0 : i32, i32
  }
  func.func @transform_3(%arg0: i32) -> (i32, i32) {
    %c0_i32 = arith.constant 0 : i32
    %c0_i32_0 = arith.constant 0 : i32
    %c0_i32_1 = arith.constant 0 : i32
    return %c0_i32, %c0_i32_0 : i32, i32
  }
  func.func @transform_4(%arg0: i32) -> (i32, i32) {
    %c0_i32 = arith.constant 0 : i32
    %c0_i32_0 = arith.constant 0 : i32
    %c0_i32_1 = arith.constant 0 : i32
    return %c0_i32, %c0_i32_0 : i32, i32
  }
  func.func @transform_5(%arg0: i32) -> (i32, i32) {
    %c0_i32 = arith.constant 0 : i32
    %c0_i32_0 = arith.constant 0 : i32
    %c0_i32_1 = arith.constant 0 : i32
    return %c0_i32, %c0_i32_0 : i32, i32
  }
  func.func @transform_6(%arg0: i32) -> (i32, i32) {
    %c0_i32 = arith.constant 0 : i32
    %c0_i32_0 = arith.constant 0 : i32
    %c0_i32_1 = arith.constant 0 : i32
    return %c0_i32, %c0_i32_0 : i32, i32
  }
  func.func @transform_7(%arg0: i32) -> (i32, i32) {
    %c0_i32 = arith.constant 0 : i32
    %c0_i32_0 = arith.constant 0 : i32
    %c0_i32_1 = arith.constant 0 : i32
    return %c0_i32, %c0_i32_0 : i32, i32
  }
  func.func @transform_8(%arg0: i32) -> (i32, i32) {
    %c0_i32 = arith.constant 0 : i32
    %c0_i32_0 = arith.constant 0 : i32
    %c0_i32_1 = arith.constant 0 : i32
    return %c0_i32, %c0_i32_0 : i32, i32
  }
  func.func @transform_9(%arg0: i32) -> (i32, i32) {
    %c0_i32 = arith.constant 0 : i32
    %c0_i32_0 = arith.constant 0 : i32
    %c0_i32_1 = arith.constant 0 : i32
    return %c0_i32, %c0_i32_0 : i32, i32
  }
  func.func @transform_10(%arg0: i32) -> (i32, i32) {
    %c0_i32 = arith.constant 0 : i32
    %c0_i32_0 = arith.constant 0 : i32
    %c0_i32_1 = arith.constant 0 : i32
    return %c0_i32, %c0_i32_0 : i32, i32
  }
  func.func @transform_11(%arg0: i32) -> (i32, i32) {
    %c0_i32 = arith.constant 0 : i32
    %c0_i32_0 = arith.constant 0 : i32
    %c0_i32_1 = arith.constant 0 : i32
    return %c0_i32, %c0_i32_0 : i32, i32
  }
  func.func @transform_12(%arg0: i32) -> (i32, i32) {
    %c0_i32 = arith.constant 0 : i32
    %c0_i32_0 = arith.constant 0 : i32
    %c0_i32_1 = arith.constant 0 : i32
    return %c0_i32, %c0_i32_0 : i32, i32
  }
  func.func @transform_13(%arg0: i32) -> (i32, i32) {
    %c0_i32 = arith.constant 0 : i32
    %c0_i32_0 = arith.constant 0 : i32
    return %arg0, %c0_i32 : i32, i32
  }
}

</mosaic_0001>

<llo_original>
// kernel: mlp_forward.1
$region0: #{mlp_forward.1}
  #allocation0 [shape = 'u32[]', space=smem, size = 0x4, offset = 0x4, fixed_abs, tag = 'smem constant byte address 0x4 - core index']
  #allocation1 [shape = 'u32[72,128]{1,0:T(1,128)}', space=vmem, size = 0x9000, scoped, tag = 'internal scratch']
  %s0 = inlined_call_operand.vmem [shape: bf16[8,3072], index: 0, kind: input, shape index: {}]
  %s1 = inlined_call_operand.hbm [shape: bf16[3072,128], index: 1, kind: input, shape index: {}]
  %s2 = inlined_call_operand.hbm [shape: f32[1,128], index: 2, kind: input, shape index: {}]
  %s3 = inlined_call_operand.hbm [shape: bf16[128,896], index: 3, kind: input, shape index: {}]
  %s4 = inlined_call_operand.hbm [shape: f32[1,896], index: 4, kind: input, shape index: {}]
  %s5 = inlined_call_operand.hbm [shape: bf16[896,1280], index: 5, kind: input, shape index: {}]
  %s6 = inlined_call_operand.hbm [shape: f32[1,1280], index: 6, kind: input, shape index: {}]
  %s7 = inlined_call_operand.hbm [shape: bf16[1280,512], index: 7, kind: input, shape index: {}]
  %s8 = inlined_call_operand.hbm [shape: f32[1,512], index: 8, kind: input, shape index: {}]
  %s9 = inlined_call_operand.hbm [shape: bf16[512,128], index: 9, kind: input, shape index: {}]
  %s10 = inlined_call_operand.hbm [shape: f32[1,128], index: 10, kind: input, shape index: {}]
  %s11 = inlined_call_operand.hbm [shape: bf16[128,128], index: 11, kind: input, shape index: {}]
  %s12 = inlined_call_operand.hbm [shape: f32[1,128], index: 12, kind: input, shape index: {}]
  %s13 = inlined_call_operand.vmem [shape: f32[8,128], index: 13, kind: output, shape index: {}]
  %s14 = sld [smem:[#allocation0]]
  $region110: #{mlp_forward.1} parent=0
    _
  %s16 = ssub.s32 1, %s14
  %s17 = scalar_select 0, %s16, %s14
  $region1: #{mlp_forward.1} parent=0
    #allocation2 [shape = 'u8[786432]{0}', space=vmem, size = 0xc0000, scoped, tag = 'input window, operand 1, single buffered']
    #allocation3 [shape = 's32[1]{0}', space=sflag, size = 0x4, scoped, tag = 'scoped memory for mlp_forward.1']
    #allocation4 [shape = 'u8[512]{0}', space=vmem, size = 0x400, scoped, tag = 'input window, operand 2, single buffered']
    #allocation5 [shape = 's32[1]{0}', space=sflag, size = 0x4, scoped, tag = 'scoped memory for mlp_forward.1']
    #allocation6 [shape = 'u8[229376]{0}', space=vmem, size = 0x38000, scoped, tag = 'input window, operand 3, single buffered']
    #allocation7 [shape = 'u8[3584]{0}', space=vmem, size = 0x1000, scoped, tag = 'input window, operand 4, single buffered']
    #allocation8 [shape = 's32[1]{0}', space=sflag, size = 0x4, scoped, tag = 'scoped memory for mlp_forward.1']
    #allocation9 [shape = 'u8[2293760]{0}', space=vmem, size = 0x230000, scoped, tag = 'input window, operand 5, single buffered']
    #allocation10 [shape = 'u8[5120]{0}', space=vmem, size = 0x1400, scoped, tag = 'input window, operand 6, single buffered']
    #allocation11 [shape = 's32[1]{0}', space=sflag, size = 0x4, scoped, tag = 'scoped memory for mlp_forward.1']
    #allocation12 [shape = 'u8[1310720]{0}', space=vmem, size = 0x140000, scoped, tag = 'input window, operand 7, single buffered']
    #allocation13 [shape = 'u8[2048]{0}', space=vmem, size = 0x800, scoped, tag = 'input window, operand 8, single buffered']
    #allocation14 [shape = 's32[1]{0}', space=sflag, size = 0x4, scoped, tag = 'scoped memory for mlp_forward.1']
    #allocation15 [shape = 'u8[131072]{0}', space=vmem, size = 0x20000, scoped, tag = 'input window, operand 9, single buffered']
    #allocation16 [shape = 'u8[512]{0}', space=vmem, size = 0x400, scoped, tag = 'input window, operand 10, single buffered']
    #allocation17 [shape = 's32[1]{0}', space=sflag, size = 0x4, scoped, tag = 'scoped memory for mlp_forward.1']
    #allocation18 [shape = 'u8[32768]{0}', space=vmem, size = 0x8000, scoped, tag = 'input window, operand 11, single buffered']
    #allocation19 [shape = 'u8[512]{0}', space=vmem, size = 0x400, scoped, tag = 'input window, operand 12, single buffered']
    #allocation20 [shape = 's32[1]{0}', space=sflag, size = 0x4, scoped, tag = 'scoped memory for mlp_forward.1']
    %18 = vsyncpa [#allocation3], 0
    %19 = vsyncpa [#allocation5], 0
    %20 = vsyncpa [#allocation8], 0
    %21 = vsyncpa [#allocation11], 0
    %22 = vsyncpa [#allocation14], 0
    %23 = vsyncpa [#allocation17], 0
    %24 = vsyncpa [#allocation20], 0
    // Predicated region
    $region2: #{mlp_forward.1} parent=1 // pred_check
      _
    $region3: #{mlp_forward.1} parent=1 // pred_check_branch
      %26 = sbr.rel (0) target = $region5
    $region4: #{mlp_forward.1} parent=1 // pred_region
      _
    $region5: #{mlp_forward.1} parent=1 // pred_fallthru
      _
    // Predicated region
    $region6: #{mlp_forward.1} parent=1 // pred_check
      _
    $region7: #{mlp_forward.1} parent=1 // pred_check_branch
      %28 = sbr.rel (0) target = $region9
    $region8: #{mlp_forward.1} parent=1 // pred_region
      %30 = vsyncadd [#allocation3], 0
      %s31 = sshll.u32 %s1, 4
      %s32 = int_to_ptr.hbm [resolvable:$true] %s31
      %s33 = sshll.u32 [#allocation2], 4
      %s34 = int_to_ptr.vmem [resolvable:$true] %s33
      %39 = dma.hbm_to_vmem [thread:$0]  %s32, 24576, %s34, [#allocation3], 64, 64, 4
    $region9: #{mlp_forward.1} parent=1 // pred_fallthru
      _
    // Predicated region
    $region10: #{mlp_forward.1} parent=1 // pred_check
      _
    $region11: #{mlp_forward.1} parent=1 // pred_check_branch
      %41 = sbr.rel (0) target = $region13
    $region12: #{mlp_forward.1} parent=1 // pred_region
      %43 = vsyncadd [#allocation5], 0
      %s45 = sshll.u32 %s2, 4
      %s46 = int_to_ptr.hbm [resolvable:$true] %s45
      %s47 = sshll.u32 [#allocation4], 4
      %s48 = int_to_ptr.vmem [resolvable:$true] %s47
      %50 = dma.hbm_to_vmem [thread:$0]  %s46, 16, %s48, [#allocation5]
    $region13: #{mlp_forward.1} parent=1 // pred_fallthru
      _
    // Predicated region
    $region14: #{mlp_forward.1} parent=1 // pred_check
      _
    $region15: #{mlp_forward.1} parent=1 // pred_check_branch
      %52 = sbr.rel (0) target = $region17
    $region16: #{mlp_forward.1} parent=1 // pred_region
      %54 = vsyncadd [#allocation5], 0
      %s55 = sshll.u32 %s3, 4
      %s56 = int_to_ptr.hbm [resolvable:$true] %s55
      %s57 = sshll.u32 [#allocation6], 4
      %s58 = int_to_ptr.vmem [resolvable:$true] %s57
      %63 = dma.hbm_to_vmem [thread:$0]  %s56, 7168, %s58, [#allocation5], 448, 448, 28
    $region17: #{mlp_forward.1} parent=1 // pred_fallthru
      _
    // Predicated region
    $region18: #{mlp_forward.1} parent=1 // pred_check
      _
    $region19: #{mlp_forward.1} parent=1 // pred_check_branch
      %65 = sbr.rel (0) target = $region21
    $region20: #{mlp_forward.1} parent=1 // pred_region
      %67 = vsyncadd [#allocation8], 0
      %s69 = sshll.u32 %s4, 4
      %s70 = int_to_ptr.hbm [resolvable:$true] %s69
      %s71 = sshll.u32 [#allocation7], 4
      %s72 = int_to_ptr.vmem [resolvable:$true] %s71
      %74 = dma.hbm_to_vmem [thread:$0]  %s70, 112, %s72, [#allocation8]
    $region21: #{mlp_forward.1} parent=1 // pred_fallthru
      _
    // Predicated region
    $region22: #{mlp_forward.1} parent=1 // pred_check
      _
    $region23: #{mlp_forward.1} parent=1 // pred_check_branch
      %76 = sbr.rel (0) target = $region25
    $region24: #{mlp_forward.1} parent=1 // pred_region
      %78 = vsyncadd [#allocation8], 0
      %s79 = sshll.u32 %s5, 4
      %s80 = int_to_ptr.hbm [resolvable:$true] %s79
      %s81 = sshll.u32 [#allocation9], 4
      %s82 = int_to_ptr.vmem [resolvable:$true] %s81
      %87 = dma.hbm_to_vmem [thread:$0]  %s80, 71680, %s82, [#allocation8], 640, 640, 40
    $region25: #{mlp_forward.1} parent=1 // pred_fallthru
      _
    // Predicated region
    $region26: #{mlp_forward.1} parent=1 // pred_check
      _
    $region27: #{mlp_forward.1} parent=1 // pred_check_branch
      %89 = sbr.rel (0) target = $region29
    $region28: #{mlp_forward.1} parent=1 // pred_region
      %91 = vsyncadd [#allocation11], 0
      %s93 = sshll.u32 %s6, 4
      %s94 = int_to_ptr.hbm [resolvable:$true] %s93
      %s95 = sshll.u32 [#allocation10], 4
      %s96 = int_to_ptr.vmem [resolvable:$true] %s95
      %98 = dma.hbm_to_vmem [thread:$0]  %s94, 160, %s96, [#allocation11]
    $region29: #{mlp_forward.1} parent=1 // pred_fallthru
      _
    // Predicated region
    $region30: #{mlp_forward.1} parent=1 // pred_check
      _
    $region31: #{mlp_forward.1} parent=1 // pred_check_branch
      %100 = sbr.rel (0) target = $region33
    $region32: #{mlp_forward.1} parent=1 // pred_region
      %102 = vsyncadd [#allocation11], 0
      %s103 = sshll.u32 %s7, 4
      %s104 = int_to_ptr.hbm [resolvable:$true] %s103
      %s105 = sshll.u32 [#allocation12], 4
      %s106 = int_to_ptr.vmem [resolvable:$true] %s105
      %111 = dma.hbm_to_vmem [thread:$0]  %s104, 40960, %s106, [#allocation11], 256, 256, 16
    $region33: #{mlp_forward.1} parent=1 // pred_fallthru
      _
    // Predicated region
    $region34: #{mlp_forward.1} parent=1 // pred_check
      _
    $region35: #{mlp_forward.1} parent=1 // pred_check_branch
      %113 = sbr.rel (0) target = $region37
    $region36: #{mlp_forward.1} parent=1 // pred_region
      %115 = vsyncadd [#allocation14], 0
      %s117 = sshll.u32 %s8, 4
      %s118 = int_to_ptr.hbm [resolvable:$true] %s117
      %s119 = sshll.u32 [#allocation13], 4
      %s120 = int_to_ptr.vmem [resolvable:$true] %s119
      %122 = dma.hbm_to_vmem [thread:$0]  %s118, 64, %s120, [#allocation14]
    $region37: #{mlp_forward.1} parent=1 // pred_fallthru
      _
    // Predicated region
    $region38: #{mlp_forward.1} parent=1 // pred_check
      _
    $region39: #{mlp_forward.1} parent=1 // pred_check_branch
      %124 = sbr.rel (0) target = $region41
    $region40: #{mlp_forward.1} parent=1 // pred_region
      %126 = vsyncadd [#allocation14], 0
      %s127 = sshll.u32 %s9, 4
      %s128 = int_to_ptr.hbm [resolvable:$true] %s127
      %s129 = sshll.u32 [#allocation15], 4
      %s130 = int_to_ptr.vmem [resolvable:$true] %s129
      %135 = dma.hbm_to_vmem [thread:$0]  %s128, 4096, %s130, [#allocation14], 64, 64, 4
    $region41: #{mlp_forward.1} parent=1 // pred_fallthru
      _
    // Predicated region
    $region42: #{mlp_forward.1} parent=1 // pred_check
      _
    $region43: #{mlp_forward.1} parent=1 // pred_check_branch
      %137 = sbr.rel (0) target = $region45
    $region44: #{mlp_forward.1} parent=1 // pred_region
      %139 = vsyncadd [#allocation17], 0
      %s141 = sshll.u32 %s10, 4
      %s142 = int_to_ptr.hbm [resolvable:$true] %s141
      %s143 = sshll.u32 [#allocation16], 4
      %s144 = int_to_ptr.vmem [resolvable:$true] %s143
      %146 = dma.hbm_to_vmem [thread:$0]  %s142, 16, %s144, [#allocation17]
    $region45: #{mlp_forward.1} parent=1 // pred_fallthru
      _
    // Predicated region
    $region46: #{mlp_forward.1} parent=1 // pred_check
      _
    $region47: #{mlp_forward.1} parent=1 // pred_check_branch
      %148 = sbr.rel (0) target = $region49
    $region48: #{mlp_forward.1} parent=1 // pred_region
      %150 = vsyncadd [#allocation17], 0
      %s151 = sshll.u32 %s11, 4
      %s152 = int_to_ptr.hbm [resolvable:$true] %s151
      %s153 = sshll.u32 [#allocation18], 4
      %s154 = int_to_ptr.vmem [resolvable:$true] %s153
      %159 = dma.hbm_to_vmem [thread:$0]  %s152, 1024, %s154, [#allocation17], 64, 64, 4
    $region49: #{mlp_forward.1} parent=1 // pred_fallthru
      _
    // Predicated region
    $region50: #{mlp_forward.1} parent=1 // pred_check
      _
    $region51: #{mlp_forward.1} parent=1 // pred_check_branch
      %161 = sbr.rel (0) target = $region53
    $region52: #{mlp_forward.1} parent=1 // pred_region
      %163 = vsyncadd [#allocation20], 0
      %s165 = sshll.u32 %s12, 4
      %s166 = int_to_ptr.hbm [resolvable:$true] %s165
      %s167 = sshll.u32 [#allocation19], 4
      %s168 = int_to_ptr.vmem [resolvable:$true] %s167
      %170 = dma.hbm_to_vmem [thread:$0]  %s166, 16, %s168, [#allocation20]
    $region53: #{mlp_forward.1} parent=1 // pred_fallthru
      _
    // Predicated region
    $region54: #{mlp_forward.1} parent=1 // pred_check
      _
    $region55: #{mlp_forward.1} parent=1 // pred_check_branch
      %172 = sbr.rel (0) target = $region57
    $region56: #{mlp_forward.1} parent=1 // pred_region
      %174 = dma.done [#allocation3], 24576
    $region57: #{mlp_forward.1} parent=1 // pred_fallthru
      _
    // Predicated region
    $region58: #{mlp_forward.1} parent=1 // pred_check
      _
    $region59: #{mlp_forward.1} parent=1 // pred_check_branch
      %176 = sbr.rel (0) target = $region61
    $region60: #{mlp_forward.1} parent=1 // pred_region
      %178 = dma.done [#allocation5], 16
    $region61: #{mlp_forward.1} parent=1 // pred_fallthru
      _
    // Predicated region
    $region62: #{mlp_forward.1} parent=1 // pred_check
      _
    $region63: #{mlp_forward.1} parent=1 // pred_check_branch
      %180 = sbr.rel (0) target = $region65
    $region64: #{mlp_forward.1} parent=1 // pred_region
      %182 = dma.done [#allocation5], 7168
    $region65: #{mlp_forward.1} parent=1 // pred_fallthru
      _
    // Predicated region
    $region66: #{mlp_forward.1} parent=1 // pred_check
      _
    $region67: #{mlp_forward.1} parent=1 // pred_check_branch
      %184 = sbr.rel (0) target = $region69
    $region68: #{mlp_forward.1} parent=1 // pred_region
      %186 = dma.done [#allocation8], 112
    $region69: #{mlp_forward.1} parent=1 // pred_fallthru
      _
    // Predicated region
    $region70: #{mlp_forward.1} parent=1 // pred_check
      _
    $region71: #{mlp_forward.1} parent=1 // pred_check_branch
      %188 = sbr.rel (0) target = $region73
    $region72: #{mlp_forward.1} parent=1 // pred_region
      %190 = dma.done [#allocation8], 71680
    $region73: #{mlp_forward.1} parent=1 // pred_fallthru
      _
    // Predicated region
    $region74: #{mlp_forward.1} parent=1 // pred_check
      _
    $region75: #{mlp_forward.1} parent=1 // pred_check_branch
      %192 = sbr.rel (0) target = $region77
    $region76: #{mlp_forward.1} parent=1 // pred_region
      %194 = dma.done [#allocation11], 160
    $region77: #{mlp_forward.1} parent=1 // pred_fallthru
      _
    // Predicated region
    $region78: #{mlp_forward.1} parent=1 // pred_check
      _
    $region79: #{mlp_forward.1} parent=1 // pred_check_branch
      %196 = sbr.rel (0) target = $region81
    $region80: #{mlp_forward.1} parent=1 // pred_region
      %198 = dma.done [#allocation11], 40960
    $region81: #{mlp_forward.1} parent=1 // pred_fallthru
      _
    // Predicated region
    $region82: #{mlp_forward.1} parent=1 // pred_check
      _
    $region83: #{mlp_forward.1} parent=1 // pred_check_branch
      %200 = sbr.rel (0) target = $region85
    $region84: #{mlp_forward.1} parent=1 // pred_region
      %202 = dma.done [#allocation14], 64
    $region85: #{mlp_forward.1} parent=1 // pred_fallthru
      _
    // Predicated region
    $region86: #{mlp_forward.1} parent=1 // pred_check
      _
    $region87: #{mlp_forward.1} parent=1 // pred_check_branch
      %204 = sbr.rel (0) target = $region89
    $region88: #{mlp_forward.1} parent=1 // pred_region
      %206 = dma.done [#allocation14], 4096
    $region89: #{mlp_forward.1} parent=1 // pred_fallthru
      _
    // Predicated region
    $region90: #{mlp_forward.1} parent=1 // pred_check
      _
    $region91: #{mlp_forward.1} parent=1 // pred_check_branch
      %208 = sbr.rel (0) target = $region93
    $region92: #{mlp_forward.1} parent=1 // pred_region
      %210 = dma.done [#allocation17], 16
    $region93: #{mlp_forward.1} parent=1 // pred_fallthru
      _
    // Predicated region
    $region94: #{mlp_forward.1} parent=1 // pred_check
      _
    $region95: #{mlp_forward.1} parent=1 // pred_check_branch
      %212 = sbr.rel (0) target = $region97
    $region96: #{mlp_forward.1} parent=1 // pred_region
      %214 = dma.done [#allocation17], 1024
    $region97: #{mlp_forward.1} parent=1 // pred_fallthru
      _
    // Predicated region
    $region98: #{mlp_forward.1} parent=1 // pred_check
      _
    $region99: #{mlp_forward.1} parent=1 // pred_check_branch
      %216 = sbr.rel (0) target = $region101
    $region100: #{mlp_forward.1} parent=1 // pred_region
      %218 = dma.done [#allocation20], 16
    $region101: #{mlp_forward.1} parent=1 // pred_fallthru
      _
    %v219 = vld [vmem:[%s0] sm:$0xff]
    %v220 = vld [vmem:[%s0 + $0x8] sm:$0xff]
    %v221 = vld [vmem:[%s0 + $0x10] sm:$0xff]
    %v222 = vld [vmem:[%s0 + $0x18] sm:$0xff]
    %v223 = vld [vmem:[%s0 + $0x20] sm:$0xff]
    %v224 = vld [vmem:[%s0 + $0x28] sm:$0xff]
    %v225 = vld [vmem:[%s0 + $0x30] sm:$0xff]
    %v226 = vld [vmem:[%s0 + $0x38] sm:$0xff]
    %v227 = vld [vmem:[%s0 + $0x40] sm:$0xff]
    %v228 = vld [vmem:[%s0 + $0x48] sm:$0xff]
    %v229 = vld [vmem:[%s0 + $0x50] sm:$0xff]
    %v230 = vld [vmem:[%s0 + $0x58] sm:$0xff]
    %v231 = vld [vmem:[#allocation2] sm:$0xf]
    %v232 = vld [vmem:[#allocation2 + $0x4] sm:$0xf]
    %v233 = vld [vmem:[#allocation2 + $0x8] sm:$0xf]
    %v234 = vld [vmem:[#allocation2 + $0xc] sm:$0xf]
    %v235 = vld [vmem:[#allocation2 + $0x10] sm:$0xf]
    %v236 = vld [vmem:[#allocation2 + $0x14] sm:$0xf]
    %v237 = vld [vmem:[#allocation2 + $0x18] sm:$0xf]
    %v238 = vld [vmem:[#allocation2 + $0x1c] sm:$0xf]
    %v239 = vld [vmem:[#allocation2 + $0x20] sm:$0xf]
    %v240 = vld [vmem:[#allocation2 + $0x24] sm:$0xf]
    %v241 = vld [vmem:[#allocation2 + $0x28] sm:$0xf]
    %v242 = vld [vmem:[#allocation2 + $0x2c] sm:$0xf]
    %v243 = vld [vmem:[#allocation2 + $0x30] sm:$0xf]
    %v244 = vld [vmem:[#allocation2 + $0x34] sm:$0xf]
    %v245 = vld [vmem:[#allocation2 + $0x38] sm:$0xf]
    %v246 = vld [vmem:[#allocation2 + $0x3c] sm:$0xf]
    %v247 = vld [vmem:[#allocation2 + $0x40] sm:$0xf]
    %v248 = vld [vmem:[#allocation2 + $0x44] sm:$0xf]
    %v249 = vld [vmem:[#allocation2 + $0x48] sm:$0xf]
    %v250 = vld [vmem:[#allocation2 + $0x4c] sm:$0xf]
    %v251 = vld [vmem:[#allocation2 + $0x50] sm:$0xf]
    %v252 = vld [vmem:[#allocation2 + $0x54] sm:$0xf]
    %v253 = vld [vmem:[#allocation2 + $0x58] sm:$0xf]
    %v254 = vld [vmem:[#allocation2 + $0x5c] sm:$0xf]
    %v255 = vld [vmem:[#allocation2 + $0x60] sm:$0xf]
    %v256 = vld [vmem:[#allocation2 + $0x64] sm:$0xf]
    %v257 = vld [vmem:[#allocation2 + $0x68] sm:$0xf]
    %v258 = vld [vmem:[#allocation2 + $0x6c] sm:$0xf]
    %v259 = vld [vmem:[#allocation2 + $0x70] sm:$0xf]
    %v260 = vld [vmem:[#allocation2 + $0x74] sm:$0xf]
    %v261 = vld [vmem:[#allocation2 + $0x78] sm:$0xf]
    %v262 = vld [vmem:[#allocation2 + $0x7c] sm:$0xf]
    %v263 = vld [vmem:[#allocation2 + $0x80] sm:$0xf]
    %v264 = vld [vmem:[#allocation2 + $0x84] sm:$0xf]
    %v265 = vld [vmem:[#allocation2 + $0x88] sm:$0xf]
    %v266 = vld [vmem:[#allocation2 + $0x8c] sm:$0xf]
    %v267 = vld [vmem:[#allocation2 + $0x90] sm:$0xf]
    %v268 = vld [vmem:[#allocation2 + $0x94] sm:$0xf]
    %v269 = vld [vmem:[#allocation2 + $0x98] sm:$0xf]
    %v270 = vld [vmem:[#allocation2 + $0x9c] sm:$0xf]
    %v271 = vld [vmem:[#allocation2 + $0xa0] sm:$0xf]
    %v272 = vld [vmem:[#allocation2 + $0xa4] sm:$0xf]
    %v273 = vld [vmem:[#allocation2 + $0xa8] sm:$0xf]
    %v274 = vld [vmem:[#allocation2 + $0xac] sm:$0xf]
    %v275 = vld [vmem:[#allocation2 + $0xb0] sm:$0xf]
    %v276 = vld [vmem:[#allocation2 + $0xb4] sm:$0xf]
    %v277 = vld [vmem:[#allocation2 + $0xb8] sm:$0xf]
    %v278 = vld [vmem:[#allocation2 + $0xbc] sm:$0xf]
    %v279 = vld [vmem:[#allocation2 + $0xc0] sm:$0xf]
    %v280 = vld [vmem:[#allocation2 + $0xc4] sm:$0xf]
    %v281 = vld [vmem:[#allocation2 + $0xc8] sm:$0xf]
    %v282 = vld [vmem:[#allocation2 + $0xcc] sm:$0xf]
    %v283 = vld [vmem:[#allocation2 + $0xd0] sm:$0xf]
    %v284 = vld [vmem:[#allocation2 + $0xd4] sm:$0xf]
    %v285 = vld [vmem:[#allocation2 + $0xd8] sm:$0xf]
    %v286 = vld [vmem:[#allocation2 + $0xdc] sm:$0xf]
    %v287 = vld [vmem:[#allocation2 + $0xe0] sm:$0xf]
    %v288 = vld [vmem:[#allocation2 + $0xe4] sm:$0xf]
    %v289 = vld [vmem:[#allocation2 + $0xe8] sm:$0xf]
    %v290 = vld [vmem:[#allocation2 + $0xec] sm:$0xf]
    %v291 = vld [vmem:[#allocation2 + $0xf0] sm:$0xf]
    %v292 = vld [vmem:[#allocation2 + $0xf4] sm:$0xf]
    %v293 = vld [vmem:[#allocation2 + $0xf8] sm:$0xf]
    %v294 = vld [vmem:[#allocation2 + $0xfc] sm:$0xf]
    %v295 = vld [vmem:[#allocation2 + $0x100] sm:$0xf]
    %v296 = vld [vmem:[#allocation2 + $0x104] sm:$0xf]
    %v297 = vld [vmem:[#allocation2 + $0x108] sm:$0xf]
    %v298 = vld [vmem:[#allocation2 + $0x10c] sm:$0xf]
    %v299 = vld [vmem:[#allocation2 + $0x110] sm:$0xf]
    %v300 = vld [vmem:[#allocation2 + $0x114] sm:$0xf]
    %v301 = vld [vmem:[#allocation2 + $0x118] sm:$0xf]
    %v302 = vld [vmem:[#allocation2 + $0x11c] sm:$0xf]
    %v303 = vld [vmem:[#allocation2 + $0x120] sm:$0xf]
    %v304 = vld [vmem:[#allocation2 + $0x124] sm:$0xf]
    %v305 = vld [vmem:[#allocation2 + $0x128] sm:$0xf]
    %v306 = vld [vmem:[#allocation2 + $0x12c] sm:$0xf]
    %v307 = vld [vmem:[#allocation2 + $0x130] sm:$0xf]
    %v308 = vld [vmem:[#allocation2 + $0x134] sm:$0xf]
    %v309 = vld [vmem:[#allocation2 + $0x138] sm:$0xf]
    %v310 = vld [vmem:[#allocation2 + $0x13c] sm:$0xf]
    %v311 = vld [vmem:[#allocation2 + $0x140] sm:$0xf]
    %v312 = vld [vmem:[#allocation2 + $0x144] sm:$0xf]
    %v313 = vld [vmem:[#allocation2 + $0x148] sm:$0xf]
    %v314 = vld [vmem:[#allocation2 + $0x14c] sm:$0xf]
    %v315 = vld [vmem:[#allocation2 + $0x150] sm:$0xf]
    %v316 = vld [vmem:[#allocation2 + $0x154] sm:$0xf]
    %v317 = vld [vmem:[#allocation2 + $0x158] sm:$0xf]
    %v318 = vld [vmem:[#allocation2 + $0x15c] sm:$0xf]
    %v319 = vld [vmem:[#allocation2 + $0x160] sm:$0xf]
    %v320 = vld [vmem:[#allocation2 + $0x164] sm:$0xf]
    %v321 = vld [vmem:[#allocation2 + $0x168] sm:$0xf]
    %v322 = vld [vmem:[#allocation2 + $0x16c] sm:$0xf]
    %v323 = vld [vmem:[#allocation2 + $0x170] sm:$0xf]
    %v324 = vld [vmem:[#allocation2 + $0x174] sm:$0xf]
    %v325 = vld [vmem:[#allocation2 + $0x178] sm:$0xf]
    %v326 = vld [vmem:[#allocation2 + $0x17c] sm:$0xf]
    %v327 = vld [vmem:[#allocation2 + $0x180] sm:$0xf]
    %v328 = vld [vmem:[#allocation2 + $0x184] sm:$0xf]
    %v329 = vld [vmem:[#allocation2 + $0x188] sm:$0xf]
    %v330 = vld [vmem:[#allocation2 + $0x18c] sm:$0xf]
    %v331 = vld [vmem:[#allocation2 + $0x190] sm:$0xf]
    %v332 = vld [vmem:[#allocation2 + $0x194] sm:$0xf]
    %v333 = vld [vmem:[#allocation2 + $0x198] sm:$0xf]
    %v334 = vld [vmem:[#allocation2 + $0x19c] sm:$0xf]
    %v335 = vld [vmem:[#allocation2 + $0x1a0] sm:$0xf]
    %v336 = vld [vmem:[#allocation2 + $0x1a4] sm:$0xf]
    %v337 = vld [vmem:[#allocation2 + $0x1a8] sm:$0xf]
    %v338 = vld [vmem:[#allocation2 + $0x1ac] sm:$0xf]
    %v339 = vld [vmem:[#allocation2 + $0x1b0] sm:$0xf]
    %v340 = vld [vmem:[#allocation2 + $0x1b4] sm:$0xf]
    %v341 = vld [vmem:[#allocation2 + $0x1b8] sm:$0xf]
    %v342 = vld [vmem:[#allocation2 + $0x1bc] sm:$0xf]
    %v343 = vld [vmem:[#allocation2 + $0x1c0] sm:$0xf]
    %v344 = vld [vmem:[#allocation2 + $0x1c4] sm:$0xf]
    %v345 = vld [vmem:[#allocation2 + $0x1c8] sm:$0xf]
    %v346 = vld [vmem:[#allocation2 + $0x1cc] sm:$0xf]
    %v347 = vld [vmem:[#allocation2 + $0x1d0] sm:$0xf]
    %v348 = vld [vmem:[#allocation2 + $0x1d4] sm:$0xf]
    %v349 = vld [vmem:[#allocation2 + $0x1d8] sm:$0xf]
    %v350 = vld [vmem:[#allocation2 + $0x1dc] sm:$0xf]
    %v351 = vld [vmem:[#allocation2 + $0x1e0] sm:$0xf]
    %v352 = vld [vmem:[#allocation2 + $0x1e4] sm:$0xf]
    %v353 = vld [vmem:[#allocation2 + $0x1e8] sm:$0xf]
    %v354 = vld [vmem:[#allocation2 + $0x1ec] sm:$0xf]
    %v355 = vld [vmem:[#allocation2 + $0x1f0] sm:$0xf]
    %v356 = vld [vmem:[#allocation2 + $0x1f4] sm:$0xf]
    %v357 = vld [vmem:[#allocation2 + $0x1f8] sm:$0xf]
    %v358 = vld [vmem:[#allocation2 + $0x1fc] sm:$0xf]
    %v359 = vld [vmem:[#allocation2 + $0x200] sm:$0xf]
    %v360 = vld [vmem:[#allocation2 + $0x204] sm:$0xf]
    %v361 = vld [vmem:[#allocation2 + $0x208] sm:$0xf]
    %v362 = vld [vmem:[#allocation2 + $0x20c] sm:$0xf]
    %v363 = vld [vmem:[#allocation2 + $0x210] sm:$0xf]
    %v364 = vld [vmem:[#allocation2 + $0x214] sm:$0xf]
    %v365 = vld [vmem:[#allocation2 + $0x218] sm:$0xf]
    %v366 = vld [vmem:[#allocation2 + $0x21c] sm:$0xf]
    %v367 = vld [vmem:[#allocation2 + $0x220] sm:$0xf]
    %v368 = vld [vmem:[#allocation2 + $0x224] sm:$0xf]
    %v369 = vld [vmem:[#allocation2 + $0x228] sm:$0xf]
    %v370 = vld [vmem:[#allocation2 + $0x22c] sm:$0xf]
    %v371 = vld [vmem:[#allocation2 + $0x230] sm:$0xf]
    %v372 = vld [vmem:[#allocation2 + $0x234] sm:$0xf]
    %v373 = vld [vmem:[#allocation2 + $0x238] sm:$0xf]
    %v374 = vld [vmem:[#allocation2 + $0x23c] sm:$0xf]
    %v375 = vld [vmem:[#allocation2 + $0x240] sm:$0xf]
    %v376 = vld [vmem:[#allocation2 + $0x244] sm:$0xf]
    %v377 = vld [vmem:[#allocation2 + $0x248] sm:$0xf]
    %v378 = vld [vmem:[#allocation2 + $0x24c] sm:$0xf]
    %v379 = vld [vmem:[#allocation2 + $0x250] sm:$0xf]
    %v380 = vld [vmem:[#allocation2 + $0x254] sm:$0xf]
    %v381 = vld [vmem:[#allocation2 + $0x258] sm:$0xf]
    %v382 = vld [vmem:[#allocation2 + $0x25c] sm:$0xf]
    %v383 = vld [vmem:[#allocation2 + $0x260] sm:$0xf]
    %v384 = vld [vmem:[#allocation2 + $0x264] sm:$0xf]
    %v385 = vld [vmem:[#allocation2 + $0x268] sm:$0xf]
    %v386 = vld [vmem:[#allocation2 + $0x26c] sm:$0xf]
    %v387 = vld [vmem:[#allocation2 + $0x270] sm:$0xf]
    %v388 = vld [vmem:[#allocation2 + $0x274] sm:$0xf]
    %v389 = vld [vmem:[#allocation2 + $0x278] sm:$0xf]
    %v390 = vld [vmem:[#allocation2 + $0x27c] sm:$0xf]
    %v391 = vld [vmem:[#allocation2 + $0x280] sm:$0xf]
    %v392 = vld [vmem:[#allocation2 + $0x284] sm:$0xf]
    %v393 = vld [vmem:[#allocation2 + $0x288] sm:$0xf]
    %v394 = vld [vmem:[#allocation2 + $0x28c] sm:$0xf]
    %v395 = vld [vmem:[#allocation2 + $0x290] sm:$0xf]
    %v396 = vld [vmem:[#allocation2 + $0x294] sm:$0xf]
    %v397 = vld [vmem:[#allocation2 + $0x298] sm:$0xf]
    %v398 = vld [vmem:[#allocation2 + $0x29c] sm:$0xf]
    %v399 = vld [vmem:[#allocation2 + $0x2a0] sm:$0xf]
    %v400 = vld [vmem:[#allocation2 + $0x2a4] sm:$0xf]
    %v401 = vld [vmem:[#allocation2 + $0x2a8] sm:$0xf]
    %v402 = vld [vmem:[#allocation2 + $0x2ac] sm:$0xf]
    %v403 = vld [vmem:[#allocation2 + $0x2b0] sm:$0xf]
    %v404 = vld [vmem:[#allocation2 + $0x2b4] sm:$0xf]
    %v405 = vld [vmem:[#allocation2 + $0x2b8] sm:$0xf]
    %v406 = vld [vmem:[#allocation2 + $0x2bc] sm:$0xf]
    %v407 = vld [vmem:[#allocation2 + $0x2c0] sm:$0xf]
    %v408 = vld [vmem:[#allocation2 + $0x2c4] sm:$0xf]
    %v409 = vld [vmem:[#allocation2 + $0x2c8] sm:$0xf]
    %v410 = vld [vmem:[#allocation2 + $0x2cc] sm:$0xf]
    %v411 = vld [vmem:[#allocation2 + $0x2d0] sm:$0xf]
    %v412 = vld [vmem:[#allocation2 + $0x2d4] sm:$0xf]
    %v413 = vld [vmem:[#allocation2 + $0x2d8] sm:$0xf]
    %v414 = vld [vmem:[#allocation2 + $0x2dc] sm:$0xf]
    %v415 = vld [vmem:[#allocation2 + $0x2e0] sm:$0xf]
    %v416 = vld [vmem:[#allocation2 + $0x2e4] sm:$0xf]
    %v417 = vld [vmem:[#allocation2 + $0x2e8] sm:$0xf]
    %v418 = vld [vmem:[#allocation2 + $0x2ec] sm:$0xf]
    %v419 = vld [vmem:[#allocation2 + $0x2f0] sm:$0xf]
    %v420 = vld [vmem:[#allocation2 + $0x2f4] sm:$0xf]
    %v421 = vld [vmem:[#allocation2 + $0x2f8] sm:$0xf]
    %v422 = vld [vmem:[#allocation2 + $0x2fc] sm:$0xf]
    %v423 = vld [vmem:[#allocation2 + $0x300] sm:$0xf]
    %v424 = vld [vmem:[#allocation2 + $0x304] sm:$0xf]
    %v425 = vld [vmem:[#allocation2 + $0x308] sm:$0xf]
    %v426 = vld [vmem:[#allocation2 + $0x30c] sm:$0xf]
    %v427 = vld [vmem:[#allocation2 + $0x310] sm:$0xf]
    %v428 = vld [vmem:[#allocation2 + $0x314] sm:$0xf]
    %v429 = vld [vmem:[#allocation2 + $0x318] sm:$0xf]
    %v430 = vld [vmem:[#allocation2 + $0x31c] sm:$0xf]
    %v431 = vld [vmem:[#allocation2 + $0x320] sm:$0xf]
    %v432 = vld [vmem:[#allocation2 + $0x324] sm:$0xf]
    %v433 = vld [vmem:[#allocation2 + $0x328] sm:$0xf]
    %v434 = vld [vmem:[#allocation2 + $0x32c] sm:$0xf]
    %v435 = vld [vmem:[#allocation2 + $0x330] sm:$0xf]
    %v436 = vld [vmem:[#allocation2 + $0x334] sm:$0xf]
    %v437 = vld [vmem:[#allocation2 + $0x338] sm:$0xf]
    %v438 = vld [vmem:[#allocation2 + $0x33c] sm:$0xf]
    %v439 = vld [vmem:[#allocation2 + $0x340] sm:$0xf]
    %v440 = vld [vmem:[#allocation2 + $0x344] sm:$0xf]
    %v441 = vld [vmem:[#allocation2 + $0x348] sm:$0xf]
    %v442 = vld [vmem:[#allocation2 + $0x34c] sm:$0xf]
    %v443 = vld [vmem:[#allocation2 + $0x350] sm:$0xf]
    %v444 = vld [vmem:[#allocation2 + $0x354] sm:$0xf]
    %v445 = vld [vmem:[#allocation2 + $0x358] sm:$0xf]
    %v446 = vld [vmem:[#allocation2 + $0x35c] sm:$0xf]
    %v447 = vld [vmem:[#allocation2 + $0x360] sm:$0xf]
    %v448 = vld [vmem:[#allocation2 + $0x364] sm:$0xf]
    %v449 = vld [vmem:[#allocation2 + $0x368] sm:$0xf]
    %v450 = vld [vmem:[#allocation2 + $0x36c] sm:$0xf]
    %v451 = vld [vmem:[#allocation2 + $0x370] sm:$0xf]
    %v452 = vld [vmem:[#allocation2 + $0x374] sm:$0xf]
    %v453 = vld [vmem:[#allocation2 + $0x378] sm:$0xf]
    %v454 = vld [vmem:[#allocation2 + $0x37c] sm:$0xf]
    %v455 = vld [vmem:[#allocation2 + $0x380] sm:$0xf]
    %v456 = vld [vmem:[#allocation2 + $0x384] sm:$0xf]
    %v457 = vld [vmem:[#allocation2 + $0x388] sm:$0xf]
    %v458 = vld [vmem:[#allocation2 + $0x38c] sm:$0xf]
    %v459 = vld [vmem:[#allocation2 + $0x390] sm:$0xf]
    %v460 = vld [vmem:[#allocation2 + $0x394] sm:$0xf]
    %v461 = vld [vmem:[#allocation2 + $0x398] sm:$0xf]
    %v462 = vld [vmem:[#allocation2 + $0x39c] sm:$0xf]
    %v463 = vld [vmem:[#allocation2 + $0x3a0] sm:$0xf]
    %v464 = vld [vmem:[#allocation2 + $0x3a4] sm:$0xf]
    %v465 = vld [vmem:[#allocation2 + $0x3a8] sm:$0xf]
    %v466 = vld [vmem:[#allocation2 + $0x3ac] sm:$0xf]
    %v467 = vld [vmem:[#allocation2 + $0x3b0] sm:$0xf]
    %v468 = vld [vmem:[#allocation2 + $0x3b4] sm:$0xf]
    %v469 = vld [vmem:[#allocation2 + $0x3b8] sm:$0xf]
    %v470 = vld [vmem:[#allocation2 + $0x3bc] sm:$0xf]
    %v471 = vld [vmem:[#allocation2 + $0x3c0] sm:$0xf]
    %v472 = vld [vmem:[#allocation2 + $0x3c4] sm:$0xf]
    %v473 = vld [vmem:[#allocation2 + $0x3c8] sm:$0xf]
    %v474 = vld [vmem:[#allocation2 + $0x3cc] sm:$0xf]
    %v475 = vld [vmem:[#allocation2 + $0x3d0] sm:$0xf]
    %v476 = vld [vmem:[#allocation2 + $0x3d4] sm:$0xf]
    %v477 = vld [vmem:[#allocation2 + $0x3d8] sm:$0xf]
    %v478 = vld [vmem:[#allocation2 + $0x3dc] sm:$0xf]
    %v479 = vld [vmem:[#allocation2 + $0x3e0] sm:$0xf]
    %v480 = vld [vmem:[#allocation2 + $0x3e4] sm:$0xf]
    %v481 = vld [vmem:[#allocation2 + $0x3e8] sm:$0xf]
    %v482 = vld [vmem:[#allocation2 + $0x3ec] sm:$0xf]
    %v483 = vld [vmem:[#allocation2 + $0x3f0] sm:$0xf]
    %v484 = vld [vmem:[#allocation2 + $0x3f4] sm:$0xf]
    %v485 = vld [vmem:[#allocation2 + $0x3f8] sm:$0xf]
    %v486 = vld [vmem:[#allocation2 + $0x3fc] sm:$0xf]
    %v487 = vld [vmem:[#allocation2 + $0x400] sm:$0xf]
    %v488 = vld [vmem:[#allocation2 + $0x404] sm:$0xf]
    %v489 = vld [vmem:[#allocation2 + $0x408] sm:$0xf]
    %v490 = vld [vmem:[#allocation2 + $0x40c] sm:$0xf]
    %v491 = vld [vmem:[#allocation2 + $0x410] sm:$0xf]
    %v492 = vld [vmem:[#allocation2 + $0x414] sm:$0xf]
    %v493 = vld [vmem:[#allocation2 + $0x418] sm:$0xf]
    %v494 = vld [vmem:[#allocation2 + $0x41c] sm:$0xf]
    %v495 = vld [vmem:[#allocation2 + $0x420] sm:$0xf]
    %v496 = vld [vmem:[#allocation2 + $0x424] sm:$0xf]
    %v497 = vld [vmem:[#allocation2 + $0x428] sm:$0xf]
    %v498 = vld [vmem:[#allocation2 + $0x42c] sm:$0xf]
    %v499 = vld [vmem:[#allocation2 + $0x430] sm:$0xf]
    %v500 = vld [vmem:[#allocation2 + $0x434] sm:$0xf]
    %v501 = vld [vmem:[#allocation2 + $0x438] sm:$0xf]
    %v502 = vld [vmem:[#allocation2 + $0x43c] sm:$0xf]
    %v503 = vld [vmem:[#allocation2 + $0x440] sm:$0xf]
    %v504 = vld [vmem:[#allocation2 + $0x444] sm:$0xf]
    %v505 = vld [vmem:[#allocation2 + $0x448] sm:$0xf]
    %v506 = vld [vmem:[#allocation2 + $0x44c] sm:$0xf]
    %v507 = vld [vmem:[#allocation2 + $0x450] sm:$0xf]
    %v508 = vld [vmem:[#allocation2 + $0x454] sm:$0xf]
    %v509 = vld [vmem:[#allocation2 + $0x458] sm:$0xf]
    %v510 = vld [vmem:[#allocation2 + $0x45c] sm:$0xf]
    %v511 = vld [vmem:[#allocation2 + $0x460] sm:$0xf]
    %v512 = vld [vmem:[#allocation2 + $0x464] sm:$0xf]
    %v513 = vld [vmem:[#allocation2 + $0x468] sm:$0xf]
    %v514 = vld [vmem:[#allocation2 + $0x46c] sm:$0xf]
    %v515 = vld [vmem:[#allocation2 + $0x470] sm:$0xf]
    %v516 = vld [vmem:[#allocation2 + $0x474] sm:$0xf]
    %v517 = vld [vmem:[#allocation2 + $0x478] sm:$0xf]
    %v518 = vld [vmem:[#allocation2 + $0x47c] sm:$0xf]
    %v519 = vld [vmem:[#allocation2 + $0x480] sm:$0xf]
    %v520 = vld [vmem:[#allocation2 + $0x484] sm:$0xf]
    %v521 = vld [vmem:[#allocation2 + $0x488] sm:$0xf]
    %v522 = vld [vmem:[#allocation2 + $0x48c] sm:$0xf]
    %v523 = vld [vmem:[#allocation2 + $0x490] sm:$0xf]
    %v524 = vld [vmem:[#allocation2 + $0x494] sm:$0xf]
    %v525 = vld [vmem:[#allocation2 + $0x498] sm:$0xf]
    %v526 = vld [vmem:[#allocation2 + $0x49c] sm:$0xf]
    %v527 = vld [vmem:[#allocation2 + $0x4a0] sm:$0xf]
    %v528 = vld [vmem:[#allocation2 + $0x4a4] sm:$0xf]
    %v529 = vld [vmem:[#allocation2 + $0x4a8] sm:$0xf]
    %v530 = vld [vmem:[#allocation2 + $0x4ac] sm:$0xf]
    %v531 = vld [vmem:[#allocation2 + $0x4b0] sm:$0xf]
    %v532 = vld [vmem:[#allocation2 + $0x4b4] sm:$0xf]
    %v533 = vld [vmem:[#allocation2 + $0x4b8] sm:$0xf]
    %v534 = vld [vmem:[#allocation2 + $0x4bc] sm:$0xf]
    %v535 = vld [vmem:[#allocation2 + $0x4c0] sm:$0xf]
    %v536 = vld [vmem:[#allocation2 + $0x4c4] sm:$0xf]
    %v537 = vld [vmem:[#allocation2 + $0x4c8] sm:$0xf]
    %v538 = vld [vmem:[#allocation2 + $0x4cc] sm:$0xf]
    %v539 = vld [vmem:[#allocation2 + $0x4d0] sm:$0xf]
    %v540 = vld [vmem:[#allocation2 + $0x4d4] sm:$0xf]
    %v541 = vld [vmem:[#allocation2 + $0x4d8] sm:$0xf]
    %v542 = vld [vmem:[#allocation2 + $0x4dc] sm:$0xf]
    %v543 = vld [vmem:[#allocation2 + $0x4e0] sm:$0xf]
    %v544 = vld [vmem:[#allocation2 + $0x4e4] sm:$0xf]
    %v545 = vld [vmem:[#allocation2 + $0x4e8] sm:$0xf]
    %v546 = vld [vmem:[#allocation2 + $0x4ec] sm:$0xf]
    %v547 = vld [vmem:[#allocation2 + $0x4f0] sm:$0xf]
    %v548 = vld [vmem:[#allocation2 + $0x4f4] sm:$0xf]
    %v549 = vld [vmem:[#allocation2 + $0x4f8] sm:$0xf]
    %v550 = vld [vmem:[#allocation2 + $0x4fc] sm:$0xf]
    %v551 = vld [vmem:[#allocation2 + $0x500] sm:$0xf]
    %v552 = vld [vmem:[#allocation2 + $0x504] sm:$0xf]
    %v553 = vld [vmem:[#allocation2 + $0x508] sm:$0xf]
    %v554 = vld [vmem:[#allocation2 + $0x50c] sm:$0xf]
    %v555 = vld [vmem:[#allocation2 + $0x510] sm:$0xf]
    %v556 = vld [vmem:[#allocation2 + $0x514] sm:$0xf]
    %v557 = vld [vmem:[#allocation2 + $0x518] sm:$0xf]
    %v558 = vld [vmem:[#allocation2 + $0x51c] sm:$0xf]
    %v559 = vld [vmem:[#allocation2 + $0x520] sm:$0xf]
    %v560 = vld [vmem:[#allocation2 + $0x524] sm:$0xf]
    %v561 = vld [vmem:[#allocation2 + $0x528] sm:$0xf]
    %v562 = vld [vmem:[#allocation2 + $0x52c] sm:$0xf]
    %v563 = vld [vmem:[#allocation2 + $0x530] sm:$0xf]
    %v564 = vld [vmem:[#allocation2 + $0x534] sm:$0xf]
    %v565 = vld [vmem:[#allocation2 + $0x538] sm:$0xf]
    %v566 = vld [vmem:[#allocation2 + $0x53c] sm:$0xf]
    %v567 = vld [vmem:[#allocation2 + $0x540] sm:$0xf]
    %v568 = vld [vmem:[#allocation2 + $0x544] sm:$0xf]
    %v569 = vld [vmem:[#allocation2 + $0x548] sm:$0xf]
    %v570 = vld [vmem:[#allocation2 + $0x54c] sm:$0xf]
    %v571 = vld [vmem:[#allocation2 + $0x550] sm:$0xf]
    %v572 = vld [vmem:[#allocation2 + $0x554] sm:$0xf]
    %v573 = vld [vmem:[#allocation2 + $0x558] sm:$0xf]
    %v574 = vld [vmem:[#allocation2 + $0x55c] sm:$0xf]
    %v575 = vld [vmem:[#allocation2 + $0x560] sm:$0xf]
    %v576 = vld [vmem:[#allocation2 + $0x564] sm:$0xf]
    %v577 = vld [vmem:[#allocation2 + $0x568] sm:$0xf]
    %v578 = vld [vmem:[#allocation2 + $0x56c] sm:$0xf]
    %v579 = vld [vmem:[#allocation2 + $0x570] sm:$0xf]
    %v580 = vld [vmem:[#allocation2 + $0x574] sm:$0xf]
    %v581 = vld [vmem:[#allocation2 + $0x578] sm:$0xf]
    %v582 = vld [vmem:[#allocation2 + $0x57c] sm:$0xf]
    %v583 = vld [vmem:[#allocation2 + $0x580] sm:$0xf]
    %v584 = vld [vmem:[#allocation2 + $0x584] sm:$0xf]
    %v585 = vld [vmem:[#allocation2 + $0x588] sm:$0xf]
    %v586 = vld [vmem:[#allocation2 + $0x58c] sm:$0xf]
    %v587 = vld [vmem:[#allocation2 + $0x590] sm:$0xf]
    %v588 = vld [vmem:[#allocation2 + $0x594] sm:$0xf]
    %v589 = vld [vmem:[#allocation2 + $0x598] sm:$0xf]
    %v590 = vld [vmem:[#allocation2 + $0x59c] sm:$0xf]
    %v591 = vld [vmem:[#allocation2 + $0x5a0] sm:$0xf]
    %v592 = vld [vmem:[#allocation2 + $0x5a4] sm:$0xf]
    %v593 = vld [vmem:[#allocation2 + $0x5a8] sm:$0xf]
    %v594 = vld [vmem:[#allocation2 + $0x5ac] sm:$0xf]
    %v595 = vld [vmem:[#allocation2 + $0x5b0] sm:$0xf]
    %v596 = vld [vmem:[#allocation2 + $0x5b4] sm:$0xf]
    %v597 = vld [vmem:[#allocation2 + $0x5b8] sm:$0xf]
    %v598 = vld [vmem:[#allocation2 + $0x5bc] sm:$0xf]
    %v599 = vld [vmem:[#allocation2 + $0x5c0] sm:$0xf]
    %v600 = vld [vmem:[#allocation2 + $0x5c4] sm:$0xf]
    %v601 = vld [vmem:[#allocation2 + $0x5c8] sm:$0xf]
    %v602 = vld [vmem:[#allocation2 + $0x5cc] sm:$0xf]
    %v603 = vld [vmem:[#allocation2 + $0x5d0] sm:$0xf]
    %v604 = vld [vmem:[#allocation2 + $0x5d4] sm:$0xf]
    %v605 = vld [vmem:[#allocation2 + $0x5d8] sm:$0xf]
    %v606 = vld [vmem:[#allocation2 + $0x5dc] sm:$0xf]
    %v607 = vld [vmem:[#allocation2 + $0x5e0] sm:$0xf]
    %v608 = vld [vmem:[#allocation2 + $0x5e4] sm:$0xf]
    %v609 = vld [vmem:[#allocation2 + $0x5e8] sm:$0xf]
    %v610 = vld [vmem:[#allocation2 + $0x5ec] sm:$0xf]
    %v611 = vld [vmem:[#allocation2 + $0x5f0] sm:$0xf]
    %v612 = vld [vmem:[#allocation2 + $0x5f4] sm:$0xf]
    %v613 = vld [vmem:[#allocation2 + $0x5f8] sm:$0xf]
    %v614 = vld [vmem:[#allocation2 + $0x5fc] sm:$0xf]
    %v615 = vld [vmem:[#allocation4] sm:$0x1]
    %v617 = vperm.slane %v615, 0
    %v631 = vunpack.c.l.b16 %v219
    %v632 = vunpack.c.h.b16 %v219
    %v633 = vunpack.c.l.b16 %v220
    %v634 = vunpack.c.h.b16 %v220
    %v635 = vunpack.c.l.b16 %v221
    %v636 = vunpack.c.h.b16 %v221
    %v637 = vunpack.c.l.b16 %v222
    %v638 = vunpack.c.h.b16 %v222
    %v639 = vunpack.c.l.b16 %v223
    %v640 = vunpack.c.h.b16 %v223
    %v641 = vunpack.c.l.b16 %v224
    %v642 = vunpack.c.h.b16 %v224
    %v643 = vunpack.c.l.b16 %v225
    %v644 = vunpack.c.h.b16 %v225
    %v645 = vunpack.c.l.b16 %v226
    %v646 = vunpack.c.h.b16 %v226
    %v647 = vunpack.c.l.b16 %v227
    %v648 = vunpack.c.h.b16 %v227
    %v649 = vunpack.c.l.b16 %v228
    %v650 = vunpack.c.h.b16 %v228
    %v651 = vunpack.c.l.b16 %v229
    %v652 = vunpack.c.h.b16 %v229
    %v653 = vunpack.c.l.b16 %v230
    %v654 = vunpack.c.h.b16 %v230
    %v655 = vpack.c.b16 %v631, %v631
    %v656 = vpack.c.b16 %v632, %v632
    %v657 = vpack.c.b16 %v633, %v633
    %v658 = vpack.c.b16 %v634, %v634
    %v659 = vpack.c.b16 %v635, %v635
    %v660 = vpack.c.b16 %v636, %v636
    %v661 = vpack.c.b16 %v637, %v637
    %v662 = vpack.c.b16 %v638, %v638
    %v663 = vpack.c.b16 %v639, %v639
    %v664 = vpack.c.b16 %v640, %v640
    %v665 = vpack.c.b16 %v641, %v641
    %v666 = vpack.c.b16 %v642, %v642
    %v667 = vpack.c.b16 %v643, %v643
    %v668 = vpack.c.b16 %v644, %v644
    %v669 = vpack.c.b16 %v645, %v645
    %v670 = vpack.c.b16 %v646, %v646
    %v671 = vpack.c.b16 %v647, %v647
    %v672 = vpack.c.b16 %v648, %v648
    %v673 = vpack.c.b16 %v649, %v649
    %v674 = vpack.c.b16 %v650, %v650
    %v675 = vpack.c.b16 %v651, %v651
    %v676 = vpack.c.b16 %v652, %v652
    %v677 = vpack.c.b16 %v653, %v653
    %v678 = vpack.c.b16 %v654, %v654
    %v1087 = vunpack.c.l.b16 %v231
    %v1088 = vunpack.c.l.b16 %v232
    %v1089 = vunpack.c.l.b16 %v233
    %v1090 = vunpack.c.l.b16 %v234
    %v1091 = vunpack.c.l.b16 %v235
    %v1092 = vunpack.c.l.b16 %v236
    %v1093 = vunpack.c.l.b16 %v237
    %v1094 = vunpack.c.l.b16 %v238
    %v1095 = vunpack.c.l.b16 %v239
    %v1096 = vunpack.c.l.b16 %v240
    %v1097 = vunpack.c.l.b16 %v241
    %v1098 = vunpack.c.l.b16 %v242
    %v1099 = vunpack.c.l.b16 %v243
    %v1100 = vunpack.c.l.b16 %v244
    %v1101 = vunpack.c.l.b16 %v245
    %v1102 = vunpack.c.l.b16 %v246
    %v1103 = vunpack.c.l.b16 %v247
    %v1104 = vunpack.c.l.b16 %v248
    %v1105 = vunpack.c.l.b16 %v249
    %v1106 = vunpack.c.l.b16 %v250
    %v1107 = vunpack.c.l.b16 %v251
    %v1108 = vunpack.c.l.b16 %v252
    %v1109 = vunpack.c.l.b16 %v253
    %v1110 = vunpack.c.l.b16 %v254
    %v1111 = vunpack.c.l.b16 %v255
    %v1112 = vunpack.c.l.b16 %v256
    %v1113 = vunpack.c.l.b16 %v257
    %v1114 = vunpack.c.l.b16 %v258
    %v1115 = vunpack.c.l.b16 %v259
    %v1116 = vunpack.c.l.b16 %v260
    %v1117 = vunpack.c.l.b16 %v261
    %v1118 = vunpack.c.l.b16 %v262
    %v1119 = vunpack.c.l.b16 %v263
    %v1120 = vunpack.c.l.b16 %v264
    %v1121 = vunpack.c.l.b16 %v265
    %v1122 = vunpack.c.l.b16 %v266
    %v1123 = vunpack.c.l.b16 %v267
    %v1124 = vunpack.c.l.b16 %v268
    %v1125 = vunpack.c.l.b16 %v269
    %v1126 = vunpack.c.l.b16 %v270
    %v1127 = vunpack.c.l.b16 %v271
    %v1128 = vunpack.c.l.b16 %v272
    %v1129 = vunpack.c.l.b16 %v273
    %v1130 = vunpack.c.l.b16 %v274
    %v1131 = vunpack.c.l.b16 %v275
    %v1132 = vunpack.c.l.b16 %v276
    %v1133 = vunpack.c.l.b16 %v277
    %v1134 = vunpack.c.l.b16 %v278
    %v1135 = vunpack.c.l.b16 %v279
    %v1136 = vunpack.c.l.b16 %v280
    %v1137 = vunpack.c.l.b16 %v281
    %v1138 = vunpack.c.l.b16 %v282
    %v1139 = vunpack.c.l.b16 %v283
    %v1140 = vunpack.c.l.b16 %v284
    %v1141 = vunpack.c.l.b16 %v285
    %v1142 = vunpack.c.l.b16 %v286
    %v1143 = vunpack.c.l.b16 %v287
    %v1144 = vunpack.c.l.b16 %v288
    %v1145 = vunpack.c.l.b16 %v289
    %v1146 = vunpack.c.l.b16 %v290
    %v1147 = vunpack.c.l.b16 %v291
    %v1148 = vunpack.c.l.b16 %v292
    %v1149 = vunpack.c.l.b16 %v293
    %v1150 = vunpack.c.l.b16 %v294
    %v1151 = vunpack.c.l.b16 %v295
    %v1152 = vunpack.c.l.b16 %v296
    %v1153 = vunpack.c.l.b16 %v297
    %v1154 = vunpack.c.l.b16 %v298
    %v1155 = vunpack.c.l.b16 %v299
    %v1156 = vunpack.c.l.b16 %v300
    %v1157 = vunpack.c.l.b16 %v301
    %v1158 = vunpack.c.l.b16 %v302
    %v1159 = vunpack.c.l.b16 %v303
    %v1160 = vunpack.c.l.b16 %v304
    %v1161 = vunpack.c.l.b16 %v305
    %v1162 = vunpack.c.l.b16 %v306
    %v1163 = vunpack.c.l.b16 %v307
    %v1164 = vunpack.c.l.b16 %v308
    %v1165 = vunpack.c.l.b16 %v309
    %v1166 = vunpack.c.l.b16 %v310
    %v1167 = vunpack.c.l.b16 %v311
    %v1168 = vunpack.c.l.b16 %v312
    %v1169 = vunpack.c.l.b16 %v313
    %v1170 = vunpack.c.l.b16 %v314
    %v1171 = vunpack.c.l.b16 %v315
    %v1172 = vunpack.c.l.b16 %v316
    %v1173 = vunpack.c.l.b16 %v317
    %v1174 = vunpack.c.l.b16 %v318
    %v1175 = vunpack.c.l.b16 %v319
    %v1176 = vunpack.c.l.b16 %v320
    %v1177 = vunpack.c.l.b16 %v321
    %v1178 = vunpack.c.l.b16 %v322
    %v1179 = vunpack.c.l.b16 %v323
    %v1180 = vunpack.c.l.b16 %v324
    %v1181 = vunpack.c.l.b16 %v325
    %v1182 = vunpack.c.l.b16 %v326
    %v1183 = vunpack.c.l.b16 %v327
    %v1184 = vunpack.c.l.b16 %v328
    %v1185 = vunpack.c.l.b16 %v329
    %v1186 = vunpack.c.l.b16 %v330
    %v1187 = vunpack.c.l.b16 %v331
    %v1188 = vunpack.c.l.b16 %v332
    %v1189 = vunpack.c.l.b16 %v333
    %v1190 = vunpack.c.l.b16 %v334
    %v1191 = vunpack.c.l.b16 %v335
    %v1192 = vunpack.c.l.b16 %v336
    %v1193 = vunpack.c.l.b16 %v337
    %v1194 = vunpack.c.l.b16 %v338
    %v1195 = vunpack.c.l.b16 %v339
    %v1196 = vunpack.c.l.b16 %v340
    %v1197 = vunpack.c.l.b16 %v341
    %v1198 = vunpack.c.l.b16 %v342
    %v1199 = vunpack.c.l.b16 %v343
    %v1200 = vunpack.c.l.b16 %v344
    %v1201 = vunpack.c.l.b16 %v345
    %v1202 = vunpack.c.l.b16 %v346
    %v1203 = vunpack.c.l.b16 %v347
    %v1204 = vunpack.c.l.b16 %v348
    %v1205 = vunpack.c.l.b16 %v349
    %v1206 = vunpack.c.l.b16 %v350
    %v1207 = vunpack.c.l.b16 %v351
    %v1208 = vunpack.c.l.b16 %v352
    %v1209 = vunpack.c.l.b16 %v353
    %v1210 = vunpack.c.l.b16 %v354
    %v1211 = vunpack.c.l.b16 %v355
    %v1212 = vunpack.c.l.b16 %v356
    %v1213 = vunpack.c.l.b16 %v357
    %v1214 = vunpack.c.l.b16 %v358
    %v1215 = vunpack.c.l.b16 %v359
    %v1216 = vunpack.c.l.b16 %v360
    %v1217 = vunpack.c.l.b16 %v361
    %v1218 = vunpack.c.l.b16 %v362
    %v1219 = vunpack.c.l.b16 %v363
    %v1220 = vunpack.c.l.b16 %v364
    %v1221 = vunpack.c.l.b16 %v365
    %v1222 = vunpack.c.l.b16 %v366
    %v1223 = vunpack.c.l.b16 %v367
    %v1224 = vunpack.c.l.b16 %v368
    %v1225 = vunpack.c.l.b16 %v369
    %v1226 = vunpack.c.l.b16 %v370
    %v1227 = vunpack.c.l.b16 %v371
    %v1228 = vunpack.c.l.b16 %v372
    %v1229 = vunpack.c.l.b16 %v373
    %v1230 = vunpack.c.l.b16 %v374
    %v1231 = vunpack.c.l.b16 %v375
    %v1232 = vunpack.c.l.b16 %v376
    %v1233 = vunpack.c.l.b16 %v377
    %v1234 = vunpack.c.l.b16 %v378
    %v1235 = vunpack.c.l.b16 %v379
    %v1236 = vunpack.c.l.b16 %v380
    %v1237 = vunpack.c.l.b16 %v381
    %v1238 = vunpack.c.l.b16 %v382
    %v1239 = vunpack.c.l.b16 %v383
    %v1240 = vunpack.c.l.b16 %v384
    %v1241 = vunpack.c.l.b16 %v385
    %v1242 = vunpack.c.l.b16 %v386
    %v1243 = vunpack.c.l.b16 %v387
    %v1244 = vunpack.c.l.b16 %v388
    %v1245 = vunpack.c.l.b16 %v389
    %v1246 = vunpack.c.l.b16 %v390
    %v1247 = vunpack.c.l.b16 %v391
    %v1248 = vunpack.c.l.b16 %v392
    %v1249 = vunpack.c.l.b16 %v393
    %v1250 = vunpack.c.l.b16 %v394
    %v1251 = vunpack.c.l.b16 %v395
    %v1252 = vunpack.c.l.b16 %v396
    %v1253 = vunpack.c.l.b16 %v397
    %v1254 = vunpack.c.l.b16 %v398
    %v1255 = vunpack.c.l.b16 %v399
    %v1256 = vunpack.c.l.b16 %v400
    %v1257 = vunpack.c.l.b16 %v401
    %v1258 = vunpack.c.l.b16 %v402
    %v1259 = vunpack.c.l.b16 %v403
    %v1260 = vunpack.c.l.b16 %v404
    %v1261 = vunpack.c.l.b16 %v405
    %v1262 = vunpack.c.l.b16 %v406
    %v1263 = vunpack.c.l.b16 %v407
    %v1264 = vunpack.c.l.b16 %v408
    %v1265 = vunpack.c.l.b16 %v409
    %v1266 = vunpack.c.l.b16 %v410
    %v1267 = vunpack.c.l.b16 %v411
    %v1268 = vunpack.c.l.b16 %v412
    %v1269 = vunpack.c.l.b16 %v413
    %v1270 = vunpack.c.l.b16 %v414
    %v1271 = vunpack.c.l.b16 %v415
    %v1272 = vunpack.c.l.b16 %v416
    %v1273 = vunpack.c.l.b16 %v417
    %v1274 = vunpack.c.l.b16 %v418
    %v1275 = vunpack.c.l.b16 %v419
    %v1276 = vunpack.c.l.b16 %v420
    %v1277 = vunpack.c.l.b16 %v421
    %v1278 = vunpack.c.l.b16 %v422
    %v1279 = vunpack.c.l.b16 %v423
    %v1280 = vunpack.c.l.b16 %v424
    %v1281 = vunpack.c.l.b16 %v425
    %v1282 = vunpack.c.l.b16 %v426
    %v1283 = vunpack.c.l.b16 %v427
    %v1284 = vunpack.c.l.b16 %v428
    %v1285 = vunpack.c.l.b16 %v429
    %v1286 = vunpack.c.l.b16 %v430
    %v1287 = vunpack.c.l.b16 %v431
    %v1288 = vunpack.c.l.b16 %v432
    %v1289 = vunpack.c.l.b16 %v433
    %v1290 = vunpack.c.l.b16 %v434
    %v1291 = vunpack.c.l.b16 %v435
    %v1292 = vunpack.c.l.b16 %v436
    %v1293 = vunpack.c.l.b16 %v437
    %v1294 = vunpack.c.l.b16 %v438
    %v1295 = vunpack.c.l.b16 %v439
    %v1296 = vunpack.c.l.b16 %v440
    %v1297 = vunpack.c.l.b16 %v441
    %v1298 = vunpack.c.l.b16 %v442
    %v1299 = vunpack.c.l.b16 %v443
    %v1300 = vunpack.c.l.b16 %v444
    %v1301 = vunpack.c.l.b16 %v445
    %v1302 = vunpack.c.l.b16 %v446
    %v1303 = vunpack.c.l.b16 %v447
    %v1304 = vunpack.c.l.b16 %v448
    %v1305 = vunpack.c.l.b16 %v449
    %v1306 = vunpack.c.l.b16 %v450
    %v1307 = vunpack.c.l.b16 %v451
    %v1308 = vunpack.c.l.b16 %v452
    %v1309 = vunpack.c.l.b16 %v453
    %v1310 = vunpack.c.l.b16 %v454
    %v1311 = vunpack.c.l.b16 %v455
    %v1312 = vunpack.c.l.b16 %v456
    %v1313 = vunpack.c.l.b16 %v457
    %v1314 = vunpack.c.l.b16 %v458
    %v1315 = vunpack.c.l.b16 %v459
    %v1316 = vunpack.c.l.b16 %v460
    %v1317 = vunpack.c.l.b16 %v461
    %v1318 = vunpack.c.l.b16 %v462
    %v1319 = vunpack.c.l.b16 %v463
    %v1320 = vunpack.c.l.b16 %v464
    %v1321 = vunpack.c.l.b16 %v465
    %v1322 = vunpack.c.l.b16 %v466
    %v1323 = vunpack.c.l.b16 %v467
    %v1324 = vunpack.c.l.b16 %v468
    %v1325 = vunpack.c.l.b16 %v469
    %v1326 = vunpack.c.l.b16 %v470
    %v1327 = vunpack.c.l.b16 %v471
    %v1328 = vunpack.c.l.b16 %v472
    %v1329 = vunpack.c.l.b16 %v473
    %v1330 = vunpack.c.l.b16 %v474
    %v1331 = vunpack.c.l.b16 %v475
    %v1332 = vunpack.c.l.b16 %v476
    %v1333 = vunpack.c.l.b16 %v477
    %v1334 = vunpack.c.l.b16 %v478
    %v1335 = vunpack.c.l.b16 %v479
    %v1336 = vunpack.c.l.b16 %v480
    %v1337 = vunpack.c.l.b16 %v481
    %v1338 = vunpack.c.l.b16 %v482
    %v1339 = vunpack.c.l.b16 %v483
    %v1340 = vunpack.c.l.b16 %v484
    %v1341 = vunpack.c.l.b16 %v485
    %v1342 = vunpack.c.l.b16 %v486
    %v1343 = vunpack.c.l.b16 %v487
    %v1344 = vunpack.c.l.b16 %v488
    %v1345 = vunpack.c.l.b16 %v489
    %v1346 = vunpack.c.l.b16 %v490
    %v1347 = vunpack.c.l.b16 %v491
    %v1348 = vunpack.c.l.b16 %v492
    %v1349 = vunpack.c.l.b16 %v493
    %v1350 = vunpack.c.l.b16 %v494
    %v1351 = vunpack.c.l.b16 %v495
    %v1352 = vunpack.c.l.b16 %v496
    %v1353 = vunpack.c.l.b16 %v497
    %v1354 = vunpack.c.l.b16 %v498
    %v1355 = vunpack.c.l.b16 %v499
    %v1356 = vunpack.c.l.b16 %v500
    %v1357 = vunpack.c.l.b16 %v501
    %v1358 = vunpack.c.l.b16 %v502
    %v1359 = vunpack.c.l.b16 %v503
    %v1360 = vunpack.c.l.b16 %v504
    %v1361 = vunpack.c.l.b16 %v505
    %v1362 = vunpack.c.l.b16 %v506
    %v1363 = vunpack.c.l.b16 %v507
    %v1364 = vunpack.c.l.b16 %v508
    %v1365 = vunpack.c.l.b16 %v509
    %v1366 = vunpack.c.l.b16 %v510
    %v1367 = vunpack.c.l.b16 %v511
    %v1368 = vunpack.c.l.b16 %v512
    %v1369 = vunpack.c.l.b16 %v513
    %v1370 = vunpack.c.l.b16 %v514
    %v1371 = vunpack.c.l.b16 %v515
    %v1372 = vunpack.c.l.b16 %v516
    %v1373 = vunpack.c.l.b16 %v517
    %v1374 = vunpack.c.l.b16 %v518
    %v1375 = vunpack.c.l.b16 %v519
    %v1376 = vunpack.c.l.b16 %v520
    %v1377 = vunpack.c.l.b16 %v521
    %v1378 = vunpack.c.l.b16 %v522
    %v1379 = vunpack.c.l.b16 %v523
    %v1380 = vunpack.c.l.b16 %v524
    %v1381 = vunpack.c.l.b16 %v525
    %v1382 = vunpack.c.l.b16 %v526
    %v1383 = vunpack.c.l.b16 %v527
    %v1384 = vunpack.c.l.b16 %v528
    %v1385 = vunpack.c.l.b16 %v529
    %v1386 = vunpack.c.l.b16 %v530
    %v1387 = vunpack.c.l.b16 %v531
    %v1388 = vunpack.c.l.b16 %v532
    %v1389 = vunpack.c.l.b16 %v533
    %v1390 = vunpack.c.l.b16 %v534
    %v1391 = vunpack.c.l.b16 %v535
    %v1392 = vunpack.c.l.b16 %v536
    %v1393 = vunpack.c.l.b16 %v537
    %v1394 = vunpack.c.l.b16 %v538
    %v1395 = vunpack.c.l.b16 %v539
    %v1396 = vunpack.c.l.b16 %v540
    %v1397 = vunpack.c.l.b16 %v541
    %v1398 = vunpack.c.l.b16 %v542
    %v1399 = vunpack.c.l.b16 %v543
    %v1400 = vunpack.c.l.b16 %v544
    %v1401 = vunpack.c.l.b16 %v545
    %v1402 = vunpack.c.l.b16 %v546
    %v1403 = vunpack.c.l.b16 %v547
    %v1404 = vunpack.c.l.b16 %v548
    %v1405 = vunpack.c.l.b16 %v549
    %v1406 = vunpack.c.l.b16 %v550
    %v1407 = vunpack.c.l.b16 %v551
    %v1408 = vunpack.c.l.b16 %v552
    %v1409 = vunpack.c.l.b16 %v553
    %v1410 = vunpack.c.l.b16 %v554
    %v1411 = vunpack.c.l.b16 %v555
    %v1412 = vunpack.c.l.b16 %v556
    %v1413 = vunpack.c.l.b16 %v557
    %v1414 = vunpack.c.l.b16 %v558
    %v1415 = vunpack.c.l.b16 %v559
    %v1416 = vunpack.c.l.b16 %v560
    %v1417 = vunpack.c.l.b16 %v561
    %v1418 = vunpack.c.l.b16 %v562
    %v1419 = vunpack.c.l.b16 %v563
    %v1420 = vunpack.c.l.b16 %v564
    %v1421 = vunpack.c.l.b16 %v565
    %v1422 = vunpack.c.l.b16 %v566
    %v1423 = vunpack.c.l.b16 %v567
    %v1424 = vunpack.c.l.b16 %v568
    %v1425 = vunpack.c.l.b16 %v569
    %v1426 = vunpack.c.l.b16 %v570
    %v1427 = vunpack.c.l.b16 %v571
    %v1428 = vunpack.c.l.b16 %v572
    %v1429 = vunpack.c.l.b16 %v573
    %v1430 = vunpack.c.l.b16 %v574
    %v1431 = vunpack.c.l.b16 %v575
    %v1432 = vunpack.c.l.b16 %v576
    %v1433 = vunpack.c.l.b16 %v577
    %v1434 = vunpack.c.l.b16 %v578
    %v1435 = vunpack.c.l.b16 %v579
    %v1436 = vunpack.c.l.b16 %v580
    %v1437 = vunpack.c.l.b16 %v581
    %v1438 = vunpack.c.l.b16 %v582
    %v1439 = vunpack.c.l.b16 %v583
    %v1440 = vunpack.c.l.b16 %v584
    %v1441 = vunpack.c.l.b16 %v585
    %v1442 = vunpack.c.l.b16 %v586
    %v1443 = vunpack.c.l.b16 %v587
    %v1444 = vunpack.c.l.b16 %v588
    %v1445 = vunpack.c.l.b16 %v589
    %v1446 = vunpack.c.l.b16 %v590
    %v1447 = vunpack.c.l.b16 %v591
    %v1448 = vunpack.c.l.b16 %v592
    %v1449 = vunpack.c.l.b16 %v593
    %v1450 = vunpack.c.l.b16 %v594
    %v1451 = vunpack.c.l.b16 %v595
    %v1452 = vunpack.c.l.b16 %v596
    %v1453 = vunpack.c.l.b16 %v597
    %v1454 = vunpack.c.l.b16 %v598
    %v1455 = vunpack.c.l.b16 %v599
    %v1456 = vunpack.c.l.b16 %v600
    %v1457 = vunpack.c.l.b16 %v601
    %v1458 = vunpack.c.l.b16 %v602
    %v1459 = vunpack.c.l.b16 %v603
    %v1460 = vunpack.c.l.b16 %v604
    %v1461 = vunpack.c.l.b16 %v605
    %v1462 = vunpack.c.l.b16 %v606
    %v1463 = vunpack.c.l.b16 %v607
    %v1464 = vunpack.c.l.b16 %v608
    %v1465 = vunpack.c.l.b16 %v609
    %v1466 = vunpack.c.l.b16 %v610
    %v1467 = vunpack.c.l.b16 %v611
    %v1468 = vunpack.c.l.b16 %v612
    %v1469 = vunpack.c.l.b16 %v613
    %v1470 = vunpack.c.l.b16 %v614
    %v1471 = vpack.c.b16 %v1088, %v1087
    %v1472 = vpack.c.b16 %v1090, %v1089
    %v1473 = vpack.c.b16 %v1092, %v1091
    %v1474 = vpack.c.b16 %v1094, %v1093
    %v1475 = vpack.c.b16 %v1096, %v1095
    %v1476 = vpack.c.b16 %v1098, %v1097
    %v1477 = vpack.c.b16 %v1100, %v1099
    %v1478 = vpack.c.b16 %v1102, %v1101
    %v1479 = vpack.c.b16 %v1104, %v1103
    %v1480 = vpack.c.b16 %v1106, %v1105
    %v1481 = vpack.c.b16 %v1108, %v1107
    %v1482 = vpack.c.b16 %v1110, %v1109
    %v1483 = vpack.c.b16 %v1112, %v1111
    %v1484 = vpack.c.b16 %v1114, %v1113
    %v1485 = vpack.c.b16 %v1116, %v1115
    %v1486 = vpack.c.b16 %v1118, %v1117
    %v1487 = vpack.c.b16 %v1120, %v1119
    %v1488 = vpack.c.b16 %v1122, %v1121
    %v1489 = vpack.c.b16 %v1124, %v1123
    %v1490 = vpack.c.b16 %v1126, %v1125
    %v1491 = vpack.c.b16 %v1128, %v1127
    %v1492 = vpack.c.b16 %v1130, %v1129
    %v1493 = vpack.c.b16 %v1132, %v1131
    %v1494 = vpack.c.b16 %v1134, %v1133
    %v1495 = vpack.c.b16 %v1136, %v1135
    %v1496 = vpack.c.b16 %v1138, %v1137
    %v1497 = vpack.c.b16 %v1140, %v1139
    %v1498 = vpack.c.b16 %v1142, %v1141
    %v1499 = vpack.c.b16 %v1144, %v1143
    %v1500 = vpack.c.b16 %v1146, %v1145
    %v1501 = vpack.c.b16 %v1148, %v1147
    %v1502 = vpack.c.b16 %v1150, %v1149
    %v1503 = vpack.c.b16 %v1152, %v1151
    %v1504 = vpack.c.b16 %v1154, %v1153
    %v1505 = vpack.c.b16 %v1156, %v1155
    %v1506 = vpack.c.b16 %v1158, %v1157
    %v1507 = vpack.c.b16 %v1160, %v1159
    %v1508 = vpack.c.b16 %v1162, %v1161
    %v1509 = vpack.c.b16 %v1164, %v1163
    %v1510 = vpack.c.b16 %v1166, %v1165
    %v1511 = vpack.c.b16 %v1168, %v1167
    %v1512 = vpack.c.b16 %v1170, %v1169
    %v1513 = vpack.c.b16 %v1172, %v1171
    %v1514 = vpack.c.b16 %v1174, %v1173
    %v1515 = vpack.c.b16 %v1176, %v1175
    %v1516 = vpack.c.b16 %v1178, %v1177
    %v1517 = vpack.c.b16 %v1180, %v1179
    %v1518 = vpack.c.b16 %v1182, %v1181
    %v1519 = vpack.c.b16 %v1184, %v1183
    %v1520 = vpack.c.b16 %v1186, %v1185
    %v1521 = vpack.c.b16 %v1188, %v1187
    %v1522 = vpack.c.b16 %v1190, %v1189
    %v1523 = vpack.c.b16 %v1192, %v1191
    %v1524 = vpack.c.b16 %v1194, %v1193
    %v1525 = vpack.c.b16 %v1196, %v1195
    %v1526 = vpack.c.b16 %v1198, %v1197
    %v1527 = vpack.c.b16 %v1200, %v1199
    %v1528 = vpack.c.b16 %v1202, %v1201
    %v1529 = vpack.c.b16 %v1204, %v1203
    %v1530 = vpack.c.b16 %v1206, %v1205
    %v1531 = vpack.c.b16 %v1208, %v1207
    %v1532 = vpack.c.b16 %v1210, %v1209
    %v1533 = vpack.c.b16 %v1212, %v1211
    %v1534 = vpack.c.b16 %v1214, %v1213
    %v1535 = vpack.c.b16 %v1216, %v1215
    %v1536 = vpack.c.b16 %v1218, %v1217
    %v1537 = vpack.c.b16 %v1220, %v1219
    %v1538 = vpack.c.b16 %v1222, %v1221
    %v1539 = vpack.c.b16 %v1224, %v1223
    %v1540 = vpack.c.b16 %v1226, %v1225
    %v1541 = vpack.c.b16 %v1228, %v1227
    %v1542 = vpack.c.b16 %v1230, %v1229
    %v1543 = vpack.c.b16 %v1232, %v1231
    %v1544 = vpack.c.b16 %v1234, %v1233
    %v1545 = vpack.c.b16 %v1236, %v1235
    %v1546 = vpack.c.b16 %v1238, %v1237
    %v1547 = vpack.c.b16 %v1240, %v1239
    %v1548 = vpack.c.b16 %v1242, %v1241
    %v1549 = vpack.c.b16 %v1244, %v1243
    %v1550 = vpack.c.b16 %v1246, %v1245
    %v1551 = vpack.c.b16 %v1248, %v1247
    %v1552 = vpack.c.b16 %v1250, %v1249
    %v1553 = vpack.c.b16 %v1252, %v1251
    %v1554 = vpack.c.b16 %v1254, %v1253
    %v1555 = vpack.c.b16 %v1256, %v1255
    %v1556 = vpack.c.b16 %v1258, %v1257
    %v1557 = vpack.c.b16 %v1260, %v1259
    %v1558 = vpack.c.b16 %v1262, %v1261
    %v1559 = vpack.c.b16 %v1264, %v1263
    %v1560 = vpack.c.b16 %v1266, %v1265
    %v1561 = vpack.c.b16 %v1268, %v1267
    %v1562 = vpack.c.b16 %v1270, %v1269
    %v1563 = vpack.c.b16 %v1272, %v1271
    %v1564 = vpack.c.b16 %v1274, %v1273
    %v1565 = vpack.c.b16 %v1276, %v1275
    %v1566 = vpack.c.b16 %v1278, %v1277
    %v1567 = vpack.c.b16 %v1280, %v1279
    %v1568 = vpack.c.b16 %v1282, %v1281
    %v1569 = vpack.c.b16 %v1284, %v1283
    %v1570 = vpack.c.b16 %v1286, %v1285
    %v1571 = vpack.c.b16 %v1288, %v1287
    %v1572 = vpack.c.b16 %v1290, %v1289
    %v1573 = vpack.c.b16 %v1292, %v1291
    %v1574 = vpack.c.b16 %v1294, %v1293
    %v1575 = vpack.c.b16 %v1296, %v1295
    %v1576 = vpack.c.b16 %v1298, %v1297
    %v1577 = vpack.c.b16 %v1300, %v1299
    %v1578 = vpack.c.b16 %v1302, %v1301
    %v1579 = vpack.c.b16 %v1304, %v1303
    %v1580 = vpack.c.b16 %v1306, %v1305
    %v1581 = vpack.c.b16 %v1308, %v1307
    %v1582 = vpack.c.b16 %v1310, %v1309
    %v1583 = vpack.c.b16 %v1312, %v1311
    %v1584 = vpack.c.b16 %v1314, %v1313
    %v1585 = vpack.c.b16 %v1316, %v1315
    %v1586 = vpack.c.b16 %v1318, %v1317
    %v1587 = vpack.c.b16 %v1320, %v1319
    %v1588 = vpack.c.b16 %v1322, %v1321
    %v1589 = vpack.c.b16 %v1324, %v1323
    %v1590 = vpack.c.b16 %v1326, %v1325
    %v1591 = vpack.c.b16 %v1328, %v1327
    %v1592 = vpack.c.b16 %v1330, %v1329
    %v1593 = vpack.c.b16 %v1332, %v1331
    %v1594 = vpack.c.b16 %v1334, %v1333
    %v1595 = vpack.c.b16 %v1336, %v1335
    %v1596 = vpack.c.b16 %v1338, %v1337
    %v1597 = vpack.c.b16 %v1340, %v1339
    %v1598 = vpack.c.b16 %v1342, %v1341
    %v1599 = vpack.c.b16 %v1344, %v1343
    %v1600 = vpack.c.b16 %v1346, %v1345
    %v1601 = vpack.c.b16 %v1348, %v1347
    %v1602 = vpack.c.b16 %v1350, %v1349
    %v1603 = vpack.c.b16 %v1352, %v1351
    %v1604 = vpack.c.b16 %v1354, %v1353
    %v1605 = vpack.c.b16 %v1356, %v1355
    %v1606 = vpack.c.b16 %v1358, %v1357
    %v1607 = vpack.c.b16 %v1360, %v1359
    %v1608 = vpack.c.b16 %v1362, %v1361
    %v1609 = vpack.c.b16 %v1364, %v1363
    %v1610 = vpack.c.b16 %v1366, %v1365
    %v1611 = vpack.c.b16 %v1368, %v1367
    %v1612 = vpack.c.b16 %v1370, %v1369
    %v1613 = vpack.c.b16 %v1372, %v1371
    %v1614 = vpack.c.b16 %v1374, %v1373
    %v1615 = vpack.c.b16 %v1376, %v1375
    %v1616 = vpack.c.b16 %v1378, %v1377
    %v1617 = vpack.c.b16 %v1380, %v1379
    %v1618 = vpack.c.b16 %v1382, %v1381
    %v1619 = vpack.c.b16 %v1384, %v1383
    %v1620 = vpack.c.b16 %v1386, %v1385
    %v1621 = vpack.c.b16 %v1388, %v1387
    %v1622 = vpack.c.b16 %v1390, %v1389
    %v1623 = vpack.c.b16 %v1392, %v1391
    %v1624 = vpack.c.b16 %v1394, %v1393
    %v1625 = vpack.c.b16 %v1396, %v1395
    %v1626 = vpack.c.b16 %v1398, %v1397
    %v1627 = vpack.c.b16 %v1400, %v1399
    %v1628 = vpack.c.b16 %v1402, %v1401
    %v1629 = vpack.c.b16 %v1404, %v1403
    %v1630 = vpack.c.b16 %v1406, %v1405
    %v1631 = vpack.c.b16 %v1408, %v1407
    %v1632 = vpack.c.b16 %v1410, %v1409
    %v1633 = vpack.c.b16 %v1412, %v1411
    %v1634 = vpack.c.b16 %v1414, %v1413
    %v1635 = vpack.c.b16 %v1416, %v1415
    %v1636 = vpack.c.b16 %v1418, %v1417
    %v1637 = vpack.c.b16 %v1420, %v1419
    %v1638 = vpack.c.b16 %v1422, %v1421
    %v1639 = vpack.c.b16 %v1424, %v1423
    %v1640 = vpack.c.b16 %v1426, %v1425
    %v1641 = vpack.c.b16 %v1428, %v1427
    %v1642 = vpack.c.b16 %v1430, %v1429
    %v1643 = vpack.c.b16 %v1432, %v1431
    %v1644 = vpack.c.b16 %v1434, %v1433
    %v1645 = vpack.c.b16 %v1436, %v1435
    %v1646 = vpack.c.b16 %v1438, %v1437
    %v1647 = vpack.c.b16 %v1440, %v1439
    %v1648 = vpack.c.b16 %v1442, %v1441
    %v1649 = vpack.c.b16 %v1444, %v1443
    %v1650 = vpack.c.b16 %v1446, %v1445
    %v1651 = vpack.c.b16 %v1448, %v1447
    %v1652 = vpack.c.b16 %v1450, %v1449
    %v1653 = vpack.c.b16 %v1452, %v1451
    %v1654 = vpack.c.b16 %v1454, %v1453
    %v1655 = vpack.c.b16 %v1456, %v1455
    %v1656 = vpack.c.b16 %v1458, %v1457
    %v1657 = vpack.c.b16 %v1460, %v1459
    %v1658 = vpack.c.b16 %v1462, %v1461
    %v1659 = vpack.c.b16 %v1464, %v1463
    %v1660 = vpack.c.b16 %v1466, %v1465
    %v1661 = vpack.c.b16 %v1468, %v1467
    %v1662 = vpack.c.b16 %v1470, %v1469
    %1855 = vmatpush.bf16.msra.mxu0 %v1478
    %1856 = vmatpush.bf16.msra.mxu0 %v1477
    %1857 = vmatpush.bf16.msra.mxu0 %v1476
    %1858 = vmatpush.bf16.msra.mxu0 %v1475
    %1859 = vmatpush.bf16.msra.mxu0 %v1474
    %1860 = vmatpush.bf16.msra.mxu0 %v1473
    %1861 = vmatpush.bf16.msra.mxu0 %v1472
    %1862 = vmatpush.bf16.msra.mxu0 %v1471
    %1863 = vmatmul.bf16.gmra.mxu0 %v655
    %v1864 = vpop.f32.mrf.mxu0
    %v1865 = vadd.f32 %v617, %v1864
    %v1866 = vpop.f32.mrf.mxu0
    %1867 = vdwg.mxu0
    %1868 = vmatpush.bf16.msra.mxu0 %v1486
    %1869 = vmatpush.bf16.msra.mxu0 %v1485
    %1870 = vmatpush.bf16.msra.mxu0 %v1484
    %1871 = vmatpush.bf16.msra.mxu0 %v1483
    %1872 = vmatpush.bf16.msra.mxu0 %v1482
    %1873 = vmatpush.bf16.msra.mxu0 %v1481
    %1874 = vmatpush.bf16.msra.mxu0 %v1480
    %1875 = vmatpush.bf16.msra.mxu0 %v1479
    %1876 = vmatmul.bf16.gmra.mxu0 %v656
    %v1877 = vpop.f32.mrf.mxu0
    %v1878 = vadd.f32 %v1865, %v1877
    %v1879 = vpop.f32.mrf.mxu0
    %1880 = vdwg.mxu0
    %1881 = vmatpush.bf16.msra.mxu0 %v1494
    %1882 = vmatpush.bf16.msra.mxu0 %v1493
    %1883 = vmatpush.bf16.msra.mxu0 %v1492
    %1884 = vmatpush.bf16.msra.mxu0 %v1491
    %1885 = vmatpush.bf16.msra.mxu0 %v1490
    %1886 = vmatpush.bf16.msra.mxu0 %v1489
    %1887 = vmatpush.bf16.msra.mxu0 %v1488
    %1888 = vmatpush.bf16.msra.mxu0 %v1487
    %1889 = vmatmul.bf16.gmra.mxu0 %v657
    %v1890 = vpop.f32.mrf.mxu0
    %v1891 = vadd.f32 %v1878, %v1890
    %v1892 = vpop.f32.mrf.mxu0
    %1893 = vdwg.mxu0
    %1894 = vmatpush.bf16.msra.mxu0 %v1502
    %1895 = vmatpush.bf16.msra.mxu0 %v1501
    %1896 = vmatpush.bf16.msra.mxu0 %v1500
    %1897 = vmatpush.bf16.msra.mxu0 %v1499
    %1898 = vmatpush.bf16.msra.mxu0 %v1498
    %1899 = vmatpush.bf16.msra.mxu0 %v1497
    %1900 = vmatpush.bf16.msra.mxu0 %v1496
    %1901 = vmatpush.bf16.msra.mxu0 %v1495
    %1902 = vmatmul.bf16.gmra.mxu0 %v658
    %v1903 = vpop.f32.mrf.mxu0
    %v1904 = vadd.f32 %v1891, %v1903
    %v1905 = vpop.f32.mrf.mxu0
    %1906 = vdwg.mxu0
    %1907 = vmatpush.bf16.msra.mxu0 %v1510
    %1908 = vmatpush.bf16.msra.mxu0 %v1509
    %1909 = vmatpush.bf16.msra.mxu0 %v1508
    %1910 = vmatpush.bf16.msra.mxu0 %v1507
    %1911 = vmatpush.bf16.msra.mxu0 %v1506
    %1912 = vmatpush.bf16.msra.mxu0 %v1505
    %1913 = vmatpush.bf16.msra.mxu0 %v1504
    %1914 = vmatpush.bf16.msra.mxu0 %v1503
    %1915 = vmatmul.bf16.gmra.mxu0 %v659
    %v1916 = vpop.f32.mrf.mxu0
    %v1917 = vadd.f32 %v1904, %v1916
    %v1918 = vpop.f32.mrf.mxu0
    %1919 = vdwg.mxu0
    %1920 = vmatpush.bf16.msra.mxu0 %v1518
    %1921 = vmatpush.bf16.msra.mxu0 %v1517
    %1922 = vmatpush.bf16.msra.mxu0 %v1516
    %1923 = vmatpush.bf16.msra.mxu0 %v1515
    %1924 = vmatpush.bf16.msra.mxu0 %v1514
    %1925 = vmatpush.bf16.msra.mxu0 %v1513
    %1926 = vmatpush.bf16.msra.mxu0 %v1512
    %1927 = vmatpush.bf16.msra.mxu0 %v1511
    %1928 = vmatmul.bf16.gmra.mxu0 %v660
    %v1929 = vpop.f32.mrf.mxu0
    %v1930 = vadd.f32 %v1917, %v1929
    %v1931 = vpop.f32.mrf.mxu0
    %1932 = vdwg.mxu0
    %1933 = vmatpush.bf16.msra.mxu0 %v1526
    %1934 = vmatpush.bf16.msra.mxu0 %v1525
    %1935 = vmatpush.bf16.msra.mxu0 %v1524
    %1936 = vmatpush.bf16.msra.mxu0 %v1523
    %1937 = vmatpush.bf16.msra.mxu0 %v1522
    %1938 = vmatpush.bf16.msra.mxu0 %v1521
    %1939 = vmatpush.bf16.msra.mxu0 %v1520
    %1940 = vmatpush.bf16.msra.mxu0 %v1519
    %1941 = vmatmul.bf16.gmra.mxu0 %v661
    %v1942 = vpop.f32.mrf.mxu0
    %v1943 = vadd.f32 %v1930, %v1942
    %v1944 = vpop.f32.mrf.mxu0
    %1945 = vdwg.mxu0
    %1946 = vmatpush.bf16.msra.mxu0 %v1534
    %1947 = vmatpush.bf16.msra.mxu0 %v1533
    %1948 = vmatpush.bf16.msra.mxu0 %v1532
    %1949 = vmatpush.bf16.msra.mxu0 %v1531
    %1950 = vmatpush.bf16.msra.mxu0 %v1530
    %1951 = vmatpush.bf16.msra.mxu0 %v1529
    %1952 = vmatpush.bf16.msra.mxu0 %v1528
    %1953 = vmatpush.bf16.msra.mxu0 %v1527
    %1954 = vmatmul.bf16.gmra.mxu0 %v662
    %v1955 = vpop.f32.mrf.mxu0
    %v1956 = vadd.f32 %v1943, %v1955
    %v1957 = vpop.f32.mrf.mxu0
    %1958 = vdwg.mxu0
    %1959 = vmatpush.bf16.msra.mxu0 %v1542
    %1960 = vmatpush.bf16.msra.mxu0 %v1541
    %1961 = vmatpush.bf16.msra.mxu0 %v1540
    %1962 = vmatpush.bf16.msra.mxu0 %v1539
    %1963 = vmatpush.bf16.msra.mxu0 %v1538
    %1964 = vmatpush.bf16.msra.mxu0 %v1537
    %1965 = vmatpush.bf16.msra.mxu0 %v1536
    %1966 = vmatpush.bf16.msra.mxu0 %v1535
    %1967 = vmatmul.bf16.gmra.mxu0 %v663
    %v1968 = vpop.f32.mrf.mxu0
    %v1969 = vadd.f32 %v1956, %v1968
    %v1970 = vpop.f32.mrf.mxu0
    %1971 = vdwg.mxu0
    %1972 = vmatpush.bf16.msra.mxu0 %v1550
    %1973 = vmatpush.bf16.msra.mxu0 %v1549
    %1974 = vmatpush.bf16.msra.mxu0 %v1548
    %1975 = vmatpush.bf16.msra.mxu0 %v1547
    %1976 = vmatpush.bf16.msra.mxu0 %v1546
    %1977 = vmatpush.bf16.msra.mxu0 %v1545
    %1978 = vmatpush.bf16.msra.mxu0 %v1544
    %1979 = vmatpush.bf16.msra.mxu0 %v1543
    %1980 = vmatmul.bf16.gmra.mxu0 %v664
    %v1981 = vpop.f32.mrf.mxu0
    %v1982 = vadd.f32 %v1969, %v1981
    %v1983 = vpop.f32.mrf.mxu0
    %1984 = vdwg.mxu0
    %1985 = vmatpush.bf16.msra.mxu0 %v1558
    %1986 = vmatpush.bf16.msra.mxu0 %v1557
    %1987 = vmatpush.bf16.msra.mxu0 %v1556
    %1988 = vmatpush.bf16.msra.mxu0 %v1555
    %1989 = vmatpush.bf16.msra.mxu0 %v1554
    %1990 = vmatpush.bf16.msra.mxu0 %v1553
    %1991 = vmatpush.bf16.msra.mxu0 %v1552
    %1992 = vmatpush.bf16.msra.mxu0 %v1551
    %1993 = vmatmul.bf16.gmra.mxu0 %v665
    %v1994 = vpop.f32.mrf.mxu0
    %v1995 = vadd.f32 %v1982, %v1994
    %v1996 = vpop.f32.mrf.mxu0
    %1997 = vdwg.mxu0
    %1998 = vmatpush.bf16.msra.mxu0 %v1566
    %1999 = vmatpush.bf16.msra.mxu0 %v1565
    %2000 = vmatpush.bf16.msra.mxu0 %v1564
    %2001 = vmatpush.bf16.msra.mxu0 %v1563
    %2002 = vmatpush.bf16.msra.mxu0 %v1562
    %2003 = vmatpush.bf16.msra.mxu0 %v1561
    %2004 = vmatpush.bf16.msra.mxu0 %v1560
    %2005 = vmatpush.bf16.msra.mxu0 %v1559
    %2006 = vmatmul.bf16.gmra.mxu0 %v666
    %v2007 = vpop.f32.mrf.mxu0
    %v2008 = vadd.f32 %v1995, %v2007
    %v2009 = vpop.f32.mrf.mxu0
    %2010 = vdwg.mxu0
    %2011 = vmatpush.bf16.msra.mxu0 %v1574
    %2012 = vmatpush.bf16.msra.mxu0 %v1573
    %2013 = vmatpush.bf16.msra.mxu0 %v1572
    %2014 = vmatpush.bf16.msra.mxu0 %v1571
    %2015 = vmatpush.bf16.msra.mxu0 %v1570
    %2016 = vmatpush.bf16.msra.mxu0 %v1569
    %2017 = vmatpush.bf16.msra.mxu0 %v1568
    %2018 = vmatpush.bf16.msra.mxu0 %v1567
    %2019 = vmatmul.bf16.gmra.mxu0 %v667
    %v2020 = vpop.f32.mrf.mxu0
    %v2021 = vadd.f32 %v2008, %v2020
    %v2022 = vpop.f32.mrf.mxu0
    %2023 = vdwg.mxu0
    %2024 = vmatpush.bf16.msra.mxu0 %v1582
    %2025 = vmatpush.bf16.msra.mxu0 %v1581
    %2026 = vmatpush.bf16.msra.mxu0 %v1580
    %2027 = vmatpush.bf16.msra.mxu0 %v1579
    %2028 = vmatpush.bf16.msra.mxu0 %v1578
    %2029 = vmatpush.bf16.msra.mxu0 %v1577
    %2030 = vmatpush.bf16.msra.mxu0 %v1576
    %2031 = vmatpush.bf16.msra.mxu0 %v1575
    %2032 = vmatmul.bf16.gmra.mxu0 %v668
    %v2033 = vpop.f32.mrf.mxu0
    %v2034 = vadd.f32 %v2021, %v2033
    %v2035 = vpop.f32.mrf.mxu0
    %2036 = vdwg.mxu0
    %2037 = vmatpush.bf16.msra.mxu0 %v1590
    %2038 = vmatpush.bf16.msra.mxu0 %v1589
    %2039 = vmatpush.bf16.msra.mxu0 %v1588
    %2040 = vmatpush.bf16.msra.mxu0 %v1587
    %2041 = vmatpush.bf16.msra.mxu0 %v1586
    %2042 = vmatpush.bf16.msra.mxu0 %v1585
    %2043 = vmatpush.bf16.msra.mxu0 %v1584
    %2044 = vmatpush.bf16.msra.mxu0 %v1583
    %2045 = vmatmul.bf16.gmra.mxu0 %v669
    %v2046 = vpop.f32.mrf.mxu0
    %v2047 = vadd.f32 %v2034, %v2046
    %v2048 = vpop.f32.mrf.mxu0
    %2049 = vdwg.mxu0
    %2050 = vmatpush.bf16.msra.mxu0 %v1598
    %2051 = vmatpush.bf16.msra.mxu0 %v1597
    %2052 = vmatpush.bf16.msra.mxu0 %v1596
    %2053 = vmatpush.bf16.msra.mxu0 %v1595
    %2054 = vmatpush.bf16.msra.mxu0 %v1594
    %2055 = vmatpush.bf16.msra.mxu0 %v1593
    %2056 = vmatpush.bf16.msra.mxu0 %v1592
    %2057 = vmatpush.bf16.msra.mxu0 %v1591
    %2058 = vmatmul.bf16.gmra.mxu0 %v670
    %v2059 = vpop.f32.mrf.mxu0
    %v2060 = vadd.f32 %v2047, %v2059
    %v2061 = vpop.f32.mrf.mxu0
    %2062 = vdwg.mxu0
    %2063 = vmatpush.bf16.msra.mxu0 %v1606
    %2064 = vmatpush.bf16.msra.mxu0 %v1605
    %2065 = vmatpush.bf16.msra.mxu0 %v1604
    %2066 = vmatpush.bf16.msra.mxu0 %v1603
    %2067 = vmatpush.bf16.msra.mxu0 %v1602
    %2068 = vmatpush.bf16.msra.mxu0 %v1601
    %2069 = vmatpush.bf16.msra.mxu0 %v1600
    %2070 = vmatpush.bf16.msra.mxu0 %v1599
    %2071 = vmatmul.bf16.gmra.mxu0 %v671
    %v2072 = vpop.f32.mrf.mxu0
    %v2073 = vadd.f32 %v2060, %v2072
    %v2074 = vpop.f32.mrf.mxu0
    %2075 = vdwg.mxu0
    %2076 = vmatpush.bf16.msra.mxu0 %v1614
    %2077 = vmatpush.bf16.msra.mxu0 %v1613
    %2078 = vmatpush.bf16.msra.mxu0 %v1612
    %2079 = vmatpush.bf16.msra.mxu0 %v1611
    %2080 = vmatpush.bf16.msra.mxu0 %v1610
    %2081 = vmatpush.bf16.msra.mxu0 %v1609
    %2082 = vmatpush.bf16.msra.mxu0 %v1608
    %2083 = vmatpush.bf16.msra.mxu0 %v1607
    %2084 = vmatmul.bf16.gmra.mxu0 %v672
    %v2085 = vpop.f32.mrf.mxu0
    %v2086 = vadd.f32 %v2073, %v2085
    %v2087 = vpop.f32.mrf.mxu0
    %2088 = vdwg.mxu0
    %2089 = vmatpush.bf16.msra.mxu0 %v1622
    %2090 = vmatpush.bf16.msra.mxu0 %v1621
    %2091 = vmatpush.bf16.msra.mxu0 %v1620
    %2092 = vmatpush.bf16.msra.mxu0 %v1619
    %2093 = vmatpush.bf16.msra.mxu0 %v1618
    %2094 = vmatpush.bf16.msra.mxu0 %v1617
    %2095 = vmatpush.bf16.msra.mxu0 %v1616
    %2096 = vmatpush.bf16.msra.mxu0 %v1615
    %2097 = vmatmul.bf16.gmra.mxu0 %v673
    %v2098 = vpop.f32.mrf.mxu0
    %v2099 = vadd.f32 %v2086, %v2098
    %v2100 = vpop.f32.mrf.mxu0
    %2101 = vdwg.mxu0
    %2102 = vmatpush.bf16.msra.mxu0 %v1630
    %2103 = vmatpush.bf16.msra.mxu0 %v1629
    %2104 = vmatpush.bf16.msra.mxu0 %v1628
    %2105 = vmatpush.bf16.msra.mxu0 %v1627
    %2106 = vmatpush.bf16.msra.mxu0 %v1626
    %2107 = vmatpush.bf16.msra.mxu0 %v1625
    %2108 = vmatpush.bf16.msra.mxu0 %v1624
    %2109 = vmatpush.bf16.msra.mxu0 %v1623
    %2110 = vmatmul.bf16.gmra.mxu0 %v674
    %v2111 = vpop.f32.mrf.mxu0
    %v2112 = vadd.f32 %v2099, %v2111
    %v2113 = vpop.f32.mrf.mxu0
    %2114 = vdwg.mxu0
    %2115 = vmatpush.bf16.msra.mxu0 %v1638
    %2116 = vmatpush.bf16.msra.mxu0 %v1637
    %2117 = vmatpush.bf16.msra.mxu0 %v1636
    %2118 = vmatpush.bf16.msra.mxu0 %v1635
    %2119 = vmatpush.bf16.msra.mxu0 %v1634
    %2120 = vmatpush.bf16.msra.mxu0 %v1633
    %2121 = vmatpush.bf16.msra.mxu0 %v1632
    %2122 = vmatpush.bf16.msra.mxu0 %v1631
    %2123 = vmatmul.bf16.gmra.mxu0 %v675
    %v2124 = vpop.f32.mrf.mxu0
    %v2125 = vadd.f32 %v2112, %v2124
    %v2126 = vpop.f32.mrf.mxu0
    %2127 = vdwg.mxu0
    %2128 = vmatpush.bf16.msra.mxu0 %v1646
    %2129 = vmatpush.bf16.msra.mxu0 %v1645
    %2130 = vmatpush.bf16.msra.mxu0 %v1644
    %2131 = vmatpush.bf16.msra.mxu0 %v1643
    %2132 = vmatpush.bf16.msra.mxu0 %v1642
    %2133 = vmatpush.bf16.msra.mxu0 %v1641
    %2134 = vmatpush.bf16.msra.mxu0 %v1640
    %2135 = vmatpush.bf16.msra.mxu0 %v1639
    %2136 = vmatmul.bf16.gmra.mxu0 %v676
    %v2137 = vpop.f32.mrf.mxu0
    %v2138 = vadd.f32 %v2125, %v2137
    %v2139 = vpop.f32.mrf.mxu0
    %2140 = vdwg.mxu0
    %2141 = vmatpush.bf16.msra.mxu0 %v1654
    %2142 = vmatpush.bf16.msra.mxu0 %v1653
    %2143 = vmatpush.bf16.msra.mxu0 %v1652
    %2144 = vmatpush.bf16.msra.mxu0 %v1651
    %2145 = vmatpush.bf16.msra.mxu0 %v1650
    %2146 = vmatpush.bf16.msra.mxu0 %v1649
    %2147 = vmatpush.bf16.msra.mxu0 %v1648
    %2148 = vmatpush.bf16.msra.mxu0 %v1647
    %2149 = vmatmul.bf16.gmra.mxu0 %v677
    %v2150 = vpop.f32.mrf.mxu0
    %v2151 = vadd.f32 %v2138, %v2150
    %v2152 = vpop.f32.mrf.mxu0
    %2153 = vdwg.mxu0
    %2154 = vmatpush.bf16.msra.mxu0 %v1662
    %2155 = vmatpush.bf16.msra.mxu0 %v1661
    %2156 = vmatpush.bf16.msra.mxu0 %v1660
    %2157 = vmatpush.bf16.msra.mxu0 %v1659
    %2158 = vmatpush.bf16.msra.mxu0 %v1658
    %2159 = vmatpush.bf16.msra.mxu0 %v1657
    %2160 = vmatpush.bf16.msra.mxu0 %v1656
    %2161 = vmatpush.bf16.msra.mxu0 %v1655
    %2162 = vmatmul.bf16.gmra.mxu0 %v678
    %v2163 = vpop.f32.mrf.mxu0
    %v2164 = vadd.f32 %v2151, %v2163
    %v2165 = vpop.f32.mrf.mxu0
    %2166 = vdwg.mxu0
    %v2167 = vmax.f32 %v2164, 0.0
    %v2168 = vpack.c.bf16 %v2167, %v2167
    %v2169 = vld [vmem:[#allocation6] sm:$0xff]
    %v2170 = vld [vmem:[#allocation6 + $0x8] sm:$0xff]
    %v2171 = vld [vmem:[#allocation6 + $0x10] sm:$0xff]
    %v2172 = vld [vmem:[#allocation6 + $0x18] sm:$0xf]
    %v2173 = vld [vmem:[#allocation6 + $0x1c] sm:$0xff]
    %v2174 = vld [vmem:[#allocation6 + $0x24] sm:$0xff]
    %v2175 = vld [vmem:[#allocation6 + $0x2c] sm:$0xff]
    %v2176 = vld [vmem:[#allocation6 + $0x34] sm:$0xf]
    %v2177 = vld [vmem:[#allocation6 + $0x38] sm:$0xff]
    %v2178 = vld [vmem:[#allocation6 + $0x40] sm:$0xff]
    %v2179 = vld [vmem:[#allocation6 + $0x48] sm:$0xff]
    %v2180 = vld [vmem:[#allocation6 + $0x50] sm:$0xf]
    %v2181 = vld [vmem:[#allocation6 + $0x54] sm:$0xff]
    %v2182 = vld [vmem:[#allocation6 + $0x5c] sm:$0xff]
    %v2183 = vld [vmem:[#allocation6 + $0x64] sm:$0xff]
    %v2184 = vld [vmem:[#allocation6 + $0x6c] sm:$0xf]
    %v2185 = vld [vmem:[#allocation6 + $0x70] sm:$0xff]
    %v2186 = vld [vmem:[#allocation6 + $0x78] sm:$0xff]
    %v2187 = vld [vmem:[#allocation6 + $0x80] sm:$0xff]
    %v2188 = vld [vmem:[#allocation6 + $0x88] sm:$0xf]
    %v2189 = vld [vmem:[#allocation6 + $0x8c] sm:$0xff]
    %v2190 = vld [vmem:[#allocation6 + $0x94] sm:$0xff]
    %v2191 = vld [vmem:[#allocation6 + $0x9c] sm:$0xff]
    %v2192 = vld [vmem:[#allocation6 + $0xa4] sm:$0xf]
    %v2193 = vld [vmem:[#allocation6 + $0xa8] sm:$0xff]
    %v2194 = vld [vmem:[#allocation6 + $0xb0] sm:$0xff]
    %v2195 = vld [vmem:[#allocation6 + $0xb8] sm:$0xff]
    %v2196 = vld [vmem:[#allocation6 + $0xc0] sm:$0xf]
    %v2197 = vld [vmem:[#allocation6 + $0xc4] sm:$0xff]
    %v2198 = vld [vmem:[#allocation6 + $0xcc] sm:$0xff]
    %v2199 = vld [vmem:[#allocation6 + $0xd4] sm:$0xff]
    %v2200 = vld [vmem:[#allocation6 + $0xdc] sm:$0xf]
    %v2201 = vld [vmem:[#allocation6 + $0xe0] sm:$0xff]
    %v2202 = vld [vmem:[#allocation6 + $0xe8] sm:$0xff]
    %v2203 = vld [vmem:[#allocation6 + $0xf0] sm:$0xff]
    %v2204 = vld [vmem:[#allocation6 + $0xf8] sm:$0xf]
    %v2205 = vld [vmem:[#allocation6 + $0xfc] sm:$0xff]
    %v2206 = vld [vmem:[#allocation6 + $0x104] sm:$0xff]
    %v2207 = vld [vmem:[#allocation6 + $0x10c] sm:$0xff]
    %v2208 = vld [vmem:[#allocation6 + $0x114] sm:$0xf]
    %v2209 = vld [vmem:[#allocation6 + $0x118] sm:$0xff]
    %v2210 = vld [vmem:[#allocation6 + $0x120] sm:$0xff]
    %v2211 = vld [vmem:[#allocation6 + $0x128] sm:$0xff]
    %v2212 = vld [vmem:[#allocation6 + $0x130] sm:$0xf]
    %v2213 = vld [vmem:[#allocation6 + $0x134] sm:$0xff]
    %v2214 = vld [vmem:[#allocation6 + $0x13c] sm:$0xff]
    %v2215 = vld [vmem:[#allocation6 + $0x144] sm:$0xff]
    %v2216 = vld [vmem:[#allocation6 + $0x14c] sm:$0xf]
    %v2217 = vld [vmem:[#allocation6 + $0x150] sm:$0xff]
    %v2218 = vld [vmem:[#allocation6 + $0x158] sm:$0xff]
    %v2219 = vld [vmem:[#allocation6 + $0x160] sm:$0xff]
    %v2220 = vld [vmem:[#allocation6 + $0x168] sm:$0xf]
    %v2221 = vld [vmem:[#allocation6 + $0x16c] sm:$0xff]
    %v2222 = vld [vmem:[#allocation6 + $0x174] sm:$0xff]
    %v2223 = vld [vmem:[#allocation6 + $0x17c] sm:$0xff]
    %v2224 = vld [vmem:[#allocation6 + $0x184] sm:$0xf]
    %v2225 = vld [vmem:[#allocation6 + $0x188] sm:$0xff]
    %v2226 = vld [vmem:[#allocation6 + $0x190] sm:$0xff]
    %v2227 = vld [vmem:[#allocation6 + $0x198] sm:$0xff]
    %v2228 = vld [vmem:[#allocation6 + $0x1a0] sm:$0xf]
    %v2229 = vld [vmem:[#allocation6 + $0x1a4] sm:$0xff]
    %v2230 = vld [vmem:[#allocation6 + $0x1ac] sm:$0xff]
    %v2231 = vld [vmem:[#allocation6 + $0x1b4] sm:$0xff]
    %v2232 = vld [vmem:[#allocation6 + $0x1bc] sm:$0xf]
    %v2233 = vld [vmem:[#allocation7] sm:$0xff]
    %v2235 = vperm.slane %v2233, 0
    %v2236 = vperm.slane %v2233, 1
    %v2237 = vperm.slane %v2233, 2
    %v2238 = vperm.slane %v2233, 3
    %v2239 = vperm.slane %v2233, 4
    %v2240 = vperm.slane %v2233, 5
    %v2241 = vperm.slane %v2233, 6
    %v2313 = vunpack.c.l.b16 %v2169
    %v2314 = vunpack.c.h.b16 %v2169
    %v2315 = vunpack.c.l.b16 %v2170
    %v2316 = vunpack.c.h.b16 %v2170
    %v2317 = vunpack.c.l.b16 %v2171
    %v2318 = vunpack.c.h.b16 %v2171
    %v2319 = vunpack.c.l.b16 %v2172
    %v2320 = vunpack.c.l.b16 %v2173
    %v2321 = vunpack.c.h.b16 %v2173
    %v2322 = vunpack.c.l.b16 %v2174
    %v2323 = vunpack.c.h.b16 %v2174
    %v2324 = vunpack.c.l.b16 %v2175
    %v2325 = vunpack.c.h.b16 %v2175
    %v2326 = vunpack.c.l.b16 %v2176
    %v2327 = vunpack.c.l.b16 %v2177
    %v2328 = vunpack.c.h.b16 %v2177
    %v2329 = vunpack.c.l.b16 %v2178
    %v2330 = vunpack.c.h.b16 %v2178
    %v2331 = vunpack.c.l.b16 %v2179
    %v2332 = vunpack.c.h.b16 %v2179
    %v2333 = vunpack.c.l.b16 %v2180
    %v2334 = vunpack.c.l.b16 %v2181
    %v2335 = vunpack.c.h.b16 %v2181
    %v2336 = vunpack.c.l.b16 %v2182
    %v2337 = vunpack.c.h.b16 %v2182
    %v2338 = vunpack.c.l.b16 %v2183
    %v2339 = vunpack.c.h.b16 %v2183
    %v2340 = vunpack.c.l.b16 %v2184
    %v2341 = vunpack.c.l.b16 %v2185
    %v2342 = vunpack.c.h.b16 %v2185
    %v2343 = vunpack.c.l.b16 %v2186
    %v2344 = vunpack.c.h.b16 %v2186
    %v2345 = vunpack.c.l.b16 %v2187
    %v2346 = vunpack.c.h.b16 %v2187
    %v2347 = vunpack.c.l.b16 %v2188
    %v2348 = vunpack.c.l.b16 %v2189
    %v2349 = vunpack.c.h.b16 %v2189
    %v2350 = vunpack.c.l.b16 %v2190
    %v2351 = vunpack.c.h.b16 %v2190
    %v2352 = vunpack.c.l.b16 %v2191
    %v2353 = vunpack.c.h.b16 %v2191
    %v2354 = vunpack.c.l.b16 %v2192
    %v2355 = vunpack.c.l.b16 %v2193
    %v2356 = vunpack.c.h.b16 %v2193
    %v2357 = vunpack.c.l.b16 %v2194
    %v2358 = vunpack.c.h.b16 %v2194
    %v2359 = vunpack.c.l.b16 %v2195
    %v2360 = vunpack.c.h.b16 %v2195
    %v2361 = vunpack.c.l.b16 %v2196
    %v2362 = vunpack.c.l.b16 %v2197
    %v2363 = vunpack.c.h.b16 %v2197
    %v2364 = vunpack.c.l.b16 %v2198
    %v2365 = vunpack.c.h.b16 %v2198
    %v2366 = vunpack.c.l.b16 %v2199
    %v2367 = vunpack.c.h.b16 %v2199
    %v2368 = vunpack.c.l.b16 %v2200
    %v2369 = vunpack.c.l.b16 %v2201
    %v2370 = vunpack.c.h.b16 %v2201
    %v2371 = vunpack.c.l.b16 %v2202
    %v2372 = vunpack.c.h.b16 %v2202
    %v2373 = vunpack.c.l.b16 %v2203
    %v2374 = vunpack.c.h.b16 %v2203
    %v2375 = vunpack.c.l.b16 %v2204
    %v2376 = vunpack.c.l.b16 %v2205
    %v2377 = vunpack.c.h.b16 %v2205
    %v2378 = vunpack.c.l.b16 %v2206
    %v2379 = vunpack.c.h.b16 %v2206
    %v2380 = vunpack.c.l.b16 %v2207
    %v2381 = vunpack.c.h.b16 %v2207
    %v2382 = vunpack.c.l.b16 %v2208
    %v2383 = vunpack.c.l.b16 %v2209
    %v2384 = vunpack.c.h.b16 %v2209
    %v2385 = vunpack.c.l.b16 %v2210
    %v2386 = vunpack.c.h.b16 %v2210
    %v2387 = vunpack.c.l.b16 %v2211
    %v2388 = vunpack.c.h.b16 %v2211
    %v2389 = vunpack.c.l.b16 %v2212
    %v2390 = vunpack.c.l.b16 %v2213
    %v2391 = vunpack.c.h.b16 %v2213
    %v2392 = vunpack.c.l.b16 %v2214
    %v2393 = vunpack.c.h.b16 %v2214
    %v2394 = vunpack.c.l.b16 %v2215
    %v2395 = vunpack.c.h.b16 %v2215
    %v2396 = vunpack.c.l.b16 %v2216
    %v2397 = vunpack.c.l.b16 %v2217
    %v2398 = vunpack.c.h.b16 %v2217
    %v2399 = vunpack.c.l.b16 %v2218
    %v2400 = vunpack.c.h.b16 %v2218
    %v2401 = vunpack.c.l.b16 %v2219
    %v2402 = vunpack.c.h.b16 %v2219
    %v2403 = vunpack.c.l.b16 %v2220
    %v2404 = vunpack.c.l.b16 %v2221
    %v2405 = vunpack.c.h.b16 %v2221
    %v2406 = vunpack.c.l.b16 %v2222
    %v2407 = vunpack.c.h.b16 %v2222
    %v2408 = vunpack.c.l.b16 %v2223
    %v2409 = vunpack.c.h.b16 %v2223
    %v2410 = vunpack.c.l.b16 %v2224
    %v2411 = vunpack.c.l.b16 %v2225
    %v2412 = vunpack.c.h.b16 %v2225
    %v2413 = vunpack.c.l.b16 %v2226
    %v2414 = vunpack.c.h.b16 %v2226
    %v2415 = vunpack.c.l.b16 %v2227
    %v2416 = vunpack.c.h.b16 %v2227
    %v2417 = vunpack.c.l.b16 %v2228
    %v2418 = vunpack.c.l.b16 %v2229
    %v2419 = vunpack.c.h.b16 %v2229
    %v2420 = vunpack.c.l.b16 %v2230
    %v2421 = vunpack.c.h.b16 %v2230
    %v2422 = vunpack.c.l.b16 %v2231
    %v2423 = vunpack.c.h.b16 %v2231
    %v2424 = vunpack.c.l.b16 %v2232
    %v2425 = vpack.c.b16 %v2320, %v2313
    %v2426 = vpack.c.b16 %v2321, %v2314
    %v2427 = vpack.c.b16 %v2322, %v2315
    %v2428 = vpack.c.b16 %v2323, %v2316
    %v2429 = vpack.c.b16 %v2324, %v2317
    %v2430 = vpack.c.b16 %v2325, %v2318
    %v2431 = vpack.c.b16 %v2326, %v2319
    %v2432 = vpack.c.b16 %v2334, %v2327
    %v2433 = vpack.c.b16 %v2335, %v2328
    %v2434 = vpack.c.b16 %v2336, %v2329
    %v2435 = vpack.c.b16 %v2337, %v2330
    %v2436 = vpack.c.b16 %v2338, %v2331
    %v2437 = vpack.c.b16 %v2339, %v2332
    %v2438 = vpack.c.b16 %v2340, %v2333
    %v2439 = vpack.c.b16 %v2348, %v2341
    %v2440 = vpack.c.b16 %v2349, %v2342
    %v2441 = vpack.c.b16 %v2350, %v2343
    %v2442 = vpack.c.b16 %v2351, %v2344
    %v2443 = vpack.c.b16 %v2352, %v2345
    %v2444 = vpack.c.b16 %v2353, %v2346
    %v2445 = vpack.c.b16 %v2354, %v2347
    %v2446 = vpack.c.b16 %v2362, %v2355
    %v2447 = vpack.c.b16 %v2363, %v2356
    %v2448 = vpack.c.b16 %v2364, %v2357
    %v2449 = vpack.c.b16 %v2365, %v2358
    %v2450 = vpack.c.b16 %v2366, %v2359
    %v2451 = vpack.c.b16 %v2367, %v2360
    %v2452 = vpack.c.b16 %v2368, %v2361
    %v2453 = vpack.c.b16 %v2376, %v2369
    %v2454 = vpack.c.b16 %v2377, %v2370
    %v2455 = vpack.c.b16 %v2378, %v2371
    %v2456 = vpack.c.b16 %v2379, %v2372
    %v2457 = vpack.c.b16 %v2380, %v2373
    %v2458 = vpack.c.b16 %v2381, %v2374
    %v2459 = vpack.c.b16 %v2382, %v2375
    %v2460 = vpack.c.b16 %v2390, %v2383
    %v2461 = vpack.c.b16 %v2391, %v2384
    %v2462 = vpack.c.b16 %v2392, %v2385
    %v2463 = vpack.c.b16 %v2393, %v2386
    %v2464 = vpack.c.b16 %v2394, %v2387
    %v2465 = vpack.c.b16 %v2395, %v2388
    %v2466 = vpack.c.b16 %v2396, %v2389
    %v2467 = vpack.c.b16 %v2404, %v2397
    %v2468 = vpack.c.b16 %v2405, %v2398
    %v2469 = vpack.c.b16 %v2406, %v2399
    %v2470 = vpack.c.b16 %v2407, %v2400
    %v2471 = vpack.c.b16 %v2408, %v2401
    %v2472 = vpack.c.b16 %v2409, %v2402
    %v2473 = vpack.c.b16 %v2410, %v2403
    %v2474 = vpack.c.b16 %v2418, %v2411
    %v2475 = vpack.c.b16 %v2419, %v2412
    %v2476 = vpack.c.b16 %v2420, %v2413
    %v2477 = vpack.c.b16 %v2421, %v2414
    %v2478 = vpack.c.b16 %v2422, %v2415
    %v2479 = vpack.c.b16 %v2423, %v2416
    %v2480 = vpack.c.b16 %v2424, %v2417
    %2537 = vmatpush.bf16.msra.mxu0 %v2474
    %2538 = vmatpush.bf16.msra.mxu0 %v2467
    %2539 = vmatpush.bf16.msra.mxu0 %v2460
    %2540 = vmatpush.bf16.msra.mxu0 %v2453
    %2541 = vmatpush.bf16.msra.mxu0 %v2446
    %2542 = vmatpush.bf16.msra.mxu0 %v2439
    %2543 = vmatpush.bf16.msra.mxu0 %v2432
    %2544 = vmatpush.bf16.msra.mxu0 %v2425
    %2545 = vmatmul.bf16.gmra.mxu0 %v2168
    %v2546 = vpop.f32.mrf.mxu0
    %v2547 = vadd.f32 %v2235, %v2546
    %v2548 = vpop.f32.mrf.mxu0
    %2549 = vdwg.mxu0
    %2550 = vmatpush.bf16.msra.mxu0 %v2475
    %2551 = vmatpush.bf16.msra.mxu0 %v2468
    %2552 = vmatpush.bf16.msra.mxu0 %v2461
    %2553 = vmatpush.bf16.msra.mxu0 %v2454
    %2554 = vmatpush.bf16.msra.mxu0 %v2447
    %2555 = vmatpush.bf16.msra.mxu0 %v2440
    %2556 = vmatpush.bf16.msra.mxu0 %v2433
    %2557 = vmatpush.bf16.msra.mxu0 %v2426
    %2558 = vmatmul.bf16.gmra.mxu0 %v2168
    %v2559 = vpop.f32.mrf.mxu0
    %v2560 = vadd.f32 %v2236, %v2559
    %v2561 = vpop.f32.mrf.mxu0
    %2562 = vdwg.mxu0
    %2563 = vmatpush.bf16.msra.mxu0 %v2476
    %2564 = vmatpush.bf16.msra.mxu0 %v2469
    %2565 = vmatpush.bf16.msra.mxu0 %v2462
    %2566 = vmatpush.bf16.msra.mxu0 %v2455
    %2567 = vmatpush.bf16.msra.mxu0 %v2448
    %2568 = vmatpush.bf16.msra.mxu0 %v2441
    %2569 = vmatpush.bf16.msra.mxu0 %v2434
    %2570 = vmatpush.bf16.msra.mxu0 %v2427
    %2571 = vmatmul.bf16.gmra.mxu0 %v2168
    %v2572 = vpop.f32.mrf.mxu0
    %v2573 = vadd.f32 %v2237, %v2572
    %v2574 = vpop.f32.mrf.mxu0
    %2575 = vdwg.mxu0
    %2576 = vmatpush.bf16.msra.mxu0 %v2477
    %2577 = vmatpush.bf16.msra.mxu0 %v2470
    %2578 = vmatpush.bf16.msra.mxu0 %v2463
    %2579 = vmatpush.bf16.msra.mxu0 %v2456
    %2580 = vmatpush.bf16.msra.mxu0 %v2449
    %2581 = vmatpush.bf16.msra.mxu0 %v2442
    %2582 = vmatpush.bf16.msra.mxu0 %v2435
    %2583 = vmatpush.bf16.msra.mxu0 %v2428
    %2584 = vmatmul.bf16.gmra.mxu0 %v2168
    %v2585 = vpop.f32.mrf.mxu0
    %v2586 = vadd.f32 %v2238, %v2585
    %v2587 = vpop.f32.mrf.mxu0
    %2588 = vdwg.mxu0
    %2589 = vmatpush.bf16.msra.mxu0 %v2478
    %2590 = vmatpush.bf16.msra.mxu0 %v2471
    %2591 = vmatpush.bf16.msra.mxu0 %v2464
    %2592 = vmatpush.bf16.msra.mxu0 %v2457
    %2593 = vmatpush.bf16.msra.mxu0 %v2450
    %2594 = vmatpush.bf16.msra.mxu0 %v2443
    %2595 = vmatpush.bf16.msra.mxu0 %v2436
    %2596 = vmatpush.bf16.msra.mxu0 %v2429
    %2597 = vmatmul.bf16.gmra.mxu0 %v2168
    %v2598 = vpop.f32.mrf.mxu0
    %v2599 = vadd.f32 %v2239, %v2598
    %v2600 = vpop.f32.mrf.mxu0
    %2601 = vdwg.mxu0
    %2602 = vmatpush.bf16.msra.mxu0 %v2479
    %2603 = vmatpush.bf16.msra.mxu0 %v2472
    %2604 = vmatpush.bf16.msra.mxu0 %v2465
    %2605 = vmatpush.bf16.msra.mxu0 %v2458
    %2606 = vmatpush.bf16.msra.mxu0 %v2451
    %2607 = vmatpush.bf16.msra.mxu0 %v2444
    %2608 = vmatpush.bf16.msra.mxu0 %v2437
    %2609 = vmatpush.bf16.msra.mxu0 %v2430
    %2610 = vmatmul.bf16.gmra.mxu0 %v2168
    %v2611 = vpop.f32.mrf.mxu0
    %v2612 = vadd.f32 %v2240, %v2611
    %v2613 = vpop.f32.mrf.mxu0
    %2614 = vdwg.mxu0
    %2615 = vmatpush.bf16.msra.mxu0 %v2480
    %2616 = vmatpush.bf16.msra.mxu0 %v2473
    %2617 = vmatpush.bf16.msra.mxu0 %v2466
    %2618 = vmatpush.bf16.msra.mxu0 %v2459
    %2619 = vmatpush.bf16.msra.mxu0 %v2452
    %2620 = vmatpush.bf16.msra.mxu0 %v2445
    %2621 = vmatpush.bf16.msra.mxu0 %v2438
    %2622 = vmatpush.bf16.msra.mxu0 %v2431
    %2623 = vmatmul.bf16.gmra.mxu0 %v2168
    %v2624 = vpop.f32.mrf.mxu0
    %v2625 = vadd.f32 %v2241, %v2624
    %v2626 = vpop.f32.mrf.mxu0
    %2627 = vdwg.mxu0
    %v2628 = vmax.f32 %v2547, 0.0
    %v2629 = vmax.f32 %v2560, 0.0
    %v2630 = vmax.f32 %v2573, 0.0
    %v2631 = vmax.f32 %v2586, 0.0
    %v2632 = vmax.f32 %v2599, 0.0
    %v2633 = vmax.f32 %v2612, 0.0
    %v2634 = vmax.f32 %v2625, 0.0
    %v2635 = vpack.c.bf16 %v2628, %v2628
    %v2636 = vpack.c.bf16 %v2629, %v2629
    %v2637 = vpack.c.bf16 %v2630, %v2630
    %v2638 = vpack.c.bf16 %v2631, %v2631
    %v2639 = vpack.c.bf16 %v2632, %v2632
    %v2640 = vpack.c.bf16 %v2633, %v2633
    %v2641 = vpack.c.bf16 %v2634, %v2634
    %v2642 = vld [vmem:[#allocation9] sm:$0xff]
    %v2643 = vld [vmem:[#allocation9 + $0x8] sm:$0xff]
    %v2644 = vld [vmem:[#allocation9 + $0x10] sm:$0xff]
    %v2645 = vld [vmem:[#allocation9 + $0x18] sm:$0xff]
    %v2646 = vld [vmem:[#allocation9 + $0x20] sm:$0xff]
    %v2647 = vld [vmem:[#allocation9 + $0x28] sm:$0xff]
    %v2648 = vld [vmem:[#allocation9 + $0x30] sm:$0xff]
    %v2649 = vld [vmem:[#allocation9 + $0x38] sm:$0xff]
    %v2650 = vld [vmem:[#allocation9 + $0x40] sm:$0xff]
    %v2651 = vld [vmem:[#allocation9 + $0x48] sm:$0xff]
    %v2652 = vld [vmem:[#allocation9 + $0x50] sm:$0xff]
    %v2653 = vld [vmem:[#allocation9 + $0x58] sm:$0xff]
    %v2654 = vld [vmem:[#allocation9 + $0x60] sm:$0xff]
    %v2655 = vld [vmem:[#allocation9 + $0x68] sm:$0xff]
    %v2656 = vld [vmem:[#allocation9 + $0x70] sm:$0xff]
    %v2657 = vld [vmem:[#allocation9 + $0x78] sm:$0xff]
    %v2658 = vld [vmem:[#allocation9 + $0x80] sm:$0xff]
    %v2659 = vld [vmem:[#allocation9 + $0x88] sm:$0xff]
    %v2660 = vld [vmem:[#allocation9 + $0x90] sm:$0xff]
    %v2661 = vld [vmem:[#allocation9 + $0x98] sm:$0xff]
    %v2662 = vld [vmem:[#allocation9 + $0xa0] sm:$0xff]
    %v2663 = vld [vmem:[#allocation9 + $0xa8] sm:$0xff]
    %v2664 = vld [vmem:[#allocation9 + $0xb0] sm:$0xff]
    %v2665 = vld [vmem:[#allocation9 + $0xb8] sm:$0xff]
    %v2666 = vld [vmem:[#allocation9 + $0xc0] sm:$0xff]
    %v2667 = vld [vmem:[#allocation9 + $0xc8] sm:$0xff]
    %v2668 = vld [vmem:[#allocation9 + $0xd0] sm:$0xff]
    %v2669 = vld [vmem:[#allocation9 + $0xd8] sm:$0xff]
    %v2670 = vld [vmem:[#allocation9 + $0xe0] sm:$0xff]
    %v2671 = vld [vmem:[#allocation9 + $0xe8] sm:$0xff]
    %v2672 = vld [vmem:[#allocation9 + $0xf0] sm:$0xff]
    %v2673 = vld [vmem:[#allocation9 + $0xf8] sm:$0xff]
    %v2674 = vld [vmem:[#allocation9 + $0x100] sm:$0xff]
    %v2675 = vld [vmem:[#allocation9 + $0x108] sm:$0xff]
    %v2676 = vld [vmem:[#allocation9 + $0x110] sm:$0xff]
    %v2677 = vld [vmem:[#allocation9 + $0x118] sm:$0xff]
    %v2678 = vld [vmem:[#allocation9 + $0x120] sm:$0xff]
    %v2679 = vld [vmem:[#allocation9 + $0x128] sm:$0xff]
    %v2680 = vld [vmem:[#allocation9 + $0x130] sm:$0xff]
    %v2681 = vld [vmem:[#allocation9 + $0x138] sm:$0xff]
    %v2682 = vld [vmem:[#allocation9 + $0x140] sm:$0xff]
    %v2683 = vld [vmem:[#allocation9 + $0x148] sm:$0xff]
    %v2684 = vld [vmem:[#allocation9 + $0x150] sm:$0xff]
    %v2685 = vld [vmem:[#allocation9 + $0x158] sm:$0xff]
    %v2686 = vld [vmem:[#allocation9 + $0x160] sm:$0xff]
    %v2687 = vld [vmem:[#allocation9 + $0x168] sm:$0xff]
    %v2688 = vld [vmem:[#allocation9 + $0x170] sm:$0xff]
    %v2689 = vld [vmem:[#allocation9 + $0x178] sm:$0xff]
    %v2690 = vld [vmem:[#allocation9 + $0x180] sm:$0xff]
    %v2691 = vld [vmem:[#allocation9 + $0x188] sm:$0xff]
    %v2692 = vld [vmem:[#allocation9 + $0x190] sm:$0xff]
    %v2693 = vld [vmem:[#allocation9 + $0x198] sm:$0xff]
    %v2694 = vld [vmem:[#allocation9 + $0x1a0] sm:$0xff]
    %v2695 = vld [vmem:[#allocation9 + $0x1a8] sm:$0xff]
    %v2696 = vld [vmem:[#allocation9 + $0x1b0] sm:$0xff]
    %v2697 = vld [vmem:[#allocation9 + $0x1b8] sm:$0xff]
    %v2698 = vld [vmem:[#allocation9 + $0x1c0] sm:$0xff]
    %v2699 = vld [vmem:[#allocation9 + $0x1c8] sm:$0xff]
    %v2700 = vld [vmem:[#allocation9 + $0x1d0] sm:$0xff]
    %v2701 = vld [vmem:[#allocation9 + $0x1d8] sm:$0xff]
    %v2702 = vld [vmem:[#allocation9 + $0x1e0] sm:$0xff]
    %v2703 = vld [vmem:[#allocation9 + $0x1e8] sm:$0xff]
    %v2704 = vld [vmem:[#allocation9 + $0x1f0] sm:$0xff]
    %v2705 = vld [vmem:[#allocation9 + $0x1f8] sm:$0xff]
    %v2706 = vld [vmem:[#allocation9 + $0x200] sm:$0xff]
    %v2707 = vld [vmem:[#allocation9 + $0x208] sm:$0xff]
    %v2708 = vld [vmem:[#allocation9 + $0x210] sm:$0xff]
    %v2709 = vld [vmem:[#allocation9 + $0x218] sm:$0xff]
    %v2710 = vld [vmem:[#allocation9 + $0x220] sm:$0xff]
    %v2711 = vld [vmem:[#allocation9 + $0x228] sm:$0xff]
    %v2712 = vld [vmem:[#allocation9 + $0x230] sm:$0xff]
    %v2713 = vld [vmem:[#allocation9 + $0x238] sm:$0xff]
    %v2714 = vld [vmem:[#allocation9 + $0x240] sm:$0xff]
    %v2715 = vld [vmem:[#allocation9 + $0x248] sm:$0xff]
    %v2716 = vld [vmem:[#allocation9 + $0x250] sm:$0xff]
    %v2717 = vld [vmem:[#allocation9 + $0x258] sm:$0xff]
    %v2718 = vld [vmem:[#allocation9 + $0x260] sm:$0xff]
    %v2719 = vld [vmem:[#allocation9 + $0x268] sm:$0xff]
    %v2720 = vld [vmem:[#allocation9 + $0x270] sm:$0xff]
    %v2721 = vld [vmem:[#allocation9 + $0x278] sm:$0xff]
    %v2722 = vld [vmem:[#allocation9 + $0x280] sm:$0xff]
    %v2723 = vld [vmem:[#allocation9 + $0x288] sm:$0xff]
    %v2724 = vld [vmem:[#allocation9 + $0x290] sm:$0xff]
    %v2725 = vld [vmem:[#allocation9 + $0x298] sm:$0xff]
    %v2726 = vld [vmem:[#allocation9 + $0x2a0] sm:$0xff]
    %v2727 = vld [vmem:[#allocation9 + $0x2a8] sm:$0xff]
    %v2728 = vld [vmem:[#allocation9 + $0x2b0] sm:$0xff]
    %v2729 = vld [vmem:[#allocation9 + $0x2b8] sm:$0xff]
    %v2730 = vld [vmem:[#allocation9 + $0x2c0] sm:$0xff]
    %v2731 = vld [vmem:[#allocation9 + $0x2c8] sm:$0xff]
    %v2732 = vld [vmem:[#allocation9 + $0x2d0] sm:$0xff]
    %v2733 = vld [vmem:[#allocation9 + $0x2d8] sm:$0xff]
    %v2734 = vld [vmem:[#allocation9 + $0x2e0] sm:$0xff]
    %v2735 = vld [vmem:[#allocation9 + $0x2e8] sm:$0xff]
    %v2736 = vld [vmem:[#allocation9 + $0x2f0] sm:$0xff]
    %v2737 = vld [vmem:[#allocation9 + $0x2f8] sm:$0xff]
    %v2738 = vld [vmem:[#allocation9 + $0x300] sm:$0xff]
    %v2739 = vld [vmem:[#allocation9 + $0x308] sm:$0xff]
    %v2740 = vld [vmem:[#allocation9 + $0x310] sm:$0xff]
    %v2741 = vld [vmem:[#allocation9 + $0x318] sm:$0xff]
    %v2742 = vld [vmem:[#allocation9 + $0x320] sm:$0xff]
    %v2743 = vld [vmem:[#allocation9 + $0x328] sm:$0xff]
    %v2744 = vld [vmem:[#allocation9 + $0x330] sm:$0xff]
    %v2745 = vld [vmem:[#allocation9 + $0x338] sm:$0xff]
    %v2746 = vld [vmem:[#allocation9 + $0x340] sm:$0xff]
    %v2747 = vld [vmem:[#allocation9 + $0x348] sm:$0xff]
    %v2748 = vld [vmem:[#allocation9 + $0x350] sm:$0xff]
    %v2749 = vld [vmem:[#allocation9 + $0x358] sm:$0xff]
    %v2750 = vld [vmem:[#allocation9 + $0x360] sm:$0xff]
    %v2751 = vld [vmem:[#allocation9 + $0x368] sm:$0xff]
    %v2752 = vld [vmem:[#allocation9 + $0x370] sm:$0xff]
    %v2753 = vld [vmem:[#allocation9 + $0x378] sm:$0xff]
    %v2754 = vld [vmem:[#allocation9 + $0x380] sm:$0xff]
    %v2755 = vld [vmem:[#allocation9 + $0x388] sm:$0xff]
    %v2756 = vld [vmem:[#allocation9 + $0x390] sm:$0xff]
    %v2757 = vld [vmem:[#allocation9 + $0x398] sm:$0xff]
    %v2758 = vld [vmem:[#allocation9 + $0x3a0] sm:$0xff]
    %v2759 = vld [vmem:[#allocation9 + $0x3a8] sm:$0xff]
    %v2760 = vld [vmem:[#allocation9 + $0x3b0] sm:$0xff]
    %v2761 = vld [vmem:[#allocation9 + $0x3b8] sm:$0xff]
    %v2762 = vld [vmem:[#allocation9 + $0x3c0] sm:$0xff]
    %v2763 = vld [vmem:[#allocation9 + $0x3c8] sm:$0xff]
    %v2764 = vld [vmem:[#allocation9 + $0x3d0] sm:$0xff]
    %v2765 = vld [vmem:[#allocation9 + $0x3d8] sm:$0xff]
    %v2766 = vld [vmem:[#allocation9 + $0x3e0] sm:$0xff]
    %v2767 = vld [vmem:[#allocation9 + $0x3e8] sm:$0xff]
    %v2768 = vld [vmem:[#allocation9 + $0x3f0] sm:$0xff]
    %v2769 = vld [vmem:[#allocation9 + $0x3f8] sm:$0xff]
    %v2770 = vld [vmem:[#allocation9 + $0x400] sm:$0xff]
    %v2771 = vld [vmem:[#allocation9 + $0x408] sm:$0xff]
    %v2772 = vld [vmem:[#allocation9 + $0x410] sm:$0xff]
    %v2773 = vld [vmem:[#allocation9 + $0x418] sm:$0xff]
    %v2774 = vld [vmem:[#allocation9 + $0x420] sm:$0xff]
    %v2775 = vld [vmem:[#allocation9 + $0x428] sm:$0xff]
    %v2776 = vld [vmem:[#allocation9 + $0x430] sm:$0xff]
    %v2777 = vld [vmem:[#allocation9 + $0x438] sm:$0xff]
    %v2778 = vld [vmem:[#allocation9 + $0x440] sm:$0xff]
    %v2779 = vld [vmem:[#allocation9 + $0x448] sm:$0xff]
    %v2780 = vld [vmem:[#allocation9 + $0x450] sm:$0xff]
    %v2781 = vld [vmem:[#allocation9 + $0x458] sm:$0xff]
    %v2782 = vld [vmem:[#allocation9 + $0x460] sm:$0xff]
    %v2783 = vld [vmem:[#allocation9 + $0x468] sm:$0xff]
    %v2784 = vld [vmem:[#allocation9 + $0x470] sm:$0xff]
    %v2785 = vld [vmem:[#allocation9 + $0x478] sm:$0xff]
    %v2786 = vld [vmem:[#allocation9 + $0x480] sm:$0xff]
    %v2787 = vld [vmem:[#allocation9 + $0x488] sm:$0xff]
    %v2788 = vld [vmem:[#allocation9 + $0x490] sm:$0xff]
    %v2789 = vld [vmem:[#allocation9 + $0x498] sm:$0xff]
    %v2790 = vld [vmem:[#allocation9 + $0x4a0] sm:$0xff]
    %v2791 = vld [vmem:[#allocation9 + $0x4a8] sm:$0xff]
    %v2792 = vld [vmem:[#allocation9 + $0x4b0] sm:$0xff]
    %v2793 = vld [vmem:[#allocation9 + $0x4b8] sm:$0xff]
    %v2794 = vld [vmem:[#allocation9 + $0x4c0] sm:$0xff]
    %v2795 = vld [vmem:[#allocation9 + $0x4c8] sm:$0xff]
    %v2796 = vld [vmem:[#allocation9 + $0x4d0] sm:$0xff]
    %v2797 = vld [vmem:[#allocation9 + $0x4d8] sm:$0xff]
    %v2798 = vld [vmem:[#allocation9 + $0x4e0] sm:$0xff]
    %v2799 = vld [vmem:[#allocation9 + $0x4e8] sm:$0xff]
    %v2800 = vld [vmem:[#allocation9 + $0x4f0] sm:$0xff]
    %v2801 = vld [vmem:[#allocation9 + $0x4f8] sm:$0xff]
    %v2802 = vld [vmem:[#allocation9 + $0x500] sm:$0xff]
    %v2803 = vld [vmem:[#allocation9 + $0x508] sm:$0xff]
    %v2804 = vld [vmem:[#allocation9 + $0x510] sm:$0xff]
    %v2805 = vld [vmem:[#allocation9 + $0x518] sm:$0xff]
    %v2806 = vld [vmem:[#allocation9 + $0x520] sm:$0xff]
    %v2807 = vld [vmem:[#allocation9 + $0x528] sm:$0xff]
    %v2808 = vld [vmem:[#allocation9 + $0x530] sm:$0xff]
    %v2809 = vld [vmem:[#allocation9 + $0x538] sm:$0xff]
    %v2810 = vld [vmem:[#allocation9 + $0x540] sm:$0xff]
    %v2811 = vld [vmem:[#allocation9 + $0x548] sm:$0xff]
    %v2812 = vld [vmem:[#allocation9 + $0x550] sm:$0xff]
    %v2813 = vld [vmem:[#allocation9 + $0x558] sm:$0xff]
    %v2814 = vld [vmem:[#allocation9 + $0x560] sm:$0xff]
    %v2815 = vld [vmem:[#allocation9 + $0x568] sm:$0xff]
    %v2816 = vld [vmem:[#allocation9 + $0x570] sm:$0xff]
    %v2817 = vld [vmem:[#allocation9 + $0x578] sm:$0xff]
    %v2818 = vld [vmem:[#allocation9 + $0x580] sm:$0xff]
    %v2819 = vld [vmem:[#allocation9 + $0x588] sm:$0xff]
    %v2820 = vld [vmem:[#allocation9 + $0x590] sm:$0xff]
    %v2821 = vld [vmem:[#allocation9 + $0x598] sm:$0xff]
    %v2822 = vld [vmem:[#allocation9 + $0x5a0] sm:$0xff]
    %v2823 = vld [vmem:[#allocation9 + $0x5a8] sm:$0xff]
    %v2824 = vld [vmem:[#allocation9 + $0x5b0] sm:$0xff]
    %v2825 = vld [vmem:[#allocation9 + $0x5b8] sm:$0xff]
    %v2826 = vld [vmem:[#allocation9 + $0x5c0] sm:$0xff]
    %v2827 = vld [vmem:[#allocation9 + $0x5c8] sm:$0xff]
    %v2828 = vld [vmem:[#allocation9 + $0x5d0] sm:$0xff]
    %v2829 = vld [vmem:[#allocation9 + $0x5d8] sm:$0xff]
    %v2830 = vld [vmem:[#allocation9 + $0x5e0] sm:$0xff]
    %v2831 = vld [vmem:[#allocation9 + $0x5e8] sm:$0xff]
    %v2832 = vld [vmem:[#allocation9 + $0x5f0] sm:$0xff]
    %v2833 = vld [vmem:[#allocation9 + $0x5f8] sm:$0xff]
    %v2834 = vld [vmem:[#allocation9 + $0x600] sm:$0xff]
    %v2835 = vld [vmem:[#allocation9 + $0x608] sm:$0xff]
    %v2836 = vld [vmem:[#allocation9 + $0x610] sm:$0xff]
    %v2837 = vld [vmem:[#allocation9 + $0x618] sm:$0xff]
    %v2838 = vld [vmem:[#allocation9 + $0x620] sm:$0xff]
    %v2839 = vld [vmem:[#allocation9 + $0x628] sm:$0xff]
    %v2840 = vld [vmem:[#allocation9 + $0x630] sm:$0xff]
    %v2841 = vld [vmem:[#allocation9 + $0x638] sm:$0xff]
    %v2842 = vld [vmem:[#allocation9 + $0x640] sm:$0xff]
    %v2843 = vld [vmem:[#allocation9 + $0x648] sm:$0xff]
    %v2844 = vld [vmem:[#allocation9 + $0x650] sm:$0xff]
    %v2845 = vld [vmem:[#allocation9 + $0x658] sm:$0xff]
    %v2846 = vld [vmem:[#allocation9 + $0x660] sm:$0xff]
    %v2847 = vld [vmem:[#allocation9 + $0x668] sm:$0xff]
    %v2848 = vld [vmem:[#allocation9 + $0x670] sm:$0xff]
    %v2849 = vld [vmem:[#allocation9 + $0x678] sm:$0xff]
    %v2850 = vld [vmem:[#allocation9 + $0x680] sm:$0xff]
    %v2851 = vld [vmem:[#allocation9 + $0x688] sm:$0xff]
    %v2852 = vld [vmem:[#allocation9 + $0x690] sm:$0xff]
    %v2853 = vld [vmem:[#allocation9 + $0x698] sm:$0xff]
    %v2854 = vld [vmem:[#allocation9 + $0x6a0] sm:$0xff]
    %v2855 = vld [vmem:[#allocation9 + $0x6a8] sm:$0xff]
    %v2856 = vld [vmem:[#allocation9 + $0x6b0] sm:$0xff]
    %v2857 = vld [vmem:[#allocation9 + $0x6b8] sm:$0xff]
    %v2858 = vld [vmem:[#allocation9 + $0x6c0] sm:$0xff]
    %v2859 = vld [vmem:[#allocation9 + $0x6c8] sm:$0xff]
    %v2860 = vld [vmem:[#allocation9 + $0x6d0] sm:$0xff]
    %v2861 = vld [vmem:[#allocation9 + $0x6d8] sm:$0xff]
    %v2862 = vld [vmem:[#allocation9 + $0x6e0] sm:$0xff]
    %v2863 = vld [vmem:[#allocation9 + $0x6e8] sm:$0xff]
    %v2864 = vld [vmem:[#allocation9 + $0x6f0] sm:$0xff]
    %v2865 = vld [vmem:[#allocation9 + $0x6f8] sm:$0xff]
    %v2866 = vld [vmem:[#allocation9 + $0x700] sm:$0xff]
    %v2867 = vld [vmem:[#allocation9 + $0x708] sm:$0xff]
    %v2868 = vld [vmem:[#allocation9 + $0x710] sm:$0xff]
    %v2869 = vld [vmem:[#allocation9 + $0x718] sm:$0xff]
    %v2870 = vld [vmem:[#allocation9 + $0x720] sm:$0xff]
    %v2871 = vld [vmem:[#allocation9 + $0x728] sm:$0xff]
    %v2872 = vld [vmem:[#allocation9 + $0x730] sm:$0xff]
    %v2873 = vld [vmem:[#allocation9 + $0x738] sm:$0xff]
    %v2874 = vld [vmem:[#allocation9 + $0x740] sm:$0xff]
    %v2875 = vld [vmem:[#allocation9 + $0x748] sm:$0xff]
    %v2876 = vld [vmem:[#allocation9 + $0x750] sm:$0xff]
    %v2877 = vld [vmem:[#allocation9 + $0x758] sm:$0xff]
    %v2878 = vld [vmem:[#allocation9 + $0x760] sm:$0xff]
    %v2879 = vld [vmem:[#allocation9 + $0x768] sm:$0xff]
    %v2880 = vld [vmem:[#allocation9 + $0x770] sm:$0xff]
    %v2881 = vld [vmem:[#allocation9 + $0x778] sm:$0xff]
    %v2882 = vld [vmem:[#allocation9 + $0x780] sm:$0xff]
    %v2883 = vld [vmem:[#allocation9 + $0x788] sm:$0xff]
    %v2884 = vld [vmem:[#allocation9 + $0x790] sm:$0xff]
    %v2885 = vld [vmem:[#allocation9 + $0x798] sm:$0xff]
    %v2886 = vld [vmem:[#allocation9 + $0x7a0] sm:$0xff]
    %v2887 = vld [vmem:[#allocation9 + $0x7a8] sm:$0xff]
    %v2888 = vld [vmem:[#allocation9 + $0x7b0] sm:$0xff]
    %v2889 = vld [vmem:[#allocation9 + $0x7b8] sm:$0xff]
    %v2890 = vld [vmem:[#allocation9 + $0x7c0] sm:$0xff]
    %v2891 = vld [vmem:[#allocation9 + $0x7c8] sm:$0xff]
    %v2892 = vld [vmem:[#allocation9 + $0x7d0] sm:$0xff]
    %v2893 = vld [vmem:[#allocation9 + $0x7d8] sm:$0xff]
    %v2894 = vld [vmem:[#allocation9 + $0x7e0] sm:$0xff]
    %v2895 = vld [vmem:[#allocation9 + $0x7e8] sm:$0xff]
    %v2896 = vld [vmem:[#allocation9 + $0x7f0] sm:$0xff]
    %v2897 = vld [vmem:[#allocation9 + $0x7f8] sm:$0xff]
    %v2898 = vld [vmem:[#allocation9 + $0x800] sm:$0xff]
    %v2899 = vld [vmem:[#allocation9 + $0x808] sm:$0xff]
    %v2900 = vld [vmem:[#allocation9 + $0x810] sm:$0xff]
    %v2901 = vld [vmem:[#allocation9 + $0x818] sm:$0xff]
    %v2902 = vld [vmem:[#allocation9 + $0x820] sm:$0xff]
    %v2903 = vld [vmem:[#allocation9 + $0x828] sm:$0xff]
    %v2904 = vld [vmem:[#allocation9 + $0x830] sm:$0xff]
    %v2905 = vld [vmem:[#allocation9 + $0x838] sm:$0xff]
    %v2906 = vld [vmem:[#allocation9 + $0x840] sm:$0xff]
    %v2907 = vld [vmem:[#allocation9 + $0x848] sm:$0xff]
    %v2908 = vld [vmem:[#allocation9 + $0x850] sm:$0xff]
    %v2909 = vld [vmem:[#allocation9 + $0x858] sm:$0xff]
    %v2910 = vld [vmem:[#allocation9 + $0x860] sm:$0xff]
    %v2911 = vld [vmem:[#allocation9 + $0x868] sm:$0xff]
    %v2912 = vld [vmem:[#allocation9 + $0x870] sm:$0xff]
    %v2913 = vld [vmem:[#allocation9 + $0x878] sm:$0xff]
    %v2914 = vld [vmem:[#allocation9 + $0x880] sm:$0xff]
    %v2915 = vld [vmem:[#allocation9 + $0x888] sm:$0xff]
    %v2916 = vld [vmem:[#allocation9 + $0x890] sm:$0xff]
    %v2917 = vld [vmem:[#allocation9 + $0x898] sm:$0xff]
    %v2918 = vld [vmem:[#allocation9 + $0x8a0] sm:$0xff]
    %v2919 = vld [vmem:[#allocation9 + $0x8a8] sm:$0xff]
    %v2920 = vld [vmem:[#allocation9 + $0x8b0] sm:$0xff]
    %v2921 = vld [vmem:[#allocation9 + $0x8b8] sm:$0xff]
    %v2922 = vld [vmem:[#allocation9 + $0x8c0] sm:$0xff]
    %v2923 = vld [vmem:[#allocation9 + $0x8c8] sm:$0xff]
    %v2924 = vld [vmem:[#allocation9 + $0x8d0] sm:$0xff]
    %v2925 = vld [vmem:[#allocation9 + $0x8d8] sm:$0xff]
    %v2926 = vld [vmem:[#allocation9 + $0x8e0] sm:$0xff]
    %v2927 = vld [vmem:[#allocation9 + $0x8e8] sm:$0xff]
    %v2928 = vld [vmem:[#allocation9 + $0x8f0] sm:$0xff]
    %v2929 = vld [vmem:[#allocation9 + $0x8f8] sm:$0xff]
    %v2930 = vld [vmem:[#allocation9 + $0x900] sm:$0xff]
    %v2931 = vld [vmem:[#allocation9 + $0x908] sm:$0xff]
    %v2932 = vld [vmem:[#allocation9 + $0x910] sm:$0xff]
    %v2933 = vld [vmem:[#allocation9 + $0x918] sm:$0xff]
    %v2934 = vld [vmem:[#allocation9 + $0x920] sm:$0xff]
    %v2935 = vld [vmem:[#allocation9 + $0x928] sm:$0xff]
    %v2936 = vld [vmem:[#allocation9 + $0x930] sm:$0xff]
    %v2937 = vld [vmem:[#allocation9 + $0x938] sm:$0xff]
    %v2938 = vld [vmem:[#allocation9 + $0x940] sm:$0xff]
    %v2939 = vld [vmem:[#allocation9 + $0x948] sm:$0xff]
    %v2940 = vld [vmem:[#allocation9 + $0x950] sm:$0xff]
    %v2941 = vld [vmem:[#allocation9 + $0x958] sm:$0xff]
    %v2942 = vld [vmem:[#allocation9 + $0x960] sm:$0xff]
    %v2943 = vld [vmem:[#allocation9 + $0x968] sm:$0xff]
    %v2944 = vld [vmem:[#allocation9 + $0x970] sm:$0xff]
    %v2945 = vld [vmem:[#allocation9 + $0x978] sm:$0xff]
    %v2946 = vld [vmem:[#allocation9 + $0x980] sm:$0xff]
    %v2947 = vld [vmem:[#allocation9 + $0x988] sm:$0xff]
    %v2948 = vld [vmem:[#allocation9 + $0x990] sm:$0xff]
    %v2949 = vld [vmem:[#allocation9 + $0x998] sm:$0xff]
    %v2950 = vld [vmem:[#allocation9 + $0x9a0] sm:$0xff]
    %v2951 = vld [vmem:[#allocation9 + $0x9a8] sm:$0xff]
    %v2952 = vld [vmem:[#allocation9 + $0x9b0] sm:$0xff]
    %v2953 = vld [vmem:[#allocation9 + $0x9b8] sm:$0xff]
    %v2954 = vld [vmem:[#allocation9 + $0x9c0] sm:$0xff]
    %v2955 = vld [vmem:[#allocation9 + $0x9c8] sm:$0xff]
    %v2956 = vld [vmem:[#allocation9 + $0x9d0] sm:$0xff]
    %v2957 = vld [vmem:[#allocation9 + $0x9d8] sm:$0xff]
    %v2958 = vld [vmem:[#allocation9 + $0x9e0] sm:$0xff]
    %v2959 = vld [vmem:[#allocation9 + $0x9e8] sm:$0xff]
    %v2960 = vld [vmem:[#allocation9 + $0x9f0] sm:$0xff]
    %v2961 = vld [vmem:[#allocation9 + $0x9f8] sm:$0xff]
    %v2962 = vld [vmem:[#allocation9 + $0xa00] sm:$0xff]
    %v2963 = vld [vmem:[#allocation9 + $0xa08] sm:$0xff]
    %v2964 = vld [vmem:[#allocation9 + $0xa10] sm:$0xff]
    %v2965 = vld [vmem:[#allocation9 + $0xa18] sm:$0xff]
    %v2966 = vld [vmem:[#allocation9 + $0xa20] sm:$0xff]
    %v2967 = vld [vmem:[#allocation9 + $0xa28] sm:$0xff]
    %v2968 = vld [vmem:[#allocation9 + $0xa30] sm:$0xff]
    %v2969 = vld [vmem:[#allocation9 + $0xa38] sm:$0xff]
    %v2970 = vld [vmem:[#allocation9 + $0xa40] sm:$0xff]
    %v2971 = vld [vmem:[#allocation9 + $0xa48] sm:$0xff]
    %v2972 = vld [vmem:[#allocation9 + $0xa50] sm:$0xff]
    %v2973 = vld [vmem:[#allocation9 + $0xa58] sm:$0xff]
    %v2974 = vld [vmem:[#allocation9 + $0xa60] sm:$0xff]
    %v2975 = vld [vmem:[#allocation9 + $0xa68] sm:$0xff]
    %v2976 = vld [vmem:[#allocation9 + $0xa70] sm:$0xff]
    %v2977 = vld [vmem:[#allocation9 + $0xa78] sm:$0xff]
    %v2978 = vld [vmem:[#allocation9 + $0xa80] sm:$0xff]
    %v2979 = vld [vmem:[#allocation9 + $0xa88] sm:$0xff]
    %v2980 = vld [vmem:[#allocation9 + $0xa90] sm:$0xff]
    %v2981 = vld [vmem:[#allocation9 + $0xa98] sm:$0xff]
    %v2982 = vld [vmem:[#allocation9 + $0xaa0] sm:$0xff]
    %v2983 = vld [vmem:[#allocation9 + $0xaa8] sm:$0xff]
    %v2984 = vld [vmem:[#allocation9 + $0xab0] sm:$0xff]
    %v2985 = vld [vmem:[#allocation9 + $0xab8] sm:$0xff]
    %v2986 = vld [vmem:[#allocation9 + $0xac0] sm:$0xff]
    %v2987 = vld [vmem:[#allocation9 + $0xac8] sm:$0xff]
    %v2988 = vld [vmem:[#allocation9 + $0xad0] sm:$0xff]
    %v2989 = vld [vmem:[#allocation9 + $0xad8] sm:$0xff]
    %v2990 = vld [vmem:[#allocation9 + $0xae0] sm:$0xff]
    %v2991 = vld [vmem:[#allocation9 + $0xae8] sm:$0xff]
    %v2992 = vld [vmem:[#allocation9 + $0xaf0] sm:$0xff]
    %v2993 = vld [vmem:[#allocation9 + $0xaf8] sm:$0xff]
    %v2994 = vld [vmem:[#allocation9 + $0xb00] sm:$0xff]
    %v2995 = vld [vmem:[#allocation9 + $0xb08] sm:$0xff]
    %v2996 = vld [vmem:[#allocation9 + $0xb10] sm:$0xff]
    %v2997 = vld [vmem:[#allocation9 + $0xb18] sm:$0xff]
    %v2998 = vld [vmem:[#allocation9 + $0xb20] sm:$0xff]
    %v2999 = vld [vmem:[#allocation9 + $0xb28] sm:$0xff]
    %v3000 = vld [vmem:[#allocation9 + $0xb30] sm:$0xff]
    %v3001 = vld [vmem:[#allocation9 + $0xb38] sm:$0xff]
    %v3002 = vld [vmem:[#allocation9 + $0xb40] sm:$0xff]
    %v3003 = vld [vmem:[#allocation9 + $0xb48] sm:$0xff]
    %v3004 = vld [vmem:[#allocation9 + $0xb50] sm:$0xff]
    %v3005 = vld [vmem:[#allocation9 + $0xb58] sm:$0xff]
    %v3006 = vld [vmem:[#allocation9 + $0xb60] sm:$0xff]
    %v3007 = vld [vmem:[#allocation9 + $0xb68] sm:$0xff]
    %v3008 = vld [vmem:[#allocation9 + $0xb70] sm:$0xff]
    %v3009 = vld [vmem:[#allocation9 + $0xb78] sm:$0xff]
    %v3010 = vld [vmem:[#allocation9 + $0xb80] sm:$0xff]
    %v3011 = vld [vmem:[#allocation9 + $0xb88] sm:$0xff]
    %v3012 = vld [vmem:[#allocation9 + $0xb90] sm:$0xff]
    %v3013 = vld [vmem:[#allocation9 + $0xb98] sm:$0xff]
    %v3014 = vld [vmem:[#allocation9 + $0xba0] sm:$0xff]
    %v3015 = vld [vmem:[#allocation9 + $0xba8] sm:$0xff]
    %v3016 = vld [vmem:[#allocation9 + $0xbb0] sm:$0xff]
    %v3017 = vld [vmem:[#allocation9 + $0xbb8] sm:$0xff]
    %v3018 = vld [vmem:[#allocation9 + $0xbc0] sm:$0xff]
    %v3019 = vld [vmem:[#allocation9 + $0xbc8] sm:$0xff]
    %v3020 = vld [vmem:[#allocation9 + $0xbd0] sm:$0xff]
    %v3021 = vld [vmem:[#allocation9 + $0xbd8] sm:$0xff]
    %v3022 = vld [vmem:[#allocation9 + $0xbe0] sm:$0xff]
    %v3023 = vld [vmem:[#allocation9 + $0xbe8] sm:$0xff]
    %v3024 = vld [vmem:[#allocation9 + $0xbf0] sm:$0xff]
    %v3025 = vld [vmem:[#allocation9 + $0xbf8] sm:$0xff]
    %v3026 = vld [vmem:[#allocation9 + $0xc00] sm:$0xff]
    %v3027 = vld [vmem:[#allocation9 + $0xc08] sm:$0xff]
    %v3028 = vld [vmem:[#allocation9 + $0xc10] sm:$0xff]
    %v3029 = vld [vmem:[#allocation9 + $0xc18] sm:$0xff]
    %v3030 = vld [vmem:[#allocation9 + $0xc20] sm:$0xff]
    %v3031 = vld [vmem:[#allocation9 + $0xc28] sm:$0xff]
    %v3032 = vld [vmem:[#allocation9 + $0xc30] sm:$0xff]
    %v3033 = vld [vmem:[#allocation9 + $0xc38] sm:$0xff]
    %v3034 = vld [vmem:[#allocation9 + $0xc40] sm:$0xff]
    %v3035 = vld [vmem:[#allocation9 + $0xc48] sm:$0xff]
    %v3036 = vld [vmem:[#allocation9 + $0xc50] sm:$0xff]
    %v3037 = vld [vmem:[#allocation9 + $0xc58] sm:$0xff]
    %v3038 = vld [vmem:[#allocation9 + $0xc60] sm:$0xff]
    %v3039 = vld [vmem:[#allocation9 + $0xc68] sm:$0xff]
    %v3040 = vld [vmem:[#allocation9 + $0xc70] sm:$0xff]
    %v3041 = vld [vmem:[#allocation9 + $0xc78] sm:$0xff]
    %v3042 = vld [vmem:[#allocation9 + $0xc80] sm:$0xff]
    %v3043 = vld [vmem:[#allocation9 + $0xc88] sm:$0xff]
    %v3044 = vld [vmem:[#allocation9 + $0xc90] sm:$0xff]
    %v3045 = vld [vmem:[#allocation9 + $0xc98] sm:$0xff]
    %v3046 = vld [vmem:[#allocation9 + $0xca0] sm:$0xff]
    %v3047 = vld [vmem:[#allocation9 + $0xca8] sm:$0xff]
    %v3048 = vld [vmem:[#allocation9 + $0xcb0] sm:$0xff]
    %v3049 = vld [vmem:[#allocation9 + $0xcb8] sm:$0xff]
    %v3050 = vld [vmem:[#allocation9 + $0xcc0] sm:$0xff]
    %v3051 = vld [vmem:[#allocation9 + $0xcc8] sm:$0xff]
    %v3052 = vld [vmem:[#allocation9 + $0xcd0] sm:$0xff]
    %v3053 = vld [vmem:[#allocation9 + $0xcd8] sm:$0xff]
    %v3054 = vld [vmem:[#allocation9 + $0xce0] sm:$0xff]
    %v3055 = vld [vmem:[#allocation9 + $0xce8] sm:$0xff]
    %v3056 = vld [vmem:[#allocation9 + $0xcf0] sm:$0xff]
    %v3057 = vld [vmem:[#allocation9 + $0xcf8] sm:$0xff]
    %v3058 = vld [vmem:[#allocation9 + $0xd00] sm:$0xff]
    %v3059 = vld [vmem:[#allocation9 + $0xd08] sm:$0xff]
    %v3060 = vld [vmem:[#allocation9 + $0xd10] sm:$0xff]
    %v3061 = vld [vmem:[#allocation9 + $0xd18] sm:$0xff]
    %v3062 = vld [vmem:[#allocation9 + $0xd20] sm:$0xff]
    %v3063 = vld [vmem:[#allocation9 + $0xd28] sm:$0xff]
    %v3064 = vld [vmem:[#allocation9 + $0xd30] sm:$0xff]
    %v3065 = vld [vmem:[#allocation9 + $0xd38] sm:$0xff]
    %v3066 = vld [vmem:[#allocation9 + $0xd40] sm:$0xff]
    %v3067 = vld [vmem:[#allocation9 + $0xd48] sm:$0xff]
    %v3068 = vld [vmem:[#allocation9 + $0xd50] sm:$0xff]
    %v3069 = vld [vmem:[#allocation9 + $0xd58] sm:$0xff]
    %v3070 = vld [vmem:[#allocation9 + $0xd60] sm:$0xff]
    %v3071 = vld [vmem:[#allocation9 + $0xd68] sm:$0xff]
    %v3072 = vld [vmem:[#allocation9 + $0xd70] sm:$0xff]
    %v3073 = vld [vmem:[#allocation9 + $0xd78] sm:$0xff]
    %v3074 = vld [vmem:[#allocation9 + $0xd80] sm:$0xff]
    %v3075 = vld [vmem:[#allocation9 + $0xd88] sm:$0xff]
    %v3076 = vld [vmem:[#allocation9 + $0xd90] sm:$0xff]
    %v3077 = vld [vmem:[#allocation9 + $0xd98] sm:$0xff]
    %v3078 = vld [vmem:[#allocation9 + $0xda0] sm:$0xff]
    %v3079 = vld [vmem:[#allocation9 + $0xda8] sm:$0xff]
    %v3080 = vld [vmem:[#allocation9 + $0xdb0] sm:$0xff]
    %v3081 = vld [vmem:[#allocation9 + $0xdb8] sm:$0xff]
    %v3082 = vld [vmem:[#allocation9 + $0xdc0] sm:$0xff]
    %v3083 = vld [vmem:[#allocation9 + $0xdc8] sm:$0xff]
    %v3084 = vld [vmem:[#allocation9 + $0xdd0] sm:$0xff]
    %v3085 = vld [vmem:[#allocation9 + $0xdd8] sm:$0xff]
    %v3086 = vld [vmem:[#allocation9 + $0xde0] sm:$0xff]
    %v3087 = vld [vmem:[#allocation9 + $0xde8] sm:$0xff]
    %v3088 = vld [vmem:[#allocation9 + $0xdf0] sm:$0xff]
    %v3089 = vld [vmem:[#allocation9 + $0xdf8] sm:$0xff]
    %v3090 = vld [vmem:[#allocation9 + $0xe00] sm:$0xff]
    %v3091 = vld [vmem:[#allocation9 + $0xe08] sm:$0xff]
    %v3092 = vld [vmem:[#allocation9 + $0xe10] sm:$0xff]
    %v3093 = vld [vmem:[#allocation9 + $0xe18] sm:$0xff]
    %v3094 = vld [vmem:[#allocation9 + $0xe20] sm:$0xff]
    %v3095 = vld [vmem:[#allocation9 + $0xe28] sm:$0xff]
    %v3096 = vld [vmem:[#allocation9 + $0xe30] sm:$0xff]
    %v3097 = vld [vmem:[#allocation9 + $0xe38] sm:$0xff]
    %v3098 = vld [vmem:[#allocation9 + $0xe40] sm:$0xff]
    %v3099 = vld [vmem:[#allocation9 + $0xe48] sm:$0xff]
    %v3100 = vld [vmem:[#allocation9 + $0xe50] sm:$0xff]
    %v3101 = vld [vmem:[#allocation9 + $0xe58] sm:$0xff]
    %v3102 = vld [vmem:[#allocation9 + $0xe60] sm:$0xff]
    %v3103 = vld [vmem:[#allocation9 + $0xe68] sm:$0xff]
    %v3104 = vld [vmem:[#allocation9 + $0xe70] sm:$0xff]
    %v3105 = vld [vmem:[#allocation9 + $0xe78] sm:$0xff]
    %v3106 = vld [vmem:[#allocation9 + $0xe80] sm:$0xff]
    %v3107 = vld [vmem:[#allocation9 + $0xe88] sm:$0xff]
    %v3108 = vld [vmem:[#allocation9 + $0xe90] sm:$0xff]
    %v3109 = vld [vmem:[#allocation9 + $0xe98] sm:$0xff]
    %v3110 = vld [vmem:[#allocation9 + $0xea0] sm:$0xff]
    %v3111 = vld [vmem:[#allocation9 + $0xea8] sm:$0xff]
    %v3112 = vld [vmem:[#allocation9 + $0xeb0] sm:$0xff]
    %v3113 = vld [vmem:[#allocation9 + $0xeb8] sm:$0xff]
    %v3114 = vld [vmem:[#allocation9 + $0xec0] sm:$0xff]
    %v3115 = vld [vmem:[#allocation9 + $0xec8] sm:$0xff]
    %v3116 = vld [vmem:[#allocation9 + $0xed0] sm:$0xff]
    %v3117 = vld [vmem:[#allocation9 + $0xed8] sm:$0xff]
    %v3118 = vld [vmem:[#allocation9 + $0xee0] sm:$0xff]
    %v3119 = vld [vmem:[#allocation9 + $0xee8] sm:$0xff]
    %v3120 = vld [vmem:[#allocation9 + $0xef0] sm:$0xff]
    %v3121 = vld [vmem:[#allocation9 + $0xef8] sm:$0xff]
    %v3122 = vld [vmem:[#allocation9 + $0xf00] sm:$0xff]
    %v3123 = vld [vmem:[#allocation9 + $0xf08] sm:$0xff]
    %v3124 = vld [vmem:[#allocation9 + $0xf10] sm:$0xff]
    %v3125 = vld [vmem:[#allocation9 + $0xf18] sm:$0xff]
    %v3126 = vld [vmem:[#allocation9 + $0xf20] sm:$0xff]
    %v3127 = vld [vmem:[#allocation9 + $0xf28] sm:$0xff]
    %v3128 = vld [vmem:[#allocation9 + $0xf30] sm:$0xff]
    %v3129 = vld [vmem:[#allocation9 + $0xf38] sm:$0xff]
    %v3130 = vld [vmem:[#allocation9 + $0xf40] sm:$0xff]
    %v3131 = vld [vmem:[#allocation9 + $0xf48] sm:$0xff]
    %v3132 = vld [vmem:[#allocation9 + $0xf50] sm:$0xff]
    %v3133 = vld [vmem:[#allocation9 + $0xf58] sm:$0xff]
    %v3134 = vld [vmem:[#allocation9 + $0xf60] sm:$0xff]
    %v3135 = vld [vmem:[#allocation9 + $0xf68] sm:$0xff]
    %v3136 = vld [vmem:[#allocation9 + $0xf70] sm:$0xff]
    %v3137 = vld [vmem:[#allocation9 + $0xf78] sm:$0xff]
    %v3138 = vld [vmem:[#allocation9 + $0xf80] sm:$0xff]
    %v3139 = vld [vmem:[#allocation9 + $0xf88] sm:$0xff]
    %v3140 = vld [vmem:[#allocation9 + $0xf90] sm:$0xff]
    %v3141 = vld [vmem:[#allocation9 + $0xf98] sm:$0xff]
    %v3142 = vld [vmem:[#allocation9 + $0xfa0] sm:$0xff]
    %v3143 = vld [vmem:[#allocation9 + $0xfa8] sm:$0xff]
    %v3144 = vld [vmem:[#allocation9 + $0xfb0] sm:$0xff]
    %v3145 = vld [vmem:[#allocation9 + $0xfb8] sm:$0xff]
    %v3146 = vld [vmem:[#allocation9 + $0xfc0] sm:$0xff]
    %v3147 = vld [vmem:[#allocation9 + $0xfc8] sm:$0xff]
    %v3148 = vld [vmem:[#allocation9 + $0xfd0] sm:$0xff]
    %v3149 = vld [vmem:[#allocation9 + $0xfd8] sm:$0xff]
    %v3150 = vld [vmem:[#allocation9 + $0xfe0] sm:$0xff]
    %v3151 = vld [vmem:[#allocation9 + $0xfe8] sm:$0xff]
    %v3152 = vld [vmem:[#allocation9 + $0xff0] sm:$0xff]
    %v3153 = vld [vmem:[#allocation9 + $0xff8] sm:$0xff]
    %v3154 = vld [vmem:[#allocation9 + $0x1000] sm:$0xff]
    %v3155 = vld [vmem:[#allocation9 + $0x1008] sm:$0xff]
    %v3156 = vld [vmem:[#allocation9 + $0x1010] sm:$0xff]
    %v3157 = vld [vmem:[#allocation9 + $0x1018] sm:$0xff]
    %v3158 = vld [vmem:[#allocation9 + $0x1020] sm:$0xff]
    %v3159 = vld [vmem:[#allocation9 + $0x1028] sm:$0xff]
    %v3160 = vld [vmem:[#allocation9 + $0x1030] sm:$0xff]
    %v3161 = vld [vmem:[#allocation9 + $0x1038] sm:$0xff]
    %v3162 = vld [vmem:[#allocation9 + $0x1040] sm:$0xff]
    %v3163 = vld [vmem:[#allocation9 + $0x1048] sm:$0xff]
    %v3164 = vld [vmem:[#allocation9 + $0x1050] sm:$0xff]
    %v3165 = vld [vmem:[#allocation9 + $0x1058] sm:$0xff]
    %v3166 = vld [vmem:[#allocation9 + $0x1060] sm:$0xff]
    %v3167 = vld [vmem:[#allocation9 + $0x1068] sm:$0xff]
    %v3168 = vld [vmem:[#allocation9 + $0x1070] sm:$0xff]
    %v3169 = vld [vmem:[#allocation9 + $0x1078] sm:$0xff]
    %v3170 = vld [vmem:[#allocation9 + $0x1080] sm:$0xff]
    %v3171 = vld [vmem:[#allocation9 + $0x1088] sm:$0xff]
    %v3172 = vld [vmem:[#allocation9 + $0x1090] sm:$0xff]
    %v3173 = vld [vmem:[#allocation9 + $0x1098] sm:$0xff]
    %v3174 = vld [vmem:[#allocation9 + $0x10a0] sm:$0xff]
    %v3175 = vld [vmem:[#allocation9 + $0x10a8] sm:$0xff]
    %v3176 = vld [vmem:[#allocation9 + $0x10b0] sm:$0xff]
    %v3177 = vld [vmem:[#allocation9 + $0x10b8] sm:$0xff]
    %v3178 = vld [vmem:[#allocation9 + $0x10c0] sm:$0xff]
    %v3179 = vld [vmem:[#allocation9 + $0x10c8] sm:$0xff]
    %v3180 = vld [vmem:[#allocation9 + $0x10d0] sm:$0xff]
    %v3181 = vld [vmem:[#allocation9 + $0x10d8] sm:$0xff]
    %v3182 = vld [vmem:[#allocation9 + $0x10e0] sm:$0xff]
    %v3183 = vld [vmem:[#allocation9 + $0x10e8] sm:$0xff]
    %v3184 = vld [vmem:[#allocation9 + $0x10f0] sm:$0xff]
    %v3185 = vld [vmem:[#allocation9 + $0x10f8] sm:$0xff]
    %v3186 = vld [vmem:[#allocation9 + $0x1100] sm:$0xff]
    %v3187 = vld [vmem:[#allocation9 + $0x1108] sm:$0xff]
    %v3188 = vld [vmem:[#allocation9 + $0x1110] sm:$0xff]
    %v3189 = vld [vmem:[#allocation9 + $0x1118] sm:$0xff]
    %v3190 = vld [vmem:[#allocation9 + $0x1120] sm:$0xff]
    %v3191 = vld [vmem:[#allocation9 + $0x1128] sm:$0xff]
    %v3192 = vld [vmem:[#allocation9 + $0x1130] sm:$0xff]
    %v3193 = vld [vmem:[#allocation9 + $0x1138] sm:$0xff]
    %v3194 = vld [vmem:[#allocation9 + $0x1140] sm:$0xff]
    %v3195 = vld [vmem:[#allocation9 + $0x1148] sm:$0xff]
    %v3196 = vld [vmem:[#allocation9 + $0x1150] sm:$0xff]
    %v3197 = vld [vmem:[#allocation9 + $0x1158] sm:$0xff]
    %v3198 = vld [vmem:[#allocation9 + $0x1160] sm:$0xff]
    %v3199 = vld [vmem:[#allocation9 + $0x1168] sm:$0xff]
    %v3200 = vld [vmem:[#allocation9 + $0x1170] sm:$0xff]
    %v3201 = vld [vmem:[#allocation9 + $0x1178] sm:$0xff]
    %v3202 = vld [vmem:[#allocation10] sm:$0xff]
    %v3203 = vld [vmem:[#allocation10 + $0x8] sm:$0x3]
    %v3206 = vperm.slane %v3202, 0
    %v3207 = vperm.slane %v3202, 1
    %v3208 = vperm.slane %v3202, 2
    %v3209 = vperm.slane %v3202, 3
    %v3210 = vperm.slane %v3202, 4
    %v3211 = vperm.slane %v3202, 5
    %v3212 = vperm.slane %v3202, 6
    %v3213 = vperm.slane %v3202, 7
    %v3214 = vperm.slane %v3203, 0
    %v3215 = vperm.slane %v3203, 1
    %v3786 = vunpack.c.l.b16 %v2642
    %v3787 = vunpack.c.h.b16 %v2642
    %v3788 = vunpack.c.l.b16 %v2643
    %v3789 = vunpack.c.h.b16 %v2643
    %v3790 = vunpack.c.l.b16 %v2644
    %v3791 = vunpack.c.h.b16 %v2644
    %v3792 = vunpack.c.l.b16 %v2645
    %v3793 = vunpack.c.h.b16 %v2645
    %v3794 = vunpack.c.l.b16 %v2646
    %v3795 = vunpack.c.h.b16 %v2646
    %v3796 = vunpack.c.l.b16 %v2647
    %v3797 = vunpack.c.h.b16 %v2647
    %v3798 = vunpack.c.l.b16 %v2648
    %v3799 = vunpack.c.h.b16 %v2648
    %v3800 = vunpack.c.l.b16 %v2649
    %v3801 = vunpack.c.h.b16 %v2649
    %v3802 = vunpack.c.l.b16 %v2650
    %v3803 = vunpack.c.h.b16 %v2650
    %v3804 = vunpack.c.l.b16 %v2651
    %v3805 = vunpack.c.h.b16 %v2651
    %v3806 = vunpack.c.l.b16 %v2652
    %v3807 = vunpack.c.h.b16 %v2652
    %v3808 = vunpack.c.l.b16 %v2653
    %v3809 = vunpack.c.h.b16 %v2653
    %v3810 = vunpack.c.l.b16 %v2654
    %v3811 = vunpack.c.h.b16 %v2654
    %v3812 = vunpack.c.l.b16 %v2655
    %v3813 = vunpack.c.h.b16 %v2655
    %v3814 = vunpack.c.l.b16 %v2656
    %v3815 = vunpack.c.h.b16 %v2656
    %v3816 = vunpack.c.l.b16 %v2657
    %v3817 = vunpack.c.h.b16 %v2657
    %v3818 = vunpack.c.l.b16 %v2658
    %v3819 = vunpack.c.h.b16 %v2658
    %v3820 = vunpack.c.l.b16 %v2659
    %v3821 = vunpack.c.h.b16 %v2659
    %v3822 = vunpack.c.l.b16 %v2660
    %v3823 = vunpack.c.h.b16 %v2660
    %v3824 = vunpack.c.l.b16 %v2661
    %v3825 = vunpack.c.h.b16 %v2661
    %v3826 = vunpack.c.l.b16 %v2662
    %v3827 = vunpack.c.h.b16 %v2662
    %v3828 = vunpack.c.l.b16 %v2663
    %v3829 = vunpack.c.h.b16 %v2663
    %v3830 = vunpack.c.l.b16 %v2664
    %v3831 = vunpack.c.h.b16 %v2664
    %v3832 = vunpack.c.l.b16 %v2665
    %v3833 = vunpack.c.h.b16 %v2665
    %v3834 = vunpack.c.l.b16 %v2666
    %v3835 = vunpack.c.h.b16 %v2666
    %v3836 = vunpack.c.l.b16 %v2667
    %v3837 = vunpack.c.h.b16 %v2667
    %v3838 = vunpack.c.l.b16 %v2668
    %v3839 = vunpack.c.h.b16 %v2668
    %v3840 = vunpack.c.l.b16 %v2669
    %v3841 = vunpack.c.h.b16 %v2669
    %v3842 = vunpack.c.l.b16 %v2670
    %v3843 = vunpack.c.h.b16 %v2670
    %v3844 = vunpack.c.l.b16 %v2671
    %v3845 = vunpack.c.h.b16 %v2671
    %v3846 = vunpack.c.l.b16 %v2672
    %v3847 = vunpack.c.h.b16 %v2672
    %v3848 = vunpack.c.l.b16 %v2673
    %v3849 = vunpack.c.h.b16 %v2673
    %v3850 = vunpack.c.l.b16 %v2674
    %v3851 = vunpack.c.h.b16 %v2674
    %v3852 = vunpack.c.l.b16 %v2675
    %v3853 = vunpack.c.h.b16 %v2675
    %v3854 = vunpack.c.l.b16 %v2676
    %v3855 = vunpack.c.h.b16 %v2676
    %v3856 = vunpack.c.l.b16 %v2677
    %v3857 = vunpack.c.h.b16 %v2677
    %v3858 = vunpack.c.l.b16 %v2678
    %v3859 = vunpack.c.h.b16 %v2678
    %v3860 = vunpack.c.l.b16 %v2679
    %v3861 = vunpack.c.h.b16 %v2679
    %v3862 = vunpack.c.l.b16 %v2680
    %v3863 = vunpack.c.h.b16 %v2680
    %v3864 = vunpack.c.l.b16 %v2681
    %v3865 = vunpack.c.h.b16 %v2681
    %v3866 = vunpack.c.l.b16 %v2682
    %v3867 = vunpack.c.h.b16 %v2682
    %v3868 = vunpack.c.l.b16 %v2683
    %v3869 = vunpack.c.h.b16 %v2683
    %v3870 = vunpack.c.l.b16 %v2684
    %v3871 = vunpack.c.h.b16 %v2684
    %v3872 = vunpack.c.l.b16 %v2685
    %v3873 = vunpack.c.h.b16 %v2685
    %v3874 = vunpack.c.l.b16 %v2686
    %v3875 = vunpack.c.h.b16 %v2686
    %v3876 = vunpack.c.l.b16 %v2687
    %v3877 = vunpack.c.h.b16 %v2687
    %v3878 = vunpack.c.l.b16 %v2688
    %v3879 = vunpack.c.h.b16 %v2688
    %v3880 = vunpack.c.l.b16 %v2689
    %v3881 = vunpack.c.h.b16 %v2689
    %v3882 = vunpack.c.l.b16 %v2690
    %v3883 = vunpack.c.h.b16 %v2690
    %v3884 = vunpack.c.l.b16 %v2691
    %v3885 = vunpack.c.h.b16 %v2691
    %v3886 = vunpack.c.l.b16 %v2692
    %v3887 = vunpack.c.h.b16 %v2692
    %v3888 = vunpack.c.l.b16 %v2693
    %v3889 = vunpack.c.h.b16 %v2693
    %v3890 = vunpack.c.l.b16 %v2694
    %v3891 = vunpack.c.h.b16 %v2694
    %v3892 = vunpack.c.l.b16 %v2695
    %v3893 = vunpack.c.h.b16 %v2695
    %v3894 = vunpack.c.l.b16 %v2696
    %v3895 = vunpack.c.h.b16 %v2696
    %v3896 = vunpack.c.l.b16 %v2697
    %v3897 = vunpack.c.h.b16 %v2697
    %v3898 = vunpack.c.l.b16 %v2698
    %v3899 = vunpack.c.h.b16 %v2698
    %v3900 = vunpack.c.l.b16 %v2699
    %v3901 = vunpack.c.h.b16 %v2699
    %v3902 = vunpack.c.l.b16 %v2700
    %v3903 = vunpack.c.h.b16 %v2700
    %v3904 = vunpack.c.l.b16 %v2701
    %v3905 = vunpack.c.h.b16 %v2701
    %v3906 = vunpack.c.l.b16 %v2702
    %v3907 = vunpack.c.h.b16 %v2702
    %v3908 = vunpack.c.l.b16 %v2703
    %v3909 = vunpack.c.h.b16 %v2703
    %v3910 = vunpack.c.l.b16 %v2704
    %v3911 = vunpack.c.h.b16 %v2704
    %v3912 = vunpack.c.l.b16 %v2705
    %v3913 = vunpack.c.h.b16 %v2705
    %v3914 = vunpack.c.l.b16 %v2706
    %v3915 = vunpack.c.h.b16 %v2706
    %v3916 = vunpack.c.l.b16 %v2707
    %v3917 = vunpack.c.h.b16 %v2707
    %v3918 = vunpack.c.l.b16 %v2708
    %v3919 = vunpack.c.h.b16 %v2708
    %v3920 = vunpack.c.l.b16 %v2709
    %v3921 = vunpack.c.h.b16 %v2709
    %v3922 = vunpack.c.l.b16 %v2710
    %v3923 = vunpack.c.h.b16 %v2710
    %v3924 = vunpack.c.l.b16 %v2711
    %v3925 = vunpack.c.h.b16 %v2711
    %v3926 = vunpack.c.l.b16 %v2712
    %v3927 = vunpack.c.h.b16 %v2712
    %v3928 = vunpack.c.l.b16 %v2713
    %v3929 = vunpack.c.h.b16 %v2713
    %v3930 = vunpack.c.l.b16 %v2714
    %v3931 = vunpack.c.h.b16 %v2714
    %v3932 = vunpack.c.l.b16 %v2715
    %v3933 = vunpack.c.h.b16 %v2715
    %v3934 = vunpack.c.l.b16 %v2716
    %v3935 = vunpack.c.h.b16 %v2716
    %v3936 = vunpack.c.l.b16 %v2717
    %v3937 = vunpack.c.h.b16 %v2717
    %v3938 = vunpack.c.l.b16 %v2718
    %v3939 = vunpack.c.h.b16 %v2718
    %v3940 = vunpack.c.l.b16 %v2719
    %v3941 = vunpack.c.h.b16 %v2719
    %v3942 = vunpack.c.l.b16 %v2720
    %v3943 = vunpack.c.h.b16 %v2720
    %v3944 = vunpack.c.l.b16 %v2721
    %v3945 = vunpack.c.h.b16 %v2721
    %v3946 = vunpack.c.l.b16 %v2722
    %v3947 = vunpack.c.h.b16 %v2722
    %v3948 = vunpack.c.l.b16 %v2723
    %v3949 = vunpack.c.h.b16 %v2723
    %v3950 = vunpack.c.l.b16 %v2724
    %v3951 = vunpack.c.h.b16 %v2724
    %v3952 = vunpack.c.l.b16 %v2725
    %v3953 = vunpack.c.h.b16 %v2725
    %v3954 = vunpack.c.l.b16 %v2726
    %v3955 = vunpack.c.h.b16 %v2726
    %v3956 = vunpack.c.l.b16 %v2727
    %v3957 = vunpack.c.h.b16 %v2727
    %v3958 = vunpack.c.l.b16 %v2728
    %v3959 = vunpack.c.h.b16 %v2728
    %v3960 = vunpack.c.l.b16 %v2729
    %v3961 = vunpack.c.h.b16 %v2729
    %v3962 = vunpack.c.l.b16 %v2730
    %v3963 = vunpack.c.h.b16 %v2730
    %v3964 = vunpack.c.l.b16 %v2731
    %v3965 = vunpack.c.h.b16 %v2731
    %v3966 = vunpack.c.l.b16 %v2732
    %v3967 = vunpack.c.h.b16 %v2732
    %v3968 = vunpack.c.l.b16 %v2733
    %v3969 = vunpack.c.h.b16 %v2733
    %v3970 = vunpack.c.l.b16 %v2734
    %v3971 = vunpack.c.h.b16 %v2734
    %v3972 = vunpack.c.l.b16 %v2735
    %v3973 = vunpack.c.h.b16 %v2735
    %v3974 = vunpack.c.l.b16 %v2736
    %v3975 = vunpack.c.h.b16 %v2736
    %v3976 = vunpack.c.l.b16 %v2737
    %v3977 = vunpack.c.h.b16 %v2737
    %v3978 = vunpack.c.l.b16 %v2738
    %v3979 = vunpack.c.h.b16 %v2738
    %v3980 = vunpack.c.l.b16 %v2739
    %v3981 = vunpack.c.h.b16 %v2739
    %v3982 = vunpack.c.l.b16 %v2740
    %v3983 = vunpack.c.h.b16 %v2740
    %v3984 = vunpack.c.l.b16 %v2741
    %v3985 = vunpack.c.h.b16 %v2741
    %v3986 = vunpack.c.l.b16 %v2742
    %v3987 = vunpack.c.h.b16 %v2742
    %v3988 = vunpack.c.l.b16 %v2743
    %v3989 = vunpack.c.h.b16 %v2743
    %v3990 = vunpack.c.l.b16 %v2744
    %v3991 = vunpack.c.h.b16 %v2744
    %v3992 = vunpack.c.l.b16 %v2745
    %v3993 = vunpack.c.h.b16 %v2745
    %v3994 = vunpack.c.l.b16 %v2746
    %v3995 = vunpack.c.h.b16 %v2746
    %v3996 = vunpack.c.l.b16 %v2747
    %v3997 = vunpack.c.h.b16 %v2747
    %v3998 = vunpack.c.l.b16 %v2748
    %v3999 = vunpack.c.h.b16 %v2748
    %v4000 = vunpack.c.l.b16 %v2749
    %v4001 = vunpack.c.h.b16 %v2749
    %v4002 = vunpack.c.l.b16 %v2750
    %v4003 = vunpack.c.h.b16 %v2750
    %v4004 = vunpack.c.l.b16 %v2751
    %v4005 = vunpack.c.h.b16 %v2751
    %v4006 = vunpack.c.l.b16 %v2752
    %v4007 = vunpack.c.h.b16 %v2752
    %v4008 = vunpack.c.l.b16 %v2753
    %v4009 = vunpack.c.h.b16 %v2753
    %v4010 = vunpack.c.l.b16 %v2754
    %v4011 = vunpack.c.h.b16 %v2754
    %v4012 = vunpack.c.l.b16 %v2755
    %v4013 = vunpack.c.h.b16 %v2755
    %v4014 = vunpack.c.l.b16 %v2756
    %v4015 = vunpack.c.h.b16 %v2756
    %v4016 = vunpack.c.l.b16 %v2757
    %v4017 = vunpack.c.h.b16 %v2757
    %v4018 = vunpack.c.l.b16 %v2758
    %v4019 = vunpack.c.h.b16 %v2758
    %v4020 = vunpack.c.l.b16 %v2759
    %v4021 = vunpack.c.h.b16 %v2759
    %v4022 = vunpack.c.l.b16 %v2760
    %v4023 = vunpack.c.h.b16 %v2760
    %v4024 = vunpack.c.l.b16 %v2761
    %v4025 = vunpack.c.h.b16 %v2761
    %v4026 = vunpack.c.l.b16 %v2762
    %v4027 = vunpack.c.h.b16 %v2762
    %v4028 = vunpack.c.l.b16 %v2763
    %v4029 = vunpack.c.h.b16 %v2763
    %v4030 = vunpack.c.l.b16 %v2764
    %v4031 = vunpack.c.h.b16 %v2764
    %v4032 = vunpack.c.l.b16 %v2765
    %v4033 = vunpack.c.h.b16 %v2765
    %v4034 = vunpack.c.l.b16 %v2766
    %v4035 = vunpack.c.h.b16 %v2766
    %v4036 = vunpack.c.l.b16 %v2767
    %v4037 = vunpack.c.h.b16 %v2767
    %v4038 = vunpack.c.l.b16 %v2768
    %v4039 = vunpack.c.h.b16 %v2768
    %v4040 = vunpack.c.l.b16 %v2769
    %v4041 = vunpack.c.h.b16 %v2769
    %v4042 = vunpack.c.l.b16 %v2770
    %v4043 = vunpack.c.h.b16 %v2770
    %v4044 = vunpack.c.l.b16 %v2771
    %v4045 = vunpack.c.h.b16 %v2771
    %v4046 = vunpack.c.l.b16 %v2772
    %v4047 = vunpack.c.h.b16 %v2772
    %v4048 = vunpack.c.l.b16 %v2773
    %v4049 = vunpack.c.h.b16 %v2773
    %v4050 = vunpack.c.l.b16 %v2774
    %v4051 = vunpack.c.h.b16 %v2774
    %v4052 = vunpack.c.l.b16 %v2775
    %v4053 = vunpack.c.h.b16 %v2775
    %v4054 = vunpack.c.l.b16 %v2776
    %v4055 = vunpack.c.h.b16 %v2776
    %v4056 = vunpack.c.l.b16 %v2777
    %v4057 = vunpack.c.h.b16 %v2777
    %v4058 = vunpack.c.l.b16 %v2778
    %v4059 = vunpack.c.h.b16 %v2778
    %v4060 = vunpack.c.l.b16 %v2779
    %v4061 = vunpack.c.h.b16 %v2779
    %v4062 = vunpack.c.l.b16 %v2780
    %v4063 = vunpack.c.h.b16 %v2780
    %v4064 = vunpack.c.l.b16 %v2781
    %v4065 = vunpack.c.h.b16 %v2781
    %v4066 = vunpack.c.l.b16 %v2782
    %v4067 = vunpack.c.h.b16 %v2782
    %v4068 = vunpack.c.l.b16 %v2783
    %v4069 = vunpack.c.h.b16 %v2783
    %v4070 = vunpack.c.l.b16 %v2784
    %v4071 = vunpack.c.h.b16 %v2784
    %v4072 = vunpack.c.l.b16 %v2785
    %v4073 = vunpack.c.h.b16 %v2785
    %v4074 = vunpack.c.l.b16 %v2786
    %v4075 = vunpack.c.h.b16 %v2786
    %v4076 = vunpack.c.l.b16 %v2787
    %v4077 = vunpack.c.h.b16 %v2787
    %v4078 = vunpack.c.l.b16 %v2788
    %v4079 = vunpack.c.h.b16 %v2788
    %v4080 = vunpack.c.l.b16 %v2789
    %v4081 = vunpack.c.h.b16 %v2789
    %v4082 = vunpack.c.l.b16 %v2790
    %v4083 = vunpack.c.h.b16 %v2790
    %v4084 = vunpack.c.l.b16 %v2791
    %v4085 = vunpack.c.h.b16 %v2791
    %v4086 = vunpack.c.l.b16 %v2792
    %v4087 = vunpack.c.h.b16 %v2792
    %v4088 = vunpack.c.l.b16 %v2793
    %v4089 = vunpack.c.h.b16 %v2793
    %v4090 = vunpack.c.l.b16 %v2794
    %v4091 = vunpack.c.h.b16 %v2794
    %v4092 = vunpack.c.l.b16 %v2795
    %v4093 = vunpack.c.h.b16 %v2795
    %v4094 = vunpack.c.l.b16 %v2796
    %v4095 = vunpack.c.h.b16 %v2796
    %v4096 = vunpack.c.l.b16 %v2797
    %v4097 = vunpack.c.h.b16 %v2797
    %v4098 = vunpack.c.l.b16 %v2798
    %v4099 = vunpack.c.h.b16 %v2798
    %v4100 = vunpack.c.l.b16 %v2799
    %v4101 = vunpack.c.h.b16 %v2799
    %v4102 = vunpack.c.l.b16 %v2800
    %v4103 = vunpack.c.h.b16 %v2800
    %v4104 = vunpack.c.l.b16 %v2801
    %v4105 = vunpack.c.h.b16 %v2801
    %v4106 = vunpack.c.l.b16 %v2802
    %v4107 = vunpack.c.h.b16 %v2802
    %v4108 = vunpack.c.l.b16 %v2803
    %v4109 = vunpack.c.h.b16 %v2803
    %v4110 = vunpack.c.l.b16 %v2804
    %v4111 = vunpack.c.h.b16 %v2804
    %v4112 = vunpack.c.l.b16 %v2805
    %v4113 = vunpack.c.h.b16 %v2805
    %v4114 = vunpack.c.l.b16 %v2806
    %v4115 = vunpack.c.h.b16 %v2806
    %v4116 = vunpack.c.l.b16 %v2807
    %v4117 = vunpack.c.h.b16 %v2807
    %v4118 = vunpack.c.l.b16 %v2808
    %v4119 = vunpack.c.h.b16 %v2808
    %v4120 = vunpack.c.l.b16 %v2809
    %v4121 = vunpack.c.h.b16 %v2809
    %v4122 = vunpack.c.l.b16 %v2810
    %v4123 = vunpack.c.h.b16 %v2810
    %v4124 = vunpack.c.l.b16 %v2811
    %v4125 = vunpack.c.h.b16 %v2811
    %v4126 = vunpack.c.l.b16 %v2812
    %v4127 = vunpack.c.h.b16 %v2812
    %v4128 = vunpack.c.l.b16 %v2813
    %v4129 = vunpack.c.h.b16 %v2813
    %v4130 = vunpack.c.l.b16 %v2814
    %v4131 = vunpack.c.h.b16 %v2814
    %v4132 = vunpack.c.l.b16 %v2815
    %v4133 = vunpack.c.h.b16 %v2815
    %v4134 = vunpack.c.l.b16 %v2816
    %v4135 = vunpack.c.h.b16 %v2816
    %v4136 = vunpack.c.l.b16 %v2817
    %v4137 = vunpack.c.h.b16 %v2817
    %v4138 = vunpack.c.l.b16 %v2818
    %v4139 = vunpack.c.h.b16 %v2818
    %v4140 = vunpack.c.l.b16 %v2819
    %v4141 = vunpack.c.h.b16 %v2819
    %v4142 = vunpack.c.l.b16 %v2820
    %v4143 = vunpack.c.h.b16 %v2820
    %v4144 = vunpack.c.l.b16 %v2821
    %v4145 = vunpack.c.h.b16 %v2821
    %v4146 = vunpack.c.l.b16 %v2822
    %v4147 = vunpack.c.h.b16 %v2822
    %v4148 = vunpack.c.l.b16 %v2823
    %v4149 = vunpack.c.h.b16 %v2823
    %v4150 = vunpack.c.l.b16 %v2824
    %v4151 = vunpack.c.h.b16 %v2824
    %v4152 = vunpack.c.l.b16 %v2825
    %v4153 = vunpack.c.h.b16 %v2825
    %v4154 = vunpack.c.l.b16 %v2826
    %v4155 = vunpack.c.h.b16 %v2826
    %v4156 = vunpack.c.l.b16 %v2827
    %v4157 = vunpack.c.h.b16 %v2827
    %v4158 = vunpack.c.l.b16 %v2828
    %v4159 = vunpack.c.h.b16 %v2828
    %v4160 = vunpack.c.l.b16 %v2829
    %v4161 = vunpack.c.h.b16 %v2829
    %v4162 = vunpack.c.l.b16 %v2830
    %v4163 = vunpack.c.h.b16 %v2830
    %v4164 = vunpack.c.l.b16 %v2831
    %v4165 = vunpack.c.h.b16 %v2831
    %v4166 = vunpack.c.l.b16 %v2832
    %v4167 = vunpack.c.h.b16 %v2832
    %v4168 = vunpack.c.l.b16 %v2833
    %v4169 = vunpack.c.h.b16 %v2833
    %v4170 = vunpack.c.l.b16 %v2834
    %v4171 = vunpack.c.h.b16 %v2834
    %v4172 = vunpack.c.l.b16 %v2835
    %v4173 = vunpack.c.h.b16 %v2835
    %v4174 = vunpack.c.l.b16 %v2836
    %v4175 = vunpack.c.h.b16 %v2836
    %v4176 = vunpack.c.l.b16 %v2837
    %v4177 = vunpack.c.h.b16 %v2837
    %v4178 = vunpack.c.l.b16 %v2838
    %v4179 = vunpack.c.h.b16 %v2838
    %v4180 = vunpack.c.l.b16 %v2839
    %v4181 = vunpack.c.h.b16 %v2839
    %v4182 = vunpack.c.l.b16 %v2840
    %v4183 = vunpack.c.h.b16 %v2840
    %v4184 = vunpack.c.l.b16 %v2841
    %v4185 = vunpack.c.h.b16 %v2841
    %v4186 = vunpack.c.l.b16 %v2842
    %v4187 = vunpack.c.h.b16 %v2842
    %v4188 = vunpack.c.l.b16 %v2843
    %v4189 = vunpack.c.h.b16 %v2843
    %v4190 = vunpack.c.l.b16 %v2844
    %v4191 = vunpack.c.h.b16 %v2844
    %v4192 = vunpack.c.l.b16 %v2845
    %v4193 = vunpack.c.h.b16 %v2845
    %v4194 = vunpack.c.l.b16 %v2846
    %v4195 = vunpack.c.h.b16 %v2846
    %v4196 = vunpack.c.l.b16 %v2847
    %v4197 = vunpack.c.h.b16 %v2847
    %v4198 = vunpack.c.l.b16 %v2848
    %v4199 = vunpack.c.h.b16 %v2848
    %v4200 = vunpack.c.l.b16 %v2849
    %v4201 = vunpack.c.h.b16 %v2849
    %v4202 = vunpack.c.l.b16 %v2850
    %v4203 = vunpack.c.h.b16 %v2850
    %v4204 = vunpack.c.l.b16 %v2851
    %v4205 = vunpack.c.h.b16 %v2851
    %v4206 = vunpack.c.l.b16 %v2852
    %v4207 = vunpack.c.h.b16 %v2852
    %v4208 = vunpack.c.l.b16 %v2853
    %v4209 = vunpack.c.h.b16 %v2853
    %v4210 = vunpack.c.l.b16 %v2854
    %v4211 = vunpack.c.h.b16 %v2854
    %v4212 = vunpack.c.l.b16 %v2855
    %v4213 = vunpack.c.h.b16 %v2855
    %v4214 = vunpack.c.l.b16 %v2856
    %v4215 = vunpack.c.h.b16 %v2856
    %v4216 = vunpack.c.l.b16 %v2857
    %v4217 = vunpack.c.h.b16 %v2857
    %v4218 = vunpack.c.l.b16 %v2858
    %v4219 = vunpack.c.h.b16 %v2858
    %v4220 = vunpack.c.l.b16 %v2859
    %v4221 = vunpack.c.h.b16 %v2859
    %v4222 = vunpack.c.l.b16 %v2860
    %v4223 = vunpack.c.h.b16 %v2860
    %v4224 = vunpack.c.l.b16 %v2861
    %v4225 = vunpack.c.h.b16 %v2861
    %v4226 = vunpack.c.l.b16 %v2862
    %v4227 = vunpack.c.h.b16 %v2862
    %v4228 = vunpack.c.l.b16 %v2863
    %v4229 = vunpack.c.h.b16 %v2863
    %v4230 = vunpack.c.l.b16 %v2864
    %v4231 = vunpack.c.h.b16 %v2864
    %v4232 = vunpack.c.l.b16 %v2865
    %v4233 = vunpack.c.h.b16 %v2865
    %v4234 = vunpack.c.l.b16 %v2866
    %v4235 = vunpack.c.h.b16 %v2866
    %v4236 = vunpack.c.l.b16 %v2867
    %v4237 = vunpack.c.h.b16 %v2867
    %v4238 = vunpack.c.l.b16 %v2868
    %v4239 = vunpack.c.h.b16 %v2868
    %v4240 = vunpack.c.l.b16 %v2869
    %v4241 = vunpack.c.h.b16 %v2869
    %v4242 = vunpack.c.l.b16 %v2870
    %v4243 = vunpack.c.h.b16 %v2870
    %v4244 = vunpack.c.l.b16 %v2871
    %v4245 = vunpack.c.h.b16 %v2871
    %v4246 = vunpack.c.l.b16 %v2872
    %v4247 = vunpack.c.h.b16 %v2872
    %v4248 = vunpack.c.l.b16 %v2873
    %v4249 = vunpack.c.h.b16 %v2873
    %v4250 = vunpack.c.l.b16 %v2874
    %v4251 = vunpack.c.h.b16 %v2874
    %v4252 = vunpack.c.l.b16 %v2875
    %v4253 = vunpack.c.h.b16 %v2875
    %v4254 = vunpack.c.l.b16 %v2876
    %v4255 = vunpack.c.h.b16 %v2876
    %v4256 = vunpack.c.l.b16 %v2877
    %v4257 = vunpack.c.h.b16 %v2877
    %v4258 = vunpack.c.l.b16 %v2878
    %v4259 = vunpack.c.h.b16 %v2878
    %v4260 = vunpack.c.l.b16 %v2879
    %v4261 = vunpack.c.h.b16 %v2879
    %v4262 = vunpack.c.l.b16 %v2880
    %v4263 = vunpack.c.h.b16 %v2880
    %v4264 = vunpack.c.l.b16 %v2881
    %v4265 = vunpack.c.h.b16 %v2881
    %v4266 = vunpack.c.l.b16 %v2882
    %v4267 = vunpack.c.h.b16 %v2882
    %v4268 = vunpack.c.l.b16 %v2883
    %v4269 = vunpack.c.h.b16 %v2883
    %v4270 = vunpack.c.l.b16 %v2884
    %v4271 = vunpack.c.h.b16 %v2884
    %v4272 = vunpack.c.l.b16 %v2885
    %v4273 = vunpack.c.h.b16 %v2885
    %v4274 = vunpack.c.l.b16 %v2886
    %v4275 = vunpack.c.h.b16 %v2886
    %v4276 = vunpack.c.l.b16 %v2887
    %v4277 = vunpack.c.h.b16 %v2887
    %v4278 = vunpack.c.l.b16 %v2888
    %v4279 = vunpack.c.h.b16 %v2888
    %v4280 = vunpack.c.l.b16 %v2889
    %v4281 = vunpack.c.h.b16 %v2889
    %v4282 = vunpack.c.l.b16 %v2890
    %v4283 = vunpack.c.h.b16 %v2890
    %v4284 = vunpack.c.l.b16 %v2891
    %v4285 = vunpack.c.h.b16 %v2891
    %v4286 = vunpack.c.l.b16 %v2892
    %v4287 = vunpack.c.h.b16 %v2892
    %v4288 = vunpack.c.l.b16 %v2893
    %v4289 = vunpack.c.h.b16 %v2893
    %v4290 = vunpack.c.l.b16 %v2894
    %v4291 = vunpack.c.h.b16 %v2894
    %v4292 = vunpack.c.l.b16 %v2895
    %v4293 = vunpack.c.h.b16 %v2895
    %v4294 = vunpack.c.l.b16 %v2896
    %v4295 = vunpack.c.h.b16 %v2896
    %v4296 = vunpack.c.l.b16 %v2897
    %v4297 = vunpack.c.h.b16 %v2897
    %v4298 = vunpack.c.l.b16 %v2898
    %v4299 = vunpack.c.h.b16 %v2898
    %v4300 = vunpack.c.l.b16 %v2899
    %v4301 = vunpack.c.h.b16 %v2899
    %v4302 = vunpack.c.l.b16 %v2900
    %v4303 = vunpack.c.h.b16 %v2900
    %v4304 = vunpack.c.l.b16 %v2901
    %v4305 = vunpack.c.h.b16 %v2901
    %v4306 = vunpack.c.l.b16 %v2902
    %v4307 = vunpack.c.h.b16 %v2902
    %v4308 = vunpack.c.l.b16 %v2903
    %v4309 = vunpack.c.h.b16 %v2903
    %v4310 = vunpack.c.l.b16 %v2904
    %v4311 = vunpack.c.h.b16 %v2904
    %v4312 = vunpack.c.l.b16 %v2905
    %v4313 = vunpack.c.h.b16 %v2905
    %v4314 = vunpack.c.l.b16 %v2906
    %v4315 = vunpack.c.h.b16 %v2906
    %v4316 = vunpack.c.l.b16 %v2907
    %v4317 = vunpack.c.h.b16 %v2907
    %v4318 = vunpack.c.l.b16 %v2908
    %v4319 = vunpack.c.h.b16 %v2908
    %v4320 = vunpack.c.l.b16 %v2909
    %v4321 = vunpack.c.h.b16 %v2909
    %v4322 = vunpack.c.l.b16 %v2910
    %v4323 = vunpack.c.h.b16 %v2910
    %v4324 = vunpack.c.l.b16 %v2911
    %v4325 = vunpack.c.h.b16 %v2911
    %v4326 = vunpack.c.l.b16 %v2912
    %v4327 = vunpack.c.h.b16 %v2912
    %v4328 = vunpack.c.l.b16 %v2913
    %v4329 = vunpack.c.h.b16 %v2913
    %v4330 = vunpack.c.l.b16 %v2914
    %v4331 = vunpack.c.h.b16 %v2914
    %v4332 = vunpack.c.l.b16 %v2915
    %v4333 = vunpack.c.h.b16 %v2915
    %v4334 = vunpack.c.l.b16 %v2916
    %v4335 = vunpack.c.h.b16 %v2916
    %v4336 = vunpack.c.l.b16 %v2917
    %v4337 = vunpack.c.h.b16 %v2917
    %v4338 = vunpack.c.l.b16 %v2918
    %v4339 = vunpack.c.h.b16 %v2918
    %v4340 = vunpack.c.l.b16 %v2919
    %v4341 = vunpack.c.h.b16 %v2919
    %v4342 = vunpack.c.l.b16 %v2920
    %v4343 = vunpack.c.h.b16 %v2920
    %v4344 = vunpack.c.l.b16 %v2921
    %v4345 = vunpack.c.h.b16 %v2921
    %v4346 = vunpack.c.l.b16 %v2922
    %v4347 = vunpack.c.h.b16 %v2922
    %v4348 = vunpack.c.l.b16 %v2923
    %v4349 = vunpack.c.h.b16 %v2923
    %v4350 = vunpack.c.l.b16 %v2924
    %v4351 = vunpack.c.h.b16 %v2924
    %v4352 = vunpack.c.l.b16 %v2925
    %v4353 = vunpack.c.h.b16 %v2925
    %v4354 = vunpack.c.l.b16 %v2926
    %v4355 = vunpack.c.h.b16 %v2926
    %v4356 = vunpack.c.l.b16 %v2927
    %v4357 = vunpack.c.h.b16 %v2927
    %v4358 = vunpack.c.l.b16 %v2928
    %v4359 = vunpack.c.h.b16 %v2928
    %v4360 = vunpack.c.l.b16 %v2929
    %v4361 = vunpack.c.h.b16 %v2929
    %v4362 = vunpack.c.l.b16 %v2930
    %v4363 = vunpack.c.h.b16 %v2930
    %v4364 = vunpack.c.l.b16 %v2931
    %v4365 = vunpack.c.h.b16 %v2931
    %v4366 = vunpack.c.l.b16 %v2932
    %v4367 = vunpack.c.h.b16 %v2932
    %v4368 = vunpack.c.l.b16 %v2933
    %v4369 = vunpack.c.h.b16 %v2933
    %v4370 = vunpack.c.l.b16 %v2934
    %v4371 = vunpack.c.h.b16 %v2934
    %v4372 = vunpack.c.l.b16 %v2935
    %v4373 = vunpack.c.h.b16 %v2935
    %v4374 = vunpack.c.l.b16 %v2936
    %v4375 = vunpack.c.h.b16 %v2936
    %v4376 = vunpack.c.l.b16 %v2937
    %v4377 = vunpack.c.h.b16 %v2937
    %v4378 = vunpack.c.l.b16 %v2938
    %v4379 = vunpack.c.h.b16 %v2938
    %v4380 = vunpack.c.l.b16 %v2939
    %v4381 = vunpack.c.h.b16 %v2939
    %v4382 = vunpack.c.l.b16 %v2940
    %v4383 = vunpack.c.h.b16 %v2940
    %v4384 = vunpack.c.l.b16 %v2941
    %v4385 = vunpack.c.h.b16 %v2941
    %v4386 = vunpack.c.l.b16 %v2942
    %v4387 = vunpack.c.h.b16 %v2942
    %v4388 = vunpack.c.l.b16 %v2943
    %v4389 = vunpack.c.h.b16 %v2943
    %v4390 = vunpack.c.l.b16 %v2944
    %v4391 = vunpack.c.h.b16 %v2944
    %v4392 = vunpack.c.l.b16 %v2945
    %v4393 = vunpack.c.h.b16 %v2945
    %v4394 = vunpack.c.l.b16 %v2946
    %v4395 = vunpack.c.h.b16 %v2946
    %v4396 = vunpack.c.l.b16 %v2947
    %v4397 = vunpack.c.h.b16 %v2947
    %v4398 = vunpack.c.l.b16 %v2948
    %v4399 = vunpack.c.h.b16 %v2948
    %v4400 = vunpack.c.l.b16 %v2949
    %v4401 = vunpack.c.h.b16 %v2949
    %v4402 = vunpack.c.l.b16 %v2950
    %v4403 = vunpack.c.h.b16 %v2950
    %v4404 = vunpack.c.l.b16 %v2951
    %v4405 = vunpack.c.h.b16 %v2951
    %v4406 = vunpack.c.l.b16 %v2952
    %v4407 = vunpack.c.h.b16 %v2952
    %v4408 = vunpack.c.l.b16 %v2953
    %v4409 = vunpack.c.h.b16 %v2953
    %v4410 = vunpack.c.l.b16 %v2954
    %v4411 = vunpack.c.h.b16 %v2954
    %v4412 = vunpack.c.l.b16 %v2955
    %v4413 = vunpack.c.h.b16 %v2955
    %v4414 = vunpack.c.l.b16 %v2956
    %v4415 = vunpack.c.h.b16 %v2956
    %v4416 = vunpack.c.l.b16 %v2957
    %v4417 = vunpack.c.h.b16 %v2957
    %v4418 = vunpack.c.l.b16 %v2958
    %v4419 = vunpack.c.h.b16 %v2958
    %v4420 = vunpack.c.l.b16 %v2959
    %v4421 = vunpack.c.h.b16 %v2959
    %v4422 = vunpack.c.l.b16 %v2960
    %v4423 = vunpack.c.h.b16 %v2960
    %v4424 = vunpack.c.l.b16 %v2961
    %v4425 = vunpack.c.h.b16 %v2961
    %v4426 = vunpack.c.l.b16 %v2962
    %v4427 = vunpack.c.h.b16 %v2962
    %v4428 = vunpack.c.l.b16 %v2963
    %v4429 = vunpack.c.h.b16 %v2963
    %v4430 = vunpack.c.l.b16 %v2964
    %v4431 = vunpack.c.h.b16 %v2964
    %v4432 = vunpack.c.l.b16 %v2965
    %v4433 = vunpack.c.h.b16 %v2965
    %v4434 = vunpack.c.l.b16 %v2966
    %v4435 = vunpack.c.h.b16 %v2966
    %v4436 = vunpack.c.l.b16 %v2967
    %v4437 = vunpack.c.h.b16 %v2967
    %v4438 = vunpack.c.l.b16 %v2968
    %v4439 = vunpack.c.h.b16 %v2968
    %v4440 = vunpack.c.l.b16 %v2969
    %v4441 = vunpack.c.h.b16 %v2969
    %v4442 = vunpack.c.l.b16 %v2970
    %v4443 = vunpack.c.h.b16 %v2970
    %v4444 = vunpack.c.l.b16 %v2971
    %v4445 = vunpack.c.h.b16 %v2971
    %v4446 = vunpack.c.l.b16 %v2972
    %v4447 = vunpack.c.h.b16 %v2972
    %v4448 = vunpack.c.l.b16 %v2973
    %v4449 = vunpack.c.h.b16 %v2973
    %v4450 = vunpack.c.l.b16 %v2974
    %v4451 = vunpack.c.h.b16 %v2974
    %v4452 = vunpack.c.l.b16 %v2975
    %v4453 = vunpack.c.h.b16 %v2975
    %v4454 = vunpack.c.l.b16 %v2976
    %v4455 = vunpack.c.h.b16 %v2976
    %v4456 = vunpack.c.l.b16 %v2977
    %v4457 = vunpack.c.h.b16 %v2977
    %v4458 = vunpack.c.l.b16 %v2978
    %v4459 = vunpack.c.h.b16 %v2978
    %v4460 = vunpack.c.l.b16 %v2979
    %v4461 = vunpack.c.h.b16 %v2979
    %v4462 = vunpack.c.l.b16 %v2980
    %v4463 = vunpack.c.h.b16 %v2980
    %v4464 = vunpack.c.l.b16 %v2981
    %v4465 = vunpack.c.h.b16 %v2981
    %v4466 = vunpack.c.l.b16 %v2982
    %v4467 = vunpack.c.h.b16 %v2982
    %v4468 = vunpack.c.l.b16 %v2983
    %v4469 = vunpack.c.h.b16 %v2983
    %v4470 = vunpack.c.l.b16 %v2984
    %v4471 = vunpack.c.h.b16 %v2984
    %v4472 = vunpack.c.l.b16 %v2985
    %v4473 = vunpack.c.h.b16 %v2985
    %v4474 = vunpack.c.l.b16 %v2986
    %v4475 = vunpack.c.h.b16 %v2986
    %v4476 = vunpack.c.l.b16 %v2987
    %v4477 = vunpack.c.h.b16 %v2987
    %v4478 = vunpack.c.l.b16 %v2988
    %v4479 = vunpack.c.h.b16 %v2988
    %v4480 = vunpack.c.l.b16 %v2989
    %v4481 = vunpack.c.h.b16 %v2989
    %v4482 = vunpack.c.l.b16 %v2990
    %v4483 = vunpack.c.h.b16 %v2990
    %v4484 = vunpack.c.l.b16 %v2991
    %v4485 = vunpack.c.h.b16 %v2991
    %v4486 = vunpack.c.l.b16 %v2992
    %v4487 = vunpack.c.h.b16 %v2992
    %v4488 = vunpack.c.l.b16 %v2993
    %v4489 = vunpack.c.h.b16 %v2993
    %v4490 = vunpack.c.l.b16 %v2994
    %v4491 = vunpack.c.h.b16 %v2994
    %v4492 = vunpack.c.l.b16 %v2995
    %v4493 = vunpack.c.h.b16 %v2995
    %v4494 = vunpack.c.l.b16 %v2996
    %v4495 = vunpack.c.h.b16 %v2996
    %v4496 = vunpack.c.l.b16 %v2997
    %v4497 = vunpack.c.h.b16 %v2997
    %v4498 = vunpack.c.l.b16 %v2998
    %v4499 = vunpack.c.h.b16 %v2998
    %v4500 = vunpack.c.l.b16 %v2999
    %v4501 = vunpack.c.h.b16 %v2999
    %v4502 = vunpack.c.l.b16 %v3000
    %v4503 = vunpack.c.h.b16 %v3000
    %v4504 = vunpack.c.l.b16 %v3001
    %v4505 = vunpack.c.h.b16 %v3001
    %v4506 = vunpack.c.l.b16 %v3002
    %v4507 = vunpack.c.h.b16 %v3002
    %v4508 = vunpack.c.l.b16 %v3003
    %v4509 = vunpack.c.h.b16 %v3003
    %v4510 = vunpack.c.l.b16 %v3004
    %v4511 = vunpack.c.h.b16 %v3004
    %v4512 = vunpack.c.l.b16 %v3005
    %v4513 = vunpack.c.h.b16 %v3005
    %v4514 = vunpack.c.l.b16 %v3006
    %v4515 = vunpack.c.h.b16 %v3006
    %v4516 = vunpack.c.l.b16 %v3007
    %v4517 = vunpack.c.h.b16 %v3007
    %v4518 = vunpack.c.l.b16 %v3008
    %v4519 = vunpack.c.h.b16 %v3008
    %v4520 = vunpack.c.l.b16 %v3009
    %v4521 = vunpack.c.h.b16 %v3009
    %v4522 = vunpack.c.l.b16 %v3010
    %v4523 = vunpack.c.h.b16 %v3010
    %v4524 = vunpack.c.l.b16 %v3011
    %v4525 = vunpack.c.h.b16 %v3011
    %v4526 = vunpack.c.l.b16 %v3012
    %v4527 = vunpack.c.h.b16 %v3012
    %v4528 = vunpack.c.l.b16 %v3013
    %v4529 = vunpack.c.h.b16 %v3013
    %v4530 = vunpack.c.l.b16 %v3014
    %v4531 = vunpack.c.h.b16 %v3014
    %v4532 = vunpack.c.l.b16 %v3015
    %v4533 = vunpack.c.h.b16 %v3015
    %v4534 = vunpack.c.l.b16 %v3016
    %v4535 = vunpack.c.h.b16 %v3016
    %v4536 = vunpack.c.l.b16 %v3017
    %v4537 = vunpack.c.h.b16 %v3017
    %v4538 = vunpack.c.l.b16 %v3018
    %v4539 = vunpack.c.h.b16 %v3018
    %v4540 = vunpack.c.l.b16 %v3019
    %v4541 = vunpack.c.h.b16 %v3019
    %v4542 = vunpack.c.l.b16 %v3020
    %v4543 = vunpack.c.h.b16 %v3020
    %v4544 = vunpack.c.l.b16 %v3021
    %v4545 = vunpack.c.h.b16 %v3021
    %v4546 = vunpack.c.l.b16 %v3022
    %v4547 = vunpack.c.h.b16 %v3022
    %v4548 = vunpack.c.l.b16 %v3023
    %v4549 = vunpack.c.h.b16 %v3023
    %v4550 = vunpack.c.l.b16 %v3024
    %v4551 = vunpack.c.h.b16 %v3024
    %v4552 = vunpack.c.l.b16 %v3025
    %v4553 = vunpack.c.h.b16 %v3025
    %v4554 = vunpack.c.l.b16 %v3026
    %v4555 = vunpack.c.h.b16 %v3026
    %v4556 = vunpack.c.l.b16 %v3027
    %v4557 = vunpack.c.h.b16 %v3027
    %v4558 = vunpack.c.l.b16 %v3028
    %v4559 = vunpack.c.h.b16 %v3028
    %v4560 = vunpack.c.l.b16 %v3029
    %v4561 = vunpack.c.h.b16 %v3029
    %v4562 = vunpack.c.l.b16 %v3030
    %v4563 = vunpack.c.h.b16 %v3030
    %v4564 = vunpack.c.l.b16 %v3031
    %v4565 = vunpack.c.h.b16 %v3031
    %v4566 = vunpack.c.l.b16 %v3032
    %v4567 = vunpack.c.h.b16 %v3032
    %v4568 = vunpack.c.l.b16 %v3033
    %v4569 = vunpack.c.h.b16 %v3033
    %v4570 = vunpack.c.l.b16 %v3034
    %v4571 = vunpack.c.h.b16 %v3034
    %v4572 = vunpack.c.l.b16 %v3035
    %v4573 = vunpack.c.h.b16 %v3035
    %v4574 = vunpack.c.l.b16 %v3036
    %v4575 = vunpack.c.h.b16 %v3036
    %v4576 = vunpack.c.l.b16 %v3037
    %v4577 = vunpack.c.h.b16 %v3037
    %v4578 = vunpack.c.l.b16 %v3038
    %v4579 = vunpack.c.h.b16 %v3038
    %v4580 = vunpack.c.l.b16 %v3039
    %v4581 = vunpack.c.h.b16 %v3039
    %v4582 = vunpack.c.l.b16 %v3040
    %v4583 = vunpack.c.h.b16 %v3040
    %v4584 = vunpack.c.l.b16 %v3041
    %v4585 = vunpack.c.h.b16 %v3041
    %v4586 = vunpack.c.l.b16 %v3042
    %v4587 = vunpack.c.h.b16 %v3042
    %v4588 = vunpack.c.l.b16 %v3043
    %v4589 = vunpack.c.h.b16 %v3043
    %v4590 = vunpack.c.l.b16 %v3044
    %v4591 = vunpack.c.h.b16 %v3044
    %v4592 = vunpack.c.l.b16 %v3045
    %v4593 = vunpack.c.h.b16 %v3045
    %v4594 = vunpack.c.l.b16 %v3046
    %v4595 = vunpack.c.h.b16 %v3046
    %v4596 = vunpack.c.l.b16 %v3047
    %v4597 = vunpack.c.h.b16 %v3047
    %v4598 = vunpack.c.l.b16 %v3048
    %v4599 = vunpack.c.h.b16 %v3048
    %v4600 = vunpack.c.l.b16 %v3049
    %v4601 = vunpack.c.h.b16 %v3049
    %v4602 = vunpack.c.l.b16 %v3050
    %v4603 = vunpack.c.h.b16 %v3050
    %v4604 = vunpack.c.l.b16 %v3051
    %v4605 = vunpack.c.h.b16 %v3051
    %v4606 = vunpack.c.l.b16 %v3052
    %v4607 = vunpack.c.h.b16 %v3052
    %v4608 = vunpack.c.l.b16 %v3053
    %v4609 = vunpack.c.h.b16 %v3053
    %v4610 = vunpack.c.l.b16 %v3054
    %v4611 = vunpack.c.h.b16 %v3054
    %v4612 = vunpack.c.l.b16 %v3055
    %v4613 = vunpack.c.h.b16 %v3055
    %v4614 = vunpack.c.l.b16 %v3056
    %v4615 = vunpack.c.h.b16 %v3056
    %v4616 = vunpack.c.l.b16 %v3057
    %v4617 = vunpack.c.h.b16 %v3057
    %v4618 = vunpack.c.l.b16 %v3058
    %v4619 = vunpack.c.h.b16 %v3058
    %v4620 = vunpack.c.l.b16 %v3059
    %v4621 = vunpack.c.h.b16 %v3059
    %v4622 = vunpack.c.l.b16 %v3060
    %v4623 = vunpack.c.h.b16 %v3060
    %v4624 = vunpack.c.l.b16 %v3061
    %v4625 = vunpack.c.h.b16 %v3061
    %v4626 = vunpack.c.l.b16 %v3062
    %v4627 = vunpack.c.h.b16 %v3062
    %v4628 = vunpack.c.l.b16 %v3063
    %v4629 = vunpack.c.h.b16 %v3063
    %v4630 = vunpack.c.l.b16 %v3064
    %v4631 = vunpack.c.h.b16 %v3064
    %v4632 = vunpack.c.l.b16 %v3065
    %v4633 = vunpack.c.h.b16 %v3065
    %v4634 = vunpack.c.l.b16 %v3066
    %v4635 = vunpack.c.h.b16 %v3066
    %v4636 = vunpack.c.l.b16 %v3067
    %v4637 = vunpack.c.h.b16 %v3067
    %v4638 = vunpack.c.l.b16 %v3068
    %v4639 = vunpack.c.h.b16 %v3068
    %v4640 = vunpack.c.l.b16 %v3069
    %v4641 = vunpack.c.h.b16 %v3069
    %v4642 = vunpack.c.l.b16 %v3070
    %v4643 = vunpack.c.h.b16 %v3070
    %v4644 = vunpack.c.l.b16 %v3071
    %v4645 = vunpack.c.h.b16 %v3071
    %v4646 = vunpack.c.l.b16 %v3072
    %v4647 = vunpack.c.h.b16 %v3072
    %v4648 = vunpack.c.l.b16 %v3073
    %v4649 = vunpack.c.h.b16 %v3073
    %v4650 = vunpack.c.l.b16 %v3074
    %v4651 = vunpack.c.h.b16 %v3074
    %v4652 = vunpack.c.l.b16 %v3075
    %v4653 = vunpack.c.h.b16 %v3075
    %v4654 = vunpack.c.l.b16 %v3076
    %v4655 = vunpack.c.h.b16 %v3076
    %v4656 = vunpack.c.l.b16 %v3077
    %v4657 = vunpack.c.h.b16 %v3077
    %v4658 = vunpack.c.l.b16 %v3078
    %v4659 = vunpack.c.h.b16 %v3078
    %v4660 = vunpack.c.l.b16 %v3079
    %v4661 = vunpack.c.h.b16 %v3079
    %v4662 = vunpack.c.l.b16 %v3080
    %v4663 = vunpack.c.h.b16 %v3080
    %v4664 = vunpack.c.l.b16 %v3081
    %v4665 = vunpack.c.h.b16 %v3081
    %v4666 = vunpack.c.l.b16 %v3082
    %v4667 = vunpack.c.h.b16 %v3082
    %v4668 = vunpack.c.l.b16 %v3083
    %v4669 = vunpack.c.h.b16 %v3083
    %v4670 = vunpack.c.l.b16 %v3084
    %v4671 = vunpack.c.h.b16 %v3084
    %v4672 = vunpack.c.l.b16 %v3085
    %v4673 = vunpack.c.h.b16 %v3085
    %v4674 = vunpack.c.l.b16 %v3086
    %v4675 = vunpack.c.h.b16 %v3086
    %v4676 = vunpack.c.l.b16 %v3087
    %v4677 = vunpack.c.h.b16 %v3087
    %v4678 = vunpack.c.l.b16 %v3088
    %v4679 = vunpack.c.h.b16 %v3088
    %v4680 = vunpack.c.l.b16 %v3089
    %v4681 = vunpack.c.h.b16 %v3089
    %v4682 = vunpack.c.l.b16 %v3090
    %v4683 = vunpack.c.h.b16 %v3090
    %v4684 = vunpack.c.l.b16 %v3091
    %v4685 = vunpack.c.h.b16 %v3091
    %v4686 = vunpack.c.l.b16 %v3092
    %v4687 = vunpack.c.h.b16 %v3092
    %v4688 = vunpack.c.l.b16 %v3093
    %v4689 = vunpack.c.h.b16 %v3093
    %v4690 = vunpack.c.l.b16 %v3094
    %v4691 = vunpack.c.h.b16 %v3094
    %v4692 = vunpack.c.l.b16 %v3095
    %v4693 = vunpack.c.h.b16 %v3095
    %v4694 = vunpack.c.l.b16 %v3096
    %v4695 = vunpack.c.h.b16 %v3096
    %v4696 = vunpack.c.l.b16 %v3097
    %v4697 = vunpack.c.h.b16 %v3097
    %v4698 = vunpack.c.l.b16 %v3098
    %v4699 = vunpack.c.h.b16 %v3098
    %v4700 = vunpack.c.l.b16 %v3099
    %v4701 = vunpack.c.h.b16 %v3099
    %v4702 = vunpack.c.l.b16 %v3100
    %v4703 = vunpack.c.h.b16 %v3100
    %v4704 = vunpack.c.l.b16 %v3101
    %v4705 = vunpack.c.h.b16 %v3101
    %v4706 = vunpack.c.l.b16 %v3102
    %v4707 = vunpack.c.h.b16 %v3102
    %v4708 = vunpack.c.l.b16 %v3103
    %v4709 = vunpack.c.h.b16 %v3103
    %v4710 = vunpack.c.l.b16 %v3104
    %v4711 = vunpack.c.h.b16 %v3104
    %v4712 = vunpack.c.l.b16 %v3105
    %v4713 = vunpack.c.h.b16 %v3105
    %v4714 = vunpack.c.l.b16 %v3106
    %v4715 = vunpack.c.h.b16 %v3106
    %v4716 = vunpack.c.l.b16 %v3107
    %v4717 = vunpack.c.h.b16 %v3107
    %v4718 = vunpack.c.l.b16 %v3108
    %v4719 = vunpack.c.h.b16 %v3108
    %v4720 = vunpack.c.l.b16 %v3109
    %v4721 = vunpack.c.h.b16 %v3109
    %v4722 = vunpack.c.l.b16 %v3110
    %v4723 = vunpack.c.h.b16 %v3110
    %v4724 = vunpack.c.l.b16 %v3111
    %v4725 = vunpack.c.h.b16 %v3111
    %v4726 = vunpack.c.l.b16 %v3112
    %v4727 = vunpack.c.h.b16 %v3112
    %v4728 = vunpack.c.l.b16 %v3113
    %v4729 = vunpack.c.h.b16 %v3113
    %v4730 = vunpack.c.l.b16 %v3114
    %v4731 = vunpack.c.h.b16 %v3114
    %v4732 = vunpack.c.l.b16 %v3115
    %v4733 = vunpack.c.h.b16 %v3115
    %v4734 = vunpack.c.l.b16 %v3116
    %v4735 = vunpack.c.h.b16 %v3116
    %v4736 = vunpack.c.l.b16 %v3117
    %v4737 = vunpack.c.h.b16 %v3117
    %v4738 = vunpack.c.l.b16 %v3118
    %v4739 = vunpack.c.h.b16 %v3118
    %v4740 = vunpack.c.l.b16 %v3119
    %v4741 = vunpack.c.h.b16 %v3119
    %v4742 = vunpack.c.l.b16 %v3120
    %v4743 = vunpack.c.h.b16 %v3120
    %v4744 = vunpack.c.l.b16 %v3121
    %v4745 = vunpack.c.h.b16 %v3121
    %v4746 = vunpack.c.l.b16 %v3122
    %v4747 = vunpack.c.h.b16 %v3122
    %v4748 = vunpack.c.l.b16 %v3123
    %v4749 = vunpack.c.h.b16 %v3123
    %v4750 = vunpack.c.l.b16 %v3124
    %v4751 = vunpack.c.h.b16 %v3124
    %v4752 = vunpack.c.l.b16 %v3125
    %v4753 = vunpack.c.h.b16 %v3125
    %v4754 = vunpack.c.l.b16 %v3126
    %v4755 = vunpack.c.h.b16 %v3126
    %v4756 = vunpack.c.l.b16 %v3127
    %v4757 = vunpack.c.h.b16 %v3127
    %v4758 = vunpack.c.l.b16 %v3128
    %v4759 = vunpack.c.h.b16 %v3128
    %v4760 = vunpack.c.l.b16 %v3129
    %v4761 = vunpack.c.h.b16 %v3129
    %v4762 = vunpack.c.l.b16 %v3130
    %v4763 = vunpack.c.h.b16 %v3130
    %v4764 = vunpack.c.l.b16 %v3131
    %v4765 = vunpack.c.h.b16 %v3131
    %v4766 = vunpack.c.l.b16 %v3132
    %v4767 = vunpack.c.h.b16 %v3132
    %v4768 = vunpack.c.l.b16 %v3133
    %v4769 = vunpack.c.h.b16 %v3133
    %v4770 = vunpack.c.l.b16 %v3134
    %v4771 = vunpack.c.h.b16 %v3134
    %v4772 = vunpack.c.l.b16 %v3135
    %v4773 = vunpack.c.h.b16 %v3135
    %v4774 = vunpack.c.l.b16 %v3136
    %v4775 = vunpack.c.h.b16 %v3136
    %v4776 = vunpack.c.l.b16 %v3137
    %v4777 = vunpack.c.h.b16 %v3137
    %v4778 = vunpack.c.l.b16 %v3138
    %v4779 = vunpack.c.h.b16 %v3138
    %v4780 = vunpack.c.l.b16 %v3139
    %v4781 = vunpack.c.h.b16 %v3139
    %v4782 = vunpack.c.l.b16 %v3140
    %v4783 = vunpack.c.h.b16 %v3140
    %v4784 = vunpack.c.l.b16 %v3141
    %v4785 = vunpack.c.h.b16 %v3141
    %v4786 = vunpack.c.l.b16 %v3142
    %v4787 = vunpack.c.h.b16 %v3142
    %v4788 = vunpack.c.l.b16 %v3143
    %v4789 = vunpack.c.h.b16 %v3143
    %v4790 = vunpack.c.l.b16 %v3144
    %v4791 = vunpack.c.h.b16 %v3144
    %v4792 = vunpack.c.l.b16 %v3145
    %v4793 = vunpack.c.h.b16 %v3145
    %v4794 = vunpack.c.l.b16 %v3146
    %v4795 = vunpack.c.h.b16 %v3146
    %v4796 = vunpack.c.l.b16 %v3147
    %v4797 = vunpack.c.h.b16 %v3147
    %v4798 = vunpack.c.l.b16 %v3148
    %v4799 = vunpack.c.h.b16 %v3148
    %v4800 = vunpack.c.l.b16 %v3149
    %v4801 = vunpack.c.h.b16 %v3149
    %v4802 = vunpack.c.l.b16 %v3150
    %v4803 = vunpack.c.h.b16 %v3150
    %v4804 = vunpack.c.l.b16 %v3151
    %v4805 = vunpack.c.h.b16 %v3151
    %v4806 = vunpack.c.l.b16 %v3152
    %v4807 = vunpack.c.h.b16 %v3152
    %v4808 = vunpack.c.l.b16 %v3153
    %v4809 = vunpack.c.h.b16 %v3153
    %v4810 = vunpack.c.l.b16 %v3154
    %v4811 = vunpack.c.h.b16 %v3154
    %v4812 = vunpack.c.l.b16 %v3155
    %v4813 = vunpack.c.h.b16 %v3155
    %v4814 = vunpack.c.l.b16 %v3156
    %v4815 = vunpack.c.h.b16 %v3156
    %v4816 = vunpack.c.l.b16 %v3157
    %v4817 = vunpack.c.h.b16 %v3157
    %v4818 = vunpack.c.l.b16 %v3158
    %v4819 = vunpack.c.h.b16 %v3158
    %v4820 = vunpack.c.l.b16 %v3159
    %v4821 = vunpack.c.h.b16 %v3159
    %v4822 = vunpack.c.l.b16 %v3160
    %v4823 = vunpack.c.h.b16 %v3160
    %v4824 = vunpack.c.l.b16 %v3161
    %v4825 = vunpack.c.h.b16 %v3161
    %v4826 = vunpack.c.l.b16 %v3162
    %v4827 = vunpack.c.h.b16 %v3162
    %v4828 = vunpack.c.l.b16 %v3163
    %v4829 = vunpack.c.h.b16 %v3163
    %v4830 = vunpack.c.l.b16 %v3164
    %v4831 = vunpack.c.h.b16 %v3164
    %v4832 = vunpack.c.l.b16 %v3165
    %v4833 = vunpack.c.h.b16 %v3165
    %v4834 = vunpack.c.l.b16 %v3166
    %v4835 = vunpack.c.h.b16 %v3166
    %v4836 = vunpack.c.l.b16 %v3167
    %v4837 = vunpack.c.h.b16 %v3167
    %v4838 = vunpack.c.l.b16 %v3168
    %v4839 = vunpack.c.h.b16 %v3168
    %v4840 = vunpack.c.l.b16 %v3169
    %v4841 = vunpack.c.h.b16 %v3169
    %v4842 = vunpack.c.l.b16 %v3170
    %v4843 = vunpack.c.h.b16 %v3170
    %v4844 = vunpack.c.l.b16 %v3171
    %v4845 = vunpack.c.h.b16 %v3171
    %v4846 = vunpack.c.l.b16 %v3172
    %v4847 = vunpack.c.h.b16 %v3172
    %v4848 = vunpack.c.l.b16 %v3173
    %v4849 = vunpack.c.h.b16 %v3173
    %v4850 = vunpack.c.l.b16 %v3174
    %v4851 = vunpack.c.h.b16 %v3174
    %v4852 = vunpack.c.l.b16 %v3175
    %v4853 = vunpack.c.h.b16 %v3175
    %v4854 = vunpack.c.l.b16 %v3176
    %v4855 = vunpack.c.h.b16 %v3176
    %v4856 = vunpack.c.l.b16 %v3177
    %v4857 = vunpack.c.h.b16 %v3177
    %v4858 = vunpack.c.l.b16 %v3178
    %v4859 = vunpack.c.h.b16 %v3178
    %v4860 = vunpack.c.l.b16 %v3179
    %v4861 = vunpack.c.h.b16 %v3179
    %v4862 = vunpack.c.l.b16 %v3180
    %v4863 = vunpack.c.h.b16 %v3180
    %v4864 = vunpack.c.l.b16 %v3181
    %v4865 = vunpack.c.h.b16 %v3181
    %v4866 = vunpack.c.l.b16 %v3182
    %v4867 = vunpack.c.h.b16 %v3182
    %v4868 = vunpack.c.l.b16 %v3183
    %v4869 = vunpack.c.h.b16 %v3183
    %v4870 = vunpack.c.l.b16 %v3184
    %v4871 = vunpack.c.h.b16 %v3184
    %v4872 = vunpack.c.l.b16 %v3185
    %v4873 = vunpack.c.h.b16 %v3185
    %v4874 = vunpack.c.l.b16 %v3186
    %v4875 = vunpack.c.h.b16 %v3186
    %v4876 = vunpack.c.l.b16 %v3187
    %v4877 = vunpack.c.h.b16 %v3187
    %v4878 = vunpack.c.l.b16 %v3188
    %v4879 = vunpack.c.h.b16 %v3188
    %v4880 = vunpack.c.l.b16 %v3189
    %v4881 = vunpack.c.h.b16 %v3189
    %v4882 = vunpack.c.l.b16 %v3190
    %v4883 = vunpack.c.h.b16 %v3190
    %v4884 = vunpack.c.l.b16 %v3191
    %v4885 = vunpack.c.h.b16 %v3191
    %v4886 = vunpack.c.l.b16 %v3192
    %v4887 = vunpack.c.h.b16 %v3192
    %v4888 = vunpack.c.l.b16 %v3193
    %v4889 = vunpack.c.h.b16 %v3193
    %v4890 = vunpack.c.l.b16 %v3194
    %v4891 = vunpack.c.h.b16 %v3194
    %v4892 = vunpack.c.l.b16 %v3195
    %v4893 = vunpack.c.h.b16 %v3195
    %v4894 = vunpack.c.l.b16 %v3196
    %v4895 = vunpack.c.h.b16 %v3196
    %v4896 = vunpack.c.l.b16 %v3197
    %v4897 = vunpack.c.h.b16 %v3197
    %v4898 = vunpack.c.l.b16 %v3198
    %v4899 = vunpack.c.h.b16 %v3198
    %v4900 = vunpack.c.l.b16 %v3199
    %v4901 = vunpack.c.h.b16 %v3199
    %v4902 = vunpack.c.l.b16 %v3200
    %v4903 = vunpack.c.h.b16 %v3200
    %v4904 = vunpack.c.l.b16 %v3201
    %v4905 = vunpack.c.h.b16 %v3201
    %v4906 = vpack.c.b16 %v3796, %v3786
    %v4907 = vpack.c.b16 %v3797, %v3787
    %v4908 = vpack.c.b16 %v3798, %v3788
    %v4909 = vpack.c.b16 %v3799, %v3789
    %v4910 = vpack.c.b16 %v3800, %v3790
    %v4911 = vpack.c.b16 %v3801, %v3791
    %v4912 = vpack.c.b16 %v3802, %v3792
    %v4913 = vpack.c.b16 %v3803, %v3793
    %v4914 = vpack.c.b16 %v3804, %v3794
    %v4915 = vpack.c.b16 %v3805, %v3795
    %v4916 = vpack.c.b16 %v3816, %v3806
    %v4917 = vpack.c.b16 %v3817, %v3807
    %v4918 = vpack.c.b16 %v3818, %v3808
    %v4919 = vpack.c.b16 %v3819, %v3809
    %v4920 = vpack.c.b16 %v3820, %v3810
    %v4921 = vpack.c.b16 %v3821, %v3811
    %v4922 = vpack.c.b16 %v3822, %v3812
    %v4923 = vpack.c.b16 %v3823, %v3813
    %v4924 = vpack.c.b16 %v3824, %v3814
    %v4925 = vpack.c.b16 %v3825, %v3815
    %v4926 = vpack.c.b16 %v3836, %v3826
    %v4927 = vpack.c.b16 %v3837, %v3827
    %v4928 = vpack.c.b16 %v3838, %v3828
    %v4929 = vpack.c.b16 %v3839, %v3829
    %v4930 = vpack.c.b16 %v3840, %v3830
    %v4931 = vpack.c.b16 %v3841, %v3831
    %v4932 = vpack.c.b16 %v3842, %v3832
    %v4933 = vpack.c.b16 %v3843, %v3833
    %v4934 = vpack.c.b16 %v3844, %v3834
    %v4935 = vpack.c.b16 %v3845, %v3835
    %v4936 = vpack.c.b16 %v3856, %v3846
    %v4937 = vpack.c.b16 %v3857, %v3847
    %v4938 = vpack.c.b16 %v3858, %v3848
    %v4939 = vpack.c.b16 %v3859, %v3849
    %v4940 = vpack.c.b16 %v3860, %v3850
    %v4941 = vpack.c.b16 %v3861, %v3851
    %v4942 = vpack.c.b16 %v3862, %v3852
    %v4943 = vpack.c.b16 %v3863, %v3853
    %v4944 = vpack.c.b16 %v3864, %v3854
    %v4945 = vpack.c.b16 %v3865, %v3855
    %v4946 = vpack.c.b16 %v3876, %v3866
    %v4947 = vpack.c.b16 %v3877, %v3867
    %v4948 = vpack.c.b16 %v3878, %v3868
    %v4949 = vpack.c.b16 %v3879, %v3869
    %v4950 = vpack.c.b16 %v3880, %v3870
    %v4951 = vpack.c.b16 %v3881, %v3871
    %v4952 = vpack.c.b16 %v3882, %v3872
    %v4953 = vpack.c.b16 %v3883, %v3873
    %v4954 = vpack.c.b16 %v3884, %v3874
    %v4955 = vpack.c.b16 %v3885, %v3875
    %v4956 = vpack.c.b16 %v3896, %v3886
    %v4957 = vpack.c.b16 %v3897, %v3887
    %v4958 = vpack.c.b16 %v3898, %v3888
    %v4959 = vpack.c.b16 %v3899, %v3889
    %v4960 = vpack.c.b16 %v3900, %v3890
    %v4961 = vpack.c.b16 %v3901, %v3891
    %v4962 = vpack.c.b16 %v3902, %v3892
    %v4963 = vpack.c.b16 %v3903, %v3893
    %v4964 = vpack.c.b16 %v3904, %v3894
    %v4965 = vpack.c.b16 %v3905, %v3895
    %v4966 = vpack.c.b16 %v3916, %v3906
    %v4967 = vpack.c.b16 %v3917, %v3907
    %v4968 = vpack.c.b16 %v3918, %v3908
    %v4969 = vpack.c.b16 %v3919, %v3909
    %v4970 = vpack.c.b16 %v3920, %v3910
    %v4971 = vpack.c.b16 %v3921, %v3911
    %v4972 = vpack.c.b16 %v3922, %v3912
    %v4973 = vpack.c.b16 %v3923, %v3913
    %v4974 = vpack.c.b16 %v3924, %v3914
    %v4975 = vpack.c.b16 %v3925, %v3915
    %v4976 = vpack.c.b16 %v3936, %v3926
    %v4977 = vpack.c.b16 %v3937, %v3927
    %v4978 = vpack.c.b16 %v3938, %v3928
    %v4979 = vpack.c.b16 %v3939, %v3929
    %v4980 = vpack.c.b16 %v3940, %v3930
    %v4981 = vpack.c.b16 %v3941, %v3931
    %v4982 = vpack.c.b16 %v3942, %v3932
    %v4983 = vpack.c.b16 %v3943, %v3933
    %v4984 = vpack.c.b16 %v3944, %v3934
    %v4985 = vpack.c.b16 %v3945, %v3935
    %v4986 = vpack.c.b16 %v3956, %v3946
    %v4987 = vpack.c.b16 %v3957, %v3947
    %v4988 = vpack.c.b16 %v3958, %v3948
    %v4989 = vpack.c.b16 %v3959, %v3949
    %v4990 = vpack.c.b16 %v3960, %v3950
    %v4991 = vpack.c.b16 %v3961, %v3951
    %v4992 = vpack.c.b16 %v3962, %v3952
    %v4993 = vpack.c.b16 %v3963, %v3953
    %v4994 = vpack.c.b16 %v3964, %v3954
    %v4995 = vpack.c.b16 %v3965, %v3955
    %v4996 = vpack.c.b16 %v3976, %v3966
    %v4997 = vpack.c.b16 %v3977, %v3967
    %v4998 = vpack.c.b16 %v3978, %v3968
    %v4999 = vpack.c.b16 %v3979, %v3969
    %v5000 = vpack.c.b16 %v3980, %v3970
    %v5001 = vpack.c.b16 %v3981, %v3971
    %v5002 = vpack.c.b16 %v3982, %v3972
    %v5003 = vpack.c.b16 %v3983, %v3973
    %v5004 = vpack.c.b16 %v3984, %v3974
    %v5005 = vpack.c.b16 %v3985, %v3975
    %v5006 = vpack.c.b16 %v3996, %v3986
    %v5007 = vpack.c.b16 %v3997, %v3987
    %v5008 = vpack.c.b16 %v3998, %v3988
    %v5009 = vpack.c.b16 %v3999, %v3989
    %v5010 = vpack.c.b16 %v4000, %v3990
    %v5011 = vpack.c.b16 %v4001, %v3991
    %v5012 = vpack.c.b16 %v4002, %v3992
    %v5013 = vpack.c.b16 %v4003, %v3993
    %v5014 = vpack.c.b16 %v4004, %v3994
    %v5015 = vpack.c.b16 %v4005, %v3995
    %v5016 = vpack.c.b16 %v4016, %v4006
    %v5017 = vpack.c.b16 %v4017, %v4007
    %v5018 = vpack.c.b16 %v4018, %v4008
    %v5019 = vpack.c.b16 %v4019, %v4009
    %v5020 = vpack.c.b16 %v4020, %v4010
    %v5021 = vpack.c.b16 %v4021, %v4011
    %v5022 = vpack.c.b16 %v4022, %v4012
    %v5023 = vpack.c.b16 %v4023, %v4013
    %v5024 = vpack.c.b16 %v4024, %v4014
    %v5025 = vpack.c.b16 %v4025, %v4015
    %v5026 = vpack.c.b16 %v4036, %v4026
    %v5027 = vpack.c.b16 %v4037, %v4027
    %v5028 = vpack.c.b16 %v4038, %v4028
    %v5029 = vpack.c.b16 %v4039, %v4029
    %v5030 = vpack.c.b16 %v4040, %v4030
    %v5031 = vpack.c.b16 %v4041, %v4031
    %v5032 = vpack.c.b16 %v4042, %v4032
    %v5033 = vpack.c.b16 %v4043, %v4033
    %v5034 = vpack.c.b16 %v4044, %v4034
    %v5035 = vpack.c.b16 %v4045, %v4035
    %v5036 = vpack.c.b16 %v4056, %v4046
    %v5037 = vpack.c.b16 %v4057, %v4047
    %v5038 = vpack.c.b16 %v4058, %v4048
    %v5039 = vpack.c.b16 %v4059, %v4049
    %v5040 = vpack.c.b16 %v4060, %v4050
    %v5041 = vpack.c.b16 %v4061, %v4051
    %v5042 = vpack.c.b16 %v4062, %v4052
    %v5043 = vpack.c.b16 %v4063, %v4053
    %v5044 = vpack.c.b16 %v4064, %v4054
    %v5045 = vpack.c.b16 %v4065, %v4055
    %v5046 = vpack.c.b16 %v4076, %v4066
    %v5047 = vpack.c.b16 %v4077, %v4067
    %v5048 = vpack.c.b16 %v4078, %v4068
    %v5049 = vpack.c.b16 %v4079, %v4069
    %v5050 = vpack.c.b16 %v4080, %v4070
    %v5051 = vpack.c.b16 %v4081, %v4071
    %v5052 = vpack.c.b16 %v4082, %v4072
    %v5053 = vpack.c.b16 %v4083, %v4073
    %v5054 = vpack.c.b16 %v4084, %v4074
    %v5055 = vpack.c.b16 %v4085, %v4075
    %v5056 = vpack.c.b16 %v4096, %v4086
    %v5057 = vpack.c.b16 %v4097, %v4087
    %v5058 = vpack.c.b16 %v4098, %v4088
    %v5059 = vpack.c.b16 %v4099, %v4089
    %v5060 = vpack.c.b16 %v4100, %v4090
    %v5061 = vpack.c.b16 %v4101, %v4091
    %v5062 = vpack.c.b16 %v4102, %v4092
    %v5063 = vpack.c.b16 %v4103, %v4093
    %v5064 = vpack.c.b16 %v4104, %v4094
    %v5065 = vpack.c.b16 %v4105, %v4095
    %v5066 = vpack.c.b16 %v4116, %v4106
    %v5067 = vpack.c.b16 %v4117, %v4107
    %v5068 = vpack.c.b16 %v4118, %v4108
    %v5069 = vpack.c.b16 %v4119, %v4109
    %v5070 = vpack.c.b16 %v4120, %v4110
    %v5071 = vpack.c.b16 %v4121, %v4111
    %v5072 = vpack.c.b16 %v4122, %v4112
    %v5073 = vpack.c.b16 %v4123, %v4113
    %v5074 = vpack.c.b16 %v4124, %v4114
    %v5075 = vpack.c.b16 %v4125, %v4115
    %v5076 = vpack.c.b16 %v4136, %v4126
    %v5077 = vpack.c.b16 %v4137, %v4127
    %v5078 = vpack.c.b16 %v4138, %v4128
    %v5079 = vpack.c.b16 %v4139, %v4129
    %v5080 = vpack.c.b16 %v4140, %v4130
    %v5081 = vpack.c.b16 %v4141, %v4131
    %v5082 = vpack.c.b16 %v4142, %v4132
    %v5083 = vpack.c.b16 %v4143, %v4133
    %v5084 = vpack.c.b16 %v4144, %v4134
    %v5085 = vpack.c.b16 %v4145, %v4135
    %v5086 = vpack.c.b16 %v4156, %v4146
    %v5087 = vpack.c.b16 %v4157, %v4147
    %v5088 = vpack.c.b16 %v4158, %v4148
    %v5089 = vpack.c.b16 %v4159, %v4149
    %v5090 = vpack.c.b16 %v4160, %v4150
    %v5091 = vpack.c.b16 %v4161, %v4151
    %v5092 = vpack.c.b16 %v4162, %v4152
    %v5093 = vpack.c.b16 %v4163, %v4153
    %v5094 = vpack.c.b16 %v4164, %v4154
    %v5095 = vpack.c.b16 %v4165, %v4155
    %v5096 = vpack.c.b16 %v4176, %v4166
    %v5097 = vpack.c.b16 %v4177, %v4167
    %v5098 = vpack.c.b16 %v4178, %v4168
    %v5099 = vpack.c.b16 %v4179, %v4169
    %v5100 = vpack.c.b16 %v4180, %v4170
    %v5101 = vpack.c.b16 %v4181, %v4171
    %v5102 = vpack.c.b16 %v4182, %v4172
    %v5103 = vpack.c.b16 %v4183, %v4173
    %v5104 = vpack.c.b16 %v4184, %v4174
    %v5105 = vpack.c.b16 %v4185, %v4175
    %v5106 = vpack.c.b16 %v4196, %v4186
    %v5107 = vpack.c.b16 %v4197, %v4187
    %v5108 = vpack.c.b16 %v4198, %v4188
    %v5109 = vpack.c.b16 %v4199, %v4189
    %v5110 = vpack.c.b16 %v4200, %v4190
    %v5111 = vpack.c.b16 %v4201, %v4191
    %v5112 = vpack.c.b16 %v4202, %v4192
    %v5113 = vpack.c.b16 %v4203, %v4193
    %v5114 = vpack.c.b16 %v4204, %v4194
    %v5115 = vpack.c.b16 %v4205, %v4195
    %v5116 = vpack.c.b16 %v4216, %v4206
    %v5117 = vpack.c.b16 %v4217, %v4207
    %v5118 = vpack.c.b16 %v4218, %v4208
    %v5119 = vpack.c.b16 %v4219, %v4209
    %v5120 = vpack.c.b16 %v4220, %v4210
    %v5121 = vpack.c.b16 %v4221, %v4211
    %v5122 = vpack.c.b16 %v4222, %v4212
    %v5123 = vpack.c.b16 %v4223, %v4213
    %v5124 = vpack.c.b16 %v4224, %v4214
    %v5125 = vpack.c.b16 %v4225, %v4215
    %v5126 = vpack.c.b16 %v4236, %v4226
    %v5127 = vpack.c.b16 %v4237, %v4227
    %v5128 = vpack.c.b16 %v4238, %v4228
    %v5129 = vpack.c.b16 %v4239, %v4229
    %v5130 = vpack.c.b16 %v4240, %v4230
    %v5131 = vpack.c.b16 %v4241, %v4231
    %v5132 = vpack.c.b16 %v4242, %v4232
    %v5133 = vpack.c.b16 %v4243, %v4233
    %v5134 = vpack.c.b16 %v4244, %v4234
    %v5135 = vpack.c.b16 %v4245, %v4235
    %v5136 = vpack.c.b16 %v4256, %v4246
    %v5137 = vpack.c.b16 %v4257, %v4247
    %v5138 = vpack.c.b16 %v4258, %v4248
    %v5139 = vpack.c.b16 %v4259, %v4249
    %v5140 = vpack.c.b16 %v4260, %v4250
    %v5141 = vpack.c.b16 %v4261, %v4251
    %v5142 = vpack.c.b16 %v4262, %v4252
    %v5143 = vpack.c.b16 %v4263, %v4253
    %v5144 = vpack.c.b16 %v4264, %v4254
    %v5145 = vpack.c.b16 %v4265, %v4255
    %v5146 = vpack.c.b16 %v4276, %v4266
    %v5147 = vpack.c.b16 %v4277, %v4267
    %v5148 = vpack.c.b16 %v4278, %v4268
    %v5149 = vpack.c.b16 %v4279, %v4269
    %v5150 = vpack.c.b16 %v4280, %v4270
    %v5151 = vpack.c.b16 %v4281, %v4271
    %v5152 = vpack.c.b16 %v4282, %v4272
    %v5153 = vpack.c.b16 %v4283, %v4273
    %v5154 = vpack.c.b16 %v4284, %v4274
    %v5155 = vpack.c.b16 %v4285, %v4275
    %v5156 = vpack.c.b16 %v4296, %v4286
    %v5157 = vpack.c.b16 %v4297, %v4287
    %v5158 = vpack.c.b16 %v4298, %v4288
    %v5159 = vpack.c.b16 %v4299, %v4289
    %v5160 = vpack.c.b16 %v4300, %v4290
    %v5161 = vpack.c.b16 %v4301, %v4291
    %v5162 = vpack.c.b16 %v4302, %v4292
    %v5163 = vpack.c.b16 %v4303, %v4293
    %v5164 = vpack.c.b16 %v4304, %v4294
    %v5165 = vpack.c.b16 %v4305, %v4295
    %v5166 = vpack.c.b16 %v4316, %v4306
    %v5167 = vpack.c.b16 %v4317, %v4307
    %v5168 = vpack.c.b16 %v4318, %v4308
    %v5169 = vpack.c.b16 %v4319, %v4309
    %v5170 = vpack.c.b16 %v4320, %v4310
    %v5171 = vpack.c.b16 %v4321, %v4311
    %v5172 = vpack.c.b16 %v4322, %v4312
    %v5173 = vpack.c.b16 %v4323, %v4313
    %v5174 = vpack.c.b16 %v4324, %v4314
    %v5175 = vpack.c.b16 %v4325, %v4315
    %v5176 = vpack.c.b16 %v4336, %v4326
    %v5177 = vpack.c.b16 %v4337, %v4327
    %v5178 = vpack.c.b16 %v4338, %v4328
    %v5179 = vpack.c.b16 %v4339, %v4329
    %v5180 = vpack.c.b16 %v4340, %v4330
    %v5181 = vpack.c.b16 %v4341, %v4331
    %v5182 = vpack.c.b16 %v4342, %v4332
    %v5183 = vpack.c.b16 %v4343, %v4333
    %v5184 = vpack.c.b16 %v4344, %v4334
    %v5185 = vpack.c.b16 %v4345, %v4335
    %v5186 = vpack.c.b16 %v4356, %v4346
    %v5187 = vpack.c.b16 %v4357, %v4347
    %v5188 = vpack.c.b16 %v4358, %v4348
    %v5189 = vpack.c.b16 %v4359, %v4349
    %v5190 = vpack.c.b16 %v4360, %v4350
    %v5191 = vpack.c.b16 %v4361, %v4351
    %v5192 = vpack.c.b16 %v4362, %v4352
    %v5193 = vpack.c.b16 %v4363, %v4353
    %v5194 = vpack.c.b16 %v4364, %v4354
    %v5195 = vpack.c.b16 %v4365, %v4355
    %v5196 = vpack.c.b16 %v4376, %v4366
    %v5197 = vpack.c.b16 %v4377, %v4367
    %v5198 = vpack.c.b16 %v4378, %v4368
    %v5199 = vpack.c.b16 %v4379, %v4369
    %v5200 = vpack.c.b16 %v4380, %v4370
    %v5201 = vpack.c.b16 %v4381, %v4371
    %v5202 = vpack.c.b16 %v4382, %v4372
    %v5203 = vpack.c.b16 %v4383, %v4373
    %v5204 = vpack.c.b16 %v4384, %v4374
    %v5205 = vpack.c.b16 %v4385, %v4375
    %v5206 = vpack.c.b16 %v4396, %v4386
    %v5207 = vpack.c.b16 %v4397, %v4387
    %v5208 = vpack.c.b16 %v4398, %v4388
    %v5209 = vpack.c.b16 %v4399, %v4389
    %v5210 = vpack.c.b16 %v4400, %v4390
    %v5211 = vpack.c.b16 %v4401, %v4391
    %v5212 = vpack.c.b16 %v4402, %v4392
    %v5213 = vpack.c.b16 %v4403, %v4393
    %v5214 = vpack.c.b16 %v4404, %v4394
    %v5215 = vpack.c.b16 %v4405, %v4395
    %v5216 = vpack.c.b16 %v4416, %v4406
    %v5217 = vpack.c.b16 %v4417, %v4407
    %v5218 = vpack.c.b16 %v4418, %v4408
    %v5219 = vpack.c.b16 %v4419, %v4409
    %v5220 = vpack.c.b16 %v4420, %v4410
    %v5221 = vpack.c.b16 %v4421, %v4411
    %v5222 = vpack.c.b16 %v4422, %v4412
    %v5223 = vpack.c.b16 %v4423, %v4413
    %v5224 = vpack.c.b16 %v4424, %v4414
    %v5225 = vpack.c.b16 %v4425, %v4415
    %v5226 = vpack.c.b16 %v4436, %v4426
    %v5227 = vpack.c.b16 %v4437, %v4427
    %v5228 = vpack.c.b16 %v4438, %v4428
    %v5229 = vpack.c.b16 %v4439, %v4429
    %v5230 = vpack.c.b16 %v4440, %v4430
    %v5231 = vpack.c.b16 %v4441, %v4431
    %v5232 = vpack.c.b16 %v4442, %v4432
    %v5233 = vpack.c.b16 %v4443, %v4433
    %v5234 = vpack.c.b16 %v4444, %v4434
    %v5235 = vpack.c.b16 %v4445, %v4435
    %v5236 = vpack.c.b16 %v4456, %v4446
    %v5237 = vpack.c.b16 %v4457, %v4447
    %v5238 = vpack.c.b16 %v4458, %v4448
    %v5239 = vpack.c.b16 %v4459, %v4449
    %v5240 = vpack.c.b16 %v4460, %v4450
    %v5241 = vpack.c.b16 %v4461, %v4451
    %v5242 = vpack.c.b16 %v4462, %v4452
    %v5243 = vpack.c.b16 %v4463, %v4453
    %v5244 = vpack.c.b16 %v4464, %v4454
    %v5245 = vpack.c.b16 %v4465, %v4455
    %v5246 = vpack.c.b16 %v4476, %v4466
    %v5247 = vpack.c.b16 %v4477, %v4467
    %v5248 = vpack.c.b16 %v4478, %v4468
    %v5249 = vpack.c.b16 %v4479, %v4469
    %v5250 = vpack.c.b16 %v4480, %v4470
    %v5251 = vpack.c.b16 %v4481, %v4471
    %v5252 = vpack.c.b16 %v4482, %v4472
    %v5253 = vpack.c.b16 %v4483, %v4473
    %v5254 = vpack.c.b16 %v4484, %v4474
    %v5255 = vpack.c.b16 %v4485, %v4475
    %v5256 = vpack.c.b16 %v4496, %v4486
    %v5257 = vpack.c.b16 %v4497, %v4487
    %v5258 = vpack.c.b16 %v4498, %v4488
    %v5259 = vpack.c.b16 %v4499, %v4489
    %v5260 = vpack.c.b16 %v4500, %v4490
    %v5261 = vpack.c.b16 %v4501, %v4491
    %v5262 = vpack.c.b16 %v4502, %v4492
    %v5263 = vpack.c.b16 %v4503, %v4493
    %v5264 = vpack.c.b16 %v4504, %v4494
    %v5265 = vpack.c.b16 %v4505, %v4495
    %v5266 = vpack.c.b16 %v4516, %v4506
    %v5267 = vpack.c.b16 %v4517, %v4507
    %v5268 = vpack.c.b16 %v4518, %v4508
    %v5269 = vpack.c.b16 %v4519, %v4509
    %v5270 = vpack.c.b16 %v4520, %v4510
    %v5271 = vpack.c.b16 %v4521, %v4511
    %v5272 = vpack.c.b16 %v4522, %v4512
    %v5273 = vpack.c.b16 %v4523, %v4513
    %v5274 = vpack.c.b16 %v4524, %v4514
    %v5275 = vpack.c.b16 %v4525, %v4515
    %v5276 = vpack.c.b16 %v4536, %v4526
    %v5277 = vpack.c.b16 %v4537, %v4527
    %v5278 = vpack.c.b16 %v4538, %v4528
    %v5279 = vpack.c.b16 %v4539, %v4529
    %v5280 = vpack.c.b16 %v4540, %v4530
    %v5281 = vpack.c.b16 %v4541, %v4531
    %v5282 = vpack.c.b16 %v4542, %v4532
    %v5283 = vpack.c.b16 %v4543, %v4533
    %v5284 = vpack.c.b16 %v4544, %v4534
    %v5285 = vpack.c.b16 %v4545, %v4535
    %v5286 = vpack.c.b16 %v4556, %v4546
    %v5287 = vpack.c.b16 %v4557, %v4547
    %v5288 = vpack.c.b16 %v4558, %v4548
    %v5289 = vpack.c.b16 %v4559, %v4549
    %v5290 = vpack.c.b16 %v4560, %v4550
    %v5291 = vpack.c.b16 %v4561, %v4551
    %v5292 = vpack.c.b16 %v4562, %v4552
    %v5293 = vpack.c.b16 %v4563, %v4553
    %v5294 = vpack.c.b16 %v4564, %v4554
    %v5295 = vpack.c.b16 %v4565, %v4555
    %v5296 = vpack.c.b16 %v4576, %v4566
    %v5297 = vpack.c.b16 %v4577, %v4567
    %v5298 = vpack.c.b16 %v4578, %v4568
    %v5299 = vpack.c.b16 %v4579, %v4569
    %v5300 = vpack.c.b16 %v4580, %v4570
    %v5301 = vpack.c.b16 %v4581, %v4571
    %v5302 = vpack.c.b16 %v4582, %v4572
    %v5303 = vpack.c.b16 %v4583, %v4573
    %v5304 = vpack.c.b16 %v4584, %v4574
    %v5305 = vpack.c.b16 %v4585, %v4575
    %v5306 = vpack.c.b16 %v4596, %v4586
    %v5307 = vpack.c.b16 %v4597, %v4587
    %v5308 = vpack.c.b16 %v4598, %v4588
    %v5309 = vpack.c.b16 %v4599, %v4589
    %v5310 = vpack.c.b16 %v4600, %v4590
    %v5311 = vpack.c.b16 %v4601, %v4591
    %v5312 = vpack.c.b16 %v4602, %v4592
    %v5313 = vpack.c.b16 %v4603, %v4593
    %v5314 = vpack.c.b16 %v4604, %v4594
    %v5315 = vpack.c.b16 %v4605, %v4595
    %v5316 = vpack.c.b16 %v4616, %v4606
    %v5317 = vpack.c.b16 %v4617, %v4607
    %v5318 = vpack.c.b16 %v4618, %v4608
    %v5319 = vpack.c.b16 %v4619, %v4609
    %v5320 = vpack.c.b16 %v4620, %v4610
    %v5321 = vpack.c.b16 %v4621, %v4611
    %v5322 = vpack.c.b16 %v4622, %v4612
    %v5323 = vpack.c.b16 %v4623, %v4613
    %v5324 = vpack.c.b16 %v4624, %v4614
    %v5325 = vpack.c.b16 %v4625, %v4615
    %v5326 = vpack.c.b16 %v4636, %v4626
    %v5327 = vpack.c.b16 %v4637, %v4627
    %v5328 = vpack.c.b16 %v4638, %v4628
    %v5329 = vpack.c.b16 %v4639, %v4629
    %v5330 = vpack.c.b16 %v4640, %v4630
    %v5331 = vpack.c.b16 %v4641, %v4631
    %v5332 = vpack.c.b16 %v4642, %v4632
    %v5333 = vpack.c.b16 %v4643, %v4633
    %v5334 = vpack.c.b16 %v4644, %v4634
    %v5335 = vpack.c.b16 %v4645, %v4635
    %v5336 = vpack.c.b16 %v4656, %v4646
    %v5337 = vpack.c.b16 %v4657, %v4647
    %v5338 = vpack.c.b16 %v4658, %v4648
    %v5339 = vpack.c.b16 %v4659, %v4649
    %v5340 = vpack.c.b16 %v4660, %v4650
    %v5341 = vpack.c.b16 %v4661, %v4651
    %v5342 = vpack.c.b16 %v4662, %v4652
    %v5343 = vpack.c.b16 %v4663, %v4653
    %v5344 = vpack.c.b16 %v4664, %v4654
    %v5345 = vpack.c.b16 %v4665, %v4655
    %v5346 = vpack.c.b16 %v4676, %v4666
    %v5347 = vpack.c.b16 %v4677, %v4667
    %v5348 = vpack.c.b16 %v4678, %v4668
    %v5349 = vpack.c.b16 %v4679, %v4669
    %v5350 = vpack.c.b16 %v4680, %v4670
    %v5351 = vpack.c.b16 %v4681, %v4671
    %v5352 = vpack.c.b16 %v4682, %v4672
    %v5353 = vpack.c.b16 %v4683, %v4673
    %v5354 = vpack.c.b16 %v4684, %v4674
    %v5355 = vpack.c.b16 %v4685, %v4675
    %v5356 = vpack.c.b16 %v4696, %v4686
    %v5357 = vpack.c.b16 %v4697, %v4687
    %v5358 = vpack.c.b16 %v4698, %v4688
    %v5359 = vpack.c.b16 %v4699, %v4689
    %v5360 = vpack.c.b16 %v4700, %v4690
    %v5361 = vpack.c.b16 %v4701, %v4691
    %v5362 = vpack.c.b16 %v4702, %v4692
    %v5363 = vpack.c.b16 %v4703, %v4693
    %v5364 = vpack.c.b16 %v4704, %v4694
    %v5365 = vpack.c.b16 %v4705, %v4695
    %v5366 = vpack.c.b16 %v4716, %v4706
    %v5367 = vpack.c.b16 %v4717, %v4707
    %v5368 = vpack.c.b16 %v4718, %v4708
    %v5369 = vpack.c.b16 %v4719, %v4709
    %v5370 = vpack.c.b16 %v4720, %v4710
    %v5371 = vpack.c.b16 %v4721, %v4711
    %v5372 = vpack.c.b16 %v4722, %v4712
    %v5373 = vpack.c.b16 %v4723, %v4713
    %v5374 = vpack.c.b16 %v4724, %v4714
    %v5375 = vpack.c.b16 %v4725, %v4715
    %v5376 = vpack.c.b16 %v4736, %v4726
    %v5377 = vpack.c.b16 %v4737, %v4727
    %v5378 = vpack.c.b16 %v4738, %v4728
    %v5379 = vpack.c.b16 %v4739, %v4729
    %v5380 = vpack.c.b16 %v4740, %v4730
    %v5381 = vpack.c.b16 %v4741, %v4731
    %v5382 = vpack.c.b16 %v4742, %v4732
    %v5383 = vpack.c.b16 %v4743, %v4733
    %v5384 = vpack.c.b16 %v4744, %v4734
    %v5385 = vpack.c.b16 %v4745, %v4735
    %v5386 = vpack.c.b16 %v4756, %v4746
    %v5387 = vpack.c.b16 %v4757, %v4747
    %v5388 = vpack.c.b16 %v4758, %v4748
    %v5389 = vpack.c.b16 %v4759, %v4749
    %v5390 = vpack.c.b16 %v4760, %v4750
    %v5391 = vpack.c.b16 %v4761, %v4751
    %v5392 = vpack.c.b16 %v4762, %v4752
    %v5393 = vpack.c.b16 %v4763, %v4753
    %v5394 = vpack.c.b16 %v4764, %v4754
    %v5395 = vpack.c.b16 %v4765, %v4755
    %v5396 = vpack.c.b16 %v4776, %v4766
    %v5397 = vpack.c.b16 %v4777, %v4767
    %v5398 = vpack.c.b16 %v4778, %v4768
    %v5399 = vpack.c.b16 %v4779, %v4769
    %v5400 = vpack.c.b16 %v4780, %v4770
    %v5401 = vpack.c.b16 %v4781, %v4771
    %v5402 = vpack.c.b16 %v4782, %v4772
    %v5403 = vpack.c.b16 %v4783, %v4773
    %v5404 = vpack.c.b16 %v4784, %v4774
    %v5405 = vpack.c.b16 %v4785, %v4775
    %v5406 = vpack.c.b16 %v4796, %v4786
    %v5407 = vpack.c.b16 %v4797, %v4787
    %v5408 = vpack.c.b16 %v4798, %v4788
    %v5409 = vpack.c.b16 %v4799, %v4789
    %v5410 = vpack.c.b16 %v4800, %v4790
    %v5411 = vpack.c.b16 %v4801, %v4791
    %v5412 = vpack.c.b16 %v4802, %v4792
    %v5413 = vpack.c.b16 %v4803, %v4793
    %v5414 = vpack.c.b16 %v4804, %v4794
    %v5415 = vpack.c.b16 %v4805, %v4795
    %v5416 = vpack.c.b16 %v4816, %v4806
    %v5417 = vpack.c.b16 %v4817, %v4807
    %v5418 = vpack.c.b16 %v4818, %v4808
    %v5419 = vpack.c.b16 %v4819, %v4809
    %v5420 = vpack.c.b16 %v4820, %v4810
    %v5421 = vpack.c.b16 %v4821, %v4811
    %v5422 = vpack.c.b16 %v4822, %v4812
    %v5423 = vpack.c.b16 %v4823, %v4813
    %v5424 = vpack.c.b16 %v4824, %v4814
    %v5425 = vpack.c.b16 %v4825, %v4815
    %v5426 = vpack.c.b16 %v4836, %v4826
    %v5427 = vpack.c.b16 %v4837, %v4827
    %v5428 = vpack.c.b16 %v4838, %v4828
    %v5429 = vpack.c.b16 %v4839, %v4829
    %v5430 = vpack.c.b16 %v4840, %v4830
    %v5431 = vpack.c.b16 %v4841, %v4831
    %v5432 = vpack.c.b16 %v4842, %v4832
    %v5433 = vpack.c.b16 %v4843, %v4833
    %v5434 = vpack.c.b16 %v4844, %v4834
    %v5435 = vpack.c.b16 %v4845, %v4835
    %v5436 = vpack.c.b16 %v4856, %v4846
    %v5437 = vpack.c.b16 %v4857, %v4847
    %v5438 = vpack.c.b16 %v4858, %v4848
    %v5439 = vpack.c.b16 %v4859, %v4849
    %v5440 = vpack.c.b16 %v4860, %v4850
    %v5441 = vpack.c.b16 %v4861, %v4851
    %v5442 = vpack.c.b16 %v4862, %v4852
    %v5443 = vpack.c.b16 %v4863, %v4853
    %v5444 = vpack.c.b16 %v4864, %v4854
    %v5445 = vpack.c.b16 %v4865, %v4855
    %v5446 = vpack.c.b16 %v4876, %v4866
    %v5447 = vpack.c.b16 %v4877, %v4867
    %v5448 = vpack.c.b16 %v4878, %v4868
    %v5449 = vpack.c.b16 %v4879, %v4869
    %v5450 = vpack.c.b16 %v4880, %v4870
    %v5451 = vpack.c.b16 %v4881, %v4871
    %v5452 = vpack.c.b16 %v4882, %v4872
    %v5453 = vpack.c.b16 %v4883, %v4873
    %v5454 = vpack.c.b16 %v4884, %v4874
    %v5455 = vpack.c.b16 %v4885, %v4875
    %v5456 = vpack.c.b16 %v4896, %v4886
    %v5457 = vpack.c.b16 %v4897, %v4887
    %v5458 = vpack.c.b16 %v4898, %v4888
    %v5459 = vpack.c.b16 %v4899, %v4889
    %v5460 = vpack.c.b16 %v4900, %v4890
    %v5461 = vpack.c.b16 %v4901, %v4891
    %v5462 = vpack.c.b16 %v4902, %v4892
    %v5463 = vpack.c.b16 %v4903, %v4893
    %v5464 = vpack.c.b16 %v4904, %v4894
    %v5465 = vpack.c.b16 %v4905, %v4895
    %6026 = vmatpush.bf16.msra.mxu0 %v4976
    %6027 = vmatpush.bf16.msra.mxu0 %v4966
    %6028 = vmatpush.bf16.msra.mxu0 %v4956
    %6029 = vmatpush.bf16.msra.mxu0 %v4946
    %6030 = vmatpush.bf16.msra.mxu0 %v4936
    %6031 = vmatpush.bf16.msra.mxu0 %v4926
    %6032 = vmatpush.bf16.msra.mxu0 %v4916
    %6033 = vmatpush.bf16.msra.mxu0 %v4906
    %6034 = vmatmul.bf16.gmra.mxu0 %v2635
    %v6035 = vpop.f32.mrf.mxu0
    %v6036 = vadd.f32 %v3206, %v6035
    %v6037 = vpop.f32.mrf.mxu0
    %6038 = vdwg.mxu0
    %6039 = vmatpush.bf16.msra.mxu0 %v5056
    %6040 = vmatpush.bf16.msra.mxu0 %v5046
    %6041 = vmatpush.bf16.msra.mxu0 %v5036
    %6042 = vmatpush.bf16.msra.mxu0 %v5026
    %6043 = vmatpush.bf16.msra.mxu0 %v5016
    %6044 = vmatpush.bf16.msra.mxu0 %v5006
    %6045 = vmatpush.bf16.msra.mxu0 %v4996
    %6046 = vmatpush.bf16.msra.mxu0 %v4986
    %6047 = vmatmul.bf16.gmra.mxu0 %v2636
    %v6048 = vpop.f32.mrf.mxu0
    %v6049 = vadd.f32 %v6036, %v6048
    %v6050 = vpop.f32.mrf.mxu0
    %6051 = vdwg.mxu0
    %6052 = vmatpush.bf16.msra.mxu0 %v5136
    %6053 = vmatpush.bf16.msra.mxu0 %v5126
    %6054 = vmatpush.bf16.msra.mxu0 %v5116
    %6055 = vmatpush.bf16.msra.mxu0 %v5106
    %6056 = vmatpush.bf16.msra.mxu0 %v5096
    %6057 = vmatpush.bf16.msra.mxu0 %v5086
    %6058 = vmatpush.bf16.msra.mxu0 %v5076
    %6059 = vmatpush.bf16.msra.mxu0 %v5066
    %6060 = vmatmul.bf16.gmra.mxu0 %v2637
    %v6061 = vpop.f32.mrf.mxu0
    %v6062 = vadd.f32 %v6049, %v6061
    %v6063 = vpop.f32.mrf.mxu0
    %6064 = vdwg.mxu0
    %6065 = vmatpush.bf16.msra.mxu0 %v5216
    %6066 = vmatpush.bf16.msra.mxu0 %v5206
    %6067 = vmatpush.bf16.msra.mxu0 %v5196
    %6068 = vmatpush.bf16.msra.mxu0 %v5186
    %6069 = vmatpush.bf16.msra.mxu0 %v5176
    %6070 = vmatpush.bf16.msra.mxu0 %v5166
    %6071 = vmatpush.bf16.msra.mxu0 %v5156
    %6072 = vmatpush.bf16.msra.mxu0 %v5146
    %6073 = vmatmul.bf16.gmra.mxu0 %v2638
    %v6074 = vpop.f32.mrf.mxu0
    %v6075 = vadd.f32 %v6062, %v6074
    %v6076 = vpop.f32.mrf.mxu0
    %6077 = vdwg.mxu0
    %6078 = vmatpush.bf16.msra.mxu0 %v5296
    %6079 = vmatpush.bf16.msra.mxu0 %v5286
    %6080 = vmatpush.bf16.msra.mxu0 %v5276
    %6081 = vmatpush.bf16.msra.mxu0 %v5266
    %6082 = vmatpush.bf16.msra.mxu0 %v5256
    %6083 = vmatpush.bf16.msra.mxu0 %v5246
    %6084 = vmatpush.bf16.msra.mxu0 %v5236
    %6085 = vmatpush.bf16.msra.mxu0 %v5226
    %6086 = vmatmul.bf16.gmra.mxu0 %v2639
    %v6087 = vpop.f32.mrf.mxu0
    %v6088 = vadd.f32 %v6075, %v6087
    %v6089 = vpop.f32.mrf.mxu0
    %6090 = vdwg.mxu0
    %6091 = vmatpush.bf16.msra.mxu0 %v5376
    %6092 = vmatpush.bf16.msra.mxu0 %v5366
    %6093 = vmatpush.bf16.msra.mxu0 %v5356
    %6094 = vmatpush.bf16.msra.mxu0 %v5346
    %6095 = vmatpush.bf16.msra.mxu0 %v5336
    %6096 = vmatpush.bf16.msra.mxu0 %v5326
    %6097 = vmatpush.bf16.msra.mxu0 %v5316
    %6098 = vmatpush.bf16.msra.mxu0 %v5306
    %6099 = vmatmul.bf16.gmra.mxu0 %v2640
    %v6100 = vpop.f32.mrf.mxu0
    %v6101 = vadd.f32 %v6088, %v6100
    %v6102 = vpop.f32.mrf.mxu0
    %6103 = vdwg.mxu0
    %6104 = vmatpush.bf16.msra.mxu0 %v5456
    %6105 = vmatpush.bf16.msra.mxu0 %v5446
    %6106 = vmatpush.bf16.msra.mxu0 %v5436
    %6107 = vmatpush.bf16.msra.mxu0 %v5426
    %6108 = vmatpush.bf16.msra.mxu0 %v5416
    %6109 = vmatpush.bf16.msra.mxu0 %v5406
    %6110 = vmatpush.bf16.msra.mxu0 %v5396
    %6111 = vmatpush.bf16.msra.mxu0 %v5386
    %6112 = vmatmul.bf16.gmra.mxu0 %v2641
    %v6113 = vpop.f32.mrf.mxu0
    %v6114 = vadd.f32 %v6101, %v6113
    %v6115 = vpop.f32.mrf.mxu0
    %6116 = vdwg.mxu0
    %6117 = vmatpush.bf16.msra.mxu0 %v4977
    %6118 = vmatpush.bf16.msra.mxu0 %v4967
    %6119 = vmatpush.bf16.msra.mxu0 %v4957
    %6120 = vmatpush.bf16.msra.mxu0 %v4947
    %6121 = vmatpush.bf16.msra.mxu0 %v4937
    %6122 = vmatpush.bf16.msra.mxu0 %v4927
    %6123 = vmatpush.bf16.msra.mxu0 %v4917
    %6124 = vmatpush.bf16.msra.mxu0 %v4907
    %6125 = vmatmul.bf16.gmra.mxu0 %v2635
    %v6126 = vpop.f32.mrf.mxu0
    %v6127 = vadd.f32 %v3207, %v6126
    %v6128 = vpop.f32.mrf.mxu0
    %6129 = vdwg.mxu0
    %6130 = vmatpush.bf16.msra.mxu0 %v5057
    %6131 = vmatpush.bf16.msra.mxu0 %v5047
    %6132 = vmatpush.bf16.msra.mxu0 %v5037
    %6133 = vmatpush.bf16.msra.mxu0 %v5027
    %6134 = vmatpush.bf16.msra.mxu0 %v5017
    %6135 = vmatpush.bf16.msra.mxu0 %v5007
    %6136 = vmatpush.bf16.msra.mxu0 %v4997
    %6137 = vmatpush.bf16.msra.mxu0 %v4987
    %6138 = vmatmul.bf16.gmra.mxu0 %v2636
    %v6139 = vpop.f32.mrf.mxu0
    %v6140 = vadd.f32 %v6127, %v6139
    %v6141 = vpop.f32.mrf.mxu0
    %6142 = vdwg.mxu0
    %6143 = vmatpush.bf16.msra.mxu0 %v5137
    %6144 = vmatpush.bf16.msra.mxu0 %v5127
    %6145 = vmatpush.bf16.msra.mxu0 %v5117
    %6146 = vmatpush.bf16.msra.mxu0 %v5107
    %6147 = vmatpush.bf16.msra.mxu0 %v5097
    %6148 = vmatpush.bf16.msra.mxu0 %v5087
    %6149 = vmatpush.bf16.msra.mxu0 %v5077
    %6150 = vmatpush.bf16.msra.mxu0 %v5067
    %6151 = vmatmul.bf16.gmra.mxu0 %v2637
    %v6152 = vpop.f32.mrf.mxu0
    %v6153 = vadd.f32 %v6140, %v6152
    %v6154 = vpop.f32.mrf.mxu0
    %6155 = vdwg.mxu0
    %6156 = vmatpush.bf16.msra.mxu0 %v5217
    %6157 = vmatpush.bf16.msra.mxu0 %v5207
    %6158 = vmatpush.bf16.msra.mxu0 %v5197
    %6159 = vmatpush.bf16.msra.mxu0 %v5187
    %6160 = vmatpush.bf16.msra.mxu0 %v5177
    %6161 = vmatpush.bf16.msra.mxu0 %v5167
    %6162 = vmatpush.bf16.msra.mxu0 %v5157
    %6163 = vmatpush.bf16.msra.mxu0 %v5147
    %6164 = vmatmul.bf16.gmra.mxu0 %v2638
    %v6165 = vpop.f32.mrf.mxu0
    %v6166 = vadd.f32 %v6153, %v6165
    %v6167 = vpop.f32.mrf.mxu0
    %6168 = vdwg.mxu0
    %6169 = vmatpush.bf16.msra.mxu0 %v5297
    %6170 = vmatpush.bf16.msra.mxu0 %v5287
    %6171 = vmatpush.bf16.msra.mxu0 %v5277
    %6172 = vmatpush.bf16.msra.mxu0 %v5267
    %6173 = vmatpush.bf16.msra.mxu0 %v5257
    %6174 = vmatpush.bf16.msra.mxu0 %v5247
    %6175 = vmatpush.bf16.msra.mxu0 %v5237
    %6176 = vmatpush.bf16.msra.mxu0 %v5227
    %6177 = vmatmul.bf16.gmra.mxu0 %v2639
    %v6178 = vpop.f32.mrf.mxu0
    %v6179 = vadd.f32 %v6166, %v6178
    %v6180 = vpop.f32.mrf.mxu0
    %6181 = vdwg.mxu0
    %6182 = vmatpush.bf16.msra.mxu0 %v5377
    %6183 = vmatpush.bf16.msra.mxu0 %v5367
    %6184 = vmatpush.bf16.msra.mxu0 %v5357
    %6185 = vmatpush.bf16.msra.mxu0 %v5347
    %6186 = vmatpush.bf16.msra.mxu0 %v5337
    %6187 = vmatpush.bf16.msra.mxu0 %v5327
    %6188 = vmatpush.bf16.msra.mxu0 %v5317
    %6189 = vmatpush.bf16.msra.mxu0 %v5307
    %6190 = vmatmul.bf16.gmra.mxu0 %v2640
    %v6191 = vpop.f32.mrf.mxu0
    %v6192 = vadd.f32 %v6179, %v6191
    %v6193 = vpop.f32.mrf.mxu0
    %6194 = vdwg.mxu0
    %6195 = vmatpush.bf16.msra.mxu0 %v5457
    %6196 = vmatpush.bf16.msra.mxu0 %v5447
    %6197 = vmatpush.bf16.msra.mxu0 %v5437
    %6198 = vmatpush.bf16.msra.mxu0 %v5427
    %6199 = vmatpush.bf16.msra.mxu0 %v5417
    %6200 = vmatpush.bf16.msra.mxu0 %v5407
    %6201 = vmatpush.bf16.msra.mxu0 %v5397
    %6202 = vmatpush.bf16.msra.mxu0 %v5387
    %6203 = vmatmul.bf16.gmra.mxu0 %v2641
    %v6204 = vpop.f32.mrf.mxu0
    %v6205 = vadd.f32 %v6192, %v6204
    %v6206 = vpop.f32.mrf.mxu0
    %6207 = vdwg.mxu0
    %6208 = vmatpush.bf16.msra.mxu0 %v4978
    %6209 = vmatpush.bf16.msra.mxu0 %v4968
    %6210 = vmatpush.bf16.msra.mxu0 %v4958
    %6211 = vmatpush.bf16.msra.mxu0 %v4948
    %6212 = vmatpush.bf16.msra.mxu0 %v4938
    %6213 = vmatpush.bf16.msra.mxu0 %v4928
    %6214 = vmatpush.bf16.msra.mxu0 %v4918
    %6215 = vmatpush.bf16.msra.mxu0 %v4908
    %6216 = vmatmul.bf16.gmra.mxu0 %v2635
    %v6217 = vpop.f32.mrf.mxu0
    %v6218 = vadd.f32 %v3208, %v6217
    %v6219 = vpop.f32.mrf.mxu0
    %6220 = vdwg.mxu0
    %6221 = vmatpush.bf16.msra.mxu0 %v5058
    %6222 = vmatpush.bf16.msra.mxu0 %v5048
    %6223 = vmatpush.bf16.msra.mxu0 %v5038
    %6224 = vmatpush.bf16.msra.mxu0 %v5028
    %6225 = vmatpush.bf16.msra.mxu0 %v5018
    %6226 = vmatpush.bf16.msra.mxu0 %v5008
    %6227 = vmatpush.bf16.msra.mxu0 %v4998
    %6228 = vmatpush.bf16.msra.mxu0 %v4988
    %6229 = vmatmul.bf16.gmra.mxu0 %v2636
    %v6230 = vpop.f32.mrf.mxu0
    %v6231 = vadd.f32 %v6218, %v6230
    %v6232 = vpop.f32.mrf.mxu0
    %6233 = vdwg.mxu0
    %6234 = vmatpush.bf16.msra.mxu0 %v5138
    %6235 = vmatpush.bf16.msra.mxu0 %v5128
    %6236 = vmatpush.bf16.msra.mxu0 %v5118
    %6237 = vmatpush.bf16.msra.mxu0 %v5108
    %6238 = vmatpush.bf16.msra.mxu0 %v5098
    %6239 = vmatpush.bf16.msra.mxu0 %v5088
    %6240 = vmatpush.bf16.msra.mxu0 %v5078
    %6241 = vmatpush.bf16.msra.mxu0 %v5068
    %6242 = vmatmul.bf16.gmra.mxu0 %v2637
    %v6243 = vpop.f32.mrf.mxu0
    %v6244 = vadd.f32 %v6231, %v6243
    %v6245 = vpop.f32.mrf.mxu0
    %6246 = vdwg.mxu0
    %6247 = vmatpush.bf16.msra.mxu0 %v5218
    %6248 = vmatpush.bf16.msra.mxu0 %v5208
    %6249 = vmatpush.bf16.msra.mxu0 %v5198
    %6250 = vmatpush.bf16.msra.mxu0 %v5188
    %6251 = vmatpush.bf16.msra.mxu0 %v5178
    %6252 = vmatpush.bf16.msra.mxu0 %v5168
    %6253 = vmatpush.bf16.msra.mxu0 %v5158
    %6254 = vmatpush.bf16.msra.mxu0 %v5148
    %6255 = vmatmul.bf16.gmra.mxu0 %v2638
    %v6256 = vpop.f32.mrf.mxu0
    %v6257 = vadd.f32 %v6244, %v6256
    %v6258 = vpop.f32.mrf.mxu0
    %6259 = vdwg.mxu0
    %6260 = vmatpush.bf16.msra.mxu0 %v5298
    %6261 = vmatpush.bf16.msra.mxu0 %v5288
    %6262 = vmatpush.bf16.msra.mxu0 %v5278
    %6263 = vmatpush.bf16.msra.mxu0 %v5268
    %6264 = vmatpush.bf16.msra.mxu0 %v5258
    %6265 = vmatpush.bf16.msra.mxu0 %v5248
    %6266 = vmatpush.bf16.msra.mxu0 %v5238
    %6267 = vmatpush.bf16.msra.mxu0 %v5228
    %6268 = vmatmul.bf16.gmra.mxu0 %v2639
    %v6269 = vpop.f32.mrf.mxu0
    %v6270 = vadd.f32 %v6257, %v6269
    %v6271 = vpop.f32.mrf.mxu0
    %6272 = vdwg.mxu0
    %6273 = vmatpush.bf16.msra.mxu0 %v5378
    %6274 = vmatpush.bf16.msra.mxu0 %v5368
    %6275 = vmatpush.bf16.msra.mxu0 %v5358
    %6276 = vmatpush.bf16.msra.mxu0 %v5348
    %6277 = vmatpush.bf16.msra.mxu0 %v5338
    %6278 = vmatpush.bf16.msra.mxu0 %v5328
    %6279 = vmatpush.bf16.msra.mxu0 %v5318
    %6280 = vmatpush.bf16.msra.mxu0 %v5308
    %6281 = vmatmul.bf16.gmra.mxu0 %v2640
    %v6282 = vpop.f32.mrf.mxu0
    %v6283 = vadd.f32 %v6270, %v6282
    %v6284 = vpop.f32.mrf.mxu0
    %6285 = vdwg.mxu0
    %6286 = vmatpush.bf16.msra.mxu0 %v5458
    %6287 = vmatpush.bf16.msra.mxu0 %v5448
    %6288 = vmatpush.bf16.msra.mxu0 %v5438
    %6289 = vmatpush.bf16.msra.mxu0 %v5428
    %6290 = vmatpush.bf16.msra.mxu0 %v5418
    %6291 = vmatpush.bf16.msra.mxu0 %v5408
    %6292 = vmatpush.bf16.msra.mxu0 %v5398
    %6293 = vmatpush.bf16.msra.mxu0 %v5388
    %6294 = vmatmul.bf16.gmra.mxu0 %v2641
    %v6295 = vpop.f32.mrf.mxu0
    %v6296 = vadd.f32 %v6283, %v6295
    %v6297 = vpop.f32.mrf.mxu0
    %6298 = vdwg.mxu0
    %6299 = vmatpush.bf16.msra.mxu0 %v4979
    %6300 = vmatpush.bf16.msra.mxu0 %v4969
    %6301 = vmatpush.bf16.msra.mxu0 %v4959
    %6302 = vmatpush.bf16.msra.mxu0 %v4949
    %6303 = vmatpush.bf16.msra.mxu0 %v4939
    %6304 = vmatpush.bf16.msra.mxu0 %v4929
    %6305 = vmatpush.bf16.msra.mxu0 %v4919
    %6306 = vmatpush.bf16.msra.mxu0 %v4909
    %6307 = vmatmul.bf16.gmra.mxu0 %v2635
    %v6308 = vpop.f32.mrf.mxu0
    %v6309 = vadd.f32 %v3209, %v6308
    %v6310 = vpop.f32.mrf.mxu0
    %6311 = vdwg.mxu0
    %6312 = vmatpush.bf16.msra.mxu0 %v5059
    %6313 = vmatpush.bf16.msra.mxu0 %v5049
    %6314 = vmatpush.bf16.msra.mxu0 %v5039
    %6315 = vmatpush.bf16.msra.mxu0 %v5029
    %6316 = vmatpush.bf16.msra.mxu0 %v5019
    %6317 = vmatpush.bf16.msra.mxu0 %v5009
    %6318 = vmatpush.bf16.msra.mxu0 %v4999
    %6319 = vmatpush.bf16.msra.mxu0 %v4989
    %6320 = vmatmul.bf16.gmra.mxu0 %v2636
    %v6321 = vpop.f32.mrf.mxu0
    %v6322 = vadd.f32 %v6309, %v6321
    %v6323 = vpop.f32.mrf.mxu0
    %6324 = vdwg.mxu0
    %6325 = vmatpush.bf16.msra.mxu0 %v5139
    %6326 = vmatpush.bf16.msra.mxu0 %v5129
    %6327 = vmatpush.bf16.msra.mxu0 %v5119
    %6328 = vmatpush.bf16.msra.mxu0 %v5109
    %6329 = vmatpush.bf16.msra.mxu0 %v5099
    %6330 = vmatpush.bf16.msra.mxu0 %v5089
    %6331 = vmatpush.bf16.msra.mxu0 %v5079
    %6332 = vmatpush.bf16.msra.mxu0 %v5069
    %6333 = vmatmul.bf16.gmra.mxu0 %v2637
    %v6334 = vpop.f32.mrf.mxu0
    %v6335 = vadd.f32 %v6322, %v6334
    %v6336 = vpop.f32.mrf.mxu0
    %6337 = vdwg.mxu0
    %6338 = vmatpush.bf16.msra.mxu0 %v5219
    %6339 = vmatpush.bf16.msra.mxu0 %v5209
    %6340 = vmatpush.bf16.msra.mxu0 %v5199
    %6341 = vmatpush.bf16.msra.mxu0 %v5189
    %6342 = vmatpush.bf16.msra.mxu0 %v5179
    %6343 = vmatpush.bf16.msra.mxu0 %v5169
    %6344 = vmatpush.bf16.msra.mxu0 %v5159
    %6345 = vmatpush.bf16.msra.mxu0 %v5149
    %6346 = vmatmul.bf16.gmra.mxu0 %v2638
    %v6347 = vpop.f32.mrf.mxu0
    %v6348 = vadd.f32 %v6335, %v6347
    %v6349 = vpop.f32.mrf.mxu0
    %6350 = vdwg.mxu0
    %6351 = vmatpush.bf16.msra.mxu0 %v5299
    %6352 = vmatpush.bf16.msra.mxu0 %v5289
    %6353 = vmatpush.bf16.msra.mxu0 %v5279
    %6354 = vmatpush.bf16.msra.mxu0 %v5269
    %6355 = vmatpush.bf16.msra.mxu0 %v5259
    %6356 = vmatpush.bf16.msra.mxu0 %v5249
    %6357 = vmatpush.bf16.msra.mxu0 %v5239
    %6358 = vmatpush.bf16.msra.mxu0 %v5229
    %6359 = vmatmul.bf16.gmra.mxu0 %v2639
    %v6360 = vpop.f32.mrf.mxu0
    %v6361 = vadd.f32 %v6348, %v6360
    %v6362 = vpop.f32.mrf.mxu0
    %6363 = vdwg.mxu0
    %6364 = vmatpush.bf16.msra.mxu0 %v5379
    %6365 = vmatpush.bf16.msra.mxu0 %v5369
    %6366 = vmatpush.bf16.msra.mxu0 %v5359
    %6367 = vmatpush.bf16.msra.mxu0 %v5349
    %6368 = vmatpush.bf16.msra.mxu0 %v5339
    %6369 = vmatpush.bf16.msra.mxu0 %v5329
    %6370 = vmatpush.bf16.msra.mxu0 %v5319
    %6371 = vmatpush.bf16.msra.mxu0 %v5309
    %6372 = vmatmul.bf16.gmra.mxu0 %v2640
    %v6373 = vpop.f32.mrf.mxu0
    %v6374 = vadd.f32 %v6361, %v6373
    %v6375 = vpop.f32.mrf.mxu0
    %6376 = vdwg.mxu0
    %6377 = vmatpush.bf16.msra.mxu0 %v5459
    %6378 = vmatpush.bf16.msra.mxu0 %v5449
    %6379 = vmatpush.bf16.msra.mxu0 %v5439
    %6380 = vmatpush.bf16.msra.mxu0 %v5429
    %6381 = vmatpush.bf16.msra.mxu0 %v5419
    %6382 = vmatpush.bf16.msra.mxu0 %v5409
    %6383 = vmatpush.bf16.msra.mxu0 %v5399
    %6384 = vmatpush.bf16.msra.mxu0 %v5389
    %6385 = vmatmul.bf16.gmra.mxu0 %v2641
    %v6386 = vpop.f32.mrf.mxu0
    %v6387 = vadd.f32 %v6374, %v6386
    %v6388 = vpop.f32.mrf.mxu0
    %6389 = vdwg.mxu0
    %6390 = vmatpush.bf16.msra.mxu0 %v4980
    %6391 = vmatpush.bf16.msra.mxu0 %v4970
    %6392 = vmatpush.bf16.msra.mxu0 %v4960
    %6393 = vmatpush.bf16.msra.mxu0 %v4950
    %6394 = vmatpush.bf16.msra.mxu0 %v4940
    %6395 = vmatpush.bf16.msra.mxu0 %v4930
    %6396 = vmatpush.bf16.msra.mxu0 %v4920
    %6397 = vmatpush.bf16.msra.mxu0 %v4910
    %6398 = vmatmul.bf16.gmra.mxu0 %v2635
    %v6399 = vpop.f32.mrf.mxu0
    %v6400 = vadd.f32 %v3210, %v6399
    %v6401 = vpop.f32.mrf.mxu0
    %6402 = vdwg.mxu0
    %6403 = vmatpush.bf16.msra.mxu0 %v5060
    %6404 = vmatpush.bf16.msra.mxu0 %v5050
    %6405 = vmatpush.bf16.msra.mxu0 %v5040
    %6406 = vmatpush.bf16.msra.mxu0 %v5030
    %6407 = vmatpush.bf16.msra.mxu0 %v5020
    %6408 = vmatpush.bf16.msra.mxu0 %v5010
    %6409 = vmatpush.bf16.msra.mxu0 %v5000
    %6410 = vmatpush.bf16.msra.mxu0 %v4990
    %6411 = vmatmul.bf16.gmra.mxu0 %v2636
    %v6412 = vpop.f32.mrf.mxu0
    %v6413 = vadd.f32 %v6400, %v6412
    %v6414 = vpop.f32.mrf.mxu0
    %6415 = vdwg.mxu0
    %6416 = vmatpush.bf16.msra.mxu0 %v5140
    %6417 = vmatpush.bf16.msra.mxu0 %v5130
    %6418 = vmatpush.bf16.msra.mxu0 %v5120
    %6419 = vmatpush.bf16.msra.mxu0 %v5110
    %6420 = vmatpush.bf16.msra.mxu0 %v5100
    %6421 = vmatpush.bf16.msra.mxu0 %v5090
    %6422 = vmatpush.bf16.msra.mxu0 %v5080
    %6423 = vmatpush.bf16.msra.mxu0 %v5070
    %6424 = vmatmul.bf16.gmra.mxu0 %v2637
    %v6425 = vpop.f32.mrf.mxu0
    %v6426 = vadd.f32 %v6413, %v6425
    %v6427 = vpop.f32.mrf.mxu0
    %6428 = vdwg.mxu0
    %6429 = vmatpush.bf16.msra.mxu0 %v5220
    %6430 = vmatpush.bf16.msra.mxu0 %v5210
    %6431 = vmatpush.bf16.msra.mxu0 %v5200
    %6432 = vmatpush.bf16.msra.mxu0 %v5190
    %6433 = vmatpush.bf16.msra.mxu0 %v5180
    %6434 = vmatpush.bf16.msra.mxu0 %v5170
    %6435 = vmatpush.bf16.msra.mxu0 %v5160
    %6436 = vmatpush.bf16.msra.mxu0 %v5150
    %6437 = vmatmul.bf16.gmra.mxu0 %v2638
    %v6438 = vpop.f32.mrf.mxu0
    %v6439 = vadd.f32 %v6426, %v6438
    %v6440 = vpop.f32.mrf.mxu0
    %6441 = vdwg.mxu0
    %6442 = vmatpush.bf16.msra.mxu0 %v5300
    %6443 = vmatpush.bf16.msra.mxu0 %v5290
    %6444 = vmatpush.bf16.msra.mxu0 %v5280
    %6445 = vmatpush.bf16.msra.mxu0 %v5270
    %6446 = vmatpush.bf16.msra.mxu0 %v5260
    %6447 = vmatpush.bf16.msra.mxu0 %v5250
    %6448 = vmatpush.bf16.msra.mxu0 %v5240
    %6449 = vmatpush.bf16.msra.mxu0 %v5230
    %6450 = vmatmul.bf16.gmra.mxu0 %v2639
    %v6451 = vpop.f32.mrf.mxu0
    %v6452 = vadd.f32 %v6439, %v6451
    %v6453 = vpop.f32.mrf.mxu0
    %6454 = vdwg.mxu0
    %6455 = vmatpush.bf16.msra.mxu0 %v5380
    %6456 = vmatpush.bf16.msra.mxu0 %v5370
    %6457 = vmatpush.bf16.msra.mxu0 %v5360
    %6458 = vmatpush.bf16.msra.mxu0 %v5350
    %6459 = vmatpush.bf16.msra.mxu0 %v5340
    %6460 = vmatpush.bf16.msra.mxu0 %v5330
    %6461 = vmatpush.bf16.msra.mxu0 %v5320
    %6462 = vmatpush.bf16.msra.mxu0 %v5310
    %6463 = vmatmul.bf16.gmra.mxu0 %v2640
    %v6464 = vpop.f32.mrf.mxu0
    %v6465 = vadd.f32 %v6452, %v6464
    %v6466 = vpop.f32.mrf.mxu0
    %6467 = vdwg.mxu0
    %6468 = vmatpush.bf16.msra.mxu0 %v5460
    %6469 = vmatpush.bf16.msra.mxu0 %v5450
    %6470 = vmatpush.bf16.msra.mxu0 %v5440
    %6471 = vmatpush.bf16.msra.mxu0 %v5430
    %6472 = vmatpush.bf16.msra.mxu0 %v5420
    %6473 = vmatpush.bf16.msra.mxu0 %v5410
    %6474 = vmatpush.bf16.msra.mxu0 %v5400
    %6475 = vmatpush.bf16.msra.mxu0 %v5390
    %6476 = vmatmul.bf16.gmra.mxu0 %v2641
    %v6477 = vpop.f32.mrf.mxu0
    %v6478 = vadd.f32 %v6465, %v6477
    %v6479 = vpop.f32.mrf.mxu0
    %6480 = vdwg.mxu0
    %6481 = vmatpush.bf16.msra.mxu0 %v4981
    %6482 = vmatpush.bf16.msra.mxu0 %v4971
    %6483 = vmatpush.bf16.msra.mxu0 %v4961
    %6484 = vmatpush.bf16.msra.mxu0 %v4951
    %6485 = vmatpush.bf16.msra.mxu0 %v4941
    %6486 = vmatpush.bf16.msra.mxu0 %v4931
    %6487 = vmatpush.bf16.msra.mxu0 %v4921
    %6488 = vmatpush.bf16.msra.mxu0 %v4911
    %6489 = vmatmul.bf16.gmra.mxu0 %v2635
    %v6490 = vpop.f32.mrf.mxu0
    %v6491 = vadd.f32 %v3211, %v6490
    %v6492 = vpop.f32.mrf.mxu0
    %6493 = vdwg.mxu0
    %6494 = vmatpush.bf16.msra.mxu0 %v5061
    %6495 = vmatpush.bf16.msra.mxu0 %v5051
    %6496 = vmatpush.bf16.msra.mxu0 %v5041
    %6497 = vmatpush.bf16.msra.mxu0 %v5031
    %6498 = vmatpush.bf16.msra.mxu0 %v5021
    %6499 = vmatpush.bf16.msra.mxu0 %v5011
    %6500 = vmatpush.bf16.msra.mxu0 %v5001
    %6501 = vmatpush.bf16.msra.mxu0 %v4991
    %6502 = vmatmul.bf16.gmra.mxu0 %v2636
    %v6503 = vpop.f32.mrf.mxu0
    %v6504 = vadd.f32 %v6491, %v6503
    %v6505 = vpop.f32.mrf.mxu0
    %6506 = vdwg.mxu0
    %6507 = vmatpush.bf16.msra.mxu0 %v5141
    %6508 = vmatpush.bf16.msra.mxu0 %v5131
    %6509 = vmatpush.bf16.msra.mxu0 %v5121
    %6510 = vmatpush.bf16.msra.mxu0 %v5111
    %6511 = vmatpush.bf16.msra.mxu0 %v5101
    %6512 = vmatpush.bf16.msra.mxu0 %v5091
    %6513 = vmatpush.bf16.msra.mxu0 %v5081
    %6514 = vmatpush.bf16.msra.mxu0 %v5071
    %6515 = vmatmul.bf16.gmra.mxu0 %v2637
    %v6516 = vpop.f32.mrf.mxu0
    %v6517 = vadd.f32 %v6504, %v6516
    %v6518 = vpop.f32.mrf.mxu0
    %6519 = vdwg.mxu0
    %6520 = vmatpush.bf16.msra.mxu0 %v5221
    %6521 = vmatpush.bf16.msra.mxu0 %v5211
    %6522 = vmatpush.bf16.msra.mxu0 %v5201
    %6523 = vmatpush.bf16.msra.mxu0 %v5191
    %6524 = vmatpush.bf16.msra.mxu0 %v5181
    %6525 = vmatpush.bf16.msra.mxu0 %v5171
    %6526 = vmatpush.bf16.msra.mxu0 %v5161
    %6527 = vmatpush.bf16.msra.mxu0 %v5151
    %6528 = vmatmul.bf16.gmra.mxu0 %v2638
    %v6529 = vpop.f32.mrf.mxu0
    %v6530 = vadd.f32 %v6517, %v6529
    %v6531 = vpop.f32.mrf.mxu0
    %6532 = vdwg.mxu0
    %6533 = vmatpush.bf16.msra.mxu0 %v5301
    %6534 = vmatpush.bf16.msra.mxu0 %v5291
    %6535 = vmatpush.bf16.msra.mxu0 %v5281
    %6536 = vmatpush.bf16.msra.mxu0 %v5271
    %6537 = vmatpush.bf16.msra.mxu0 %v5261
    %6538 = vmatpush.bf16.msra.mxu0 %v5251
    %6539 = vmatpush.bf16.msra.mxu0 %v5241
    %6540 = vmatpush.bf16.msra.mxu0 %v5231
    %6541 = vmatmul.bf16.gmra.mxu0 %v2639
    %v6542 = vpop.f32.mrf.mxu0
    %v6543 = vadd.f32 %v6530, %v6542
    %v6544 = vpop.f32.mrf.mxu0
    %6545 = vdwg.mxu0
    %6546 = vmatpush.bf16.msra.mxu0 %v5381
    %6547 = vmatpush.bf16.msra.mxu0 %v5371
    %6548 = vmatpush.bf16.msra.mxu0 %v5361
    %6549 = vmatpush.bf16.msra.mxu0 %v5351
    %6550 = vmatpush.bf16.msra.mxu0 %v5341
    %6551 = vmatpush.bf16.msra.mxu0 %v5331
    %6552 = vmatpush.bf16.msra.mxu0 %v5321
    %6553 = vmatpush.bf16.msra.mxu0 %v5311
    %6554 = vmatmul.bf16.gmra.mxu0 %v2640
    %v6555 = vpop.f32.mrf.mxu0
    %v6556 = vadd.f32 %v6543, %v6555
    %v6557 = vpop.f32.mrf.mxu0
    %6558 = vdwg.mxu0
    %6559 = vmatpush.bf16.msra.mxu0 %v5461
    %6560 = vmatpush.bf16.msra.mxu0 %v5451
    %6561 = vmatpush.bf16.msra.mxu0 %v5441
    %6562 = vmatpush.bf16.msra.mxu0 %v5431
    %6563 = vmatpush.bf16.msra.mxu0 %v5421
    %6564 = vmatpush.bf16.msra.mxu0 %v5411
    %6565 = vmatpush.bf16.msra.mxu0 %v5401
    %6566 = vmatpush.bf16.msra.mxu0 %v5391
    %6567 = vmatmul.bf16.gmra.mxu0 %v2641
    %v6568 = vpop.f32.mrf.mxu0
    %v6569 = vadd.f32 %v6556, %v6568
    %v6570 = vpop.f32.mrf.mxu0
    %6571 = vdwg.mxu0
    %6572 = vmatpush.bf16.msra.mxu0 %v4982
    %6573 = vmatpush.bf16.msra.mxu0 %v4972
    %6574 = vmatpush.bf16.msra.mxu0 %v4962
    %6575 = vmatpush.bf16.msra.mxu0 %v4952
    %6576 = vmatpush.bf16.msra.mxu0 %v4942
    %6577 = vmatpush.bf16.msra.mxu0 %v4932
    %6578 = vmatpush.bf16.msra.mxu0 %v4922
    %6579 = vmatpush.bf16.msra.mxu0 %v4912
    %6580 = vmatmul.bf16.gmra.mxu0 %v2635
    %v6581 = vpop.f32.mrf.mxu0
    %v6582 = vadd.f32 %v3212, %v6581
    %v6583 = vpop.f32.mrf.mxu0
    %6584 = vdwg.mxu0
    %6585 = vmatpush.bf16.msra.mxu0 %v5062
    %6586 = vmatpush.bf16.msra.mxu0 %v5052
    %6587 = vmatpush.bf16.msra.mxu0 %v5042
    %6588 = vmatpush.bf16.msra.mxu0 %v5032
    %6589 = vmatpush.bf16.msra.mxu0 %v5022
    %6590 = vmatpush.bf16.msra.mxu0 %v5012
    %6591 = vmatpush.bf16.msra.mxu0 %v5002
    %6592 = vmatpush.bf16.msra.mxu0 %v4992
    %6593 = vmatmul.bf16.gmra.mxu0 %v2636
    %v6594 = vpop.f32.mrf.mxu0
    %v6595 = vadd.f32 %v6582, %v6594
    %v6596 = vpop.f32.mrf.mxu0
    %6597 = vdwg.mxu0
    %6598 = vmatpush.bf16.msra.mxu0 %v5142
    %6599 = vmatpush.bf16.msra.mxu0 %v5132
    %6600 = vmatpush.bf16.msra.mxu0 %v5122
    %6601 = vmatpush.bf16.msra.mxu0 %v5112
    %6602 = vmatpush.bf16.msra.mxu0 %v5102
    %6603 = vmatpush.bf16.msra.mxu0 %v5092
    %6604 = vmatpush.bf16.msra.mxu0 %v5082
    %6605 = vmatpush.bf16.msra.mxu0 %v5072
    %6606 = vmatmul.bf16.gmra.mxu0 %v2637
    %v6607 = vpop.f32.mrf.mxu0
    %v6608 = vadd.f32 %v6595, %v6607
    %v6609 = vpop.f32.mrf.mxu0
    %6610 = vdwg.mxu0
    %6611 = vmatpush.bf16.msra.mxu0 %v5222
    %6612 = vmatpush.bf16.msra.mxu0 %v5212
    %6613 = vmatpush.bf16.msra.mxu0 %v5202
    %6614 = vmatpush.bf16.msra.mxu0 %v5192
    %6615 = vmatpush.bf16.msra.mxu0 %v5182
    %6616 = vmatpush.bf16.msra.mxu0 %v5172
    %6617 = vmatpush.bf16.msra.mxu0 %v5162
    %6618 = vmatpush.bf16.msra.mxu0 %v5152
    %6619 = vmatmul.bf16.gmra.mxu0 %v2638
    %v6620 = vpop.f32.mrf.mxu0
    %v6621 = vadd.f32 %v6608, %v6620
    %v6622 = vpop.f32.mrf.mxu0
    %6623 = vdwg.mxu0
    %6624 = vmatpush.bf16.msra.mxu0 %v5302
    %6625 = vmatpush.bf16.msra.mxu0 %v5292
    %6626 = vmatpush.bf16.msra.mxu0 %v5282
    %6627 = vmatpush.bf16.msra.mxu0 %v5272
    %6628 = vmatpush.bf16.msra.mxu0 %v5262
    %6629 = vmatpush.bf16.msra.mxu0 %v5252
    %6630 = vmatpush.bf16.msra.mxu0 %v5242
    %6631 = vmatpush.bf16.msra.mxu0 %v5232
    %6632 = vmatmul.bf16.gmra.mxu0 %v2639
    %v6633 = vpop.f32.mrf.mxu0
    %v6634 = vadd.f32 %v6621, %v6633
    %v6635 = vpop.f32.mrf.mxu0
    %6636 = vdwg.mxu0
    %6637 = vmatpush.bf16.msra.mxu0 %v5382
    %6638 = vmatpush.bf16.msra.mxu0 %v5372
    %6639 = vmatpush.bf16.msra.mxu0 %v5362
    %6640 = vmatpush.bf16.msra.mxu0 %v5352
    %6641 = vmatpush.bf16.msra.mxu0 %v5342
    %6642 = vmatpush.bf16.msra.mxu0 %v5332
    %6643 = vmatpush.bf16.msra.mxu0 %v5322
    %6644 = vmatpush.bf16.msra.mxu0 %v5312
    %6645 = vmatmul.bf16.gmra.mxu0 %v2640
    %v6646 = vpop.f32.mrf.mxu0
    %v6647 = vadd.f32 %v6634, %v6646
    %v6648 = vpop.f32.mrf.mxu0
    %6649 = vdwg.mxu0
    %6650 = vmatpush.bf16.msra.mxu0 %v5462
    %6651 = vmatpush.bf16.msra.mxu0 %v5452
    %6652 = vmatpush.bf16.msra.mxu0 %v5442
    %6653 = vmatpush.bf16.msra.mxu0 %v5432
    %6654 = vmatpush.bf16.msra.mxu0 %v5422
    %6655 = vmatpush.bf16.msra.mxu0 %v5412
    %6656 = vmatpush.bf16.msra.mxu0 %v5402
    %6657 = vmatpush.bf16.msra.mxu0 %v5392
    %6658 = vmatmul.bf16.gmra.mxu0 %v2641
    %v6659 = vpop.f32.mrf.mxu0
    %v6660 = vadd.f32 %v6647, %v6659
    %v6661 = vpop.f32.mrf.mxu0
    %6662 = vdwg.mxu0
    %6663 = vmatpush.bf16.msra.mxu0 %v4983
    %6664 = vmatpush.bf16.msra.mxu0 %v4973
    %6665 = vmatpush.bf16.msra.mxu0 %v4963
    %6666 = vmatpush.bf16.msra.mxu0 %v4953
    %6667 = vmatpush.bf16.msra.mxu0 %v4943
    %6668 = vmatpush.bf16.msra.mxu0 %v4933
    %6669 = vmatpush.bf16.msra.mxu0 %v4923
    %6670 = vmatpush.bf16.msra.mxu0 %v4913
    %6671 = vmatmul.bf16.gmra.mxu0 %v2635
    %v6672 = vpop.f32.mrf.mxu0
    %v6673 = vadd.f32 %v3213, %v6672
    %v6674 = vpop.f32.mrf.mxu0
    %6675 = vdwg.mxu0
    %6676 = vmatpush.bf16.msra.mxu0 %v5063
    %6677 = vmatpush.bf16.msra.mxu0 %v5053
    %6678 = vmatpush.bf16.msra.mxu0 %v5043
    %6679 = vmatpush.bf16.msra.mxu0 %v5033
    %6680 = vmatpush.bf16.msra.mxu0 %v5023
    %6681 = vmatpush.bf16.msra.mxu0 %v5013
    %6682 = vmatpush.bf16.msra.mxu0 %v5003
    %6683 = vmatpush.bf16.msra.mxu0 %v4993
    %6684 = vmatmul.bf16.gmra.mxu0 %v2636
    %v6685 = vpop.f32.mrf.mxu0
    %v6686 = vadd.f32 %v6673, %v6685
    %v6687 = vpop.f32.mrf.mxu0
    %6688 = vdwg.mxu0
    %6689 = vmatpush.bf16.msra.mxu0 %v5143
    %6690 = vmatpush.bf16.msra.mxu0 %v5133
    %6691 = vmatpush.bf16.msra.mxu0 %v5123
    %6692 = vmatpush.bf16.msra.mxu0 %v5113
    %6693 = vmatpush.bf16.msra.mxu0 %v5103
    %6694 = vmatpush.bf16.msra.mxu0 %v5093
    %6695 = vmatpush.bf16.msra.mxu0 %v5083
    %6696 = vmatpush.bf16.msra.mxu0 %v5073
    %6697 = vmatmul.bf16.gmra.mxu0 %v2637
    %v6698 = vpop.f32.mrf.mxu0
    %v6699 = vadd.f32 %v6686, %v6698
    %v6700 = vpop.f32.mrf.mxu0
    %6701 = vdwg.mxu0
    %6702 = vmatpush.bf16.msra.mxu0 %v5223
    %6703 = vmatpush.bf16.msra.mxu0 %v5213
    %6704 = vmatpush.bf16.msra.mxu0 %v5203
    %6705 = vmatpush.bf16.msra.mxu0 %v5193
    %6706 = vmatpush.bf16.msra.mxu0 %v5183
    %6707 = vmatpush.bf16.msra.mxu0 %v5173
    %6708 = vmatpush.bf16.msra.mxu0 %v5163
    %6709 = vmatpush.bf16.msra.mxu0 %v5153
    %6710 = vmatmul.bf16.gmra.mxu0 %v2638
    %v6711 = vpop.f32.mrf.mxu0
    %v6712 = vadd.f32 %v6699, %v6711
    %v6713 = vpop.f32.mrf.mxu0
    %6714 = vdwg.mxu0
    %6715 = vmatpush.bf16.msra.mxu0 %v5303
    %6716 = vmatpush.bf16.msra.mxu0 %v5293
    %6717 = vmatpush.bf16.msra.mxu0 %v5283
    %6718 = vmatpush.bf16.msra.mxu0 %v5273
    %6719 = vmatpush.bf16.msra.mxu0 %v5263
    %6720 = vmatpush.bf16.msra.mxu0 %v5253
    %6721 = vmatpush.bf16.msra.mxu0 %v5243
    %6722 = vmatpush.bf16.msra.mxu0 %v5233
    %6723 = vmatmul.bf16.gmra.mxu0 %v2639
    %v6724 = vpop.f32.mrf.mxu0
    %v6725 = vadd.f32 %v6712, %v6724
    %v6726 = vpop.f32.mrf.mxu0
    %6727 = vdwg.mxu0
    %6728 = vmatpush.bf16.msra.mxu0 %v5383
    %6729 = vmatpush.bf16.msra.mxu0 %v5373
    %6730 = vmatpush.bf16.msra.mxu0 %v5363
    %6731 = vmatpush.bf16.msra.mxu0 %v5353
    %6732 = vmatpush.bf16.msra.mxu0 %v5343
    %6733 = vmatpush.bf16.msra.mxu0 %v5333
    %6734 = vmatpush.bf16.msra.mxu0 %v5323
    %6735 = vmatpush.bf16.msra.mxu0 %v5313
    %6736 = vmatmul.bf16.gmra.mxu0 %v2640
    %v6737 = vpop.f32.mrf.mxu0
    %v6738 = vadd.f32 %v6725, %v6737
    %v6739 = vpop.f32.mrf.mxu0
    %6740 = vdwg.mxu0
    %6741 = vmatpush.bf16.msra.mxu0 %v5463
    %6742 = vmatpush.bf16.msra.mxu0 %v5453
    %6743 = vmatpush.bf16.msra.mxu0 %v5443
    %6744 = vmatpush.bf16.msra.mxu0 %v5433
    %6745 = vmatpush.bf16.msra.mxu0 %v5423
    %6746 = vmatpush.bf16.msra.mxu0 %v5413
    %6747 = vmatpush.bf16.msra.mxu0 %v5403
    %6748 = vmatpush.bf16.msra.mxu0 %v5393
    %6749 = vmatmul.bf16.gmra.mxu0 %v2641
    %v6750 = vpop.f32.mrf.mxu0
    %v6751 = vadd.f32 %v6738, %v6750
    %v6752 = vpop.f32.mrf.mxu0
    %6753 = vdwg.mxu0
    %6754 = vmatpush.bf16.msra.mxu0 %v4984
    %6755 = vmatpush.bf16.msra.mxu0 %v4974
    %6756 = vmatpush.bf16.msra.mxu0 %v4964
    %6757 = vmatpush.bf16.msra.mxu0 %v4954
    %6758 = vmatpush.bf16.msra.mxu0 %v4944
    %6759 = vmatpush.bf16.msra.mxu0 %v4934
    %6760 = vmatpush.bf16.msra.mxu0 %v4924
    %6761 = vmatpush.bf16.msra.mxu0 %v4914
    %6762 = vmatmul.bf16.gmra.mxu0 %v2635
    %v6763 = vpop.f32.mrf.mxu0
    %v6764 = vadd.f32 %v3214, %v6763
    %v6765 = vpop.f32.mrf.mxu0
    %6766 = vdwg.mxu0
    %6767 = vmatpush.bf16.msra.mxu0 %v5064
    %6768 = vmatpush.bf16.msra.mxu0 %v5054
    %6769 = vmatpush.bf16.msra.mxu0 %v5044
    %6770 = vmatpush.bf16.msra.mxu0 %v5034
    %6771 = vmatpush.bf16.msra.mxu0 %v5024
    %6772 = vmatpush.bf16.msra.mxu0 %v5014
    %6773 = vmatpush.bf16.msra.mxu0 %v5004
    %6774 = vmatpush.bf16.msra.mxu0 %v4994
    %6775 = vmatmul.bf16.gmra.mxu0 %v2636
    %v6776 = vpop.f32.mrf.mxu0
    %v6777 = vadd.f32 %v6764, %v6776
    %v6778 = vpop.f32.mrf.mxu0
    %6779 = vdwg.mxu0
    %6780 = vmatpush.bf16.msra.mxu0 %v5144
    %6781 = vmatpush.bf16.msra.mxu0 %v5134
    %6782 = vmatpush.bf16.msra.mxu0 %v5124
    %6783 = vmatpush.bf16.msra.mxu0 %v5114
    %6784 = vmatpush.bf16.msra.mxu0 %v5104
    %6785 = vmatpush.bf16.msra.mxu0 %v5094
    %6786 = vmatpush.bf16.msra.mxu0 %v5084
    %6787 = vmatpush.bf16.msra.mxu0 %v5074
    %6788 = vmatmul.bf16.gmra.mxu0 %v2637
    %v6789 = vpop.f32.mrf.mxu0
    %v6790 = vadd.f32 %v6777, %v6789
    %v6791 = vpop.f32.mrf.mxu0
    %6792 = vdwg.mxu0
    %6793 = vmatpush.bf16.msra.mxu0 %v5224
    %6794 = vmatpush.bf16.msra.mxu0 %v5214
    %6795 = vmatpush.bf16.msra.mxu0 %v5204
    %6796 = vmatpush.bf16.msra.mxu0 %v5194
    %6797 = vmatpush.bf16.msra.mxu0 %v5184
    %6798 = vmatpush.bf16.msra.mxu0 %v5174
    %6799 = vmatpush.bf16.msra.mxu0 %v5164
    %6800 = vmatpush.bf16.msra.mxu0 %v5154
    %6801 = vmatmul.bf16.gmra.mxu0 %v2638
    %v6802 = vpop.f32.mrf.mxu0
    %v6803 = vadd.f32 %v6790, %v6802
    %v6804 = vpop.f32.mrf.mxu0
    %6805 = vdwg.mxu0
    %6806 = vmatpush.bf16.msra.mxu0 %v5304
    %6807 = vmatpush.bf16.msra.mxu0 %v5294
    %6808 = vmatpush.bf16.msra.mxu0 %v5284
    %6809 = vmatpush.bf16.msra.mxu0 %v5274
    %6810 = vmatpush.bf16.msra.mxu0 %v5264
    %6811 = vmatpush.bf16.msra.mxu0 %v5254
    %6812 = vmatpush.bf16.msra.mxu0 %v5244
    %6813 = vmatpush.bf16.msra.mxu0 %v5234
    %6814 = vmatmul.bf16.gmra.mxu0 %v2639
    %v6815 = vpop.f32.mrf.mxu0
    %v6816 = vadd.f32 %v6803, %v6815
    %v6817 = vpop.f32.mrf.mxu0
    %6818 = vdwg.mxu0
    %6819 = vmatpush.bf16.msra.mxu0 %v5384
    %6820 = vmatpush.bf16.msra.mxu0 %v5374
    %6821 = vmatpush.bf16.msra.mxu0 %v5364
    %6822 = vmatpush.bf16.msra.mxu0 %v5354
    %6823 = vmatpush.bf16.msra.mxu0 %v5344
    %6824 = vmatpush.bf16.msra.mxu0 %v5334
    %6825 = vmatpush.bf16.msra.mxu0 %v5324
    %6826 = vmatpush.bf16.msra.mxu0 %v5314
    %6827 = vmatmul.bf16.gmra.mxu0 %v2640
    %v6828 = vpop.f32.mrf.mxu0
    %v6829 = vadd.f32 %v6816, %v6828
    %v6830 = vpop.f32.mrf.mxu0
    %6831 = vdwg.mxu0
    %6832 = vmatpush.bf16.msra.mxu0 %v5464
    %6833 = vmatpush.bf16.msra.mxu0 %v5454
    %6834 = vmatpush.bf16.msra.mxu0 %v5444
    %6835 = vmatpush.bf16.msra.mxu0 %v5434
    %6836 = vmatpush.bf16.msra.mxu0 %v5424
    %6837 = vmatpush.bf16.msra.mxu0 %v5414
    %6838 = vmatpush.bf16.msra.mxu0 %v5404
    %6839 = vmatpush.bf16.msra.mxu0 %v5394
    %6840 = vmatmul.bf16.gmra.mxu0 %v2641
    %v6841 = vpop.f32.mrf.mxu0
    %v6842 = vadd.f32 %v6829, %v6841
    %v6843 = vpop.f32.mrf.mxu0
    %6844 = vdwg.mxu0
    %6845 = vmatpush.bf16.msra.mxu0 %v4985
    %6846 = vmatpush.bf16.msra.mxu0 %v4975
    %6847 = vmatpush.bf16.msra.mxu0 %v4965
    %6848 = vmatpush.bf16.msra.mxu0 %v4955
    %6849 = vmatpush.bf16.msra.mxu0 %v4945
    %6850 = vmatpush.bf16.msra.mxu0 %v4935
    %6851 = vmatpush.bf16.msra.mxu0 %v4925
    %6852 = vmatpush.bf16.msra.mxu0 %v4915
    %6853 = vmatmul.bf16.gmra.mxu0 %v2635
    %v6854 = vpop.f32.mrf.mxu0
    %v6855 = vadd.f32 %v3215, %v6854
    %v6856 = vpop.f32.mrf.mxu0
    %6857 = vdwg.mxu0
    %6858 = vmatpush.bf16.msra.mxu0 %v5065
    %6859 = vmatpush.bf16.msra.mxu0 %v5055
    %6860 = vmatpush.bf16.msra.mxu0 %v5045
    %6861 = vmatpush.bf16.msra.mxu0 %v5035
    %6862 = vmatpush.bf16.msra.mxu0 %v5025
    %6863 = vmatpush.bf16.msra.mxu0 %v5015
    %6864 = vmatpush.bf16.msra.mxu0 %v5005
    %6865 = vmatpush.bf16.msra.mxu0 %v4995
    %6866 = vmatmul.bf16.gmra.mxu0 %v2636
    %v6867 = vpop.f32.mrf.mxu0
    %v6868 = vadd.f32 %v6855, %v6867
    %v6869 = vpop.f32.mrf.mxu0
    %6870 = vdwg.mxu0
    %6871 = vmatpush.bf16.msra.mxu0 %v5145
    %6872 = vmatpush.bf16.msra.mxu0 %v5135
    %6873 = vmatpush.bf16.msra.mxu0 %v5125
    %6874 = vmatpush.bf16.msra.mxu0 %v5115
    %6875 = vmatpush.bf16.msra.mxu0 %v5105
    %6876 = vmatpush.bf16.msra.mxu0 %v5095
    %6877 = vmatpush.bf16.msra.mxu0 %v5085
    %6878 = vmatpush.bf16.msra.mxu0 %v5075
    %6879 = vmatmul.bf16.gmra.mxu0 %v2637
    %v6880 = vpop.f32.mrf.mxu0
    %v6881 = vadd.f32 %v6868, %v6880
    %v6882 = vpop.f32.mrf.mxu0
    %6883 = vdwg.mxu0
    %6884 = vmatpush.bf16.msra.mxu0 %v5225
    %6885 = vmatpush.bf16.msra.mxu0 %v5215
    %6886 = vmatpush.bf16.msra.mxu0 %v5205
    %6887 = vmatpush.bf16.msra.mxu0 %v5195
    %6888 = vmatpush.bf16.msra.mxu0 %v5185
    %6889 = vmatpush.bf16.msra.mxu0 %v5175
    %6890 = vmatpush.bf16.msra.mxu0 %v5165
    %6891 = vmatpush.bf16.msra.mxu0 %v5155
    %6892 = vmatmul.bf16.gmra.mxu0 %v2638
    %v6893 = vpop.f32.mrf.mxu0
    %v6894 = vadd.f32 %v6881, %v6893
    %v6895 = vpop.f32.mrf.mxu0
    %6896 = vdwg.mxu0
    %6897 = vmatpush.bf16.msra.mxu0 %v5305
    %6898 = vmatpush.bf16.msra.mxu0 %v5295
    %6899 = vmatpush.bf16.msra.mxu0 %v5285
    %6900 = vmatpush.bf16.msra.mxu0 %v5275
    %6901 = vmatpush.bf16.msra.mxu0 %v5265
    %6902 = vmatpush.bf16.msra.mxu0 %v5255
    %6903 = vmatpush.bf16.msra.mxu0 %v5245
    %6904 = vmatpush.bf16.msra.mxu0 %v5235
    %6905 = vmatmul.bf16.gmra.mxu0 %v2639
    %v6906 = vpop.f32.mrf.mxu0
    %v6907 = vadd.f32 %v6894, %v6906
    %v6908 = vpop.f32.mrf.mxu0
    %6909 = vdwg.mxu0
    %6910 = vmatpush.bf16.msra.mxu0 %v5385
    %6911 = vmatpush.bf16.msra.mxu0 %v5375
    %6912 = vmatpush.bf16.msra.mxu0 %v5365
    %6913 = vmatpush.bf16.msra.mxu0 %v5355
    %6914 = vmatpush.bf16.msra.mxu0 %v5345
    %6915 = vmatpush.bf16.msra.mxu0 %v5335
    %6916 = vmatpush.bf16.msra.mxu0 %v5325
    %6917 = vmatpush.bf16.msra.mxu0 %v5315
    %6918 = vmatmul.bf16.gmra.mxu0 %v2640
    %v6919 = vpop.f32.mrf.mxu0
    %v6920 = vadd.f32 %v6907, %v6919
    %v6921 = vpop.f32.mrf.mxu0
    %6922 = vdwg.mxu0
    %6923 = vmatpush.bf16.msra.mxu0 %v5465
    %6924 = vmatpush.bf16.msra.mxu0 %v5455
    %6925 = vmatpush.bf16.msra.mxu0 %v5445
    %6926 = vmatpush.bf16.msra.mxu0 %v5435
    %6927 = vmatpush.bf16.msra.mxu0 %v5425
    %6928 = vmatpush.bf16.msra.mxu0 %v5415
    %6929 = vmatpush.bf16.msra.mxu0 %v5405
    %6930 = vmatpush.bf16.msra.mxu0 %v5395
    %6931 = vmatmul.bf16.gmra.mxu0 %v2641
    %v6932 = vpop.f32.mrf.mxu0
    %v6933 = vadd.f32 %v6920, %v6932
    %v6934 = vpop.f32.mrf.mxu0
    %6935 = vdwg.mxu0
    %v6936 = vmax.f32 %v6114, 0.0
    %v6937 = vmax.f32 %v6205, 0.0
    %v6938 = vmax.f32 %v6296, 0.0
    %v6939 = vmax.f32 %v6387, 0.0
    %v6940 = vmax.f32 %v6478, 0.0
    %v6941 = vmax.f32 %v6569, 0.0
    %v6942 = vmax.f32 %v6660, 0.0
    %v6943 = vmax.f32 %v6751, 0.0
    %v6944 = vmax.f32 %v6842, 0.0
    %v6945 = vmax.f32 %v6933, 0.0
    %v6946 = vpack.c.bf16 %v6936, %v6936
    %v6947 = vpack.c.bf16 %v6937, %v6937
    %v6948 = vpack.c.bf16 %v6938, %v6938
    %v6949 = vpack.c.bf16 %v6939, %v6939
    %v6950 = vpack.c.bf16 %v6940, %v6940
    %v6951 = vpack.c.bf16 %v6941, %v6941
    %v6952 = vpack.c.bf16 %v6942, %v6942
    %v6953 = vpack.c.bf16 %v6943, %v6943
    %v6954 = vpack.c.bf16 %v6944, %v6944
    %v6955 = vpack.c.bf16 %v6945, %v6945
    %v6956 = vld [vmem:[#allocation12] sm:$0xff]
    %v6957 = vld [vmem:[#allocation12 + $0x8] sm:$0xff]
    %v6958 = vld [vmem:[#allocation12 + $0x10] sm:$0xff]
    %v6959 = vld [vmem:[#allocation12 + $0x18] sm:$0xff]
    %v6960 = vld [vmem:[#allocation12 + $0x20] sm:$0xff]
    %v6961 = vld [vmem:[#allocation12 + $0x28] sm:$0xff]
    %v6962 = vld [vmem:[#allocation12 + $0x30] sm:$0xff]
    %v6963 = vld [vmem:[#allocation12 + $0x38] sm:$0xff]
    %v6964 = vld [vmem:[#allocation12 + $0x40] sm:$0xff]
    %v6965 = vld [vmem:[#allocation12 + $0x48] sm:$0xff]
    %v6966 = vld [vmem:[#allocation12 + $0x50] sm:$0xff]
    %v6967 = vld [vmem:[#allocation12 + $0x58] sm:$0xff]
    %v6968 = vld [vmem:[#allocation12 + $0x60] sm:$0xff]
    %v6969 = vld [vmem:[#allocation12 + $0x68] sm:$0xff]
    %v6970 = vld [vmem:[#allocation12 + $0x70] sm:$0xff]
    %v6971 = vld [vmem:[#allocation12 + $0x78] sm:$0xff]
    %v6972 = vld [vmem:[#allocation12 + $0x80] sm:$0xff]
    %v6973 = vld [vmem:[#allocation12 + $0x88] sm:$0xff]
    %v6974 = vld [vmem:[#allocation12 + $0x90] sm:$0xff]
    %v6975 = vld [vmem:[#allocation12 + $0x98] sm:$0xff]
    %v6976 = vld [vmem:[#allocation12 + $0xa0] sm:$0xff]
    %v6977 = vld [vmem:[#allocation12 + $0xa8] sm:$0xff]
    %v6978 = vld [vmem:[#allocation12 + $0xb0] sm:$0xff]
    %v6979 = vld [vmem:[#allocation12 + $0xb8] sm:$0xff]
    %v6980 = vld [vmem:[#allocation12 + $0xc0] sm:$0xff]
    %v6981 = vld [vmem:[#allocation12 + $0xc8] sm:$0xff]
    %v6982 = vld [vmem:[#allocation12 + $0xd0] sm:$0xff]
    %v6983 = vld [vmem:[#allocation12 + $0xd8] sm:$0xff]
    %v6984 = vld [vmem:[#allocation12 + $0xe0] sm:$0xff]
    %v6985 = vld [vmem:[#allocation12 + $0xe8] sm:$0xff]
    %v6986 = vld [vmem:[#allocation12 + $0xf0] sm:$0xff]
    %v6987 = vld [vmem:[#allocation12 + $0xf8] sm:$0xff]
    %v6988 = vld [vmem:[#allocation12 + $0x100] sm:$0xff]
    %v6989 = vld [vmem:[#allocation12 + $0x108] sm:$0xff]
    %v6990 = vld [vmem:[#allocation12 + $0x110] sm:$0xff]
    %v6991 = vld [vmem:[#allocation12 + $0x118] sm:$0xff]
    %v6992 = vld [vmem:[#allocation12 + $0x120] sm:$0xff]
    %v6993 = vld [vmem:[#allocation12 + $0x128] sm:$0xff]
    %v6994 = vld [vmem:[#allocation12 + $0x130] sm:$0xff]
    %v6995 = vld [vmem:[#allocation12 + $0x138] sm:$0xff]
    %v6996 = vld [vmem:[#allocation12 + $0x140] sm:$0xff]
    %v6997 = vld [vmem:[#allocation12 + $0x148] sm:$0xff]
    %v6998 = vld [vmem:[#allocation12 + $0x150] sm:$0xff]
    %v6999 = vld [vmem:[#allocation12 + $0x158] sm:$0xff]
    %v7000 = vld [vmem:[#allocation12 + $0x160] sm:$0xff]
    %v7001 = vld [vmem:[#allocation12 + $0x168] sm:$0xff]
    %v7002 = vld [vmem:[#allocation12 + $0x170] sm:$0xff]
    %v7003 = vld [vmem:[#allocation12 + $0x178] sm:$0xff]
    %v7004 = vld [vmem:[#allocation12 + $0x180] sm:$0xff]
    %v7005 = vld [vmem:[#allocation12 + $0x188] sm:$0xff]
    %v7006 = vld [vmem:[#allocation12 + $0x190] sm:$0xff]
    %v7007 = vld [vmem:[#allocation12 + $0x198] sm:$0xff]
    %v7008 = vld [vmem:[#allocation12 + $0x1a0] sm:$0xff]
    %v7009 = vld [vmem:[#allocation12 + $0x1a8] sm:$0xff]
    %v7010 = vld [vmem:[#allocation12 + $0x1b0] sm:$0xff]
    %v7011 = vld [vmem:[#allocation12 + $0x1b8] sm:$0xff]
    %v7012 = vld [vmem:[#allocation12 + $0x1c0] sm:$0xff]
    %v7013 = vld [vmem:[#allocation12 + $0x1c8] sm:$0xff]
    %v7014 = vld [vmem:[#allocation12 + $0x1d0] sm:$0xff]
    %v7015 = vld [vmem:[#allocation12 + $0x1d8] sm:$0xff]
    %v7016 = vld [vmem:[#allocation12 + $0x1e0] sm:$0xff]
    %v7017 = vld [vmem:[#allocation12 + $0x1e8] sm:$0xff]
    %v7018 = vld [vmem:[#allocation12 + $0x1f0] sm:$0xff]
    %v7019 = vld [vmem:[#allocation12 + $0x1f8] sm:$0xff]
    %v7020 = vld [vmem:[#allocation12 + $0x200] sm:$0xff]
    %v7021 = vld [vmem:[#allocation12 + $0x208] sm:$0xff]
    %v7022 = vld [vmem:[#allocation12 + $0x210] sm:$0xff]
    %v7023 = vld [vmem:[#allocation12 + $0x218] sm:$0xff]
    %v7024 = vld [vmem:[#allocation12 + $0x220] sm:$0xff]
    %v7025 = vld [vmem:[#allocation12 + $0x228] sm:$0xff]
    %v7026 = vld [vmem:[#allocation12 + $0x230] sm:$0xff]
    %v7027 = vld [vmem:[#allocation12 + $0x238] sm:$0xff]
    %v7028 = vld [vmem:[#allocation12 + $0x240] sm:$0xff]
    %v7029 = vld [vmem:[#allocation12 + $0x248] sm:$0xff]
    %v7030 = vld [vmem:[#allocation12 + $0x250] sm:$0xff]
    %v7031 = vld [vmem:[#allocation12 + $0x258] sm:$0xff]
    %v7032 = vld [vmem:[#allocation12 + $0x260] sm:$0xff]
    %v7033 = vld [vmem:[#allocation12 + $0x268] sm:$0xff]
    %v7034 = vld [vmem:[#allocation12 + $0x270] sm:$0xff]
    %v7035 = vld [vmem:[#allocation12 + $0x278] sm:$0xff]
    %v7036 = vld [vmem:[#allocation12 + $0x280] sm:$0xff]
    %v7037 = vld [vmem:[#allocation12 + $0x288] sm:$0xff]
    %v7038 = vld [vmem:[#allocation12 + $0x290] sm:$0xff]
    %v7039 = vld [vmem:[#allocation12 + $0x298] sm:$0xff]
    %v7040 = vld [vmem:[#allocation12 + $0x2a0] sm:$0xff]
    %v7041 = vld [vmem:[#allocation12 + $0x2a8] sm:$0xff]
    %v7042 = vld [vmem:[#allocation12 + $0x2b0] sm:$0xff]
    %v7043 = vld [vmem:[#allocation12 + $0x2b8] sm:$0xff]
    %v7044 = vld [vmem:[#allocation12 + $0x2c0] sm:$0xff]
    %v7045 = vld [vmem:[#allocation12 + $0x2c8] sm:$0xff]
    %v7046 = vld [vmem:[#allocation12 + $0x2d0] sm:$0xff]
    %v7047 = vld [vmem:[#allocation12 + $0x2d8] sm:$0xff]
    %v7048 = vld [vmem:[#allocation12 + $0x2e0] sm:$0xff]
    %v7049 = vld [vmem:[#allocation12 + $0x2e8] sm:$0xff]
    %v7050 = vld [vmem:[#allocation12 + $0x2f0] sm:$0xff]
    %v7051 = vld [vmem:[#allocation12 + $0x2f8] sm:$0xff]
    %v7052 = vld [vmem:[#allocation12 + $0x300] sm:$0xff]
    %v7053 = vld [vmem:[#allocation12 + $0x308] sm:$0xff]
    %v7054 = vld [vmem:[#allocation12 + $0x310] sm:$0xff]
    %v7055 = vld [vmem:[#allocation12 + $0x318] sm:$0xff]
    %v7056 = vld [vmem:[#allocation12 + $0x320] sm:$0xff]
    %v7057 = vld [vmem:[#allocation12 + $0x328] sm:$0xff]
    %v7058 = vld [vmem:[#allocation12 + $0x330] sm:$0xff]
    %v7059 = vld [vmem:[#allocation12 + $0x338] sm:$0xff]
    %v7060 = vld [vmem:[#allocation12 + $0x340] sm:$0xff]
    %v7061 = vld [vmem:[#allocation12 + $0x348] sm:$0xff]
    %v7062 = vld [vmem:[#allocation12 + $0x350] sm:$0xff]
    %v7063 = vld [vmem:[#allocation12 + $0x358] sm:$0xff]
    %v7064 = vld [vmem:[#allocation12 + $0x360] sm:$0xff]
    %v7065 = vld [vmem:[#allocation12 + $0x368] sm:$0xff]
    %v7066 = vld [vmem:[#allocation12 + $0x370] sm:$0xff]
    %v7067 = vld [vmem:[#allocation12 + $0x378] sm:$0xff]
    %v7068 = vld [vmem:[#allocation12 + $0x380] sm:$0xff]
    %v7069 = vld [vmem:[#allocation12 + $0x388] sm:$0xff]
    %v7070 = vld [vmem:[#allocation12 + $0x390] sm:$0xff]
    %v7071 = vld [vmem:[#allocation12 + $0x398] sm:$0xff]
    %v7072 = vld [vmem:[#allocation12 + $0x3a0] sm:$0xff]
    %v7073 = vld [vmem:[#allocation12 + $0x3a8] sm:$0xff]
    %v7074 = vld [vmem:[#allocation12 + $0x3b0] sm:$0xff]
    %v7075 = vld [vmem:[#allocation12 + $0x3b8] sm:$0xff]
    %v7076 = vld [vmem:[#allocation12 + $0x3c0] sm:$0xff]
    %v7077 = vld [vmem:[#allocation12 + $0x3c8] sm:$0xff]
    %v7078 = vld [vmem:[#allocation12 + $0x3d0] sm:$0xff]
    %v7079 = vld [vmem:[#allocation12 + $0x3d8] sm:$0xff]
    %v7080 = vld [vmem:[#allocation12 + $0x3e0] sm:$0xff]
    %v7081 = vld [vmem:[#allocation12 + $0x3e8] sm:$0xff]
    %v7082 = vld [vmem:[#allocation12 + $0x3f0] sm:$0xff]
    %v7083 = vld [vmem:[#allocation12 + $0x3f8] sm:$0xff]
    %v7084 = vld [vmem:[#allocation12 + $0x400] sm:$0xff]
    %v7085 = vld [vmem:[#allocation12 + $0x408] sm:$0xff]
    %v7086 = vld [vmem:[#allocation12 + $0x410] sm:$0xff]
    %v7087 = vld [vmem:[#allocation12 + $0x418] sm:$0xff]
    %v7088 = vld [vmem:[#allocation12 + $0x420] sm:$0xff]
    %v7089 = vld [vmem:[#allocation12 + $0x428] sm:$0xff]
    %v7090 = vld [vmem:[#allocation12 + $0x430] sm:$0xff]
    %v7091 = vld [vmem:[#allocation12 + $0x438] sm:$0xff]
    %v7092 = vld [vmem:[#allocation12 + $0x440] sm:$0xff]
    %v7093 = vld [vmem:[#allocation12 + $0x448] sm:$0xff]
    %v7094 = vld [vmem:[#allocation12 + $0x450] sm:$0xff]
    %v7095 = vld [vmem:[#allocation12 + $0x458] sm:$0xff]
    %v7096 = vld [vmem:[#allocation12 + $0x460] sm:$0xff]
    %v7097 = vld [vmem:[#allocation12 + $0x468] sm:$0xff]
    %v7098 = vld [vmem:[#allocation12 + $0x470] sm:$0xff]
    %v7099 = vld [vmem:[#allocation12 + $0x478] sm:$0xff]
    %v7100 = vld [vmem:[#allocation12 + $0x480] sm:$0xff]
    %v7101 = vld [vmem:[#allocation12 + $0x488] sm:$0xff]
    %v7102 = vld [vmem:[#allocation12 + $0x490] sm:$0xff]
    %v7103 = vld [vmem:[#allocation12 + $0x498] sm:$0xff]
    %v7104 = vld [vmem:[#allocation12 + $0x4a0] sm:$0xff]
    %v7105 = vld [vmem:[#allocation12 + $0x4a8] sm:$0xff]
    %v7106 = vld [vmem:[#allocation12 + $0x4b0] sm:$0xff]
    %v7107 = vld [vmem:[#allocation12 + $0x4b8] sm:$0xff]
    %v7108 = vld [vmem:[#allocation12 + $0x4c0] sm:$0xff]
    %v7109 = vld [vmem:[#allocation12 + $0x4c8] sm:$0xff]
    %v7110 = vld [vmem:[#allocation12 + $0x4d0] sm:$0xff]
    %v7111 = vld [vmem:[#allocation12 + $0x4d8] sm:$0xff]
    %v7112 = vld [vmem:[#allocation12 + $0x4e0] sm:$0xff]
    %v7113 = vld [vmem:[#allocation12 + $0x4e8] sm:$0xff]
    %v7114 = vld [vmem:[#allocation12 + $0x4f0] sm:$0xff]
    %v7115 = vld [vmem:[#allocation12 + $0x4f8] sm:$0xff]
    %v7116 = vld [vmem:[#allocation12 + $0x500] sm:$0xff]
    %v7117 = vld [vmem:[#allocation12 + $0x508] sm:$0xff]
    %v7118 = vld [vmem:[#allocation12 + $0x510] sm:$0xff]
    %v7119 = vld [vmem:[#allocation12 + $0x518] sm:$0xff]
    %v7120 = vld [vmem:[#allocation12 + $0x520] sm:$0xff]
    %v7121 = vld [vmem:[#allocation12 + $0x528] sm:$0xff]
    %v7122 = vld [vmem:[#allocation12 + $0x530] sm:$0xff]
    %v7123 = vld [vmem:[#allocation12 + $0x538] sm:$0xff]
    %v7124 = vld [vmem:[#allocation12 + $0x540] sm:$0xff]
    %v7125 = vld [vmem:[#allocation12 + $0x548] sm:$0xff]
    %v7126 = vld [vmem:[#allocation12 + $0x550] sm:$0xff]
    %v7127 = vld [vmem:[#allocation12 + $0x558] sm:$0xff]
    %v7128 = vld [vmem:[#allocation12 + $0x560] sm:$0xff]
    %v7129 = vld [vmem:[#allocation12 + $0x568] sm:$0xff]
    %v7130 = vld [vmem:[#allocation12 + $0x570] sm:$0xff]
    %v7131 = vld [vmem:[#allocation12 + $0x578] sm:$0xff]
    %v7132 = vld [vmem:[#allocation12 + $0x580] sm:$0xff]
    %v7133 = vld [vmem:[#allocation12 + $0x588] sm:$0xff]
    %v7134 = vld [vmem:[#allocation12 + $0x590] sm:$0xff]
    %v7135 = vld [vmem:[#allocation12 + $0x598] sm:$0xff]
    %v7136 = vld [vmem:[#allocation12 + $0x5a0] sm:$0xff]
    %v7137 = vld [vmem:[#allocation12 + $0x5a8] sm:$0xff]
    %v7138 = vld [vmem:[#allocation12 + $0x5b0] sm:$0xff]
    %v7139 = vld [vmem:[#allocation12 + $0x5b8] sm:$0xff]
    %v7140 = vld [vmem:[#allocation12 + $0x5c0] sm:$0xff]
    %v7141 = vld [vmem:[#allocation12 + $0x5c8] sm:$0xff]
    %v7142 = vld [vmem:[#allocation12 + $0x5d0] sm:$0xff]
    %v7143 = vld [vmem:[#allocation12 + $0x5d8] sm:$0xff]
    %v7144 = vld [vmem:[#allocation12 + $0x5e0] sm:$0xff]
    %v7145 = vld [vmem:[#allocation12 + $0x5e8] sm:$0xff]
    %v7146 = vld [vmem:[#allocation12 + $0x5f0] sm:$0xff]
    %v7147 = vld [vmem:[#allocation12 + $0x5f8] sm:$0xff]
    %v7148 = vld [vmem:[#allocation12 + $0x600] sm:$0xff]
    %v7149 = vld [vmem:[#allocation12 + $0x608] sm:$0xff]
    %v7150 = vld [vmem:[#allocation12 + $0x610] sm:$0xff]
    %v7151 = vld [vmem:[#allocation12 + $0x618] sm:$0xff]
    %v7152 = vld [vmem:[#allocation12 + $0x620] sm:$0xff]
    %v7153 = vld [vmem:[#allocation12 + $0x628] sm:$0xff]
    %v7154 = vld [vmem:[#allocation12 + $0x630] sm:$0xff]
    %v7155 = vld [vmem:[#allocation12 + $0x638] sm:$0xff]
    %v7156 = vld [vmem:[#allocation12 + $0x640] sm:$0xff]
    %v7157 = vld [vmem:[#allocation12 + $0x648] sm:$0xff]
    %v7158 = vld [vmem:[#allocation12 + $0x650] sm:$0xff]
    %v7159 = vld [vmem:[#allocation12 + $0x658] sm:$0xff]
    %v7160 = vld [vmem:[#allocation12 + $0x660] sm:$0xff]
    %v7161 = vld [vmem:[#allocation12 + $0x668] sm:$0xff]
    %v7162 = vld [vmem:[#allocation12 + $0x670] sm:$0xff]
    %v7163 = vld [vmem:[#allocation12 + $0x678] sm:$0xff]
    %v7164 = vld [vmem:[#allocation12 + $0x680] sm:$0xff]
    %v7165 = vld [vmem:[#allocation12 + $0x688] sm:$0xff]
    %v7166 = vld [vmem:[#allocation12 + $0x690] sm:$0xff]
    %v7167 = vld [vmem:[#allocation12 + $0x698] sm:$0xff]
    %v7168 = vld [vmem:[#allocation12 + $0x6a0] sm:$0xff]
    %v7169 = vld [vmem:[#allocation12 + $0x6a8] sm:$0xff]
    %v7170 = vld [vmem:[#allocation12 + $0x6b0] sm:$0xff]
    %v7171 = vld [vmem:[#allocation12 + $0x6b8] sm:$0xff]
    %v7172 = vld [vmem:[#allocation12 + $0x6c0] sm:$0xff]
    %v7173 = vld [vmem:[#allocation12 + $0x6c8] sm:$0xff]
    %v7174 = vld [vmem:[#allocation12 + $0x6d0] sm:$0xff]
    %v7175 = vld [vmem:[#allocation12 + $0x6d8] sm:$0xff]
    %v7176 = vld [vmem:[#allocation12 + $0x6e0] sm:$0xff]
    %v7177 = vld [vmem:[#allocation12 + $0x6e8] sm:$0xff]
    %v7178 = vld [vmem:[#allocation12 + $0x6f0] sm:$0xff]
    %v7179 = vld [vmem:[#allocation12 + $0x6f8] sm:$0xff]
    %v7180 = vld [vmem:[#allocation12 + $0x700] sm:$0xff]
    %v7181 = vld [vmem:[#allocation12 + $0x708] sm:$0xff]
    %v7182 = vld [vmem:[#allocation12 + $0x710] sm:$0xff]
    %v7183 = vld [vmem:[#allocation12 + $0x718] sm:$0xff]
    %v7184 = vld [vmem:[#allocation12 + $0x720] sm:$0xff]
    %v7185 = vld [vmem:[#allocation12 + $0x728] sm:$0xff]
    %v7186 = vld [vmem:[#allocation12 + $0x730] sm:$0xff]
    %v7187 = vld [vmem:[#allocation12 + $0x738] sm:$0xff]
    %v7188 = vld [vmem:[#allocation12 + $0x740] sm:$0xff]
    %v7189 = vld [vmem:[#allocation12 + $0x748] sm:$0xff]
    %v7190 = vld [vmem:[#allocation12 + $0x750] sm:$0xff]
    %v7191 = vld [vmem:[#allocation12 + $0x758] sm:$0xff]
    %v7192 = vld [vmem:[#allocation12 + $0x760] sm:$0xff]
    %v7193 = vld [vmem:[#allocation12 + $0x768] sm:$0xff]
    %v7194 = vld [vmem:[#allocation12 + $0x770] sm:$0xff]
    %v7195 = vld [vmem:[#allocation12 + $0x778] sm:$0xff]
    %v7196 = vld [vmem:[#allocation12 + $0x780] sm:$0xff]
    %v7197 = vld [vmem:[#allocation12 + $0x788] sm:$0xff]
    %v7198 = vld [vmem:[#allocation12 + $0x790] sm:$0xff]
    %v7199 = vld [vmem:[#allocation12 + $0x798] sm:$0xff]
    %v7200 = vld [vmem:[#allocation12 + $0x7a0] sm:$0xff]
    %v7201 = vld [vmem:[#allocation12 + $0x7a8] sm:$0xff]
    %v7202 = vld [vmem:[#allocation12 + $0x7b0] sm:$0xff]
    %v7203 = vld [vmem:[#allocation12 + $0x7b8] sm:$0xff]
    %v7204 = vld [vmem:[#allocation12 + $0x7c0] sm:$0xff]
    %v7205 = vld [vmem:[#allocation12 + $0x7c8] sm:$0xff]
    %v7206 = vld [vmem:[#allocation12 + $0x7d0] sm:$0xff]
    %v7207 = vld [vmem:[#allocation12 + $0x7d8] sm:$0xff]
    %v7208 = vld [vmem:[#allocation12 + $0x7e0] sm:$0xff]
    %v7209 = vld [vmem:[#allocation12 + $0x7e8] sm:$0xff]
    %v7210 = vld [vmem:[#allocation12 + $0x7f0] sm:$0xff]
    %v7211 = vld [vmem:[#allocation12 + $0x7f8] sm:$0xff]
    %v7212 = vld [vmem:[#allocation12 + $0x800] sm:$0xff]
    %v7213 = vld [vmem:[#allocation12 + $0x808] sm:$0xff]
    %v7214 = vld [vmem:[#allocation12 + $0x810] sm:$0xff]
    %v7215 = vld [vmem:[#allocation12 + $0x818] sm:$0xff]
    %v7216 = vld [vmem:[#allocation12 + $0x820] sm:$0xff]
    %v7217 = vld [vmem:[#allocation12 + $0x828] sm:$0xff]
    %v7218 = vld [vmem:[#allocation12 + $0x830] sm:$0xff]
    %v7219 = vld [vmem:[#allocation12 + $0x838] sm:$0xff]
    %v7220 = vld [vmem:[#allocation12 + $0x840] sm:$0xff]
    %v7221 = vld [vmem:[#allocation12 + $0x848] sm:$0xff]
    %v7222 = vld [vmem:[#allocation12 + $0x850] sm:$0xff]
    %v7223 = vld [vmem:[#allocation12 + $0x858] sm:$0xff]
    %v7224 = vld [vmem:[#allocation12 + $0x860] sm:$0xff]
    %v7225 = vld [vmem:[#allocation12 + $0x868] sm:$0xff]
    %v7226 = vld [vmem:[#allocation12 + $0x870] sm:$0xff]
    %v7227 = vld [vmem:[#allocation12 + $0x878] sm:$0xff]
    %v7228 = vld [vmem:[#allocation12 + $0x880] sm:$0xff]
    %v7229 = vld [vmem:[#allocation12 + $0x888] sm:$0xff]
    %v7230 = vld [vmem:[#allocation12 + $0x890] sm:$0xff]
    %v7231 = vld [vmem:[#allocation12 + $0x898] sm:$0xff]
    %v7232 = vld [vmem:[#allocation12 + $0x8a0] sm:$0xff]
    %v7233 = vld [vmem:[#allocation12 + $0x8a8] sm:$0xff]
    %v7234 = vld [vmem:[#allocation12 + $0x8b0] sm:$0xff]
    %v7235 = vld [vmem:[#allocation12 + $0x8b8] sm:$0xff]
    %v7236 = vld [vmem:[#allocation12 + $0x8c0] sm:$0xff]
    %v7237 = vld [vmem:[#allocation12 + $0x8c8] sm:$0xff]
    %v7238 = vld [vmem:[#allocation12 + $0x8d0] sm:$0xff]
    %v7239 = vld [vmem:[#allocation12 + $0x8d8] sm:$0xff]
    %v7240 = vld [vmem:[#allocation12 + $0x8e0] sm:$0xff]
    %v7241 = vld [vmem:[#allocation12 + $0x8e8] sm:$0xff]
    %v7242 = vld [vmem:[#allocation12 + $0x8f0] sm:$0xff]
    %v7243 = vld [vmem:[#allocation12 + $0x8f8] sm:$0xff]
    %v7244 = vld [vmem:[#allocation12 + $0x900] sm:$0xff]
    %v7245 = vld [vmem:[#allocation12 + $0x908] sm:$0xff]
    %v7246 = vld [vmem:[#allocation12 + $0x910] sm:$0xff]
    %v7247 = vld [vmem:[#allocation12 + $0x918] sm:$0xff]
    %v7248 = vld [vmem:[#allocation12 + $0x920] sm:$0xff]
    %v7249 = vld [vmem:[#allocation12 + $0x928] sm:$0xff]
    %v7250 = vld [vmem:[#allocation12 + $0x930] sm:$0xff]
    %v7251 = vld [vmem:[#allocation12 + $0x938] sm:$0xff]
    %v7252 = vld [vmem:[#allocation12 + $0x940] sm:$0xff]
    %v7253 = vld [vmem:[#allocation12 + $0x948] sm:$0xff]
    %v7254 = vld [vmem:[#allocation12 + $0x950] sm:$0xff]
    %v7255 = vld [vmem:[#allocation12 + $0x958] sm:$0xff]
    %v7256 = vld [vmem:[#allocation12 + $0x960] sm:$0xff]
    %v7257 = vld [vmem:[#allocation12 + $0x968] sm:$0xff]
    %v7258 = vld [vmem:[#allocation12 + $0x970] sm:$0xff]
    %v7259 = vld [vmem:[#allocation12 + $0x978] sm:$0xff]
    %v7260 = vld [vmem:[#allocation12 + $0x980] sm:$0xff]
    %v7261 = vld [vmem:[#allocation12 + $0x988] sm:$0xff]
    %v7262 = vld [vmem:[#allocation12 + $0x990] sm:$0xff]
    %v7263 = vld [vmem:[#allocation12 + $0x998] sm:$0xff]
    %v7264 = vld [vmem:[#allocation12 + $0x9a0] sm:$0xff]
    %v7265 = vld [vmem:[#allocation12 + $0x9a8] sm:$0xff]
    %v7266 = vld [vmem:[#allocation12 + $0x9b0] sm:$0xff]
    %v7267 = vld [vmem:[#allocation12 + $0x9b8] sm:$0xff]
    %v7268 = vld [vmem:[#allocation12 + $0x9c0] sm:$0xff]
    %v7269 = vld [vmem:[#allocation12 + $0x9c8] sm:$0xff]
    %v7270 = vld [vmem:[#allocation12 + $0x9d0] sm:$0xff]
    %v7271 = vld [vmem:[#allocation12 + $0x9d8] sm:$0xff]
    %v7272 = vld [vmem:[#allocation12 + $0x9e0] sm:$0xff]
    %v7273 = vld [vmem:[#allocation12 + $0x9e8] sm:$0xff]
    %v7274 = vld [vmem:[#allocation12 + $0x9f0] sm:$0xff]
    %v7275 = vld [vmem:[#allocation12 + $0x9f8] sm:$0xff]
    %v7276 = vld [vmem:[#allocation13] sm:$0xf]
    %v7278 = vperm.slane %v7276, 0
    %v7279 = vperm.slane %v7276, 1
    %v7280 = vperm.slane %v7276, 2
    %v7281 = vperm.slane %v7276, 3
    %v7606 = vunpack.c.l.b16 %v6956
    %v7607 = vunpack.c.h.b16 %v6956
    %v7608 = vunpack.c.l.b16 %v6957
    %v7609 = vunpack.c.h.b16 %v6957
    %v7610 = vunpack.c.l.b16 %v6958
    %v7611 = vunpack.c.h.b16 %v6958
    %v7612 = vunpack.c.l.b16 %v6959
    %v7613 = vunpack.c.h.b16 %v6959
    %v7614 = vunpack.c.l.b16 %v6960
    %v7615 = vunpack.c.h.b16 %v6960
    %v7616 = vunpack.c.l.b16 %v6961
    %v7617 = vunpack.c.h.b16 %v6961
    %v7618 = vunpack.c.l.b16 %v6962
    %v7619 = vunpack.c.h.b16 %v6962
    %v7620 = vunpack.c.l.b16 %v6963
    %v7621 = vunpack.c.h.b16 %v6963
    %v7622 = vunpack.c.l.b16 %v6964
    %v7623 = vunpack.c.h.b16 %v6964
    %v7624 = vunpack.c.l.b16 %v6965
    %v7625 = vunpack.c.h.b16 %v6965
    %v7626 = vunpack.c.l.b16 %v6966
    %v7627 = vunpack.c.h.b16 %v6966
    %v7628 = vunpack.c.l.b16 %v6967
    %v7629 = vunpack.c.h.b16 %v6967
    %v7630 = vunpack.c.l.b16 %v6968
    %v7631 = vunpack.c.h.b16 %v6968
    %v7632 = vunpack.c.l.b16 %v6969
    %v7633 = vunpack.c.h.b16 %v6969
    %v7634 = vunpack.c.l.b16 %v6970
    %v7635 = vunpack.c.h.b16 %v6970
    %v7636 = vunpack.c.l.b16 %v6971
    %v7637 = vunpack.c.h.b16 %v6971
    %v7638 = vunpack.c.l.b16 %v6972
    %v7639 = vunpack.c.h.b16 %v6972
    %v7640 = vunpack.c.l.b16 %v6973
    %v7641 = vunpack.c.h.b16 %v6973
    %v7642 = vunpack.c.l.b16 %v6974
    %v7643 = vunpack.c.h.b16 %v6974
    %v7644 = vunpack.c.l.b16 %v6975
    %v7645 = vunpack.c.h.b16 %v6975
    %v7646 = vunpack.c.l.b16 %v6976
    %v7647 = vunpack.c.h.b16 %v6976
    %v7648 = vunpack.c.l.b16 %v6977
    %v7649 = vunpack.c.h.b16 %v6977
    %v7650 = vunpack.c.l.b16 %v6978
    %v7651 = vunpack.c.h.b16 %v6978
    %v7652 = vunpack.c.l.b16 %v6979
    %v7653 = vunpack.c.h.b16 %v6979
    %v7654 = vunpack.c.l.b16 %v6980
    %v7655 = vunpack.c.h.b16 %v6980
    %v7656 = vunpack.c.l.b16 %v6981
    %v7657 = vunpack.c.h.b16 %v6981
    %v7658 = vunpack.c.l.b16 %v6982
    %v7659 = vunpack.c.h.b16 %v6982
    %v7660 = vunpack.c.l.b16 %v6983
    %v7661 = vunpack.c.h.b16 %v6983
    %v7662 = vunpack.c.l.b16 %v6984
    %v7663 = vunpack.c.h.b16 %v6984
    %v7664 = vunpack.c.l.b16 %v6985
    %v7665 = vunpack.c.h.b16 %v6985
    %v7666 = vunpack.c.l.b16 %v6986
    %v7667 = vunpack.c.h.b16 %v6986
    %v7668 = vunpack.c.l.b16 %v6987
    %v7669 = vunpack.c.h.b16 %v6987
    %v7670 = vunpack.c.l.b16 %v6988
    %v7671 = vunpack.c.h.b16 %v6988
    %v7672 = vunpack.c.l.b16 %v6989
    %v7673 = vunpack.c.h.b16 %v6989
    %v7674 = vunpack.c.l.b16 %v6990
    %v7675 = vunpack.c.h.b16 %v6990
    %v7676 = vunpack.c.l.b16 %v6991
    %v7677 = vunpack.c.h.b16 %v6991
    %v7678 = vunpack.c.l.b16 %v6992
    %v7679 = vunpack.c.h.b16 %v6992
    %v7680 = vunpack.c.l.b16 %v6993
    %v7681 = vunpack.c.h.b16 %v6993
    %v7682 = vunpack.c.l.b16 %v6994
    %v7683 = vunpack.c.h.b16 %v6994
    %v7684 = vunpack.c.l.b16 %v6995
    %v7685 = vunpack.c.h.b16 %v6995
    %v7686 = vunpack.c.l.b16 %v6996
    %v7687 = vunpack.c.h.b16 %v6996
    %v7688 = vunpack.c.l.b16 %v6997
    %v7689 = vunpack.c.h.b16 %v6997
    %v7690 = vunpack.c.l.b16 %v6998
    %v7691 = vunpack.c.h.b16 %v6998
    %v7692 = vunpack.c.l.b16 %v6999
    %v7693 = vunpack.c.h.b16 %v6999
    %v7694 = vunpack.c.l.b16 %v7000
    %v7695 = vunpack.c.h.b16 %v7000
    %v7696 = vunpack.c.l.b16 %v7001
    %v7697 = vunpack.c.h.b16 %v7001
    %v7698 = vunpack.c.l.b16 %v7002
    %v7699 = vunpack.c.h.b16 %v7002
    %v7700 = vunpack.c.l.b16 %v7003
    %v7701 = vunpack.c.h.b16 %v7003
    %v7702 = vunpack.c.l.b16 %v7004
    %v7703 = vunpack.c.h.b16 %v7004
    %v7704 = vunpack.c.l.b16 %v7005
    %v7705 = vunpack.c.h.b16 %v7005
    %v7706 = vunpack.c.l.b16 %v7006
    %v7707 = vunpack.c.h.b16 %v7006
    %v7708 = vunpack.c.l.b16 %v7007
    %v7709 = vunpack.c.h.b16 %v7007
    %v7710 = vunpack.c.l.b16 %v7008
    %v7711 = vunpack.c.h.b16 %v7008
    %v7712 = vunpack.c.l.b16 %v7009
    %v7713 = vunpack.c.h.b16 %v7009
    %v7714 = vunpack.c.l.b16 %v7010
    %v7715 = vunpack.c.h.b16 %v7010
    %v7716 = vunpack.c.l.b16 %v7011
    %v7717 = vunpack.c.h.b16 %v7011
    %v7718 = vunpack.c.l.b16 %v7012
    %v7719 = vunpack.c.h.b16 %v7012
    %v7720 = vunpack.c.l.b16 %v7013
    %v7721 = vunpack.c.h.b16 %v7013
    %v7722 = vunpack.c.l.b16 %v7014
    %v7723 = vunpack.c.h.b16 %v7014
    %v7724 = vunpack.c.l.b16 %v7015
    %v7725 = vunpack.c.h.b16 %v7015
    %v7726 = vunpack.c.l.b16 %v7016
    %v7727 = vunpack.c.h.b16 %v7016
    %v7728 = vunpack.c.l.b16 %v7017
    %v7729 = vunpack.c.h.b16 %v7017
    %v7730 = vunpack.c.l.b16 %v7018
    %v7731 = vunpack.c.h.b16 %v7018
    %v7732 = vunpack.c.l.b16 %v7019
    %v7733 = vunpack.c.h.b16 %v7019
    %v7734 = vunpack.c.l.b16 %v7020
    %v7735 = vunpack.c.h.b16 %v7020
    %v7736 = vunpack.c.l.b16 %v7021
    %v7737 = vunpack.c.h.b16 %v7021
    %v7738 = vunpack.c.l.b16 %v7022
    %v7739 = vunpack.c.h.b16 %v7022
    %v7740 = vunpack.c.l.b16 %v7023
    %v7741 = vunpack.c.h.b16 %v7023
    %v7742 = vunpack.c.l.b16 %v7024
    %v7743 = vunpack.c.h.b16 %v7024
    %v7744 = vunpack.c.l.b16 %v7025
    %v7745 = vunpack.c.h.b16 %v7025
    %v7746 = vunpack.c.l.b16 %v7026
    %v7747 = vunpack.c.h.b16 %v7026
    %v7748 = vunpack.c.l.b16 %v7027
    %v7749 = vunpack.c.h.b16 %v7027
    %v7750 = vunpack.c.l.b16 %v7028
    %v7751 = vunpack.c.h.b16 %v7028
    %v7752 = vunpack.c.l.b16 %v7029
    %v7753 = vunpack.c.h.b16 %v7029
    %v7754 = vunpack.c.l.b16 %v7030
    %v7755 = vunpack.c.h.b16 %v7030
    %v7756 = vunpack.c.l.b16 %v7031
    %v7757 = vunpack.c.h.b16 %v7031
    %v7758 = vunpack.c.l.b16 %v7032
    %v7759 = vunpack.c.h.b16 %v7032
    %v7760 = vunpack.c.l.b16 %v7033
    %v7761 = vunpack.c.h.b16 %v7033
    %v7762 = vunpack.c.l.b16 %v7034
    %v7763 = vunpack.c.h.b16 %v7034
    %v7764 = vunpack.c.l.b16 %v7035
    %v7765 = vunpack.c.h.b16 %v7035
    %v7766 = vunpack.c.l.b16 %v7036
    %v7767 = vunpack.c.h.b16 %v7036
    %v7768 = vunpack.c.l.b16 %v7037
    %v7769 = vunpack.c.h.b16 %v7037
    %v7770 = vunpack.c.l.b16 %v7038
    %v7771 = vunpack.c.h.b16 %v7038
    %v7772 = vunpack.c.l.b16 %v7039
    %v7773 = vunpack.c.h.b16 %v7039
    %v7774 = vunpack.c.l.b16 %v7040
    %v7775 = vunpack.c.h.b16 %v7040
    %v7776 = vunpack.c.l.b16 %v7041
    %v7777 = vunpack.c.h.b16 %v7041
    %v7778 = vunpack.c.l.b16 %v7042
    %v7779 = vunpack.c.h.b16 %v7042
    %v7780 = vunpack.c.l.b16 %v7043
    %v7781 = vunpack.c.h.b16 %v7043
    %v7782 = vunpack.c.l.b16 %v7044
    %v7783 = vunpack.c.h.b16 %v7044
    %v7784 = vunpack.c.l.b16 %v7045
    %v7785 = vunpack.c.h.b16 %v7045
    %v7786 = vunpack.c.l.b16 %v7046
    %v7787 = vunpack.c.h.b16 %v7046
    %v7788 = vunpack.c.l.b16 %v7047
    %v7789 = vunpack.c.h.b16 %v7047
    %v7790 = vunpack.c.l.b16 %v7048
    %v7791 = vunpack.c.h.b16 %v7048
    %v7792 = vunpack.c.l.b16 %v7049
    %v7793 = vunpack.c.h.b16 %v7049
    %v7794 = vunpack.c.l.b16 %v7050
    %v7795 = vunpack.c.h.b16 %v7050
    %v7796 = vunpack.c.l.b16 %v7051
    %v7797 = vunpack.c.h.b16 %v7051
    %v7798 = vunpack.c.l.b16 %v7052
    %v7799 = vunpack.c.h.b16 %v7052
    %v7800 = vunpack.c.l.b16 %v7053
    %v7801 = vunpack.c.h.b16 %v7053
    %v7802 = vunpack.c.l.b16 %v7054
    %v7803 = vunpack.c.h.b16 %v7054
    %v7804 = vunpack.c.l.b16 %v7055
    %v7805 = vunpack.c.h.b16 %v7055
    %v7806 = vunpack.c.l.b16 %v7056
    %v7807 = vunpack.c.h.b16 %v7056
    %v7808 = vunpack.c.l.b16 %v7057
    %v7809 = vunpack.c.h.b16 %v7057
    %v7810 = vunpack.c.l.b16 %v7058
    %v7811 = vunpack.c.h.b16 %v7058
    %v7812 = vunpack.c.l.b16 %v7059
    %v7813 = vunpack.c.h.b16 %v7059
    %v7814 = vunpack.c.l.b16 %v7060
    %v7815 = vunpack.c.h.b16 %v7060
    %v7816 = vunpack.c.l.b16 %v7061
    %v7817 = vunpack.c.h.b16 %v7061
    %v7818 = vunpack.c.l.b16 %v7062
    %v7819 = vunpack.c.h.b16 %v7062
    %v7820 = vunpack.c.l.b16 %v7063
    %v7821 = vunpack.c.h.b16 %v7063
    %v7822 = vunpack.c.l.b16 %v7064
    %v7823 = vunpack.c.h.b16 %v7064
    %v7824 = vunpack.c.l.b16 %v7065
    %v7825 = vunpack.c.h.b16 %v7065
    %v7826 = vunpack.c.l.b16 %v7066
    %v7827 = vunpack.c.h.b16 %v7066
    %v7828 = vunpack.c.l.b16 %v7067
    %v7829 = vunpack.c.h.b16 %v7067
    %v7830 = vunpack.c.l.b16 %v7068
    %v7831 = vunpack.c.h.b16 %v7068
    %v7832 = vunpack.c.l.b16 %v7069
    %v7833 = vunpack.c.h.b16 %v7069
    %v7834 = vunpack.c.l.b16 %v7070
    %v7835 = vunpack.c.h.b16 %v7070
    %v7836 = vunpack.c.l.b16 %v7071
    %v7837 = vunpack.c.h.b16 %v7071
    %v7838 = vunpack.c.l.b16 %v7072
    %v7839 = vunpack.c.h.b16 %v7072
    %v7840 = vunpack.c.l.b16 %v7073
    %v7841 = vunpack.c.h.b16 %v7073
    %v7842 = vunpack.c.l.b16 %v7074
    %v7843 = vunpack.c.h.b16 %v7074
    %v7844 = vunpack.c.l.b16 %v7075
    %v7845 = vunpack.c.h.b16 %v7075
    %v7846 = vunpack.c.l.b16 %v7076
    %v7847 = vunpack.c.h.b16 %v7076
    %v7848 = vunpack.c.l.b16 %v7077
    %v7849 = vunpack.c.h.b16 %v7077
    %v7850 = vunpack.c.l.b16 %v7078
    %v7851 = vunpack.c.h.b16 %v7078
    %v7852 = vunpack.c.l.b16 %v7079
    %v7853 = vunpack.c.h.b16 %v7079
    %v7854 = vunpack.c.l.b16 %v7080
    %v7855 = vunpack.c.h.b16 %v7080
    %v7856 = vunpack.c.l.b16 %v7081
    %v7857 = vunpack.c.h.b16 %v7081
    %v7858 = vunpack.c.l.b16 %v7082
    %v7859 = vunpack.c.h.b16 %v7082
    %v7860 = vunpack.c.l.b16 %v7083
    %v7861 = vunpack.c.h.b16 %v7083
    %v7862 = vunpack.c.l.b16 %v7084
    %v7863 = vunpack.c.h.b16 %v7084
    %v7864 = vunpack.c.l.b16 %v7085
    %v7865 = vunpack.c.h.b16 %v7085
    %v7866 = vunpack.c.l.b16 %v7086
    %v7867 = vunpack.c.h.b16 %v7086
    %v7868 = vunpack.c.l.b16 %v7087
    %v7869 = vunpack.c.h.b16 %v7087
    %v7870 = vunpack.c.l.b16 %v7088
    %v7871 = vunpack.c.h.b16 %v7088
    %v7872 = vunpack.c.l.b16 %v7089
    %v7873 = vunpack.c.h.b16 %v7089
    %v7874 = vunpack.c.l.b16 %v7090
    %v7875 = vunpack.c.h.b16 %v7090
    %v7876 = vunpack.c.l.b16 %v7091
    %v7877 = vunpack.c.h.b16 %v7091
    %v7878 = vunpack.c.l.b16 %v7092
    %v7879 = vunpack.c.h.b16 %v7092
    %v7880 = vunpack.c.l.b16 %v7093
    %v7881 = vunpack.c.h.b16 %v7093
    %v7882 = vunpack.c.l.b16 %v7094
    %v7883 = vunpack.c.h.b16 %v7094
    %v7884 = vunpack.c.l.b16 %v7095
    %v7885 = vunpack.c.h.b16 %v7095
    %v7886 = vunpack.c.l.b16 %v7096
    %v7887 = vunpack.c.h.b16 %v7096
    %v7888 = vunpack.c.l.b16 %v7097
    %v7889 = vunpack.c.h.b16 %v7097
    %v7890 = vunpack.c.l.b16 %v7098
    %v7891 = vunpack.c.h.b16 %v7098
    %v7892 = vunpack.c.l.b16 %v7099
    %v7893 = vunpack.c.h.b16 %v7099
    %v7894 = vunpack.c.l.b16 %v7100
    %v7895 = vunpack.c.h.b16 %v7100
    %v7896 = vunpack.c.l.b16 %v7101
    %v7897 = vunpack.c.h.b16 %v7101
    %v7898 = vunpack.c.l.b16 %v7102
    %v7899 = vunpack.c.h.b16 %v7102
    %v7900 = vunpack.c.l.b16 %v7103
    %v7901 = vunpack.c.h.b16 %v7103
    %v7902 = vunpack.c.l.b16 %v7104
    %v7903 = vunpack.c.h.b16 %v7104
    %v7904 = vunpack.c.l.b16 %v7105
    %v7905 = vunpack.c.h.b16 %v7105
    %v7906 = vunpack.c.l.b16 %v7106
    %v7907 = vunpack.c.h.b16 %v7106
    %v7908 = vunpack.c.l.b16 %v7107
    %v7909 = vunpack.c.h.b16 %v7107
    %v7910 = vunpack.c.l.b16 %v7108
    %v7911 = vunpack.c.h.b16 %v7108
    %v7912 = vunpack.c.l.b16 %v7109
    %v7913 = vunpack.c.h.b16 %v7109
    %v7914 = vunpack.c.l.b16 %v7110
    %v7915 = vunpack.c.h.b16 %v7110
    %v7916 = vunpack.c.l.b16 %v7111
    %v7917 = vunpack.c.h.b16 %v7111
    %v7918 = vunpack.c.l.b16 %v7112
    %v7919 = vunpack.c.h.b16 %v7112
    %v7920 = vunpack.c.l.b16 %v7113
    %v7921 = vunpack.c.h.b16 %v7113
    %v7922 = vunpack.c.l.b16 %v7114
    %v7923 = vunpack.c.h.b16 %v7114
    %v7924 = vunpack.c.l.b16 %v7115
    %v7925 = vunpack.c.h.b16 %v7115
    %v7926 = vunpack.c.l.b16 %v7116
    %v7927 = vunpack.c.h.b16 %v7116
    %v7928 = vunpack.c.l.b16 %v7117
    %v7929 = vunpack.c.h.b16 %v7117
    %v7930 = vunpack.c.l.b16 %v7118
    %v7931 = vunpack.c.h.b16 %v7118
    %v7932 = vunpack.c.l.b16 %v7119
    %v7933 = vunpack.c.h.b16 %v7119
    %v7934 = vunpack.c.l.b16 %v7120
    %v7935 = vunpack.c.h.b16 %v7120
    %v7936 = vunpack.c.l.b16 %v7121
    %v7937 = vunpack.c.h.b16 %v7121
    %v7938 = vunpack.c.l.b16 %v7122
    %v7939 = vunpack.c.h.b16 %v7122
    %v7940 = vunpack.c.l.b16 %v7123
    %v7941 = vunpack.c.h.b16 %v7123
    %v7942 = vunpack.c.l.b16 %v7124
    %v7943 = vunpack.c.h.b16 %v7124
    %v7944 = vunpack.c.l.b16 %v7125
    %v7945 = vunpack.c.h.b16 %v7125
    %v7946 = vunpack.c.l.b16 %v7126
    %v7947 = vunpack.c.h.b16 %v7126
    %v7948 = vunpack.c.l.b16 %v7127
    %v7949 = vunpack.c.h.b16 %v7127
    %v7950 = vunpack.c.l.b16 %v7128
    %v7951 = vunpack.c.h.b16 %v7128
    %v7952 = vunpack.c.l.b16 %v7129
    %v7953 = vunpack.c.h.b16 %v7129
    %v7954 = vunpack.c.l.b16 %v7130
    %v7955 = vunpack.c.h.b16 %v7130
    %v7956 = vunpack.c.l.b16 %v7131
    %v7957 = vunpack.c.h.b16 %v7131
    %v7958 = vunpack.c.l.b16 %v7132
    %v7959 = vunpack.c.h.b16 %v7132
    %v7960 = vunpack.c.l.b16 %v7133
    %v7961 = vunpack.c.h.b16 %v7133
    %v7962 = vunpack.c.l.b16 %v7134
    %v7963 = vunpack.c.h.b16 %v7134
    %v7964 = vunpack.c.l.b16 %v7135
    %v7965 = vunpack.c.h.b16 %v7135
    %v7966 = vunpack.c.l.b16 %v7136
    %v7967 = vunpack.c.h.b16 %v7136
    %v7968 = vunpack.c.l.b16 %v7137
    %v7969 = vunpack.c.h.b16 %v7137
    %v7970 = vunpack.c.l.b16 %v7138
    %v7971 = vunpack.c.h.b16 %v7138
    %v7972 = vunpack.c.l.b16 %v7139
    %v7973 = vunpack.c.h.b16 %v7139
    %v7974 = vunpack.c.l.b16 %v7140
    %v7975 = vunpack.c.h.b16 %v7140
    %v7976 = vunpack.c.l.b16 %v7141
    %v7977 = vunpack.c.h.b16 %v7141
    %v7978 = vunpack.c.l.b16 %v7142
    %v7979 = vunpack.c.h.b16 %v7142
    %v7980 = vunpack.c.l.b16 %v7143
    %v7981 = vunpack.c.h.b16 %v7143
    %v7982 = vunpack.c.l.b16 %v7144
    %v7983 = vunpack.c.h.b16 %v7144
    %v7984 = vunpack.c.l.b16 %v7145
    %v7985 = vunpack.c.h.b16 %v7145
    %v7986 = vunpack.c.l.b16 %v7146
    %v7987 = vunpack.c.h.b16 %v7146
    %v7988 = vunpack.c.l.b16 %v7147
    %v7989 = vunpack.c.h.b16 %v7147
    %v7990 = vunpack.c.l.b16 %v7148
    %v7991 = vunpack.c.h.b16 %v7148
    %v7992 = vunpack.c.l.b16 %v7149
    %v7993 = vunpack.c.h.b16 %v7149
    %v7994 = vunpack.c.l.b16 %v7150
    %v7995 = vunpack.c.h.b16 %v7150
    %v7996 = vunpack.c.l.b16 %v7151
    %v7997 = vunpack.c.h.b16 %v7151
    %v7998 = vunpack.c.l.b16 %v7152
    %v7999 = vunpack.c.h.b16 %v7152
    %v8000 = vunpack.c.l.b16 %v7153
    %v8001 = vunpack.c.h.b16 %v7153
    %v8002 = vunpack.c.l.b16 %v7154
    %v8003 = vunpack.c.h.b16 %v7154
    %v8004 = vunpack.c.l.b16 %v7155
    %v8005 = vunpack.c.h.b16 %v7155
    %v8006 = vunpack.c.l.b16 %v7156
    %v8007 = vunpack.c.h.b16 %v7156
    %v8008 = vunpack.c.l.b16 %v7157
    %v8009 = vunpack.c.h.b16 %v7157
    %v8010 = vunpack.c.l.b16 %v7158
    %v8011 = vunpack.c.h.b16 %v7158
    %v8012 = vunpack.c.l.b16 %v7159
    %v8013 = vunpack.c.h.b16 %v7159
    %v8014 = vunpack.c.l.b16 %v7160
    %v8015 = vunpack.c.h.b16 %v7160
    %v8016 = vunpack.c.l.b16 %v7161
    %v8017 = vunpack.c.h.b16 %v7161
    %v8018 = vunpack.c.l.b16 %v7162
    %v8019 = vunpack.c.h.b16 %v7162
    %v8020 = vunpack.c.l.b16 %v7163
    %v8021 = vunpack.c.h.b16 %v7163
    %v8022 = vunpack.c.l.b16 %v7164
    %v8023 = vunpack.c.h.b16 %v7164
    %v8024 = vunpack.c.l.b16 %v7165
    %v8025 = vunpack.c.h.b16 %v7165
    %v8026 = vunpack.c.l.b16 %v7166
    %v8027 = vunpack.c.h.b16 %v7166
    %v8028 = vunpack.c.l.b16 %v7167
    %v8029 = vunpack.c.h.b16 %v7167
    %v8030 = vunpack.c.l.b16 %v7168
    %v8031 = vunpack.c.h.b16 %v7168
    %v8032 = vunpack.c.l.b16 %v7169
    %v8033 = vunpack.c.h.b16 %v7169
    %v8034 = vunpack.c.l.b16 %v7170
    %v8035 = vunpack.c.h.b16 %v7170
    %v8036 = vunpack.c.l.b16 %v7171
    %v8037 = vunpack.c.h.b16 %v7171
    %v8038 = vunpack.c.l.b16 %v7172
    %v8039 = vunpack.c.h.b16 %v7172
    %v8040 = vunpack.c.l.b16 %v7173
    %v8041 = vunpack.c.h.b16 %v7173
    %v8042 = vunpack.c.l.b16 %v7174
    %v8043 = vunpack.c.h.b16 %v7174
    %v8044 = vunpack.c.l.b16 %v7175
    %v8045 = vunpack.c.h.b16 %v7175
    %v8046 = vunpack.c.l.b16 %v7176
    %v8047 = vunpack.c.h.b16 %v7176
    %v8048 = vunpack.c.l.b16 %v7177
    %v8049 = vunpack.c.h.b16 %v7177
    %v8050 = vunpack.c.l.b16 %v7178
    %v8051 = vunpack.c.h.b16 %v7178
    %v8052 = vunpack.c.l.b16 %v7179
    %v8053 = vunpack.c.h.b16 %v7179
    %v8054 = vunpack.c.l.b16 %v7180
    %v8055 = vunpack.c.h.b16 %v7180
    %v8056 = vunpack.c.l.b16 %v7181
    %v8057 = vunpack.c.h.b16 %v7181
    %v8058 = vunpack.c.l.b16 %v7182
    %v8059 = vunpack.c.h.b16 %v7182
    %v8060 = vunpack.c.l.b16 %v7183
    %v8061 = vunpack.c.h.b16 %v7183
    %v8062 = vunpack.c.l.b16 %v7184
    %v8063 = vunpack.c.h.b16 %v7184
    %v8064 = vunpack.c.l.b16 %v7185
    %v8065 = vunpack.c.h.b16 %v7185
    %v8066 = vunpack.c.l.b16 %v7186
    %v8067 = vunpack.c.h.b16 %v7186
    %v8068 = vunpack.c.l.b16 %v7187
    %v8069 = vunpack.c.h.b16 %v7187
    %v8070 = vunpack.c.l.b16 %v7188
    %v8071 = vunpack.c.h.b16 %v7188
    %v8072 = vunpack.c.l.b16 %v7189
    %v8073 = vunpack.c.h.b16 %v7189
    %v8074 = vunpack.c.l.b16 %v7190
    %v8075 = vunpack.c.h.b16 %v7190
    %v8076 = vunpack.c.l.b16 %v7191
    %v8077 = vunpack.c.h.b16 %v7191
    %v8078 = vunpack.c.l.b16 %v7192
    %v8079 = vunpack.c.h.b16 %v7192
    %v8080 = vunpack.c.l.b16 %v7193
    %v8081 = vunpack.c.h.b16 %v7193
    %v8082 = vunpack.c.l.b16 %v7194
    %v8083 = vunpack.c.h.b16 %v7194
    %v8084 = vunpack.c.l.b16 %v7195
    %v8085 = vunpack.c.h.b16 %v7195
    %v8086 = vunpack.c.l.b16 %v7196
    %v8087 = vunpack.c.h.b16 %v7196
    %v8088 = vunpack.c.l.b16 %v7197
    %v8089 = vunpack.c.h.b16 %v7197
    %v8090 = vunpack.c.l.b16 %v7198
    %v8091 = vunpack.c.h.b16 %v7198
    %v8092 = vunpack.c.l.b16 %v7199
    %v8093 = vunpack.c.h.b16 %v7199
    %v8094 = vunpack.c.l.b16 %v7200
    %v8095 = vunpack.c.h.b16 %v7200
    %v8096 = vunpack.c.l.b16 %v7201
    %v8097 = vunpack.c.h.b16 %v7201
    %v8098 = vunpack.c.l.b16 %v7202
    %v8099 = vunpack.c.h.b16 %v7202
    %v8100 = vunpack.c.l.b16 %v7203
    %v8101 = vunpack.c.h.b16 %v7203
    %v8102 = vunpack.c.l.b16 %v7204
    %v8103 = vunpack.c.h.b16 %v7204
    %v8104 = vunpack.c.l.b16 %v7205
    %v8105 = vunpack.c.h.b16 %v7205
    %v8106 = vunpack.c.l.b16 %v7206
    %v8107 = vunpack.c.h.b16 %v7206
    %v8108 = vunpack.c.l.b16 %v7207
    %v8109 = vunpack.c.h.b16 %v7207
    %v8110 = vunpack.c.l.b16 %v7208
    %v8111 = vunpack.c.h.b16 %v7208
    %v8112 = vunpack.c.l.b16 %v7209
    %v8113 = vunpack.c.h.b16 %v7209
    %v8114 = vunpack.c.l.b16 %v7210
    %v8115 = vunpack.c.h.b16 %v7210
    %v8116 = vunpack.c.l.b16 %v7211
    %v8117 = vunpack.c.h.b16 %v7211
    %v8118 = vunpack.c.l.b16 %v7212
    %v8119 = vunpack.c.h.b16 %v7212
    %v8120 = vunpack.c.l.b16 %v7213
    %v8121 = vunpack.c.h.b16 %v7213
    %v8122 = vunpack.c.l.b16 %v7214
    %v8123 = vunpack.c.h.b16 %v7214
    %v8124 = vunpack.c.l.b16 %v7215
    %v8125 = vunpack.c.h.b16 %v7215
    %v8126 = vunpack.c.l.b16 %v7216
    %v8127 = vunpack.c.h.b16 %v7216
    %v8128 = vunpack.c.l.b16 %v7217
    %v8129 = vunpack.c.h.b16 %v7217
    %v8130 = vunpack.c.l.b16 %v7218
    %v8131 = vunpack.c.h.b16 %v7218
    %v8132 = vunpack.c.l.b16 %v7219
    %v8133 = vunpack.c.h.b16 %v7219
    %v8134 = vunpack.c.l.b16 %v7220
    %v8135 = vunpack.c.h.b16 %v7220
    %v8136 = vunpack.c.l.b16 %v7221
    %v8137 = vunpack.c.h.b16 %v7221
    %v8138 = vunpack.c.l.b16 %v7222
    %v8139 = vunpack.c.h.b16 %v7222
    %v8140 = vunpack.c.l.b16 %v7223
    %v8141 = vunpack.c.h.b16 %v7223
    %v8142 = vunpack.c.l.b16 %v7224
    %v8143 = vunpack.c.h.b16 %v7224
    %v8144 = vunpack.c.l.b16 %v7225
    %v8145 = vunpack.c.h.b16 %v7225
    %v8146 = vunpack.c.l.b16 %v7226
    %v8147 = vunpack.c.h.b16 %v7226
    %v8148 = vunpack.c.l.b16 %v7227
    %v8149 = vunpack.c.h.b16 %v7227
    %v8150 = vunpack.c.l.b16 %v7228
    %v8151 = vunpack.c.h.b16 %v7228
    %v8152 = vunpack.c.l.b16 %v7229
    %v8153 = vunpack.c.h.b16 %v7229
    %v8154 = vunpack.c.l.b16 %v7230
    %v8155 = vunpack.c.h.b16 %v7230
    %v8156 = vunpack.c.l.b16 %v7231
    %v8157 = vunpack.c.h.b16 %v7231
    %v8158 = vunpack.c.l.b16 %v7232
    %v8159 = vunpack.c.h.b16 %v7232
    %v8160 = vunpack.c.l.b16 %v7233
    %v8161 = vunpack.c.h.b16 %v7233
    %v8162 = vunpack.c.l.b16 %v7234
    %v8163 = vunpack.c.h.b16 %v7234
    %v8164 = vunpack.c.l.b16 %v7235
    %v8165 = vunpack.c.h.b16 %v7235
    %v8166 = vunpack.c.l.b16 %v7236
    %v8167 = vunpack.c.h.b16 %v7236
    %v8168 = vunpack.c.l.b16 %v7237
    %v8169 = vunpack.c.h.b16 %v7237
    %v8170 = vunpack.c.l.b16 %v7238
    %v8171 = vunpack.c.h.b16 %v7238
    %v8172 = vunpack.c.l.b16 %v7239
    %v8173 = vunpack.c.h.b16 %v7239
    %v8174 = vunpack.c.l.b16 %v7240
    %v8175 = vunpack.c.h.b16 %v7240
    %v8176 = vunpack.c.l.b16 %v7241
    %v8177 = vunpack.c.h.b16 %v7241
    %v8178 = vunpack.c.l.b16 %v7242
    %v8179 = vunpack.c.h.b16 %v7242
    %v8180 = vunpack.c.l.b16 %v7243
    %v8181 = vunpack.c.h.b16 %v7243
    %v8182 = vunpack.c.l.b16 %v7244
    %v8183 = vunpack.c.h.b16 %v7244
    %v8184 = vunpack.c.l.b16 %v7245
    %v8185 = vunpack.c.h.b16 %v7245
    %v8186 = vunpack.c.l.b16 %v7246
    %v8187 = vunpack.c.h.b16 %v7246
    %v8188 = vunpack.c.l.b16 %v7247
    %v8189 = vunpack.c.h.b16 %v7247
    %v8190 = vunpack.c.l.b16 %v7248
    %v8191 = vunpack.c.h.b16 %v7248
    %v8192 = vunpack.c.l.b16 %v7249
    %v8193 = vunpack.c.h.b16 %v7249
    %v8194 = vunpack.c.l.b16 %v7250
    %v8195 = vunpack.c.h.b16 %v7250
    %v8196 = vunpack.c.l.b16 %v7251
    %v8197 = vunpack.c.h.b16 %v7251
    %v8198 = vunpack.c.l.b16 %v7252
    %v8199 = vunpack.c.h.b16 %v7252
    %v8200 = vunpack.c.l.b16 %v7253
    %v8201 = vunpack.c.h.b16 %v7253
    %v8202 = vunpack.c.l.b16 %v7254
    %v8203 = vunpack.c.h.b16 %v7254
    %v8204 = vunpack.c.l.b16 %v7255
    %v8205 = vunpack.c.h.b16 %v7255
    %v8206 = vunpack.c.l.b16 %v7256
    %v8207 = vunpack.c.h.b16 %v7256
    %v8208 = vunpack.c.l.b16 %v7257
    %v8209 = vunpack.c.h.b16 %v7257
    %v8210 = vunpack.c.l.b16 %v7258
    %v8211 = vunpack.c.h.b16 %v7258
    %v8212 = vunpack.c.l.b16 %v7259
    %v8213 = vunpack.c.h.b16 %v7259
    %v8214 = vunpack.c.l.b16 %v7260
    %v8215 = vunpack.c.h.b16 %v7260
    %v8216 = vunpack.c.l.b16 %v7261
    %v8217 = vunpack.c.h.b16 %v7261
    %v8218 = vunpack.c.l.b16 %v7262
    %v8219 = vunpack.c.h.b16 %v7262
    %v8220 = vunpack.c.l.b16 %v7263
    %v8221 = vunpack.c.h.b16 %v7263
    %v8222 = vunpack.c.l.b16 %v7264
    %v8223 = vunpack.c.h.b16 %v7264
    %v8224 = vunpack.c.l.b16 %v7265
    %v8225 = vunpack.c.h.b16 %v7265
    %v8226 = vunpack.c.l.b16 %v7266
    %v8227 = vunpack.c.h.b16 %v7266
    %v8228 = vunpack.c.l.b16 %v7267
    %v8229 = vunpack.c.h.b16 %v7267
    %v8230 = vunpack.c.l.b16 %v7268
    %v8231 = vunpack.c.h.b16 %v7268
    %v8232 = vunpack.c.l.b16 %v7269
    %v8233 = vunpack.c.h.b16 %v7269
    %v8234 = vunpack.c.l.b16 %v7270
    %v8235 = vunpack.c.h.b16 %v7270
    %v8236 = vunpack.c.l.b16 %v7271
    %v8237 = vunpack.c.h.b16 %v7271
    %v8238 = vunpack.c.l.b16 %v7272
    %v8239 = vunpack.c.h.b16 %v7272
    %v8240 = vunpack.c.l.b16 %v7273
    %v8241 = vunpack.c.h.b16 %v7273
    %v8242 = vunpack.c.l.b16 %v7274
    %v8243 = vunpack.c.h.b16 %v7274
    %v8244 = vunpack.c.l.b16 %v7275
    %v8245 = vunpack.c.h.b16 %v7275
    %v8246 = vpack.c.b16 %v7610, %v7606
    %v8247 = vpack.c.b16 %v7611, %v7607
    %v8248 = vpack.c.b16 %v7612, %v7608
    %v8249 = vpack.c.b16 %v7613, %v7609
    %v8250 = vpack.c.b16 %v7618, %v7614
    %v8251 = vpack.c.b16 %v7619, %v7615
    %v8252 = vpack.c.b16 %v7620, %v7616
    %v8253 = vpack.c.b16 %v7621, %v7617
    %v8254 = vpack.c.b16 %v7626, %v7622
    %v8255 = vpack.c.b16 %v7627, %v7623
    %v8256 = vpack.c.b16 %v7628, %v7624
    %v8257 = vpack.c.b16 %v7629, %v7625
    %v8258 = vpack.c.b16 %v7634, %v7630
    %v8259 = vpack.c.b16 %v7635, %v7631
    %v8260 = vpack.c.b16 %v7636, %v7632
    %v8261 = vpack.c.b16 %v7637, %v7633
    %v8262 = vpack.c.b16 %v7642, %v7638
    %v8263 = vpack.c.b16 %v7643, %v7639
    %v8264 = vpack.c.b16 %v7644, %v7640
    %v8265 = vpack.c.b16 %v7645, %v7641
    %v8266 = vpack.c.b16 %v7650, %v7646
    %v8267 = vpack.c.b16 %v7651, %v7647
    %v8268 = vpack.c.b16 %v7652, %v7648
    %v8269 = vpack.c.b16 %v7653, %v7649
    %v8270 = vpack.c.b16 %v7658, %v7654
    %v8271 = vpack.c.b16 %v7659, %v7655
    %v8272 = vpack.c.b16 %v7660, %v7656
    %v8273 = vpack.c.b16 %v7661, %v7657
    %v8274 = vpack.c.b16 %v7666, %v7662
    %v8275 = vpack.c.b16 %v7667, %v7663
    %v8276 = vpack.c.b16 %v7668, %v7664
    %v8277 = vpack.c.b16 %v7669, %v7665
    %v8278 = vpack.c.b16 %v7674, %v7670
    %v8279 = vpack.c.b16 %v7675, %v7671
    %v8280 = vpack.c.b16 %v7676, %v7672
    %v8281 = vpack.c.b16 %v7677, %v7673
    %v8282 = vpack.c.b16 %v7682, %v7678
    %v8283 = vpack.c.b16 %v7683, %v7679
    %v8284 = vpack.c.b16 %v7684, %v7680
    %v8285 = vpack.c.b16 %v7685, %v7681
    %v8286 = vpack.c.b16 %v7690, %v7686
    %v8287 = vpack.c.b16 %v7691, %v7687
    %v8288 = vpack.c.b16 %v7692, %v7688
    %v8289 = vpack.c.b16 %v7693, %v7689
    %v8290 = vpack.c.b16 %v7698, %v7694
    %v8291 = vpack.c.b16 %v7699, %v7695
    %v8292 = vpack.c.b16 %v7700, %v7696
    %v8293 = vpack.c.b16 %v7701, %v7697
    %v8294 = vpack.c.b16 %v7706, %v7702
    %v8295 = vpack.c.b16 %v7707, %v7703
    %v8296 = vpack.c.b16 %v7708, %v7704
    %v8297 = vpack.c.b16 %v7709, %v7705
    %v8298 = vpack.c.b16 %v7714, %v7710
    %v8299 = vpack.c.b16 %v7715, %v7711
    %v8300 = vpack.c.b16 %v7716, %v7712
    %v8301 = vpack.c.b16 %v7717, %v7713
    %v8302 = vpack.c.b16 %v7722, %v7718
    %v8303 = vpack.c.b16 %v7723, %v7719
    %v8304 = vpack.c.b16 %v7724, %v7720
    %v8305 = vpack.c.b16 %v7725, %v7721
    %v8306 = vpack.c.b16 %v7730, %v7726
    %v8307 = vpack.c.b16 %v7731, %v7727
    %v8308 = vpack.c.b16 %v7732, %v7728
    %v8309 = vpack.c.b16 %v7733, %v7729
    %v8310 = vpack.c.b16 %v7738, %v7734
    %v8311 = vpack.c.b16 %v7739, %v7735
    %v8312 = vpack.c.b16 %v7740, %v7736
    %v8313 = vpack.c.b16 %v7741, %v7737
    %v8314 = vpack.c.b16 %v7746, %v7742
    %v8315 = vpack.c.b16 %v7747, %v7743
    %v8316 = vpack.c.b16 %v7748, %v7744
    %v8317 = vpack.c.b16 %v7749, %v7745
    %v8318 = vpack.c.b16 %v7754, %v7750
    %v8319 = vpack.c.b16 %v7755, %v7751
    %v8320 = vpack.c.b16 %v7756, %v7752
    %v8321 = vpack.c.b16 %v7757, %v7753
    %v8322 = vpack.c.b16 %v7762, %v7758
    %v8323 = vpack.c.b16 %v7763, %v7759
    %v8324 = vpack.c.b16 %v7764, %v7760
    %v8325 = vpack.c.b16 %v7765, %v7761
    %v8326 = vpack.c.b16 %v7770, %v7766
    %v8327 = vpack.c.b16 %v7771, %v7767
    %v8328 = vpack.c.b16 %v7772, %v7768
    %v8329 = vpack.c.b16 %v7773, %v7769
    %v8330 = vpack.c.b16 %v7778, %v7774
    %v8331 = vpack.c.b16 %v7779, %v7775
    %v8332 = vpack.c.b16 %v7780, %v7776
    %v8333 = vpack.c.b16 %v7781, %v7777
    %v8334 = vpack.c.b16 %v7786, %v7782
    %v8335 = vpack.c.b16 %v7787, %v7783
    %v8336 = vpack.c.b16 %v7788, %v7784
    %v8337 = vpack.c.b16 %v7789, %v7785
    %v8338 = vpack.c.b16 %v7794, %v7790
    %v8339 = vpack.c.b16 %v7795, %v7791
    %v8340 = vpack.c.b16 %v7796, %v7792
    %v8341 = vpack.c.b16 %v7797, %v7793
    %v8342 = vpack.c.b16 %v7802, %v7798
    %v8343 = vpack.c.b16 %v7803, %v7799
    %v8344 = vpack.c.b16 %v7804, %v7800
    %v8345 = vpack.c.b16 %v7805, %v7801
    %v8346 = vpack.c.b16 %v7810, %v7806
    %v8347 = vpack.c.b16 %v7811, %v7807
    %v8348 = vpack.c.b16 %v7812, %v7808
    %v8349 = vpack.c.b16 %v7813, %v7809
    %v8350 = vpack.c.b16 %v7818, %v7814
    %v8351 = vpack.c.b16 %v7819, %v7815
    %v8352 = vpack.c.b16 %v7820, %v7816
    %v8353 = vpack.c.b16 %v7821, %v7817
    %v8354 = vpack.c.b16 %v7826, %v7822
    %v8355 = vpack.c.b16 %v7827, %v7823
    %v8356 = vpack.c.b16 %v7828, %v7824
    %v8357 = vpack.c.b16 %v7829, %v7825
    %v8358 = vpack.c.b16 %v7834, %v7830
    %v8359 = vpack.c.b16 %v7835, %v7831
    %v8360 = vpack.c.b16 %v7836, %v7832
    %v8361 = vpack.c.b16 %v7837, %v7833
    %v8362 = vpack.c.b16 %v7842, %v7838
    %v8363 = vpack.c.b16 %v7843, %v7839
    %v8364 = vpack.c.b16 %v7844, %v7840
    %v8365 = vpack.c.b16 %v7845, %v7841
    %v8366 = vpack.c.b16 %v7850, %v7846
    %v8367 = vpack.c.b16 %v7851, %v7847
    %v8368 = vpack.c.b16 %v7852, %v7848
    %v8369 = vpack.c.b16 %v7853, %v7849
    %v8370 = vpack.c.b16 %v7858, %v7854
    %v8371 = vpack.c.b16 %v7859, %v7855
    %v8372 = vpack.c.b16 %v7860, %v7856
    %v8373 = vpack.c.b16 %v7861, %v7857
    %v8374 = vpack.c.b16 %v7866, %v7862
    %v8375 = vpack.c.b16 %v7867, %v7863
    %v8376 = vpack.c.b16 %v7868, %v7864
    %v8377 = vpack.c.b16 %v7869, %v7865
    %v8378 = vpack.c.b16 %v7874, %v7870
    %v8379 = vpack.c.b16 %v7875, %v7871
    %v8380 = vpack.c.b16 %v7876, %v7872
    %v8381 = vpack.c.b16 %v7877, %v7873
    %v8382 = vpack.c.b16 %v7882, %v7878
    %v8383 = vpack.c.b16 %v7883, %v7879
    %v8384 = vpack.c.b16 %v7884, %v7880
    %v8385 = vpack.c.b16 %v7885, %v7881
    %v8386 = vpack.c.b16 %v7890, %v7886
    %v8387 = vpack.c.b16 %v7891, %v7887
    %v8388 = vpack.c.b16 %v7892, %v7888
    %v8389 = vpack.c.b16 %v7893, %v7889
    %v8390 = vpack.c.b16 %v7898, %v7894
    %v8391 = vpack.c.b16 %v7899, %v7895
    %v8392 = vpack.c.b16 %v7900, %v7896
    %v8393 = vpack.c.b16 %v7901, %v7897
    %v8394 = vpack.c.b16 %v7906, %v7902
    %v8395 = vpack.c.b16 %v7907, %v7903
    %v8396 = vpack.c.b16 %v7908, %v7904
    %v8397 = vpack.c.b16 %v7909, %v7905
    %v8398 = vpack.c.b16 %v7914, %v7910
    %v8399 = vpack.c.b16 %v7915, %v7911
    %v8400 = vpack.c.b16 %v7916, %v7912
    %v8401 = vpack.c.b16 %v7917, %v7913
    %v8402 = vpack.c.b16 %v7922, %v7918
    %v8403 = vpack.c.b16 %v7923, %v7919
    %v8404 = vpack.c.b16 %v7924, %v7920
    %v8405 = vpack.c.b16 %v7925, %v7921
    %v8406 = vpack.c.b16 %v7930, %v7926
    %v8407 = vpack.c.b16 %v7931, %v7927
    %v8408 = vpack.c.b16 %v7932, %v7928
    %v8409 = vpack.c.b16 %v7933, %v7929
    %v8410 = vpack.c.b16 %v7938, %v7934
    %v8411 = vpack.c.b16 %v7939, %v7935
    %v8412 = vpack.c.b16 %v7940, %v7936
    %v8413 = vpack.c.b16 %v7941, %v7937
    %v8414 = vpack.c.b16 %v7946, %v7942
    %v8415 = vpack.c.b16 %v7947, %v7943
    %v8416 = vpack.c.b16 %v7948, %v7944
    %v8417 = vpack.c.b16 %v7949, %v7945
    %v8418 = vpack.c.b16 %v7954, %v7950
    %v8419 = vpack.c.b16 %v7955, %v7951
    %v8420 = vpack.c.b16 %v7956, %v7952
    %v8421 = vpack.c.b16 %v7957, %v7953
    %v8422 = vpack.c.b16 %v7962, %v7958
    %v8423 = vpack.c.b16 %v7963, %v7959
    %v8424 = vpack.c.b16 %v7964, %v7960
    %v8425 = vpack.c.b16 %v7965, %v7961
    %v8426 = vpack.c.b16 %v7970, %v7966
    %v8427 = vpack.c.b16 %v7971, %v7967
    %v8428 = vpack.c.b16 %v7972, %v7968
    %v8429 = vpack.c.b16 %v7973, %v7969
    %v8430 = vpack.c.b16 %v7978, %v7974
    %v8431 = vpack.c.b16 %v7979, %v7975
    %v8432 = vpack.c.b16 %v7980, %v7976
    %v8433 = vpack.c.b16 %v7981, %v7977
    %v8434 = vpack.c.b16 %v7986, %v7982
    %v8435 = vpack.c.b16 %v7987, %v7983
    %v8436 = vpack.c.b16 %v7988, %v7984
    %v8437 = vpack.c.b16 %v7989, %v7985
    %v8438 = vpack.c.b16 %v7994, %v7990
    %v8439 = vpack.c.b16 %v7995, %v7991
    %v8440 = vpack.c.b16 %v7996, %v7992
    %v8441 = vpack.c.b16 %v7997, %v7993
    %v8442 = vpack.c.b16 %v8002, %v7998
    %v8443 = vpack.c.b16 %v8003, %v7999
    %v8444 = vpack.c.b16 %v8004, %v8000
    %v8445 = vpack.c.b16 %v8005, %v8001
    %v8446 = vpack.c.b16 %v8010, %v8006
    %v8447 = vpack.c.b16 %v8011, %v8007
    %v8448 = vpack.c.b16 %v8012, %v8008
    %v8449 = vpack.c.b16 %v8013, %v8009
    %v8450 = vpack.c.b16 %v8018, %v8014
    %v8451 = vpack.c.b16 %v8019, %v8015
    %v8452 = vpack.c.b16 %v8020, %v8016
    %v8453 = vpack.c.b16 %v8021, %v8017
    %v8454 = vpack.c.b16 %v8026, %v8022
    %v8455 = vpack.c.b16 %v8027, %v8023
    %v8456 = vpack.c.b16 %v8028, %v8024
    %v8457 = vpack.c.b16 %v8029, %v8025
    %v8458 = vpack.c.b16 %v8034, %v8030
    %v8459 = vpack.c.b16 %v8035, %v8031
    %v8460 = vpack.c.b16 %v8036, %v8032
    %v8461 = vpack.c.b16 %v8037, %v8033
    %v8462 = vpack.c.b16 %v8042, %v8038
    %v8463 = vpack.c.b16 %v8043, %v8039
    %v8464 = vpack.c.b16 %v8044, %v8040
    %v8465 = vpack.c.b16 %v8045, %v8041
    %v8466 = vpack.c.b16 %v8050, %v8046
    %v8467 = vpack.c.b16 %v8051, %v8047
    %v8468 = vpack.c.b16 %v8052, %v8048
    %v8469 = vpack.c.b16 %v8053, %v8049
    %v8470 = vpack.c.b16 %v8058, %v8054
    %v8471 = vpack.c.b16 %v8059, %v8055
    %v8472 = vpack.c.b16 %v8060, %v8056
    %v8473 = vpack.c.b16 %v8061, %v8057
    %v8474 = vpack.c.b16 %v8066, %v8062
    %v8475 = vpack.c.b16 %v8067, %v8063
    %v8476 = vpack.c.b16 %v8068, %v8064
    %v8477 = vpack.c.b16 %v8069, %v8065
    %v8478 = vpack.c.b16 %v8074, %v8070
    %v8479 = vpack.c.b16 %v8075, %v8071
    %v8480 = vpack.c.b16 %v8076, %v8072
    %v8481 = vpack.c.b16 %v8077, %v8073
    %v8482 = vpack.c.b16 %v8082, %v8078
    %v8483 = vpack.c.b16 %v8083, %v8079
    %v8484 = vpack.c.b16 %v8084, %v8080
    %v8485 = vpack.c.b16 %v8085, %v8081
    %v8486 = vpack.c.b16 %v8090, %v8086
    %v8487 = vpack.c.b16 %v8091, %v8087
    %v8488 = vpack.c.b16 %v8092, %v8088
    %v8489 = vpack.c.b16 %v8093, %v8089
    %v8490 = vpack.c.b16 %v8098, %v8094
    %v8491 = vpack.c.b16 %v8099, %v8095
    %v8492 = vpack.c.b16 %v8100, %v8096
    %v8493 = vpack.c.b16 %v8101, %v8097
    %v8494 = vpack.c.b16 %v8106, %v8102
    %v8495 = vpack.c.b16 %v8107, %v8103
    %v8496 = vpack.c.b16 %v8108, %v8104
    %v8497 = vpack.c.b16 %v8109, %v8105
    %v8498 = vpack.c.b16 %v8114, %v8110
    %v8499 = vpack.c.b16 %v8115, %v8111
    %v8500 = vpack.c.b16 %v8116, %v8112
    %v8501 = vpack.c.b16 %v8117, %v8113
    %v8502 = vpack.c.b16 %v8122, %v8118
    %v8503 = vpack.c.b16 %v8123, %v8119
    %v8504 = vpack.c.b16 %v8124, %v8120
    %v8505 = vpack.c.b16 %v8125, %v8121
    %v8506 = vpack.c.b16 %v8130, %v8126
    %v8507 = vpack.c.b16 %v8131, %v8127
    %v8508 = vpack.c.b16 %v8132, %v8128
    %v8509 = vpack.c.b16 %v8133, %v8129
    %v8510 = vpack.c.b16 %v8138, %v8134
    %v8511 = vpack.c.b16 %v8139, %v8135
    %v8512 = vpack.c.b16 %v8140, %v8136
    %v8513 = vpack.c.b16 %v8141, %v8137
    %v8514 = vpack.c.b16 %v8146, %v8142
    %v8515 = vpack.c.b16 %v8147, %v8143
    %v8516 = vpack.c.b16 %v8148, %v8144
    %v8517 = vpack.c.b16 %v8149, %v8145
    %v8518 = vpack.c.b16 %v8154, %v8150
    %v8519 = vpack.c.b16 %v8155, %v8151
    %v8520 = vpack.c.b16 %v8156, %v8152
    %v8521 = vpack.c.b16 %v8157, %v8153
    %v8522 = vpack.c.b16 %v8162, %v8158
    %v8523 = vpack.c.b16 %v8163, %v8159
    %v8524 = vpack.c.b16 %v8164, %v8160
    %v8525 = vpack.c.b16 %v8165, %v8161
    %v8526 = vpack.c.b16 %v8170, %v8166
    %v8527 = vpack.c.b16 %v8171, %v8167
    %v8528 = vpack.c.b16 %v8172, %v8168
    %v8529 = vpack.c.b16 %v8173, %v8169
    %v8530 = vpack.c.b16 %v8178, %v8174
    %v8531 = vpack.c.b16 %v8179, %v8175
    %v8532 = vpack.c.b16 %v8180, %v8176
    %v8533 = vpack.c.b16 %v8181, %v8177
    %v8534 = vpack.c.b16 %v8186, %v8182
    %v8535 = vpack.c.b16 %v8187, %v8183
    %v8536 = vpack.c.b16 %v8188, %v8184
    %v8537 = vpack.c.b16 %v8189, %v8185
    %v8538 = vpack.c.b16 %v8194, %v8190
    %v8539 = vpack.c.b16 %v8195, %v8191
    %v8540 = vpack.c.b16 %v8196, %v8192
    %v8541 = vpack.c.b16 %v8197, %v8193
    %v8542 = vpack.c.b16 %v8202, %v8198
    %v8543 = vpack.c.b16 %v8203, %v8199
    %v8544 = vpack.c.b16 %v8204, %v8200
    %v8545 = vpack.c.b16 %v8205, %v8201
    %v8546 = vpack.c.b16 %v8210, %v8206
    %v8547 = vpack.c.b16 %v8211, %v8207
    %v8548 = vpack.c.b16 %v8212, %v8208
    %v8549 = vpack.c.b16 %v8213, %v8209
    %v8550 = vpack.c.b16 %v8218, %v8214
    %v8551 = vpack.c.b16 %v8219, %v8215
    %v8552 = vpack.c.b16 %v8220, %v8216
    %v8553 = vpack.c.b16 %v8221, %v8217
    %v8554 = vpack.c.b16 %v8226, %v8222
    %v8555 = vpack.c.b16 %v8227, %v8223
    %v8556 = vpack.c.b16 %v8228, %v8224
    %v8557 = vpack.c.b16 %v8229, %v8225
    %v8558 = vpack.c.b16 %v8234, %v8230
    %v8559 = vpack.c.b16 %v8235, %v8231
    %v8560 = vpack.c.b16 %v8236, %v8232
    %v8561 = vpack.c.b16 %v8237, %v8233
    %v8562 = vpack.c.b16 %v8242, %v8238
    %v8563 = vpack.c.b16 %v8243, %v8239
    %v8564 = vpack.c.b16 %v8244, %v8240
    %v8565 = vpack.c.b16 %v8245, %v8241
    %8886 = vmatpush.bf16.msra.mxu0 %v8274
    %8887 = vmatpush.bf16.msra.mxu0 %v8270
    %8888 = vmatpush.bf16.msra.mxu0 %v8266
    %8889 = vmatpush.bf16.msra.mxu0 %v8262
    %8890 = vmatpush.bf16.msra.mxu0 %v8258
    %8891 = vmatpush.bf16.msra.mxu0 %v8254
    %8892 = vmatpush.bf16.msra.mxu0 %v8250
    %8893 = vmatpush.bf16.msra.mxu0 %v8246
    %8894 = vmatmul.bf16.gmra.mxu0 %v6946
    %v8895 = vpop.f32.mrf.mxu0
    %v8896 = vadd.f32 %v7278, %v8895
    %v8897 = vpop.f32.mrf.mxu0
    %8898 = vdwg.mxu0
    %8899 = vmatpush.bf16.msra.mxu0 %v8306
    %8900 = vmatpush.bf16.msra.mxu0 %v8302
    %8901 = vmatpush.bf16.msra.mxu0 %v8298
    %8902 = vmatpush.bf16.msra.mxu0 %v8294
    %8903 = vmatpush.bf16.msra.mxu0 %v8290
    %8904 = vmatpush.bf16.msra.mxu0 %v8286
    %8905 = vmatpush.bf16.msra.mxu0 %v8282
    %8906 = vmatpush.bf16.msra.mxu0 %v8278
    %8907 = vmatmul.bf16.gmra.mxu0 %v6947
    %v8908 = vpop.f32.mrf.mxu0
    %v8909 = vadd.f32 %v8896, %v8908
    %v8910 = vpop.f32.mrf.mxu0
    %8911 = vdwg.mxu0
    %8912 = vmatpush.bf16.msra.mxu0 %v8338
    %8913 = vmatpush.bf16.msra.mxu0 %v8334
    %8914 = vmatpush.bf16.msra.mxu0 %v8330
    %8915 = vmatpush.bf16.msra.mxu0 %v8326
    %8916 = vmatpush.bf16.msra.mxu0 %v8322
    %8917 = vmatpush.bf16.msra.mxu0 %v8318
    %8918 = vmatpush.bf16.msra.mxu0 %v8314
    %8919 = vmatpush.bf16.msra.mxu0 %v8310
    %8920 = vmatmul.bf16.gmra.mxu0 %v6948
    %v8921 = vpop.f32.mrf.mxu0
    %v8922 = vadd.f32 %v8909, %v8921
    %v8923 = vpop.f32.mrf.mxu0
    %8924 = vdwg.mxu0
    %8925 = vmatpush.bf16.msra.mxu0 %v8370
    %8926 = vmatpush.bf16.msra.mxu0 %v8366
    %8927 = vmatpush.bf16.msra.mxu0 %v8362
    %8928 = vmatpush.bf16.msra.mxu0 %v8358
    %8929 = vmatpush.bf16.msra.mxu0 %v8354
    %8930 = vmatpush.bf16.msra.mxu0 %v8350
    %8931 = vmatpush.bf16.msra.mxu0 %v8346
    %8932 = vmatpush.bf16.msra.mxu0 %v8342
    %8933 = vmatmul.bf16.gmra.mxu0 %v6949
    %v8934 = vpop.f32.mrf.mxu0
    %v8935 = vadd.f32 %v8922, %v8934
    %v8936 = vpop.f32.mrf.mxu0
    %8937 = vdwg.mxu0
    %8938 = vmatpush.bf16.msra.mxu0 %v8402
    %8939 = vmatpush.bf16.msra.mxu0 %v8398
    %8940 = vmatpush.bf16.msra.mxu0 %v8394
    %8941 = vmatpush.bf16.msra.mxu0 %v8390
    %8942 = vmatpush.bf16.msra.mxu0 %v8386
    %8943 = vmatpush.bf16.msra.mxu0 %v8382
    %8944 = vmatpush.bf16.msra.mxu0 %v8378
    %8945 = vmatpush.bf16.msra.mxu0 %v8374
    %8946 = vmatmul.bf16.gmra.mxu0 %v6950
    %v8947 = vpop.f32.mrf.mxu0
    %v8948 = vadd.f32 %v8935, %v8947
    %v8949 = vpop.f32.mrf.mxu0
    %8950 = vdwg.mxu0
    %8951 = vmatpush.bf16.msra.mxu0 %v8434
    %8952 = vmatpush.bf16.msra.mxu0 %v8430
    %8953 = vmatpush.bf16.msra.mxu0 %v8426
    %8954 = vmatpush.bf16.msra.mxu0 %v8422
    %8955 = vmatpush.bf16.msra.mxu0 %v8418
    %8956 = vmatpush.bf16.msra.mxu0 %v8414
    %8957 = vmatpush.bf16.msra.mxu0 %v8410
    %8958 = vmatpush.bf16.msra.mxu0 %v8406
    %8959 = vmatmul.bf16.gmra.mxu0 %v6951
    %v8960 = vpop.f32.mrf.mxu0
    %v8961 = vadd.f32 %v8948, %v8960
    %v8962 = vpop.f32.mrf.mxu0
    %8963 = vdwg.mxu0
    %8964 = vmatpush.bf16.msra.mxu0 %v8466
    %8965 = vmatpush.bf16.msra.mxu0 %v8462
    %8966 = vmatpush.bf16.msra.mxu0 %v8458
    %8967 = vmatpush.bf16.msra.mxu0 %v8454
    %8968 = vmatpush.bf16.msra.mxu0 %v8450
    %8969 = vmatpush.bf16.msra.mxu0 %v8446
    %8970 = vmatpush.bf16.msra.mxu0 %v8442
    %8971 = vmatpush.bf16.msra.mxu0 %v8438
    %8972 = vmatmul.bf16.gmra.mxu0 %v6952
    %v8973 = vpop.f32.mrf.mxu0
    %v8974 = vadd.f32 %v8961, %v8973
    %v8975 = vpop.f32.mrf.mxu0
    %8976 = vdwg.mxu0
    %8977 = vmatpush.bf16.msra.mxu0 %v8498
    %8978 = vmatpush.bf16.msra.mxu0 %v8494
    %8979 = vmatpush.bf16.msra.mxu0 %v8490
    %8980 = vmatpush.bf16.msra.mxu0 %v8486
    %8981 = vmatpush.bf16.msra.mxu0 %v8482
    %8982 = vmatpush.bf16.msra.mxu0 %v8478
    %8983 = vmatpush.bf16.msra.mxu0 %v8474
    %8984 = vmatpush.bf16.msra.mxu0 %v8470
    %8985 = vmatmul.bf16.gmra.mxu0 %v6953
    %v8986 = vpop.f32.mrf.mxu0
    %v8987 = vadd.f32 %v8974, %v8986
    %v8988 = vpop.f32.mrf.mxu0
    %8989 = vdwg.mxu0
    %8990 = vmatpush.bf16.msra.mxu0 %v8530
    %8991 = vmatpush.bf16.msra.mxu0 %v8526
    %8992 = vmatpush.bf16.msra.mxu0 %v8522
    %8993 = vmatpush.bf16.msra.mxu0 %v8518
    %8994 = vmatpush.bf16.msra.mxu0 %v8514
    %8995 = vmatpush.bf16.msra.mxu0 %v8510
    %8996 = vmatpush.bf16.msra.mxu0 %v8506
    %8997 = vmatpush.bf16.msra.mxu0 %v8502
    %8998 = vmatmul.bf16.gmra.mxu0 %v6954
    %v8999 = vpop.f32.mrf.mxu0
    %v9000 = vadd.f32 %v8987, %v8999
    %v9001 = vpop.f32.mrf.mxu0
    %9002 = vdwg.mxu0
    %9003 = vmatpush.bf16.msra.mxu0 %v8562
    %9004 = vmatpush.bf16.msra.mxu0 %v8558
    %9005 = vmatpush.bf16.msra.mxu0 %v8554
    %9006 = vmatpush.bf16.msra.mxu0 %v8550
    %9007 = vmatpush.bf16.msra.mxu0 %v8546
    %9008 = vmatpush.bf16.msra.mxu0 %v8542
    %9009 = vmatpush.bf16.msra.mxu0 %v8538
    %9010 = vmatpush.bf16.msra.mxu0 %v8534
    %9011 = vmatmul.bf16.gmra.mxu0 %v6955
    %v9012 = vpop.f32.mrf.mxu0
    %v9013 = vadd.f32 %v9000, %v9012
    %v9014 = vpop.f32.mrf.mxu0
    %9015 = vdwg.mxu0
    %9016 = vmatpush.bf16.msra.mxu0 %v8275
    %9017 = vmatpush.bf16.msra.mxu0 %v8271
    %9018 = vmatpush.bf16.msra.mxu0 %v8267
    %9019 = vmatpush.bf16.msra.mxu0 %v8263
    %9020 = vmatpush.bf16.msra.mxu0 %v8259
    %9021 = vmatpush.bf16.msra.mxu0 %v8255
    %9022 = vmatpush.bf16.msra.mxu0 %v8251
    %9023 = vmatpush.bf16.msra.mxu0 %v8247
    %9024 = vmatmul.bf16.gmra.mxu0 %v6946
    %v9025 = vpop.f32.mrf.mxu0
    %v9026 = vadd.f32 %v7279, %v9025
    %v9027 = vpop.f32.mrf.mxu0
    %9028 = vdwg.mxu0
    %9029 = vmatpush.bf16.msra.mxu0 %v8307
    %9030 = vmatpush.bf16.msra.mxu0 %v8303
    %9031 = vmatpush.bf16.msra.mxu0 %v8299
    %9032 = vmatpush.bf16.msra.mxu0 %v8295
    %9033 = vmatpush.bf16.msra.mxu0 %v8291
    %9034 = vmatpush.bf16.msra.mxu0 %v8287
    %9035 = vmatpush.bf16.msra.mxu0 %v8283
    %9036 = vmatpush.bf16.msra.mxu0 %v8279
    %9037 = vmatmul.bf16.gmra.mxu0 %v6947
    %v9038 = vpop.f32.mrf.mxu0
    %v9039 = vadd.f32 %v9026, %v9038
    %v9040 = vpop.f32.mrf.mxu0
    %9041 = vdwg.mxu0
    %9042 = vmatpush.bf16.msra.mxu0 %v8339
    %9043 = vmatpush.bf16.msra.mxu0 %v8335
    %9044 = vmatpush.bf16.msra.mxu0 %v8331
    %9045 = vmatpush.bf16.msra.mxu0 %v8327
    %9046 = vmatpush.bf16.msra.mxu0 %v8323
    %9047 = vmatpush.bf16.msra.mxu0 %v8319
    %9048 = vmatpush.bf16.msra.mxu0 %v8315
    %9049 = vmatpush.bf16.msra.mxu0 %v8311
    %9050 = vmatmul.bf16.gmra.mxu0 %v6948
    %v9051 = vpop.f32.mrf.mxu0
    %v9052 = vadd.f32 %v9039, %v9051
    %v9053 = vpop.f32.mrf.mxu0
    %9054 = vdwg.mxu0
    %9055 = vmatpush.bf16.msra.mxu0 %v8371
    %9056 = vmatpush.bf16.msra.mxu0 %v8367
    %9057 = vmatpush.bf16.msra.mxu0 %v8363
    %9058 = vmatpush.bf16.msra.mxu0 %v8359
    %9059 = vmatpush.bf16.msra.mxu0 %v8355
    %9060 = vmatpush.bf16.msra.mxu0 %v8351
    %9061 = vmatpush.bf16.msra.mxu0 %v8347
    %9062 = vmatpush.bf16.msra.mxu0 %v8343
    %9063 = vmatmul.bf16.gmra.mxu0 %v6949
    %v9064 = vpop.f32.mrf.mxu0
    %v9065 = vadd.f32 %v9052, %v9064
    %v9066 = vpop.f32.mrf.mxu0
    %9067 = vdwg.mxu0
    %9068 = vmatpush.bf16.msra.mxu0 %v8403
    %9069 = vmatpush.bf16.msra.mxu0 %v8399
    %9070 = vmatpush.bf16.msra.mxu0 %v8395
    %9071 = vmatpush.bf16.msra.mxu0 %v8391
    %9072 = vmatpush.bf16.msra.mxu0 %v8387
    %9073 = vmatpush.bf16.msra.mxu0 %v8383
    %9074 = vmatpush.bf16.msra.mxu0 %v8379
    %9075 = vmatpush.bf16.msra.mxu0 %v8375
    %9076 = vmatmul.bf16.gmra.mxu0 %v6950
    %v9077 = vpop.f32.mrf.mxu0
    %v9078 = vadd.f32 %v9065, %v9077
    %v9079 = vpop.f32.mrf.mxu0
    %9080 = vdwg.mxu0
    %9081 = vmatpush.bf16.msra.mxu0 %v8435
    %9082 = vmatpush.bf16.msra.mxu0 %v8431
    %9083 = vmatpush.bf16.msra.mxu0 %v8427
    %9084 = vmatpush.bf16.msra.mxu0 %v8423
    %9085 = vmatpush.bf16.msra.mxu0 %v8419
    %9086 = vmatpush.bf16.msra.mxu0 %v8415
    %9087 = vmatpush.bf16.msra.mxu0 %v8411
    %9088 = vmatpush.bf16.msra.mxu0 %v8407
    %9089 = vmatmul.bf16.gmra.mxu0 %v6951
    %v9090 = vpop.f32.mrf.mxu0
    %v9091 = vadd.f32 %v9078, %v9090
    %v9092 = vpop.f32.mrf.mxu0
    %9093 = vdwg.mxu0
    %9094 = vmatpush.bf16.msra.mxu0 %v8467
    %9095 = vmatpush.bf16.msra.mxu0 %v8463
    %9096 = vmatpush.bf16.msra.mxu0 %v8459
    %9097 = vmatpush.bf16.msra.mxu0 %v8455
    %9098 = vmatpush.bf16.msra.mxu0 %v8451
    %9099 = vmatpush.bf16.msra.mxu0 %v8447
    %9100 = vmatpush.bf16.msra.mxu0 %v8443
    %9101 = vmatpush.bf16.msra.mxu0 %v8439
    %9102 = vmatmul.bf16.gmra.mxu0 %v6952
    %v9103 = vpop.f32.mrf.mxu0
    %v9104 = vadd.f32 %v9091, %v9103
    %v9105 = vpop.f32.mrf.mxu0
    %9106 = vdwg.mxu0
    %9107 = vmatpush.bf16.msra.mxu0 %v8499
    %9108 = vmatpush.bf16.msra.mxu0 %v8495
    %9109 = vmatpush.bf16.msra.mxu0 %v8491
    %9110 = vmatpush.bf16.msra.mxu0 %v8487
    %9111 = vmatpush.bf16.msra.mxu0 %v8483
    %9112 = vmatpush.bf16.msra.mxu0 %v8479
    %9113 = vmatpush.bf16.msra.mxu0 %v8475
    %9114 = vmatpush.bf16.msra.mxu0 %v8471
    %9115 = vmatmul.bf16.gmra.mxu0 %v6953
    %v9116 = vpop.f32.mrf.mxu0
    %v9117 = vadd.f32 %v9104, %v9116
    %v9118 = vpop.f32.mrf.mxu0
    %9119 = vdwg.mxu0
    %9120 = vmatpush.bf16.msra.mxu0 %v8531
    %9121 = vmatpush.bf16.msra.mxu0 %v8527
    %9122 = vmatpush.bf16.msra.mxu0 %v8523
    %9123 = vmatpush.bf16.msra.mxu0 %v8519
    %9124 = vmatpush.bf16.msra.mxu0 %v8515
    %9125 = vmatpush.bf16.msra.mxu0 %v8511
    %9126 = vmatpush.bf16.msra.mxu0 %v8507
    %9127 = vmatpush.bf16.msra.mxu0 %v8503
    %9128 = vmatmul.bf16.gmra.mxu0 %v6954
    %v9129 = vpop.f32.mrf.mxu0
    %v9130 = vadd.f32 %v9117, %v9129
    %v9131 = vpop.f32.mrf.mxu0
    %9132 = vdwg.mxu0
    %9133 = vmatpush.bf16.msra.mxu0 %v8563
    %9134 = vmatpush.bf16.msra.mxu0 %v8559
    %9135 = vmatpush.bf16.msra.mxu0 %v8555
    %9136 = vmatpush.bf16.msra.mxu0 %v8551
    %9137 = vmatpush.bf16.msra.mxu0 %v8547
    %9138 = vmatpush.bf16.msra.mxu0 %v8543
    %9139 = vmatpush.bf16.msra.mxu0 %v8539
    %9140 = vmatpush.bf16.msra.mxu0 %v8535
    %9141 = vmatmul.bf16.gmra.mxu0 %v6955
    %v9142 = vpop.f32.mrf.mxu0
    %v9143 = vadd.f32 %v9130, %v9142
    %v9144 = vpop.f32.mrf.mxu0
    %9145 = vdwg.mxu0
    %9146 = vmatpush.bf16.msra.mxu0 %v8276
    %9147 = vmatpush.bf16.msra.mxu0 %v8272
    %9148 = vmatpush.bf16.msra.mxu0 %v8268
    %9149 = vmatpush.bf16.msra.mxu0 %v8264
    %9150 = vmatpush.bf16.msra.mxu0 %v8260
    %9151 = vmatpush.bf16.msra.mxu0 %v8256
    %9152 = vmatpush.bf16.msra.mxu0 %v8252
    %9153 = vmatpush.bf16.msra.mxu0 %v8248
    %9154 = vmatmul.bf16.gmra.mxu0 %v6946
    %v9155 = vpop.f32.mrf.mxu0
    %v9156 = vadd.f32 %v7280, %v9155
    %v9157 = vpop.f32.mrf.mxu0
    %9158 = vdwg.mxu0
    %9159 = vmatpush.bf16.msra.mxu0 %v8308
    %9160 = vmatpush.bf16.msra.mxu0 %v8304
    %9161 = vmatpush.bf16.msra.mxu0 %v8300
    %9162 = vmatpush.bf16.msra.mxu0 %v8296
    %9163 = vmatpush.bf16.msra.mxu0 %v8292
    %9164 = vmatpush.bf16.msra.mxu0 %v8288
    %9165 = vmatpush.bf16.msra.mxu0 %v8284
    %9166 = vmatpush.bf16.msra.mxu0 %v8280
    %9167 = vmatmul.bf16.gmra.mxu0 %v6947
    %v9168 = vpop.f32.mrf.mxu0
    %v9169 = vadd.f32 %v9156, %v9168
    %v9170 = vpop.f32.mrf.mxu0
    %9171 = vdwg.mxu0
    %9172 = vmatpush.bf16.msra.mxu0 %v8340
    %9173 = vmatpush.bf16.msra.mxu0 %v8336
    %9174 = vmatpush.bf16.msra.mxu0 %v8332
    %9175 = vmatpush.bf16.msra.mxu0 %v8328
    %9176 = vmatpush.bf16.msra.mxu0 %v8324
    %9177 = vmatpush.bf16.msra.mxu0 %v8320
    %9178 = vmatpush.bf16.msra.mxu0 %v8316
    %9179 = vmatpush.bf16.msra.mxu0 %v8312
    %9180 = vmatmul.bf16.gmra.mxu0 %v6948
    %v9181 = vpop.f32.mrf.mxu0
    %v9182 = vadd.f32 %v9169, %v9181
    %v9183 = vpop.f32.mrf.mxu0
    %9184 = vdwg.mxu0
    %9185 = vmatpush.bf16.msra.mxu0 %v8372
    %9186 = vmatpush.bf16.msra.mxu0 %v8368
    %9187 = vmatpush.bf16.msra.mxu0 %v8364
    %9188 = vmatpush.bf16.msra.mxu0 %v8360
    %9189 = vmatpush.bf16.msra.mxu0 %v8356
    %9190 = vmatpush.bf16.msra.mxu0 %v8352
    %9191 = vmatpush.bf16.msra.mxu0 %v8348
    %9192 = vmatpush.bf16.msra.mxu0 %v8344
    %9193 = vmatmul.bf16.gmra.mxu0 %v6949
    %v9194 = vpop.f32.mrf.mxu0
    %v9195 = vadd.f32 %v9182, %v9194
    %v9196 = vpop.f32.mrf.mxu0
    %9197 = vdwg.mxu0
    %9198 = vmatpush.bf16.msra.mxu0 %v8404
    %9199 = vmatpush.bf16.msra.mxu0 %v8400
    %9200 = vmatpush.bf16.msra.mxu0 %v8396
    %9201 = vmatpush.bf16.msra.mxu0 %v8392
    %9202 = vmatpush.bf16.msra.mxu0 %v8388
    %9203 = vmatpush.bf16.msra.mxu0 %v8384
    %9204 = vmatpush.bf16.msra.mxu0 %v8380
    %9205 = vmatpush.bf16.msra.mxu0 %v8376
    %9206 = vmatmul.bf16.gmra.mxu0 %v6950
    %v9207 = vpop.f32.mrf.mxu0
    %v9208 = vadd.f32 %v9195, %v9207
    %v9209 = vpop.f32.mrf.mxu0
    %9210 = vdwg.mxu0
    %9211 = vmatpush.bf16.msra.mxu0 %v8436
    %9212 = vmatpush.bf16.msra.mxu0 %v8432
    %9213 = vmatpush.bf16.msra.mxu0 %v8428
    %9214 = vmatpush.bf16.msra.mxu0 %v8424
    %9215 = vmatpush.bf16.msra.mxu0 %v8420
    %9216 = vmatpush.bf16.msra.mxu0 %v8416
    %9217 = vmatpush.bf16.msra.mxu0 %v8412
    %9218 = vmatpush.bf16.msra.mxu0 %v8408
    %9219 = vmatmul.bf16.gmra.mxu0 %v6951
    %v9220 = vpop.f32.mrf.mxu0
    %v9221 = vadd.f32 %v9208, %v9220
    %v9222 = vpop.f32.mrf.mxu0
    %9223 = vdwg.mxu0
    %9224 = vmatpush.bf16.msra.mxu0 %v8468
    %9225 = vmatpush.bf16.msra.mxu0 %v8464
    %9226 = vmatpush.bf16.msra.mxu0 %v8460
    %9227 = vmatpush.bf16.msra.mxu0 %v8456
    %9228 = vmatpush.bf16.msra.mxu0 %v8452
    %9229 = vmatpush.bf16.msra.mxu0 %v8448
    %9230 = vmatpush.bf16.msra.mxu0 %v8444
    %9231 = vmatpush.bf16.msra.mxu0 %v8440
    %9232 = vmatmul.bf16.gmra.mxu0 %v6952
    %v9233 = vpop.f32.mrf.mxu0
    %v9234 = vadd.f32 %v9221, %v9233
    %v9235 = vpop.f32.mrf.mxu0
    %9236 = vdwg.mxu0
    %9237 = vmatpush.bf16.msra.mxu0 %v8500
    %9238 = vmatpush.bf16.msra.mxu0 %v8496
    %9239 = vmatpush.bf16.msra.mxu0 %v8492
    %9240 = vmatpush.bf16.msra.mxu0 %v8488
    %9241 = vmatpush.bf16.msra.mxu0 %v8484
    %9242 = vmatpush.bf16.msra.mxu0 %v8480
    %9243 = vmatpush.bf16.msra.mxu0 %v8476
    %9244 = vmatpush.bf16.msra.mxu0 %v8472
    %9245 = vmatmul.bf16.gmra.mxu0 %v6953
    %v9246 = vpop.f32.mrf.mxu0
    %v9247 = vadd.f32 %v9234, %v9246
    %v9248 = vpop.f32.mrf.mxu0
    %9249 = vdwg.mxu0
    %9250 = vmatpush.bf16.msra.mxu0 %v8532
    %9251 = vmatpush.bf16.msra.mxu0 %v8528
    %9252 = vmatpush.bf16.msra.mxu0 %v8524
    %9253 = vmatpush.bf16.msra.mxu0 %v8520
    %9254 = vmatpush.bf16.msra.mxu0 %v8516
    %9255 = vmatpush.bf16.msra.mxu0 %v8512
    %9256 = vmatpush.bf16.msra.mxu0 %v8508
    %9257 = vmatpush.bf16.msra.mxu0 %v8504
    %9258 = vmatmul.bf16.gmra.mxu0 %v6954
    %v9259 = vpop.f32.mrf.mxu0
    %v9260 = vadd.f32 %v9247, %v9259
    %v9261 = vpop.f32.mrf.mxu0
    %9262 = vdwg.mxu0
    %9263 = vmatpush.bf16.msra.mxu0 %v8564
    %9264 = vmatpush.bf16.msra.mxu0 %v8560
    %9265 = vmatpush.bf16.msra.mxu0 %v8556
    %9266 = vmatpush.bf16.msra.mxu0 %v8552
    %9267 = vmatpush.bf16.msra.mxu0 %v8548
    %9268 = vmatpush.bf16.msra.mxu0 %v8544
    %9269 = vmatpush.bf16.msra.mxu0 %v8540
    %9270 = vmatpush.bf16.msra.mxu0 %v8536
    %9271 = vmatmul.bf16.gmra.mxu0 %v6955
    %v9272 = vpop.f32.mrf.mxu0
    %v9273 = vadd.f32 %v9260, %v9272
    %v9274 = vpop.f32.mrf.mxu0
    %9275 = vdwg.mxu0
    %9276 = vmatpush.bf16.msra.mxu0 %v8277
    %9277 = vmatpush.bf16.msra.mxu0 %v8273
    %9278 = vmatpush.bf16.msra.mxu0 %v8269
    %9279 = vmatpush.bf16.msra.mxu0 %v8265
    %9280 = vmatpush.bf16.msra.mxu0 %v8261
    %9281 = vmatpush.bf16.msra.mxu0 %v8257
    %9282 = vmatpush.bf16.msra.mxu0 %v8253
    %9283 = vmatpush.bf16.msra.mxu0 %v8249
    %9284 = vmatmul.bf16.gmra.mxu0 %v6946
    %v9285 = vpop.f32.mrf.mxu0
    %v9286 = vadd.f32 %v7281, %v9285
    %v9287 = vpop.f32.mrf.mxu0
    %9288 = vdwg.mxu0
    %9289 = vmatpush.bf16.msra.mxu0 %v8309
    %9290 = vmatpush.bf16.msra.mxu0 %v8305
    %9291 = vmatpush.bf16.msra.mxu0 %v8301
    %9292 = vmatpush.bf16.msra.mxu0 %v8297
    %9293 = vmatpush.bf16.msra.mxu0 %v8293
    %9294 = vmatpush.bf16.msra.mxu0 %v8289
    %9295 = vmatpush.bf16.msra.mxu0 %v8285
    %9296 = vmatpush.bf16.msra.mxu0 %v8281
    %9297 = vmatmul.bf16.gmra.mxu0 %v6947
    %v9298 = vpop.f32.mrf.mxu0
    %v9299 = vadd.f32 %v9286, %v9298
    %v9300 = vpop.f32.mrf.mxu0
    %9301 = vdwg.mxu0
    %9302 = vmatpush.bf16.msra.mxu0 %v8341
    %9303 = vmatpush.bf16.msra.mxu0 %v8337
    %9304 = vmatpush.bf16.msra.mxu0 %v8333
    %9305 = vmatpush.bf16.msra.mxu0 %v8329
    %9306 = vmatpush.bf16.msra.mxu0 %v8325
    %9307 = vmatpush.bf16.msra.mxu0 %v8321
    %9308 = vmatpush.bf16.msra.mxu0 %v8317
    %9309 = vmatpush.bf16.msra.mxu0 %v8313
    %9310 = vmatmul.bf16.gmra.mxu0 %v6948
    %v9311 = vpop.f32.mrf.mxu0
    %v9312 = vadd.f32 %v9299, %v9311
    %v9313 = vpop.f32.mrf.mxu0
    %9314 = vdwg.mxu0
    %9315 = vmatpush.bf16.msra.mxu0 %v8373
    %9316 = vmatpush.bf16.msra.mxu0 %v8369
    %9317 = vmatpush.bf16.msra.mxu0 %v8365
    %9318 = vmatpush.bf16.msra.mxu0 %v8361
    %9319 = vmatpush.bf16.msra.mxu0 %v8357
    %9320 = vmatpush.bf16.msra.mxu0 %v8353
    %9321 = vmatpush.bf16.msra.mxu0 %v8349
    %9322 = vmatpush.bf16.msra.mxu0 %v8345
    %9323 = vmatmul.bf16.gmra.mxu0 %v6949
    %v9324 = vpop.f32.mrf.mxu0
    %v9325 = vadd.f32 %v9312, %v9324
    %v9326 = vpop.f32.mrf.mxu0
    %9327 = vdwg.mxu0
    %9328 = vmatpush.bf16.msra.mxu0 %v8405
    %9329 = vmatpush.bf16.msra.mxu0 %v8401
    %9330 = vmatpush.bf16.msra.mxu0 %v8397
    %9331 = vmatpush.bf16.msra.mxu0 %v8393
    %9332 = vmatpush.bf16.msra.mxu0 %v8389
    %9333 = vmatpush.bf16.msra.mxu0 %v8385
    %9334 = vmatpush.bf16.msra.mxu0 %v8381
    %9335 = vmatpush.bf16.msra.mxu0 %v8377
    %9336 = vmatmul.bf16.gmra.mxu0 %v6950
    %v9337 = vpop.f32.mrf.mxu0
    %v9338 = vadd.f32 %v9325, %v9337
    %v9339 = vpop.f32.mrf.mxu0
    %9340 = vdwg.mxu0
    %9341 = vmatpush.bf16.msra.mxu0 %v8437
    %9342 = vmatpush.bf16.msra.mxu0 %v8433
    %9343 = vmatpush.bf16.msra.mxu0 %v8429
    %9344 = vmatpush.bf16.msra.mxu0 %v8425
    %9345 = vmatpush.bf16.msra.mxu0 %v8421
    %9346 = vmatpush.bf16.msra.mxu0 %v8417
    %9347 = vmatpush.bf16.msra.mxu0 %v8413
    %9348 = vmatpush.bf16.msra.mxu0 %v8409
    %9349 = vmatmul.bf16.gmra.mxu0 %v6951
    %v9350 = vpop.f32.mrf.mxu0
    %v9351 = vadd.f32 %v9338, %v9350
    %v9352 = vpop.f32.mrf.mxu0
    %9353 = vdwg.mxu0
    %9354 = vmatpush.bf16.msra.mxu0 %v8469
    %9355 = vmatpush.bf16.msra.mxu0 %v8465
    %9356 = vmatpush.bf16.msra.mxu0 %v8461
    %9357 = vmatpush.bf16.msra.mxu0 %v8457
    %9358 = vmatpush.bf16.msra.mxu0 %v8453
    %9359 = vmatpush.bf16.msra.mxu0 %v8449
    %9360 = vmatpush.bf16.msra.mxu0 %v8445
    %9361 = vmatpush.bf16.msra.mxu0 %v8441
    %9362 = vmatmul.bf16.gmra.mxu0 %v6952
    %v9363 = vpop.f32.mrf.mxu0
    %v9364 = vadd.f32 %v9351, %v9363
    %v9365 = vpop.f32.mrf.mxu0
    %9366 = vdwg.mxu0
    %9367 = vmatpush.bf16.msra.mxu0 %v8501
    %9368 = vmatpush.bf16.msra.mxu0 %v8497
    %9369 = vmatpush.bf16.msra.mxu0 %v8493
    %9370 = vmatpush.bf16.msra.mxu0 %v8489
    %9371 = vmatpush.bf16.msra.mxu0 %v8485
    %9372 = vmatpush.bf16.msra.mxu0 %v8481
    %9373 = vmatpush.bf16.msra.mxu0 %v8477
    %9374 = vmatpush.bf16.msra.mxu0 %v8473
    %9375 = vmatmul.bf16.gmra.mxu0 %v6953
    %v9376 = vpop.f32.mrf.mxu0
    %v9377 = vadd.f32 %v9364, %v9376
    %v9378 = vpop.f32.mrf.mxu0
    %9379 = vdwg.mxu0
    %9380 = vmatpush.bf16.msra.mxu0 %v8533
    %9381 = vmatpush.bf16.msra.mxu0 %v8529
    %9382 = vmatpush.bf16.msra.mxu0 %v8525
    %9383 = vmatpush.bf16.msra.mxu0 %v8521
    %9384 = vmatpush.bf16.msra.mxu0 %v8517
    %9385 = vmatpush.bf16.msra.mxu0 %v8513
    %9386 = vmatpush.bf16.msra.mxu0 %v8509
    %9387 = vmatpush.bf16.msra.mxu0 %v8505
    %9388 = vmatmul.bf16.gmra.mxu0 %v6954
    %v9389 = vpop.f32.mrf.mxu0
    %v9390 = vadd.f32 %v9377, %v9389
    %v9391 = vpop.f32.mrf.mxu0
    %9392 = vdwg.mxu0
    %9393 = vmatpush.bf16.msra.mxu0 %v8565
    %9394 = vmatpush.bf16.msra.mxu0 %v8561
    %9395 = vmatpush.bf16.msra.mxu0 %v8557
    %9396 = vmatpush.bf16.msra.mxu0 %v8553
    %9397 = vmatpush.bf16.msra.mxu0 %v8549
    %9398 = vmatpush.bf16.msra.mxu0 %v8545
    %9399 = vmatpush.bf16.msra.mxu0 %v8541
    %9400 = vmatpush.bf16.msra.mxu0 %v8537
    %9401 = vmatmul.bf16.gmra.mxu0 %v6955
    %v9402 = vpop.f32.mrf.mxu0
    %v9403 = vadd.f32 %v9390, %v9402
    %v9404 = vpop.f32.mrf.mxu0
    %9405 = vdwg.mxu0
    %v9406 = vmax.f32 %v9013, 0.0
    %v9407 = vmax.f32 %v9143, 0.0
    %v9408 = vmax.f32 %v9273, 0.0
    %v9409 = vmax.f32 %v9403, 0.0
    %v9410 = vpack.c.bf16 %v9406, %v9406
    %v9411 = vpack.c.bf16 %v9407, %v9407
    %v9412 = vpack.c.bf16 %v9408, %v9408
    %v9413 = vpack.c.bf16 %v9409, %v9409
    %v9414 = vld [vmem:[#allocation15] sm:$0xf]
    %v9415 = vld [vmem:[#allocation15 + $0x4] sm:$0xf]
    %v9416 = vld [vmem:[#allocation15 + $0x8] sm:$0xf]
    %v9417 = vld [vmem:[#allocation15 + $0xc] sm:$0xf]
    %v9418 = vld [vmem:[#allocation15 + $0x10] sm:$0xf]
    %v9419 = vld [vmem:[#allocation15 + $0x14] sm:$0xf]
    %v9420 = vld [vmem:[#allocation15 + $0x18] sm:$0xf]
    %v9421 = vld [vmem:[#allocation15 + $0x1c] sm:$0xf]
    %v9422 = vld [vmem:[#allocation15 + $0x20] sm:$0xf]
    %v9423 = vld [vmem:[#allocation15 + $0x24] sm:$0xf]
    %v9424 = vld [vmem:[#allocation15 + $0x28] sm:$0xf]
    %v9425 = vld [vmem:[#allocation15 + $0x2c] sm:$0xf]
    %v9426 = vld [vmem:[#allocation15 + $0x30] sm:$0xf]
    %v9427 = vld [vmem:[#allocation15 + $0x34] sm:$0xf]
    %v9428 = vld [vmem:[#allocation15 + $0x38] sm:$0xf]
    %v9429 = vld [vmem:[#allocation15 + $0x3c] sm:$0xf]
    %v9430 = vld [vmem:[#allocation15 + $0x40] sm:$0xf]
    %v9431 = vld [vmem:[#allocation15 + $0x44] sm:$0xf]
    %v9432 = vld [vmem:[#allocation15 + $0x48] sm:$0xf]
    %v9433 = vld [vmem:[#allocation15 + $0x4c] sm:$0xf]
    %v9434 = vld [vmem:[#allocation15 + $0x50] sm:$0xf]
    %v9435 = vld [vmem:[#allocation15 + $0x54] sm:$0xf]
    %v9436 = vld [vmem:[#allocation15 + $0x58] sm:$0xf]
    %v9437 = vld [vmem:[#allocation15 + $0x5c] sm:$0xf]
    %v9438 = vld [vmem:[#allocation15 + $0x60] sm:$0xf]
    %v9439 = vld [vmem:[#allocation15 + $0x64] sm:$0xf]
    %v9440 = vld [vmem:[#allocation15 + $0x68] sm:$0xf]
    %v9441 = vld [vmem:[#allocation15 + $0x6c] sm:$0xf]
    %v9442 = vld [vmem:[#allocation15 + $0x70] sm:$0xf]
    %v9443 = vld [vmem:[#allocation15 + $0x74] sm:$0xf]
    %v9444 = vld [vmem:[#allocation15 + $0x78] sm:$0xf]
    %v9445 = vld [vmem:[#allocation15 + $0x7c] sm:$0xf]
    %v9446 = vld [vmem:[#allocation15 + $0x80] sm:$0xf]
    %v9447 = vld [vmem:[#allocation15 + $0x84] sm:$0xf]
    %v9448 = vld [vmem:[#allocation15 + $0x88] sm:$0xf]
    %v9449 = vld [vmem:[#allocation15 + $0x8c] sm:$0xf]
    %v9450 = vld [vmem:[#allocation15 + $0x90] sm:$0xf]
    %v9451 = vld [vmem:[#allocation15 + $0x94] sm:$0xf]
    %v9452 = vld [vmem:[#allocation15 + $0x98] sm:$0xf]
    %v9453 = vld [vmem:[#allocation15 + $0x9c] sm:$0xf]
    %v9454 = vld [vmem:[#allocation15 + $0xa0] sm:$0xf]
    %v9455 = vld [vmem:[#allocation15 + $0xa4] sm:$0xf]
    %v9456 = vld [vmem:[#allocation15 + $0xa8] sm:$0xf]
    %v9457 = vld [vmem:[#allocation15 + $0xac] sm:$0xf]
    %v9458 = vld [vmem:[#allocation15 + $0xb0] sm:$0xf]
    %v9459 = vld [vmem:[#allocation15 + $0xb4] sm:$0xf]
    %v9460 = vld [vmem:[#allocation15 + $0xb8] sm:$0xf]
    %v9461 = vld [vmem:[#allocation15 + $0xbc] sm:$0xf]
    %v9462 = vld [vmem:[#allocation15 + $0xc0] sm:$0xf]
    %v9463 = vld [vmem:[#allocation15 + $0xc4] sm:$0xf]
    %v9464 = vld [vmem:[#allocation15 + $0xc8] sm:$0xf]
    %v9465 = vld [vmem:[#allocation15 + $0xcc] sm:$0xf]
    %v9466 = vld [vmem:[#allocation15 + $0xd0] sm:$0xf]
    %v9467 = vld [vmem:[#allocation15 + $0xd4] sm:$0xf]
    %v9468 = vld [vmem:[#allocation15 + $0xd8] sm:$0xf]
    %v9469 = vld [vmem:[#allocation15 + $0xdc] sm:$0xf]
    %v9470 = vld [vmem:[#allocation15 + $0xe0] sm:$0xf]
    %v9471 = vld [vmem:[#allocation15 + $0xe4] sm:$0xf]
    %v9472 = vld [vmem:[#allocation15 + $0xe8] sm:$0xf]
    %v9473 = vld [vmem:[#allocation15 + $0xec] sm:$0xf]
    %v9474 = vld [vmem:[#allocation15 + $0xf0] sm:$0xf]
    %v9475 = vld [vmem:[#allocation15 + $0xf4] sm:$0xf]
    %v9476 = vld [vmem:[#allocation15 + $0xf8] sm:$0xf]
    %v9477 = vld [vmem:[#allocation15 + $0xfc] sm:$0xf]
    %v9478 = vld [vmem:[#allocation16] sm:$0x1]
    %v9480 = vperm.slane %v9478, 0
    %v9546 = vunpack.c.l.b16 %v9414
    %v9547 = vunpack.c.l.b16 %v9415
    %v9548 = vunpack.c.l.b16 %v9416
    %v9549 = vunpack.c.l.b16 %v9417
    %v9550 = vunpack.c.l.b16 %v9418
    %v9551 = vunpack.c.l.b16 %v9419
    %v9552 = vunpack.c.l.b16 %v9420
    %v9553 = vunpack.c.l.b16 %v9421
    %v9554 = vunpack.c.l.b16 %v9422
    %v9555 = vunpack.c.l.b16 %v9423
    %v9556 = vunpack.c.l.b16 %v9424
    %v9557 = vunpack.c.l.b16 %v9425
    %v9558 = vunpack.c.l.b16 %v9426
    %v9559 = vunpack.c.l.b16 %v9427
    %v9560 = vunpack.c.l.b16 %v9428
    %v9561 = vunpack.c.l.b16 %v9429
    %v9562 = vunpack.c.l.b16 %v9430
    %v9563 = vunpack.c.l.b16 %v9431
    %v9564 = vunpack.c.l.b16 %v9432
    %v9565 = vunpack.c.l.b16 %v9433
    %v9566 = vunpack.c.l.b16 %v9434
    %v9567 = vunpack.c.l.b16 %v9435
    %v9568 = vunpack.c.l.b16 %v9436
    %v9569 = vunpack.c.l.b16 %v9437
    %v9570 = vunpack.c.l.b16 %v9438
    %v9571 = vunpack.c.l.b16 %v9439
    %v9572 = vunpack.c.l.b16 %v9440
    %v9573 = vunpack.c.l.b16 %v9441
    %v9574 = vunpack.c.l.b16 %v9442
    %v9575 = vunpack.c.l.b16 %v9443
    %v9576 = vunpack.c.l.b16 %v9444
    %v9577 = vunpack.c.l.b16 %v9445
    %v9578 = vunpack.c.l.b16 %v9446
    %v9579 = vunpack.c.l.b16 %v9447
    %v9580 = vunpack.c.l.b16 %v9448
    %v9581 = vunpack.c.l.b16 %v9449
    %v9582 = vunpack.c.l.b16 %v9450
    %v9583 = vunpack.c.l.b16 %v9451
    %v9584 = vunpack.c.l.b16 %v9452
    %v9585 = vunpack.c.l.b16 %v9453
    %v9586 = vunpack.c.l.b16 %v9454
    %v9587 = vunpack.c.l.b16 %v9455
    %v9588 = vunpack.c.l.b16 %v9456
    %v9589 = vunpack.c.l.b16 %v9457
    %v9590 = vunpack.c.l.b16 %v9458
    %v9591 = vunpack.c.l.b16 %v9459
    %v9592 = vunpack.c.l.b16 %v9460
    %v9593 = vunpack.c.l.b16 %v9461
    %v9594 = vunpack.c.l.b16 %v9462
    %v9595 = vunpack.c.l.b16 %v9463
    %v9596 = vunpack.c.l.b16 %v9464
    %v9597 = vunpack.c.l.b16 %v9465
    %v9598 = vunpack.c.l.b16 %v9466
    %v9599 = vunpack.c.l.b16 %v9467
    %v9600 = vunpack.c.l.b16 %v9468
    %v9601 = vunpack.c.l.b16 %v9469
    %v9602 = vunpack.c.l.b16 %v9470
    %v9603 = vunpack.c.l.b16 %v9471
    %v9604 = vunpack.c.l.b16 %v9472
    %v9605 = vunpack.c.l.b16 %v9473
    %v9606 = vunpack.c.l.b16 %v9474
    %v9607 = vunpack.c.l.b16 %v9475
    %v9608 = vunpack.c.l.b16 %v9476
    %v9609 = vunpack.c.l.b16 %v9477
    %v9610 = vpack.c.b16 %v9547, %v9546
    %v9611 = vpack.c.b16 %v9549, %v9548
    %v9612 = vpack.c.b16 %v9551, %v9550
    %v9613 = vpack.c.b16 %v9553, %v9552
    %v9614 = vpack.c.b16 %v9555, %v9554
    %v9615 = vpack.c.b16 %v9557, %v9556
    %v9616 = vpack.c.b16 %v9559, %v9558
    %v9617 = vpack.c.b16 %v9561, %v9560
    %v9618 = vpack.c.b16 %v9563, %v9562
    %v9619 = vpack.c.b16 %v9565, %v9564
    %v9620 = vpack.c.b16 %v9567, %v9566
    %v9621 = vpack.c.b16 %v9569, %v9568
    %v9622 = vpack.c.b16 %v9571, %v9570
    %v9623 = vpack.c.b16 %v9573, %v9572
    %v9624 = vpack.c.b16 %v9575, %v9574
    %v9625 = vpack.c.b16 %v9577, %v9576
    %v9626 = vpack.c.b16 %v9579, %v9578
    %v9627 = vpack.c.b16 %v9581, %v9580
    %v9628 = vpack.c.b16 %v9583, %v9582
    %v9629 = vpack.c.b16 %v9585, %v9584
    %v9630 = vpack.c.b16 %v9587, %v9586
    %v9631 = vpack.c.b16 %v9589, %v9588
    %v9632 = vpack.c.b16 %v9591, %v9590
    %v9633 = vpack.c.b16 %v9593, %v9592
    %v9634 = vpack.c.b16 %v9595, %v9594
    %v9635 = vpack.c.b16 %v9597, %v9596
    %v9636 = vpack.c.b16 %v9599, %v9598
    %v9637 = vpack.c.b16 %v9601, %v9600
    %v9638 = vpack.c.b16 %v9603, %v9602
    %v9639 = vpack.c.b16 %v9605, %v9604
    %v9640 = vpack.c.b16 %v9607, %v9606
    %v9641 = vpack.c.b16 %v9609, %v9608
    %9674 = vmatpush.bf16.msra.mxu0 %v9617
    %9675 = vmatpush.bf16.msra.mxu0 %v9616
    %9676 = vmatpush.bf16.msra.mxu0 %v9615
    %9677 = vmatpush.bf16.msra.mxu0 %v9614
    %9678 = vmatpush.bf16.msra.mxu0 %v9613
    %9679 = vmatpush.bf16.msra.mxu0 %v9612
    %9680 = vmatpush.bf16.msra.mxu0 %v9611
    %9681 = vmatpush.bf16.msra.mxu0 %v9610
    %9682 = vmatmul.bf16.gmra.mxu0 %v9410
    %v9683 = vpop.f32.mrf.mxu0
    %v9684 = vadd.f32 %v9480, %v9683
    %v9685 = vpop.f32.mrf.mxu0
    %9686 = vdwg.mxu0
    %9687 = vmatpush.bf16.msra.mxu0 %v9625
    %9688 = vmatpush.bf16.msra.mxu0 %v9624
    %9689 = vmatpush.bf16.msra.mxu0 %v9623
    %9690 = vmatpush.bf16.msra.mxu0 %v9622
    %9691 = vmatpush.bf16.msra.mxu0 %v9621
    %9692 = vmatpush.bf16.msra.mxu0 %v9620
    %9693 = vmatpush.bf16.msra.mxu0 %v9619
    %9694 = vmatpush.bf16.msra.mxu0 %v9618
    %9695 = vmatmul.bf16.gmra.mxu0 %v9411
    %v9696 = vpop.f32.mrf.mxu0
    %v9697 = vadd.f32 %v9684, %v9696
    %v9698 = vpop.f32.mrf.mxu0
    %9699 = vdwg.mxu0
    %9700 = vmatpush.bf16.msra.mxu0 %v9633
    %9701 = vmatpush.bf16.msra.mxu0 %v9632
    %9702 = vmatpush.bf16.msra.mxu0 %v9631
    %9703 = vmatpush.bf16.msra.mxu0 %v9630
    %9704 = vmatpush.bf16.msra.mxu0 %v9629
    %9705 = vmatpush.bf16.msra.mxu0 %v9628
    %9706 = vmatpush.bf16.msra.mxu0 %v9627
    %9707 = vmatpush.bf16.msra.mxu0 %v9626
    %9708 = vmatmul.bf16.gmra.mxu0 %v9412
    %v9709 = vpop.f32.mrf.mxu0
    %v9710 = vadd.f32 %v9697, %v9709
    %v9711 = vpop.f32.mrf.mxu0
    %9712 = vdwg.mxu0
    %9713 = vmatpush.bf16.msra.mxu0 %v9641
    %9714 = vmatpush.bf16.msra.mxu0 %v9640
    %9715 = vmatpush.bf16.msra.mxu0 %v9639
    %9716 = vmatpush.bf16.msra.mxu0 %v9638
    %9717 = vmatpush.bf16.msra.mxu0 %v9637
    %9718 = vmatpush.bf16.msra.mxu0 %v9636
    %9719 = vmatpush.bf16.msra.mxu0 %v9635
    %9720 = vmatpush.bf16.msra.mxu0 %v9634
    %9721 = vmatmul.bf16.gmra.mxu0 %v9413
    %v9722 = vpop.f32.mrf.mxu0
    %v9723 = vadd.f32 %v9710, %v9722
    %v9724 = vpop.f32.mrf.mxu0
    %9725 = vdwg.mxu0
    %v9726 = vmax.f32 %v9723, 0.0
    %v9727 = vpack.c.bf16 %v9726, %v9726
    %v9728 = vld [vmem:[#allocation18] sm:$0xf]
    %v9729 = vld [vmem:[#allocation18 + $0x4] sm:$0xf]
    %v9730 = vld [vmem:[#allocation18 + $0x8] sm:$0xf]
    %v9731 = vld [vmem:[#allocation18 + $0xc] sm:$0xf]
    %v9732 = vld [vmem:[#allocation18 + $0x10] sm:$0xf]
    %v9733 = vld [vmem:[#allocation18 + $0x14] sm:$0xf]
    %v9734 = vld [vmem:[#allocation18 + $0x18] sm:$0xf]
    %v9735 = vld [vmem:[#allocation18 + $0x1c] sm:$0xf]
    %v9736 = vld [vmem:[#allocation18 + $0x20] sm:$0xf]
    %v9737 = vld [vmem:[#allocation18 + $0x24] sm:$0xf]
    %v9738 = vld [vmem:[#allocation18 + $0x28] sm:$0xf]
    %v9739 = vld [vmem:[#allocation18 + $0x2c] sm:$0xf]
    %v9740 = vld [vmem:[#allocation18 + $0x30] sm:$0xf]
    %v9741 = vld [vmem:[#allocation18 + $0x34] sm:$0xf]
    %v9742 = vld [vmem:[#allocation18 + $0x38] sm:$0xf]
    %v9743 = vld [vmem:[#allocation18 + $0x3c] sm:$0xf]
    %v9744 = vld [vmem:[#allocation19] sm:$0x1]
    %v9746 = vperm.slane %v9744, 0
    %v9764 = vunpack.c.l.b16 %v9728
    %v9765 = vunpack.c.l.b16 %v9729
    %v9766 = vunpack.c.l.b16 %v9730
    %v9767 = vunpack.c.l.b16 %v9731
    %v9768 = vunpack.c.l.b16 %v9732
    %v9769 = vunpack.c.l.b16 %v9733
    %v9770 = vunpack.c.l.b16 %v9734
    %v9771 = vunpack.c.l.b16 %v9735
    %v9772 = vunpack.c.l.b16 %v9736
    %v9773 = vunpack.c.l.b16 %v9737
    %v9774 = vunpack.c.l.b16 %v9738
    %v9775 = vunpack.c.l.b16 %v9739
    %v9776 = vunpack.c.l.b16 %v9740
    %v9777 = vunpack.c.l.b16 %v9741
    %v9778 = vunpack.c.l.b16 %v9742
    %v9779 = vunpack.c.l.b16 %v9743
    %v9780 = vpack.c.b16 %v9765, %v9764
    %v9781 = vpack.c.b16 %v9767, %v9766
    %v9782 = vpack.c.b16 %v9769, %v9768
    %v9783 = vpack.c.b16 %v9771, %v9770
    %v9784 = vpack.c.b16 %v9773, %v9772
    %v9785 = vpack.c.b16 %v9775, %v9774
    %v9786 = vpack.c.b16 %v9777, %v9776
    %v9787 = vpack.c.b16 %v9779, %v9778
    %9796 = vmatpush.bf16.msra.mxu0 %v9787
    %9797 = vmatpush.bf16.msra.mxu0 %v9786
    %9798 = vmatpush.bf16.msra.mxu0 %v9785
    %9799 = vmatpush.bf16.msra.mxu0 %v9784
    %9800 = vmatpush.bf16.msra.mxu0 %v9783
    %9801 = vmatpush.bf16.msra.mxu0 %v9782
    %9802 = vmatpush.bf16.msra.mxu0 %v9781
    %9803 = vmatpush.bf16.msra.mxu0 %v9780
    %9804 = vmatmul.bf16.gmra.mxu0 %v9727
    %v9805 = vpop.f32.mrf.mxu0
    %v9806 = vadd.f32 %v9746, %v9805
    %v9807 = vpop.f32.mrf.mxu0
    %9808 = vdwg.mxu0
    %9809 = vmax.xlane.f32.xlu0 %v9806
    %v9810 = vpop.xlane.xlu0 %9809
    %v9811 = vsub.f32 %v9806, %v9810
    %v9812 = vmul.f32 %v9811, 1.442695
    %v9813 = vpow.pop %v9812
    %9814 = vadd.xlane.f32.xlu0 %v9813
    %v9815 = vpop.xlane.xlu0 %9814
    %v9816 = vlog2.pop %v9815
    %v9817 = vmul.f32 %v9816, 0.6931472
    %v9818 = vsub.f32 %v9811, %v9817
    %9819 = vst [vmem:[%s13] sm:$0xff] %v9818
    // Predicated region
    $region102: #{mlp_forward.1} parent=1 // pred_check
      _
    $region103: #{mlp_forward.1} parent=1 // pred_check_branch
      %9821 = sbr.rel (0) target = $region105
    $region104: #{mlp_forward.1} parent=1 // pred_region
      _
    $region105: #{mlp_forward.1} parent=1 // pred_fallthru
      _
    // Predicated region
    $region106: #{mlp_forward.1} parent=1 // pred_check
      _
    $region107: #{mlp_forward.1} parent=1 // pred_check_branch
      %9823 = sbr.rel (0) target = $region109
    $region108: #{mlp_forward.1} parent=1 // pred_region
      _
    $region109: #{mlp_forward.1} parent=1 // pred_fallthru
      _
    %9824 = vsyncpa [#allocation3], 1
    %9825 = vsyncpa [#allocation5], 1
    %9826 = vsyncpa [#allocation8], 1
    %9827 = vsyncpa [#allocation11], 1
    %9828 = vsyncpa [#allocation14], 1
    %9829 = vsyncpa [#allocation17], 1
    %9830 = vsyncpa [#allocation20], 1

</llo_original>
